<compile_context>
chip_gen: v6e
topology: v6e:2x2x1
jax: 0.10.0
libtpu: 0.0.40
codegen_flags: <defaults>
</compile_context>

<pallas_src>
import functools

import jax
import jax.numpy as jnp
from jax.experimental import pallas as pl
from jax.experimental.pallas import tpu as pltpu

NUM_PATCHES = 196        # (224/16)^2  -- hard-coded by the SE layers in the module
EMBED = 768              # ViT-base embed dim (hard-coded by SE2 / pooling)
KDIM = 3 * 16 * 16       # flattened conv kernel (== 768)
SE_HIDDEN = 16
BOTTLENECK = 512
NUM_CLASSES = 2
PATCH_SIZE = 16


# ----------------------------------------------------------------------------
# Fused kernel: Spp_patch2 (conv-proj-as-matmul + SE re-weighting) + mean-token
# pooling + feature_embedder + classifier.  Grid over tiles of `bt` images.
# ----------------------------------------------------------------------------
def _fas_fused_kernel(patch_c, pixel_c, norm_flag,
                      patches_ref,   # (bt*196, 768) bf16
                      wp_ref,        # (768, 768)    bf16, resident
                      bp_ref,        # (1, 768)      f32  conv bias
                      w1t_ref,       # (bt*196, 16)  f32  w1a.T tiled per image
                      b1a_ref,       # (1, 16)       f32  b1a + mean(bp)*sum_p w1a[:,p]
                      w1bT_ref,      # (16, 196)     f32
                      b1b_ref,       # (1, 196)      f32
                      w2a_ref,       # (768, 16)     f32
                      b2a_ref,       # (1, 16)       f32
                      w2b_ref,       # (16, 768)     f32
                      b2b_ref,       # (1, 768)      f32
                      wb_ref,        # (768, 512)    bf16, resident
                      bb_ref,        # (1, 512)      f32
                      wcT_ref,       # (512, 2)      f32 (pre-l2-normalized if norm_flag)
                      bc_ref,        # (1, 2)        f32
                      cls_ref,       # (bt, 2)       f32 out
                      feat_ref):     # (bt, 512)     f32 out
    bt = feat_ref.shape[0]
    npr = patches_ref.shape[0]                  # bt * 196
    bp = bp_ref[...]                            # (1, 768)

    # ---- patch embedding: one batched bf16 matmul, f32 accumulation (MXU) ----
    # z is the bias-free projection; the bias is folded analytically below so the
    # (bt*196, 768) tensor is only ever consumed by matmuls.
    z = jnp.dot(patches_ref[...], wp_ref[...],
                preferred_element_type=jnp.float32)                    # (bt*196, 768)

    # Block-diagonal "which image owns row r" selector (bt, bt*196), built from iota
    # without integer division.
    col = jax.lax.broadcasted_iota(jnp.int32, (bt, npr), 1)
    row = jax.lax.broadcasted_iota(jnp.int32, (bt, npr), 0)
    lo = row * NUM_PATCHES
    bd = jnp.logical_and(col >= lo, col < lo + NUM_PATCHES).astype(jnp.float32)

    # ---- SE branch 1 (squeeze over embed, per patch) -------------------------
    #   p1[i,p] = mean_e(z + bp)[i*196+p, e]
    #   h1[i,h] = sum_p w1a[h,p] p1[i,p] + b1a[h]
    #           = (1/768) sum_{r in img i} colsum[r] * w1t[r,h] + b1a_eff[h]
    # (the bp contribution is pre-folded into b1a_eff in the wrapper)
    colsum = jnp.dot(z, jnp.ones((EMBED, 1), jnp.float32),
                     preferred_element_type=jnp.float32)               # (bt*196, 1)
    h1 = jnp.dot(bd, colsum * w1t_ref[...],
                 preferred_element_type=jnp.float32) * (1.0 / EMBED) + b1a_ref[...]
    h1 = jnp.maximum(h1, 0.0)                                          # (bt, 16)
    s1 = jax.nn.sigmoid(jnp.dot(h1, w1bT_ref[...],
                                preferred_element_type=jnp.float32)
                        + b1b_ref[...])                                # (bt, 196)

    # ---- per-image patch-mean p2 and s1-weighted sum sx as MXU matmuls -------
    # (could be stacked into a single (2bt, bt*196) x (bt*196, 768) dot; kept as two
    #  dots for layout simplicity -- the MXU has ample slack here)
    s1_tiled = jnp.concatenate([s1] * bt, axis=1)                      # (bt, bt*196)
    s1_sum = jnp.sum(s1, axis=1, keepdims=True)                        # (bt, 1)
    p2 = jnp.dot(bd, z, preferred_element_type=jnp.float32) * (1.0 / NUM_PATCHES) + bp
    sx = jnp.dot(bd * s1_tiled, z, preferred_element_type=jnp.float32) + s1_sum * bp

    # ---- SE branch 2 (squeeze over patches, per embed), batched over images --
    h2 = jnp.maximum(jnp.dot(p2, w2a_ref[...],
                             preferred_element_type=jnp.float32) + b2a_ref[...], 0.0)
    s2 = jax.nn.sigmoid(jnp.dot(h2, w2b_ref[...],
                                preferred_element_type=jnp.float32)
                        + b2b_ref[...])                                # (bt, 768)

    # ---- fused re-weighting + mean-token pooling ------------------------------
    #   mean_p[x*(1 + patch*s1 + pixel*s2)] = p2*(1 + pixel*s2) + (patch/196)*sx
    pooled = p2 * (1.0 + pixel_c * s2) + (patch_c / NUM_PATCHES) * sx  # (bt, 768)

    # ---- feature_embedder: Linear(768,512) + ReLU -----------------------------
    f = jnp.dot(pooled.astype(jnp.bfloat16), wb_ref[...],
                preferred_element_type=jnp.float32) + bb_ref[...]      # (bt, 512)
    f = jnp.maximum(f, 0.0)
    # TODO(synk): nn.Dropout(0.5) treated as inference-mode identity (stochastic in train).
    if norm_flag:
        # PyTorch: feature / (||f||_2.clamp(min=1e-12) ** 0.5 * 2 ** 0.5)
        nrm = jnp.sqrt(jnp.sum(f * f, axis=1, keepdims=True))
        f = f * jax.lax.rsqrt(jnp.maximum(nrm, 1e-12) * 2.0)
    feat_ref[...] = f

    # ---- classifier (weight already l2-normalized in the wrapper if norm_flag) --
    cls_ref[...] = jnp.dot(f, wcT_ref[...],
                           preferred_element_type=jnp.float32) + bc_ref[...]


def _pick_batch_tile(b):
    # 8 images keeps every block sublane-aligned (8 | bt and 8 | bt*196) and the
    # per-step working set (~2.4 MB bf16 patches + ~5 MB f32 intermediates +
    # ~2 MB resident weights) well inside the 32 MiB scoped-VMEM budget common to
    # v5e/v6e/v7x.  B >= 16 gives >=2 grid steps so v7x's two TensorCores both work.
    return 8 if b % 8 == 0 else b


def fas_model_weighting2_forward(x, params, patch, pixel, norm_flag=True):
    B = x.shape[0]
    patches = patchify(x)                                              # (B*196, 768) bf16

    # Pad large ragged batches up to a multiple of 8 (instead of one huge tile);
    # small batches run as a single full-size tile.
    Bp = B if (B % 8 == 0 or B <= 8) else ((B + 7) // 8) * 8
    if Bp != B:
        patches = jnp.pad(patches, ((0, (Bp - B) * NUM_PATCHES), (0, 0)))
    bt = _pick_batch_tile(Bp)

    # Wrapper-side folding (hoisted out of the kernel / grid loop):
    bp_row = params["bp"]                                              # (1, 768)
    bp_mean = jnp.mean(bp_row)
    w1t = jnp.tile(params["w1a"].T, (bt, 1))                           # (bt*196, 16)
    b1a_eff = params["b1a"] + bp_mean * jnp.sum(params["w1a"], axis=1)[None, :]
    wcT = params["wcT"]
    if norm_flag:                                                      # l2_norm(weight, axis=0)
        wcT = wcT / jnp.sqrt(jnp.sum(wcT * wcT, axis=1, keepdims=True))

    def const_spec(a):
        nd = a.ndim
        return pl.BlockSpec(a.shape, lambda g: (0,) * nd,
                            pipeline_mode=pl.Buffered(1))              # single-buffered weights

    flops = (2 * Bp * NUM_PATCHES * KDIM * EMBED                       # projection
             + 2 * Bp * NUM_PATCHES * EMBED * 3                        # reduction matmuls
             + 2 * Bp * (EMBED * BOTTLENECK + BOTTLENECK * NUM_CLASSES))
    bytes_accessed = (patches.size * 2
                      + Bp * (BOTTLENECK + NUM_CLASSES) * 4
                      + (KDIM * EMBED + EMBED * BOTTLENECK) * 2)
    cost = pl.CostEstimate(flops=int(flops),
                           transcendentals=int(Bp * (NUM_PATCHES + EMBED)),
                           bytes_accessed=int(bytes_accessed))

    kern = functools.partial(_fas_fused_kernel,
                             float(patch), float(pixel), bool(norm_flag))
    cls, feat512 = pl.pallas_call(
        kern,
        out_shape=(jax.ShapeDtypeStruct((Bp, NUM_CLASSES), jnp.float32),
                   jax.ShapeDtypeStruct((Bp, BOTTLENECK), jnp.float32)),
        grid=(Bp // bt,),
        in_specs=[
            pl.BlockSpec((bt * NUM_PATCHES, KDIM), lambda g: (g, 0)),
            const_spec(params["wp"]), const_spec(bp_row),
            const_spec(w1t), const_spec(b1a_eff),
            const_spec(params["w1bT"]), const_spec(params["b1b"]),
            const_spec(params["w2a"]), const_spec(params["b2a"]),
            const_spec(params["w2b"]), const_spec(params["b2b"]),
            const_spec(params["wb"]), const_spec(params["bb"]),
            const_spec(wcT), const_spec(params["bc"]),
        ],
        out_specs=(pl.BlockSpec((bt, NUM_CLASSES), lambda g: (g, 0)),
                   pl.BlockSpec((bt, BOTTLENECK), lambda g: (g, 0))),
        compiler_params=pltpu.CompilerParams(
            dimension_semantics=("parallel",),          # batch tiles are independent
            vmem_limit_bytes=32 * 1024 * 1024),
        cost_estimate=cost,
    )(patches, params["wp"], bp_row, w1t, b1a_eff,
      params["w1bT"], params["b1b"], params["w2a"], params["b2a"],
      params["w2b"], params["b2b"], params["wb"], params["bb"], wcT, params["bc"])

    # TODO(synk): the third_party ViT transformer blocks (gamma/beta adapters) and their
    # auxiliary total_loss have no in-script equivalent; stand in with mean token pooling
    # (fused into the kernel above) and a zero loss.
    total_loss = jnp.float32(0.0)
    return cls[:B], feat512[:B], total_loss


# ----------------------------------------------------------------------------
# Plain-JAX glue
# ----------------------------------------------------------------------------
def patchify(x):
    """NCHW (B,3,224,224) f32 -> flat (B*196, 768) bf16, K flattened (c, kh, kw)."""
    B, C, H, W = x.shape
    p = PATCH_SIZE
    x = x.astype(jnp.bfloat16)                        # cast BEFORE the relayout transpose
    x = x.reshape(B, C, H // p, p, W // p, p)
    x = x.transpose(0, 2, 4, 1, 3, 5)                 # (B, 14, 14, C, 16, 16)
    return x.reshape(B * (H // p) * (W // p), C * p * p)


def init_params(key):
    ks = jax.random.split(key, 8)
    f32 = jnp.float32
    # patch_embed.proj: Conv2d(3, 768, kernel_size=16, stride=16)
    wconv = jax.random.normal(ks[0], (EMBED, 3, PATCH_SIZE, PATCH_SIZE), f32) * 0.02
    bconv = jax.random.normal(ks[1], (EMBED,), f32) * 0.02
    # SE_zlf_1: Linear(196,16), Linear(16,196)
    w_se1_fc1 = jax.random.normal(ks[2], (SE_HIDDEN, NUM_PATCHES), f32) * 0.05
    b_se1_fc1 = jnp.zeros((SE_HIDDEN,), f32)
    w_se1_fc2 = jax.random.normal(ks[3], (NUM_PATCHES, SE_HIDDEN), f32) * 0.05
    b_se1_fc2 = jnp.zeros((NUM_PATCHES,), f32)
    # SE_zlf_2: Linear(768,16), Linear(16,768)
    w_se2_fc1 = jax.random.normal(ks[4], (SE_HIDDEN, EMBED), f32) * 0.05
    b_se2_fc1 = jnp.zeros((SE_HIDDEN,), f32)
    w_se2_fc2 = jax.random.normal(ks[5], (EMBED, SE_HIDDEN), f32) * 0.05
    b_se2_fc2 = jnp.zeros((EMBED,), f32)
    # feature_embedder: Linear(768,512), weight ~ N(0, 0.005), bias = 0.1
    w_bottle = jax.random.normal(ks[6], (BOTTLENECK, EMBED), f32) * 0.005
    b_bottle = jnp.full((BOTTLENECK,), 0.1, f32)
    # classifier: Linear(512,2), weight ~ N(0, 0.01), bias = 0
    w_cls = jax.random.normal(ks[7], (NUM_CLASSES, BOTTLENECK), f32) * 0.01
    b_cls = jnp.zeros((NUM_CLASSES,), f32)
    return {
        # big MXU weights stored in bf16 (f32 accumulation in-kernel)
        "wp":   wconv.reshape(EMBED, KDIM).T.astype(jnp.bfloat16),   # (768_in, 768_out)
        "bp":   bconv.reshape(1, EMBED),
        "w1a":  w_se1_fc1,                                           # (16, 196)
        "b1a":  b_se1_fc1.reshape(1, SE_HIDDEN),
        "w1bT": w_se1_fc2.T,                                         # (16, 196)
        "b1b":  b_se1_fc2.reshape(1, NUM_PATCHES),
        "w2a":  w_se2_fc1.T,                                         # (768, 16)
        "b2a":  b_se2_fc1.reshape(1, SE_HIDDEN),
        "w2b":  w_se2_fc2.T,                                         # (16, 768)
        "b2b":  b_se2_fc2.reshape(1, EMBED),
        "wb":   w_bottle.T.astype(jnp.bfloat16),                     # (768, 512)
        "bb":   b_bottle.reshape(1, BOTTLENECK),
        "wcT":  w_cls.T,                                             # (512, 2)
        "bc":   b_cls.reshape(1, NUM_CLASSES),
    }


# ----------------------------------------------------------------------------
# Pure-JAX reference (same bf16-rounded inputs) for a sanity check
# ----------------------------------------------------------------------------
def _reference_forward(x, params, patch, pixel, norm_flag=True):
    B = x.shape[0]
    pats = patchify(x).astype(jnp.float32).reshape(B, NUM_PATCHES, KDIM)
    wp = params["wp"].astype(jnp.float32)
    xe = jnp.einsum("bpk,ke->bpe", pats, wp,
                    precision=jax.lax.Precision.HIGHEST) + params["bp"]      # (B,196,768)
    p1 = jnp.mean(xe, axis=2)                                                # (B,196)
    h1 = jnp.maximum(p1 @ params["w1a"].T + params["b1a"], 0.0)              # (B,16)
    s1 = jax.nn.sigmoid(h1 @ params["w1bT"] + params["b1b"])                 # (B,196)
    p2 = jnp.mean(xe, axis=1)                                                # (B,768)
    h2 = jnp.maximum(p2 @ params["w2a"] + params["b2a"], 0.0)                # (B,16)
    s2 = jax.nn.sigmoid(h2 @ params["w2b"] + params["b2b"])                  # (B,768)
    out = xe * (1.0 + patch * s1[:, :, None] + pixel * s2[:, None, :])
    feat768 = jnp.mean(out, axis=1)                                          # (B,768)

    f = feat768.astype(jnp.bfloat16).astype(jnp.float32) @ params["wb"].astype(jnp.float32)
    f = jnp.maximum(f + params["bb"], 0.0)
    if norm_flag:
        nrm = jnp.sqrt(jnp.sum(f * f, axis=1, keepdims=True))
        f = f / (jnp.sqrt(jnp.maximum(nrm, 1e-12)) * (2.0 ** 0.5))
    wcT = params["wcT"]
    if norm_flag:
        wcT = wcT / jnp.sqrt(jnp.sum(wcT * wcT, axis=1, keepdims=True))
    cls = f @ wcT + params["bc"]
    return cls, f


if __name__ == "__main__":
    key = jax.random.PRNGKey(0)
    kx, kp = jax.random.split(key)
    params = init_params(kp)
    # 224x224x3 is forced by the module (SE layers hard-code 196 patches / 768 dims).
    x = jax.random.normal(kx, (2, 3, 224, 224), jnp.float32)          # NCHW like PyTorch
    patch_w, pixel_w = 0.5, 0.3

    cls_out, feat512, total_loss = fas_model_weighting2_forward(
        x, params, patch_w, pixel_w, norm_flag=True)
    jax.block_until_ready((cls_out, feat512, total_loss))

    assert cls_out.shape == (2, NUM_CLASSES)
    assert feat512.shape == (2, BOTTLENECK)
    assert bool(jnp.all(jnp.isfinite(cls_out))) and bool(jnp.all(jnp.isfinite(feat512)))

    cls_ref, feat_ref = _reference_forward(x, params, patch_w, pixel_w, norm_flag=True)
    assert bool(jnp.allclose(cls_out, cls_ref, rtol=5e-2, atol=5e-2))
    assert bool(jnp.allclose(feat512, feat_ref, rtol=5e-2, atol=5e-2))

    print("KERNEL_OK")
</pallas_src>

<mosaic_0001>
module attributes {stable_mosaic.version = 11 : i64} {
  func.func @_fas_fused_kernel(%arg0: i32, %arg1: memref<392x768xbf16, #tpu.memory_space<vmem>>, %arg2: memref<768x768xbf16, #tpu.memory_space<vmem>>, %arg3: memref<1x768xf32, #tpu.memory_space<vmem>>, %arg4: memref<392x16xf32, #tpu.memory_space<vmem>>, %arg5: memref<1x16xf32, #tpu.memory_space<vmem>>, %arg6: memref<16x196xf32, #tpu.memory_space<vmem>>, %arg7: memref<1x196xf32, #tpu.memory_space<vmem>>, %arg8: memref<768x16xf32, #tpu.memory_space<vmem>>, %arg9: memref<1x16xf32, #tpu.memory_space<vmem>>, %arg10: memref<16x768xf32, #tpu.memory_space<vmem>>, %arg11: memref<1x768xf32, #tpu.memory_space<vmem>>, %arg12: memref<768x512xbf16, #tpu.memory_space<vmem>>, %arg13: memref<1x512xf32, #tpu.memory_space<vmem>>, %arg14: memref<512x2xf32, #tpu.memory_space<vmem>>, %arg15: memref<1x2xf32, #tpu.memory_space<vmem>>, %arg16: memref<2x2xf32, #tpu.memory_space<vmem>>, %arg17: memref<2x512xf32, #tpu.memory_space<vmem>>) attributes {dimension_semantics = [#tpu.dimension_semantics<parallel>], iteration_bounds = array<i64: 1>, scalar_prefetch = 0 : i64, scratch_operands = 0 : i64, tpu.core_type = #tpu.core_type<tc>, window_params = [{transform_indices = @transform_0, window_bounds = array<i64: 392, 768>}, {pipeline_mode = #tpu.pipeline_mode<synchronous>, transform_indices = @transform_1, window_bounds = array<i64: 768, 768>}, {pipeline_mode = #tpu.pipeline_mode<synchronous>, transform_indices = @transform_2, window_bounds = array<i64: 1, 768>}, {pipeline_mode = #tpu.pipeline_mode<synchronous>, transform_indices = @transform_3, window_bounds = array<i64: 392, 16>}, {pipeline_mode = #tpu.pipeline_mode<synchronous>, transform_indices = @transform_4, window_bounds = array<i64: 1, 16>}, {pipeline_mode = #tpu.pipeline_mode<synchronous>, transform_indices = @transform_5, window_bounds = array<i64: 16, 196>}, {pipeline_mode = #tpu.pipeline_mode<synchronous>, transform_indices = @transform_6, window_bounds = array<i64: 1, 196>}, {pipeline_mode = #tpu.pipeline_mode<synchronous>, transform_indices = @transform_7, window_bounds = array<i64: 768, 16>}, {pipeline_mode = #tpu.pipeline_mode<synchronous>, transform_indices = @transform_8, window_bounds = array<i64: 1, 16>}, {pipeline_mode = #tpu.pipeline_mode<synchronous>, transform_indices = @transform_9, window_bounds = array<i64: 16, 768>}, {pipeline_mode = #tpu.pipeline_mode<synchronous>, transform_indices = @transform_10, window_bounds = array<i64: 1, 768>}, {pipeline_mode = #tpu.pipeline_mode<synchronous>, transform_indices = @transform_11, window_bounds = array<i64: 768, 512>}, {pipeline_mode = #tpu.pipeline_mode<synchronous>, transform_indices = @transform_12, window_bounds = array<i64: 1, 512>}, {pipeline_mode = #tpu.pipeline_mode<synchronous>, transform_indices = @transform_13, window_bounds = array<i64: 512, 2>}, {pipeline_mode = #tpu.pipeline_mode<synchronous>, transform_indices = @transform_14, window_bounds = array<i64: 1, 2>}, {transform_indices = @transform_15, window_bounds = array<i64: 2, 2>}, {transform_indices = @transform_16, window_bounds = array<i64: 2, 512>}]} {
    %c0 = arith.constant 0 : index
    %c0_0 = arith.constant 0 : index
    %0 = vector.load %arg3[%c0, %c0_0] : memref<1x768xf32, #tpu.memory_space<vmem>>, vector<1x768xf32>
    %c0_1 = arith.constant 0 : index
    %c0_2 = arith.constant 0 : index
    %1 = vector.load %arg1[%c0_1, %c0_2] : memref<392x768xbf16, #tpu.memory_space<vmem>>, vector<392x768xbf16>
    %c0_3 = arith.constant 0 : index
    %c0_4 = arith.constant 0 : index
    %2 = vector.load %arg2[%c0_3, %c0_4] : memref<768x768xbf16, #tpu.memory_space<vmem>>, vector<768x768xbf16>
    %cst = arith.constant dense<0.000000e+00> : vector<392x768xf32>
    %3 = tpu.matmul %1, %2, %cst {dimension_numbers = #tpu.dot_dimension_numbers<[1], [0], [0], [1], [0, 0, 1, 1], [], []>} : vector<392x768xbf16>, vector<768x768xbf16>, vector<392x768xf32> -> vector<392x768xf32>
    %4 = tpu.iota {dimensions = array<i32: 1>} : vector<2x392xi32>
    %5 = tpu.iota {dimensions = array<i32: 0>} : vector<2x392xi32>
    %c196_i32 = arith.constant 196 : i32
    %6 = vector.broadcast %c196_i32 : i32 to vector<2x392xi32>
    %7 = arith.muli %5, %6 : vector<2x392xi32>
    %8 = arith.cmpi sge, %4, %7 : vector<2x392xi32>
    %c196_i32_5 = arith.constant 196 : i32
    %9 = vector.broadcast %c196_i32_5 : i32 to vector<2x392xi32>
    %10 = arith.addi %7, %9 : vector<2x392xi32>
    %11 = arith.cmpi slt, %4, %10 : vector<2x392xi32>
    %12 = arith.andi %8, %11 : vector<2x392xi1>
    %13 = arith.extui %12 : vector<2x392xi1> to vector<2x392xi32>
    %14 = arith.sitofp %13 : vector<2x392xi32> to vector<2x392xf32>
    %cst_6 = arith.constant 1.000000e+00 : f32
    %15 = vector.broadcast %cst_6 : f32 to vector<768x1xf32>
    %cst_7 = arith.constant dense<0.000000e+00> : vector<392x1xf32>
    %16 = tpu.matmul %3, %15, %cst_7 {dimension_numbers = #tpu.dot_dimension_numbers<[1], [0], [0], [1], [0, 0, 1, 1], [], []>} : vector<392x768xf32>, vector<768x1xf32>, vector<392x1xf32> -> vector<392x1xf32>
    %c0_8 = arith.constant 0 : index
    %c0_9 = arith.constant 0 : index
    %17 = vector.load %arg4[%c0_8, %c0_9] : memref<392x16xf32, #tpu.memory_space<vmem>>, vector<392x16xf32>
    %18 = vector.broadcast %16 : vector<392x1xf32> to vector<392x16xf32>
    %19 = arith.mulf %18, %17 : vector<392x16xf32>
    %cst_10 = arith.constant dense<0.000000e+00> : vector<2x16xf32>
    %20 = tpu.matmul %14, %19, %cst_10 {dimension_numbers = #tpu.dot_dimension_numbers<[1], [0], [0], [1], [0, 0, 1, 1], [], []>} : vector<2x392xf32>, vector<392x16xf32>, vector<2x16xf32> -> vector<2x16xf32>
    %cst_11 = arith.constant 0.00130208337 : f32
    %21 = vector.broadcast %cst_11 : f32 to vector<2x16xf32>
    %22 = arith.mulf %20, %21 : vector<2x16xf32>
    %c0_12 = arith.constant 0 : index
    %c0_13 = arith.constant 0 : index
    %23 = vector.load %arg5[%c0_12, %c0_13] : memref<1x16xf32, #tpu.memory_space<vmem>>, vector<1x16xf32>
    %24 = vector.broadcast %23 : vector<1x16xf32> to vector<2x16xf32>
    %25 = arith.addf %22, %24 : vector<2x16xf32>
    %cst_14 = arith.constant 0.000000e+00 : f32
    %26 = vector.broadcast %cst_14 : f32 to vector<2x16xf32>
    %27 = arith.maximumf %25, %26 : vector<2x16xf32>
    %c0_15 = arith.constant 0 : index
    %c0_16 = arith.constant 0 : index
    %28 = vector.load %arg6[%c0_15, %c0_16] : memref<16x196xf32, #tpu.memory_space<vmem>>, vector<16x196xf32>
    %cst_17 = arith.constant dense<0.000000e+00> : vector<2x196xf32>
    %29 = tpu.matmul %27, %28, %cst_17 {dimension_numbers = #tpu.dot_dimension_numbers<[1], [0], [0], [1], [0, 0, 1, 1], [], []>} : vector<2x16xf32>, vector<16x196xf32>, vector<2x196xf32> -> vector<2x196xf32>
    %c0_18 = arith.constant 0 : index
    %c0_19 = arith.constant 0 : index
    %30 = vector.load %arg7[%c0_18, %c0_19] : memref<1x196xf32, #tpu.memory_space<vmem>>, vector<1x196xf32>
    %31 = vector.broadcast %30 : vector<1x196xf32> to vector<2x196xf32>
    %32 = arith.addf %29, %31 : vector<2x196xf32>
    %33 = arith.negf %32 : vector<2x196xf32>
    %34 = math.exp %33 : vector<2x196xf32>
    %cst_20 = arith.constant 1.000000e+00 : f32
    %35 = vector.broadcast %cst_20 : f32 to vector<2x196xf32>
    %36 = arith.addf %35, %34 : vector<2x196xf32>
    %37 = arith.divf %35, %36 : vector<2x196xf32>
    %38 = tpu.concatenate %37, %37 in 1 : vector<2x196xf32>, vector<2x196xf32> -> vector<2x392xf32>
    %cst_21 = arith.constant dense<0.000000e+00> : vector<2xf32>
    %39 = vector.multi_reduction <add>, %37, %cst_21 [1] : vector<2x196xf32> to vector<2xf32>
    %40 = vector.shape_cast %39 : vector<2xf32> to vector<2x1xf32>
    %cst_22 = arith.constant dense<0.000000e+00> : vector<2x768xf32>
    %41 = tpu.matmul %14, %3, %cst_22 {dimension_numbers = #tpu.dot_dimension_numbers<[1], [0], [0], [1], [0, 0, 1, 1], [], []>} : vector<2x392xf32>, vector<392x768xf32>, vector<2x768xf32> -> vector<2x768xf32>
    %cst_23 = arith.constant 0.00510204071 : f32
    %42 = vector.broadcast %cst_23 : f32 to vector<2x768xf32>
    %43 = arith.mulf %41, %42 : vector<2x768xf32>
    %44 = vector.broadcast %0 : vector<1x768xf32> to vector<2x768xf32>
    %45 = arith.addf %43, %44 : vector<2x768xf32>
    %46 = arith.mulf %14, %38 : vector<2x392xf32>
    %cst_24 = arith.constant dense<0.000000e+00> : vector<2x768xf32>
    %47 = tpu.matmul %46, %3, %cst_24 {dimension_numbers = #tpu.dot_dimension_numbers<[1], [0], [0], [1], [0, 0, 1, 1], [], []>} : vector<2x392xf32>, vector<392x768xf32>, vector<2x768xf32> -> vector<2x768xf32>
    %48 = vector.broadcast %40 : vector<2x1xf32> to vector<2x768xf32>
    %49 = vector.broadcast %0 : vector<1x768xf32> to vector<2x768xf32>
    %50 = arith.mulf %48, %49 : vector<2x768xf32>
    %51 = arith.addf %47, %50 : vector<2x768xf32>
    %c0_25 = arith.constant 0 : index
    %c0_26 = arith.constant 0 : index
    %52 = vector.load %arg8[%c0_25, %c0_26] : memref<768x16xf32, #tpu.memory_space<vmem>>, vector<768x16xf32>
    %cst_27 = arith.constant dense<0.000000e+00> : vector<2x16xf32>
    %53 = tpu.matmul %45, %52, %cst_27 {dimension_numbers = #tpu.dot_dimension_numbers<[1], [0], [0], [1], [0, 0, 1, 1], [], []>} : vector<2x768xf32>, vector<768x16xf32>, vector<2x16xf32> -> vector<2x16xf32>
    %c0_28 = arith.constant 0 : index
    %c0_29 = arith.constant 0 : index
    %54 = vector.load %arg9[%c0_28, %c0_29] : memref<1x16xf32, #tpu.memory_space<vmem>>, vector<1x16xf32>
    %55 = vector.broadcast %54 : vector<1x16xf32> to vector<2x16xf32>
    %56 = arith.addf %53, %55 : vector<2x16xf32>
    %cst_30 = arith.constant 0.000000e+00 : f32
    %57 = vector.broadcast %cst_30 : f32 to vector<2x16xf32>
    %58 = arith.maximumf %56, %57 : vector<2x16xf32>
    %c0_31 = arith.constant 0 : index
    %c0_32 = arith.constant 0 : index
    %59 = vector.load %arg10[%c0_31, %c0_32] : memref<16x768xf32, #tpu.memory_space<vmem>>, vector<16x768xf32>
    %cst_33 = arith.constant dense<0.000000e+00> : vector<2x768xf32>
    %60 = tpu.matmul %58, %59, %cst_33 {dimension_numbers = #tpu.dot_dimension_numbers<[1], [0], [0], [1], [0, 0, 1, 1], [], []>} : vector<2x16xf32>, vector<16x768xf32>, vector<2x768xf32> -> vector<2x768xf32>
    %c0_34 = arith.constant 0 : index
    %c0_35 = arith.constant 0 : index
    %61 = vector.load %arg11[%c0_34, %c0_35] : memref<1x768xf32, #tpu.memory_space<vmem>>, vector<1x768xf32>
    %62 = vector.broadcast %61 : vector<1x768xf32> to vector<2x768xf32>
    %63 = arith.addf %60, %62 : vector<2x768xf32>
    %64 = arith.negf %63 : vector<2x768xf32>
    %65 = math.exp %64 : vector<2x768xf32>
    %cst_36 = arith.constant 1.000000e+00 : f32
    %66 = vector.broadcast %cst_36 : f32 to vector<2x768xf32>
    %67 = arith.addf %66, %65 : vector<2x768xf32>
    %68 = arith.divf %66, %67 : vector<2x768xf32>
    %cst_37 = arith.constant 3.000000e-01 : f32
    %69 = vector.broadcast %cst_37 : f32 to vector<2x768xf32>
    %70 = arith.mulf %69, %68 : vector<2x768xf32>
    %cst_38 = arith.constant 1.000000e+00 : f32
    %71 = vector.broadcast %cst_38 : f32 to vector<2x768xf32>
    %72 = arith.addf %71, %70 : vector<2x768xf32>
    %73 = arith.mulf %45, %72 : vector<2x768xf32>
    %cst_39 = arith.constant 0.00255102036 : f32
    %74 = vector.broadcast %cst_39 : f32 to vector<2x768xf32>
    %75 = arith.mulf %74, %51 : vector<2x768xf32>
    %76 = arith.addf %73, %75 : vector<2x768xf32>
    %77 = arith.truncf %76 : vector<2x768xf32> to vector<2x768xbf16>
    %c0_40 = arith.constant 0 : index
    %c0_41 = arith.constant 0 : index
    %78 = vector.load %arg12[%c0_40, %c0_41] : memref<768x512xbf16, #tpu.memory_space<vmem>>, vector<768x512xbf16>
    %cst_42 = arith.constant dense<0.000000e+00> : vector<2x512xf32>
    %79 = tpu.matmul %77, %78, %cst_42 {dimension_numbers = #tpu.dot_dimension_numbers<[1], [0], [0], [1], [0, 0, 1, 1], [], []>} : vector<2x768xbf16>, vector<768x512xbf16>, vector<2x512xf32> -> vector<2x512xf32>
    %c0_43 = arith.constant 0 : index
    %c0_44 = arith.constant 0 : index
    %80 = vector.load %arg13[%c0_43, %c0_44] : memref<1x512xf32, #tpu.memory_space<vmem>>, vector<1x512xf32>
    %81 = vector.broadcast %80 : vector<1x512xf32> to vector<2x512xf32>
    %82 = arith.addf %79, %81 : vector<2x512xf32>
    %cst_45 = arith.constant 0.000000e+00 : f32
    %83 = vector.broadcast %cst_45 : f32 to vector<2x512xf32>
    %84 = arith.maximumf %82, %83 : vector<2x512xf32>
    %85 = arith.mulf %84, %84 : vector<2x512xf32>
    %cst_46 = arith.constant dense<0.000000e+00> : vector<2xf32>
    %86 = vector.multi_reduction <add>, %85, %cst_46 [1] : vector<2x512xf32> to vector<2xf32>
    %87 = vector.shape_cast %86 : vector<2xf32> to vector<2x1xf32>
    %88 = math.sqrt %87 : vector<2x1xf32>
    %cst_47 = arith.constant 9.99999996E-13 : f32
    %89 = vector.broadcast %cst_47 : f32 to vector<2x1xf32>
    %90 = arith.maximumf %88, %89 : vector<2x1xf32>
    %cst_48 = arith.constant 2.000000e+00 : f32
    %91 = vector.broadcast %cst_48 : f32 to vector<2x1xf32>
    %92 = arith.mulf %90, %91 : vector<2x1xf32>
    %93 = math.rsqrt %92 : vector<2x1xf32>
    %94 = vector.broadcast %93 : vector<2x1xf32> to vector<2x512xf32>
    %95 = arith.mulf %84, %94 : vector<2x512xf32>
    %c0_49 = arith.constant 0 : index
    %c0_50 = arith.constant 0 : index
    %96 = vector.load %arg17[%c0_49, %c0_50] : memref<2x512xf32, #tpu.memory_space<vmem>>, vector<2x512xf32>
    tpu.vector_store %arg17[%c0_49, %c0_50], %95 {strides = array<i32>} : memref<2x512xf32, #tpu.memory_space<vmem>>, vector<2x512xf32>,
    %c0_51 = arith.constant 0 : index
    %c0_52 = arith.constant 0 : index
    %97 = vector.load %arg14[%c0_51, %c0_52] : memref<512x2xf32, #tpu.memory_space<vmem>>, vector<512x2xf32>
    %cst_53 = arith.constant dense<0.000000e+00> : vector<2x2xf32>
    %98 = tpu.matmul %95, %97, %cst_53 {dimension_numbers = #tpu.dot_dimension_numbers<[1], [0], [0], [1], [0, 0, 1, 1], [], []>} : vector<2x512xf32>, vector<512x2xf32>, vector<2x2xf32> -> vector<2x2xf32>
    %c0_54 = arith.constant 0 : index
    %c0_55 = arith.constant 0 : index
    %99 = vector.load %arg15[%c0_54, %c0_55] : memref<1x2xf32, #tpu.memory_space<vmem>>, vector<1x2xf32>
    %100 = vector.broadcast %99 : vector<1x2xf32> to vector<2x2xf32>
    %101 = arith.addf %98, %100 : vector<2x2xf32>
    %c0_56 = arith.constant 0 : index
    %c0_57 = arith.constant 0 : index
    %102 = vector.load %arg16[%c0_56, %c0_57] : memref<2x2xf32, #tpu.memory_space<vmem>>, vector<2x2xf32>
    tpu.vector_store %arg16[%c0_56, %c0_57], %101 {strides = array<i32>} : memref<2x2xf32, #tpu.memory_space<vmem>>, vector<2x2xf32>,
    return
  }
  func.func @transform_0(%arg0: i32) -> (i32, i32) {
    %c0_i32 = arith.constant 0 : i32
    %c0_i32_0 = arith.constant 0 : i32
    return %arg0, %c0_i32 : i32, i32
  }
  func.func @transform_1(%arg0: i32) -> (i32, i32) {
    %c0_i32 = arith.constant 0 : i32
    %c0_i32_0 = arith.constant 0 : i32
    %c0_i32_1 = arith.constant 0 : i32
    return %c0_i32, %c0_i32_0 : i32, i32
  }
  func.func @transform_2(%arg0: i32) -> (i32, i32) {
    %c0_i32 = arith.constant 0 : i32
    %c0_i32_0 = arith.constant 0 : i32
    %c0_i32_1 = arith.constant 0 : i32
    return %c0_i32, %c0_i32_0 : i32, i32
  }
  func.func @transform_3(%arg0: i32) -> (i32, i32) {
    %c0_i32 = arith.constant 0 : i32
    %c0_i32_0 = arith.constant 0 : i32
    %c0_i32_1 = arith.constant 0 : i32
    return %c0_i32, %c0_i32_0 : i32, i32
  }
  func.func @transform_4(%arg0: i32) -> (i32, i32) {
    %c0_i32 = arith.constant 0 : i32
    %c0_i32_0 = arith.constant 0 : i32
    %c0_i32_1 = arith.constant 0 : i32
    return %c0_i32, %c0_i32_0 : i32, i32
  }
  func.func @transform_5(%arg0: i32) -> (i32, i32) {
    %c0_i32 = arith.constant 0 : i32
    %c0_i32_0 = arith.constant 0 : i32
    %c0_i32_1 = arith.constant 0 : i32
    return %c0_i32, %c0_i32_0 : i32, i32
  }
  func.func @transform_6(%arg0: i32) -> (i32, i32) {
    %c0_i32 = arith.constant 0 : i32
    %c0_i32_0 = arith.constant 0 : i32
    %c0_i32_1 = arith.constant 0 : i32
    return %c0_i32, %c0_i32_0 : i32, i32
  }
  func.func @transform_7(%arg0: i32) -> (i32, i32) {
    %c0_i32 = arith.constant 0 : i32
    %c0_i32_0 = arith.constant 0 : i32
    %c0_i32_1 = arith.constant 0 : i32
    return %c0_i32, %c0_i32_0 : i32, i32
  }
  func.func @transform_8(%arg0: i32) -> (i32, i32) {
    %c0_i32 = arith.constant 0 : i32
    %c0_i32_0 = arith.constant 0 : i32
    %c0_i32_1 = arith.constant 0 : i32
    return %c0_i32, %c0_i32_0 : i32, i32
  }
  func.func @transform_9(%arg0: i32) -> (i32, i32) {
    %c0_i32 = arith.constant 0 : i32
    %c0_i32_0 = arith.constant 0 : i32
    %c0_i32_1 = arith.constant 0 : i32
    return %c0_i32, %c0_i32_0 : i32, i32
  }
  func.func @transform_10(%arg0: i32) -> (i32, i32) {
    %c0_i32 = arith.constant 0 : i32
    %c0_i32_0 = arith.constant 0 : i32
    %c0_i32_1 = arith.constant 0 : i32
    return %c0_i32, %c0_i32_0 : i32, i32
  }
  func.func @transform_11(%arg0: i32) -> (i32, i32) {
    %c0_i32 = arith.constant 0 : i32
    %c0_i32_0 = arith.constant 0 : i32
    %c0_i32_1 = arith.constant 0 : i32
    return %c0_i32, %c0_i32_0 : i32, i32
  }
  func.func @transform_12(%arg0: i32) -> (i32, i32) {
    %c0_i32 = arith.constant 0 : i32
    %c0_i32_0 = arith.constant 0 : i32
    %c0_i32_1 = arith.constant 0 : i32
    return %c0_i32, %c0_i32_0 : i32, i32
  }
  func.func @transform_13(%arg0: i32) -> (i32, i32) {
    %c0_i32 = arith.constant 0 : i32
    %c0_i32_0 = arith.constant 0 : i32
    %c0_i32_1 = arith.constant 0 : i32
    return %c0_i32, %c0_i32_0 : i32, i32
  }
  func.func @transform_14(%arg0: i32) -> (i32, i32) {
    %c0_i32 = arith.constant 0 : i32
    %c0_i32_0 = arith.constant 0 : i32
    %c0_i32_1 = arith.constant 0 : i32
    return %c0_i32, %c0_i32_0 : i32, i32
  }
  func.func @transform_15(%arg0: i32) -> (i32, i32) {
    %c0_i32 = arith.constant 0 : i32
    %c0_i32_0 = arith.constant 0 : i32
    return %arg0, %c0_i32 : i32, i32
  }
  func.func @transform_16(%arg0: i32) -> (i32, i32) {
    %c0_i32 = arith.constant 0 : i32
    %c0_i32_0 = arith.constant 0 : i32
    return %arg0, %c0_i32 : i32, i32
  }
}

</mosaic_0001>

<llo_original>
// kernel: tpu_custom_call.1
$region0: #{tpu_custom_call.1}
  #allocation0 [shape = 'u32[]', space=smem, size = 0x4, offset = 0x4, fixed_abs, tag = 'smem constant byte address 0x4 - core index']
  #allocation1 [shape = 'u32[144,128]{1,0:T(1,128)}', space=vmem, size = 0x12000, scoped, tag = 'internal scratch']
  %s0 = inlined_call_operand.hbm [shape: bf16[392,768], index: 0, kind: input, shape index: {}]
  %s1 = inlined_call_operand.hbm [shape: bf16[768,768], index: 1, kind: input, shape index: {}]
  %s2 = inlined_call_operand.hbm [shape: f32[1,768], index: 2, kind: input, shape index: {}]
  %s3 = inlined_call_operand.vmem [shape: f32[392,16], index: 3, kind: input, shape index: {}]
  %s4 = inlined_call_operand.hbm [shape: f32[1,16], index: 4, kind: input, shape index: {}]
  %s5 = inlined_call_operand.hbm [shape: f32[16,196], index: 5, kind: input, shape index: {}]
  %s6 = inlined_call_operand.hbm [shape: f32[1,196], index: 6, kind: input, shape index: {}]
  %s7 = inlined_call_operand.vmem [shape: f32[768,16], index: 7, kind: input, shape index: {}]
  %s8 = inlined_call_operand.hbm [shape: f32[1,16], index: 8, kind: input, shape index: {}]
  %s9 = inlined_call_operand.hbm [shape: f32[16,768], index: 9, kind: input, shape index: {}]
  %s10 = inlined_call_operand.hbm [shape: f32[1,768], index: 10, kind: input, shape index: {}]
  %s11 = inlined_call_operand.vmem [shape: bf16[768,512], index: 11, kind: input, shape index: {}]
  %s12 = inlined_call_operand.hbm [shape: f32[1,512], index: 12, kind: input, shape index: {}]
  %s13 = inlined_call_operand.vmem [shape: f32[512,2], index: 13, kind: input, shape index: {}]
  %s14 = inlined_call_operand.hbm [shape: f32[1,2], index: 14, kind: input, shape index: {}]
  %s15 = inlined_call_operand.hbm [shape: f32[2,2], index: 15, kind: output, shape index: {0}]
  %s16 = inlined_call_operand.hbm [shape: f32[2,512], index: 16, kind: output, shape index: {1}]
  %17 = xla_tuple %s15, %s16
  %s18 = sld [smem:[#allocation0]]
  $region122: #{tpu_custom_call.1} parent=0
    _
  %s20 = ssub.s32 1, %s18
  %s21 = scalar_select 0, %s20, %s18
  $region1: #{tpu_custom_call.1} parent=0
    #allocation2 [shape = 'u8[602112]{0}', space=vmem, size = 0x93000, scoped, tag = 'input window, operand 0, single buffered']
    #allocation3 [shape = 's32[1]{0}', space=sflag, size = 0x4, scoped, tag = 'scoped memory for tpu_custom_call.1']
    #allocation4 [shape = 's32[1]{0}', space=sflag, size = 0x4, scoped, tag = 'scoped memory for tpu_custom_call.1']
    #allocation5 [shape = 'u8[1179648]{0}', space=vmem, size = 0x120000, scoped, tag = 'input window, operand 1, single buffered']
    #allocation6 [shape = 's32[1]{0}', space=sflag, size = 0x4, scoped, tag = 'scoped memory for tpu_custom_call.1']
    #allocation7 [shape = 'u8[3072]{0}', space=vmem, size = 0xc00, scoped, tag = 'input window, operand 2, single buffered']
    #allocation8 [shape = 'u8[512]{0}', space=vmem, size = 0x400, scoped, tag = 'input window, operand 4, single buffered']
    #allocation9 [shape = 's32[1]{0}', space=sflag, size = 0x4, scoped, tag = 'scoped memory for tpu_custom_call.1']
    #allocation10 [shape = 'u8[16384]{0}', space=vmem, size = 0x4000, scoped, tag = 'input window, operand 5, single buffered']
    #allocation11 [shape = 'u8[1024]{0}', space=vmem, size = 0x400, scoped, tag = 'input window, operand 6, single buffered']
    #allocation12 [shape = 's32[1]{0}', space=sflag, size = 0x4, scoped, tag = 'scoped memory for tpu_custom_call.1']
    #allocation13 [shape = 'u8[512]{0}', space=vmem, size = 0x400, scoped, tag = 'input window, operand 8, single buffered']
    #allocation14 [shape = 'u8[49152]{0}', space=vmem, size = 0xc000, scoped, tag = 'input window, operand 9, single buffered']
    #allocation15 [shape = 's32[1]{0}', space=sflag, size = 0x4, scoped, tag = 'scoped memory for tpu_custom_call.1']
    #allocation16 [shape = 'u8[3072]{0}', space=vmem, size = 0xc00, scoped, tag = 'input window, operand 10, single buffered']
    #allocation17 [shape = 'u8[2048]{0}', space=vmem, size = 0x800, scoped, tag = 'input window, operand 12, single buffered']
    #allocation18 [shape = 's32[1]{0}', space=sflag, size = 0x4, scoped, tag = 'scoped memory for tpu_custom_call.1']
    #allocation19 [shape = 'u8[512]{0}', space=vmem, size = 0x400, scoped, tag = 'input window, operand 14, single buffered']
    #allocation20 [shape = 'u8[1024]{0}', space=vmem, size = 0x400, scoped, tag = 'output window, operand 0, single buffered']
    #allocation21 [shape = 'u8[4096]{0}', space=vmem, size = 0x1000, scoped, tag = 'output window, operand 1, single buffered']
    #allocation22 [shape = 's32[1]{0}', space=sflag, size = 0x4, scoped, tag = 'scoped memory for tpu_custom_call.1']
    %22 = vsyncpa [#allocation3], 0
    %23 = vsyncpa [#allocation6], 0
    %24 = vsyncpa [#allocation9], 0
    %25 = vsyncpa [#allocation12], 0
    %26 = vsyncpa [#allocation15], 0
    %27 = vsyncpa [#allocation18], 0
    %28 = vsyncpa [#allocation4], 0
    %29 = vsyncpa [#allocation22], 0
    // Predicated region
    $region2: #{tpu_custom_call.1} parent=1 // pred_check
      _
    $region3: #{tpu_custom_call.1} parent=1 // pred_check_branch
      %31 = sbr.rel (0) target = $region5
    $region4: #{tpu_custom_call.1} parent=1 // pred_region
      %s33 = ssub.s32 18816, 18816
      %34 = vsyncadd [#allocation3], %s33
      %s35 = sshll.u32 [#allocation2], 4
      %s36 = int_to_ptr.vmem [resolvable:$true] %s35
      %41 = dma.hbm_to_vmem [thread:$0]  %s0, 18816, %s36, [#allocation3], 384, 384, 24
    $region5: #{tpu_custom_call.1} parent=1 // pred_fallthru
      _
    // Predicated region
    $region6: #{tpu_custom_call.1} parent=1 // pred_check
      _
    $region7: #{tpu_custom_call.1} parent=1 // pred_check_branch
      %43 = sbr.rel (0) target = $region9
    $region8: #{tpu_custom_call.1} parent=1 // pred_region
      %s45 = ssub.s32 36864, 36864
      %46 = vsyncadd [#allocation6], %s45
      %s47 = sshll.u32 [#allocation5], 4
      %s48 = int_to_ptr.vmem [resolvable:$true] %s47
      %53 = dma.hbm_to_vmem [thread:$0]  %s1, 36864, %s48, [#allocation6], 384, 384, 24
    $region9: #{tpu_custom_call.1} parent=1 // pred_fallthru
      _
    // Predicated region
    $region10: #{tpu_custom_call.1} parent=1 // pred_check
      _
    $region11: #{tpu_custom_call.1} parent=1 // pred_check_branch
      %55 = sbr.rel (0) target = $region13
    $region12: #{tpu_custom_call.1} parent=1 // pred_region
      %s57 = ssub.s32 96, 96
      %58 = vsyncadd [#allocation6], %s57
      %s60 = sshll.u32 [#allocation7], 4
      %s61 = int_to_ptr.vmem [resolvable:$true] %s60
      %63 = dma.hbm_to_vmem [thread:$0]  %s2, 96, %s61, [#allocation6]
    $region13: #{tpu_custom_call.1} parent=1 // pred_fallthru
      _
    // Predicated region
    $region14: #{tpu_custom_call.1} parent=1 // pred_check
      _
    $region15: #{tpu_custom_call.1} parent=1 // pred_check_branch
      %65 = sbr.rel (0) target = $region17
    $region16: #{tpu_custom_call.1} parent=1 // pred_region
      _
    $region17: #{tpu_custom_call.1} parent=1 // pred_fallthru
      _
    // Predicated region
    $region18: #{tpu_custom_call.1} parent=1 // pred_check
      _
    $region19: #{tpu_custom_call.1} parent=1 // pred_check_branch
      %67 = sbr.rel (0) target = $region21
    $region20: #{tpu_custom_call.1} parent=1 // pred_region
      %s69 = ssub.s32 16, 16
      %70 = vsyncadd [#allocation9], %s69
      %s72 = sshll.u32 [#allocation8], 4
      %s73 = int_to_ptr.vmem [resolvable:$true] %s72
      %75 = dma.hbm_to_vmem [thread:$0]  %s4, 16, %s73, [#allocation9]
    $region21: #{tpu_custom_call.1} parent=1 // pred_fallthru
      _
    // Predicated region
    $region22: #{tpu_custom_call.1} parent=1 // pred_check
      _
    $region23: #{tpu_custom_call.1} parent=1 // pred_check_branch
      %77 = sbr.rel (0) target = $region25
    $region24: #{tpu_custom_call.1} parent=1 // pred_region
      %s79 = ssub.s32 512, 512
      %80 = vsyncadd [#allocation9], %s79
      %s81 = sshll.u32 [#allocation10], 4
      %s82 = int_to_ptr.vmem [resolvable:$true] %s81
      %87 = dma.hbm_to_vmem [thread:$0]  %s5, 512, %s82, [#allocation9], 256, 256, 16
    $region25: #{tpu_custom_call.1} parent=1 // pred_fallthru
      _
    // Predicated region
    $region26: #{tpu_custom_call.1} parent=1 // pred_check
      _
    $region27: #{tpu_custom_call.1} parent=1 // pred_check_branch
      %89 = sbr.rel (0) target = $region29
    $region28: #{tpu_custom_call.1} parent=1 // pred_region
      %s91 = ssub.s32 32, 32
      %92 = vsyncadd [#allocation12], %s91
      %s94 = sshll.u32 [#allocation11], 4
      %s95 = int_to_ptr.vmem [resolvable:$true] %s94
      %97 = dma.hbm_to_vmem [thread:$0]  %s6, 32, %s95, [#allocation12]
    $region29: #{tpu_custom_call.1} parent=1 // pred_fallthru
      _
    // Predicated region
    $region30: #{tpu_custom_call.1} parent=1 // pred_check
      _
    $region31: #{tpu_custom_call.1} parent=1 // pred_check_branch
      %99 = sbr.rel (0) target = $region33
    $region32: #{tpu_custom_call.1} parent=1 // pred_region
      _
    $region33: #{tpu_custom_call.1} parent=1 // pred_fallthru
      _
    // Predicated region
    $region34: #{tpu_custom_call.1} parent=1 // pred_check
      _
    $region35: #{tpu_custom_call.1} parent=1 // pred_check_branch
      %101 = sbr.rel (0) target = $region37
    $region36: #{tpu_custom_call.1} parent=1 // pred_region
      %s103 = ssub.s32 16, 16
      %104 = vsyncadd [#allocation12], %s103
      %s106 = sshll.u32 [#allocation13], 4
      %s107 = int_to_ptr.vmem [resolvable:$true] %s106
      %109 = dma.hbm_to_vmem [thread:$0]  %s8, 16, %s107, [#allocation12]
    $region37: #{tpu_custom_call.1} parent=1 // pred_fallthru
      _
    // Predicated region
    $region38: #{tpu_custom_call.1} parent=1 // pred_check
      _
    $region39: #{tpu_custom_call.1} parent=1 // pred_check_branch
      %111 = sbr.rel (0) target = $region41
    $region40: #{tpu_custom_call.1} parent=1 // pred_region
      %s113 = ssub.s32 1536, 1536
      %114 = vsyncadd [#allocation15], %s113
      %s115 = sshll.u32 [#allocation14], 4
      %s116 = int_to_ptr.vmem [resolvable:$true] %s115
      %121 = dma.hbm_to_vmem [thread:$0]  %s9, 1536, %s116, [#allocation15], 768, 768, 48
    $region41: #{tpu_custom_call.1} parent=1 // pred_fallthru
      _
    // Predicated region
    $region42: #{tpu_custom_call.1} parent=1 // pred_check
      _
    $region43: #{tpu_custom_call.1} parent=1 // pred_check_branch
      %123 = sbr.rel (0) target = $region45
    $region44: #{tpu_custom_call.1} parent=1 // pred_region
      %s125 = ssub.s32 96, 96
      %126 = vsyncadd [#allocation15], %s125
      %s128 = sshll.u32 [#allocation16], 4
      %s129 = int_to_ptr.vmem [resolvable:$true] %s128
      %131 = dma.hbm_to_vmem [thread:$0]  %s10, 96, %s129, [#allocation15]
    $region45: #{tpu_custom_call.1} parent=1 // pred_fallthru
      _
    // Predicated region
    $region46: #{tpu_custom_call.1} parent=1 // pred_check
      _
    $region47: #{tpu_custom_call.1} parent=1 // pred_check_branch
      %133 = sbr.rel (0) target = $region49
    $region48: #{tpu_custom_call.1} parent=1 // pred_region
      _
    $region49: #{tpu_custom_call.1} parent=1 // pred_fallthru
      _
    // Predicated region
    $region50: #{tpu_custom_call.1} parent=1 // pred_check
      _
    $region51: #{tpu_custom_call.1} parent=1 // pred_check_branch
      %135 = sbr.rel (0) target = $region53
    $region52: #{tpu_custom_call.1} parent=1 // pred_region
      %s137 = ssub.s32 64, 64
      %138 = vsyncadd [#allocation18], %s137
      %s140 = sshll.u32 [#allocation17], 4
      %s141 = int_to_ptr.vmem [resolvable:$true] %s140
      %143 = dma.hbm_to_vmem [thread:$0]  %s12, 64, %s141, [#allocation18]
    $region53: #{tpu_custom_call.1} parent=1 // pred_fallthru
      _
    // Predicated region
    $region54: #{tpu_custom_call.1} parent=1 // pred_check
      _
    $region55: #{tpu_custom_call.1} parent=1 // pred_check_branch
      %145 = sbr.rel (0) target = $region57
    $region56: #{tpu_custom_call.1} parent=1 // pred_region
      _
    $region57: #{tpu_custom_call.1} parent=1 // pred_fallthru
      _
    // Predicated region
    $region58: #{tpu_custom_call.1} parent=1 // pred_check
      _
    $region59: #{tpu_custom_call.1} parent=1 // pred_check_branch
      %147 = sbr.rel (0) target = $region61
    $region60: #{tpu_custom_call.1} parent=1 // pred_region
      %s149 = ssub.s32 16, 16
      %150 = vsyncadd [#allocation18], %s149
      %s152 = sshll.u32 [#allocation19], 4
      %s153 = int_to_ptr.vmem [resolvable:$true] %s152
      %155 = dma.hbm_to_vmem [thread:$0]  %s14, 16, %s153, [#allocation18]
    $region61: #{tpu_custom_call.1} parent=1 // pred_fallthru
      _
    // Predicated region
    $region62: #{tpu_custom_call.1} parent=1 // pred_check
      _
    $region63: #{tpu_custom_call.1} parent=1 // pred_check_branch
      %157 = sbr.rel (0) target = $region65
    $region64: #{tpu_custom_call.1} parent=1 // pred_region
      %158 = dma.done [#allocation3], 18816
    $region65: #{tpu_custom_call.1} parent=1 // pred_fallthru
      _
    // Predicated region
    $region66: #{tpu_custom_call.1} parent=1 // pred_check
      _
    $region67: #{tpu_custom_call.1} parent=1 // pred_check_branch
      %160 = sbr.rel (0) target = $region69
    $region68: #{tpu_custom_call.1} parent=1 // pred_region
      %161 = dma.done [#allocation6], 36864
    $region69: #{tpu_custom_call.1} parent=1 // pred_fallthru
      _
    // Predicated region
    $region70: #{tpu_custom_call.1} parent=1 // pred_check
      _
    $region71: #{tpu_custom_call.1} parent=1 // pred_check_branch
      %163 = sbr.rel (0) target = $region73
    $region72: #{tpu_custom_call.1} parent=1 // pred_region
      %164 = dma.done [#allocation6], 96
    $region73: #{tpu_custom_call.1} parent=1 // pred_fallthru
      _
    // Predicated region
    $region74: #{tpu_custom_call.1} parent=1 // pred_check
      _
    $region75: #{tpu_custom_call.1} parent=1 // pred_check_branch
      %166 = sbr.rel (0) target = $region77
    $region76: #{tpu_custom_call.1} parent=1 // pred_region
      %167 = dma.done [#allocation9], 16
    $region77: #{tpu_custom_call.1} parent=1 // pred_fallthru
      _
    // Predicated region
    $region78: #{tpu_custom_call.1} parent=1 // pred_check
      _
    $region79: #{tpu_custom_call.1} parent=1 // pred_check_branch
      %169 = sbr.rel (0) target = $region81
    $region80: #{tpu_custom_call.1} parent=1 // pred_region
      %170 = dma.done [#allocation9], 512
    $region81: #{tpu_custom_call.1} parent=1 // pred_fallthru
      _
    // Predicated region
    $region82: #{tpu_custom_call.1} parent=1 // pred_check
      _
    $region83: #{tpu_custom_call.1} parent=1 // pred_check_branch
      %172 = sbr.rel (0) target = $region85
    $region84: #{tpu_custom_call.1} parent=1 // pred_region
      %173 = dma.done [#allocation12], 32
    $region85: #{tpu_custom_call.1} parent=1 // pred_fallthru
      _
    // Predicated region
    $region86: #{tpu_custom_call.1} parent=1 // pred_check
      _
    $region87: #{tpu_custom_call.1} parent=1 // pred_check_branch
      %175 = sbr.rel (0) target = $region89
    $region88: #{tpu_custom_call.1} parent=1 // pred_region
      %176 = dma.done [#allocation12], 16
    $region89: #{tpu_custom_call.1} parent=1 // pred_fallthru
      _
    // Predicated region
    $region90: #{tpu_custom_call.1} parent=1 // pred_check
      _
    $region91: #{tpu_custom_call.1} parent=1 // pred_check_branch
      %178 = sbr.rel (0) target = $region93
    $region92: #{tpu_custom_call.1} parent=1 // pred_region
      %179 = dma.done [#allocation15], 1536
    $region93: #{tpu_custom_call.1} parent=1 // pred_fallthru
      _
    // Predicated region
    $region94: #{tpu_custom_call.1} parent=1 // pred_check
      _
    $region95: #{tpu_custom_call.1} parent=1 // pred_check_branch
      %181 = sbr.rel (0) target = $region97
    $region96: #{tpu_custom_call.1} parent=1 // pred_region
      %182 = dma.done [#allocation15], 96
    $region97: #{tpu_custom_call.1} parent=1 // pred_fallthru
      _
    // Predicated region
    $region98: #{tpu_custom_call.1} parent=1 // pred_check
      _
    $region99: #{tpu_custom_call.1} parent=1 // pred_check_branch
      %184 = sbr.rel (0) target = $region101
    $region100: #{tpu_custom_call.1} parent=1 // pred_region
      %185 = dma.done [#allocation18], 64
    $region101: #{tpu_custom_call.1} parent=1 // pred_fallthru
      _
    // Predicated region
    $region102: #{tpu_custom_call.1} parent=1 // pred_check
      _
    $region103: #{tpu_custom_call.1} parent=1 // pred_check_branch
      %187 = sbr.rel (0) target = $region105
    $region104: #{tpu_custom_call.1} parent=1 // pred_region
      %188 = dma.done [#allocation18], 16
    $region105: #{tpu_custom_call.1} parent=1 // pred_fallthru
      _
    %v189 = vld [vmem:[#allocation7] sm:$0x3f]
    %v190 = vld [vmem:[#allocation2] sm:$0xff]
    %v191 = vld [vmem:[#allocation2 + $0x8] sm:$0xff]
    %v192 = vld [vmem:[#allocation2 + $0x10] sm:$0xff]
    %v193 = vld [vmem:[#allocation2 + $0x18] sm:$0xff]
    %v194 = vld [vmem:[#allocation2 + $0x20] sm:$0xff]
    %v195 = vld [vmem:[#allocation2 + $0x28] sm:$0xff]
    %v196 = vld [vmem:[#allocation2 + $0x30] sm:$0xff]
    %v197 = vld [vmem:[#allocation2 + $0x38] sm:$0xff]
    %v198 = vld [vmem:[#allocation2 + $0x40] sm:$0xff]
    %v199 = vld [vmem:[#allocation2 + $0x48] sm:$0xff]
    %v200 = vld [vmem:[#allocation2 + $0x50] sm:$0xff]
    %v201 = vld [vmem:[#allocation2 + $0x58] sm:$0xff]
    %v202 = vld [vmem:[#allocation2 + $0x60] sm:$0xff]
    %v203 = vld [vmem:[#allocation2 + $0x68] sm:$0xff]
    %v204 = vld [vmem:[#allocation2 + $0x70] sm:$0xff]
    %v205 = vld [vmem:[#allocation2 + $0x78] sm:$0xff]
    %v206 = vld [vmem:[#allocation2 + $0x80] sm:$0xff]
    %v207 = vld [vmem:[#allocation2 + $0x88] sm:$0xff]
    %v208 = vld [vmem:[#allocation2 + $0x90] sm:$0xff]
    %v209 = vld [vmem:[#allocation2 + $0x98] sm:$0xff]
    %v210 = vld [vmem:[#allocation2 + $0xa0] sm:$0xff]
    %v211 = vld [vmem:[#allocation2 + $0xa8] sm:$0xff]
    %v212 = vld [vmem:[#allocation2 + $0xb0] sm:$0xff]
    %v213 = vld [vmem:[#allocation2 + $0xb8] sm:$0xff]
    %v214 = vld [vmem:[#allocation2 + $0xc0] sm:$0xff]
    %v215 = vld [vmem:[#allocation2 + $0xc8] sm:$0xff]
    %v216 = vld [vmem:[#allocation2 + $0xd0] sm:$0xff]
    %v217 = vld [vmem:[#allocation2 + $0xd8] sm:$0xff]
    %v218 = vld [vmem:[#allocation2 + $0xe0] sm:$0xff]
    %v219 = vld [vmem:[#allocation2 + $0xe8] sm:$0xff]
    %v220 = vld [vmem:[#allocation2 + $0xf0] sm:$0xff]
    %v221 = vld [vmem:[#allocation2 + $0xf8] sm:$0xff]
    %v222 = vld [vmem:[#allocation2 + $0x100] sm:$0xff]
    %v223 = vld [vmem:[#allocation2 + $0x108] sm:$0xff]
    %v224 = vld [vmem:[#allocation2 + $0x110] sm:$0xff]
    %v225 = vld [vmem:[#allocation2 + $0x118] sm:$0xff]
    %v226 = vld [vmem:[#allocation2 + $0x120] sm:$0xff]
    %v227 = vld [vmem:[#allocation2 + $0x128] sm:$0xff]
    %v228 = vld [vmem:[#allocation2 + $0x130] sm:$0xff]
    %v229 = vld [vmem:[#allocation2 + $0x138] sm:$0xff]
    %v230 = vld [vmem:[#allocation2 + $0x140] sm:$0xff]
    %v231 = vld [vmem:[#allocation2 + $0x148] sm:$0xff]
    %v232 = vld [vmem:[#allocation2 + $0x150] sm:$0xff]
    %v233 = vld [vmem:[#allocation2 + $0x158] sm:$0xff]
    %v234 = vld [vmem:[#allocation2 + $0x160] sm:$0xff]
    %v235 = vld [vmem:[#allocation2 + $0x168] sm:$0xff]
    %v236 = vld [vmem:[#allocation2 + $0x170] sm:$0xff]
    %v237 = vld [vmem:[#allocation2 + $0x178] sm:$0xff]
    %v238 = vld [vmem:[#allocation2 + $0x180] sm:$0xff]
    %v239 = vld [vmem:[#allocation2 + $0x188] sm:$0xff]
    %v240 = vld [vmem:[#allocation2 + $0x190] sm:$0xff]
    %v241 = vld [vmem:[#allocation2 + $0x198] sm:$0xff]
    %v242 = vld [vmem:[#allocation2 + $0x1a0] sm:$0xff]
    %v243 = vld [vmem:[#allocation2 + $0x1a8] sm:$0xff]
    %v244 = vld [vmem:[#allocation2 + $0x1b0] sm:$0xff]
    %v245 = vld [vmem:[#allocation2 + $0x1b8] sm:$0xff]
    %v246 = vld [vmem:[#allocation2 + $0x1c0] sm:$0xff]
    %v247 = vld [vmem:[#allocation2 + $0x1c8] sm:$0xff]
    %v248 = vld [vmem:[#allocation2 + $0x1d0] sm:$0xff]
    %v249 = vld [vmem:[#allocation2 + $0x1d8] sm:$0xff]
    %v250 = vld [vmem:[#allocation2 + $0x1e0] sm:$0xff]
    %v251 = vld [vmem:[#allocation2 + $0x1e8] sm:$0xff]
    %v252 = vld [vmem:[#allocation2 + $0x1f0] sm:$0xff]
    %v253 = vld [vmem:[#allocation2 + $0x1f8] sm:$0xff]
    %v254 = vld [vmem:[#allocation2 + $0x200] sm:$0xff]
    %v255 = vld [vmem:[#allocation2 + $0x208] sm:$0xff]
    %v256 = vld [vmem:[#allocation2 + $0x210] sm:$0xff]
    %v257 = vld [vmem:[#allocation2 + $0x218] sm:$0xff]
    %v258 = vld [vmem:[#allocation2 + $0x220] sm:$0xff]
    %v259 = vld [vmem:[#allocation2 + $0x228] sm:$0xff]
    %v260 = vld [vmem:[#allocation2 + $0x230] sm:$0xff]
    %v261 = vld [vmem:[#allocation2 + $0x238] sm:$0xff]
    %v262 = vld [vmem:[#allocation2 + $0x240] sm:$0xff]
    %v263 = vld [vmem:[#allocation2 + $0x248] sm:$0xff]
    %v264 = vld [vmem:[#allocation2 + $0x250] sm:$0xff]
    %v265 = vld [vmem:[#allocation2 + $0x258] sm:$0xff]
    %v266 = vld [vmem:[#allocation2 + $0x260] sm:$0xff]
    %v267 = vld [vmem:[#allocation2 + $0x268] sm:$0xff]
    %v268 = vld [vmem:[#allocation2 + $0x270] sm:$0xff]
    %v269 = vld [vmem:[#allocation2 + $0x278] sm:$0xff]
    %v270 = vld [vmem:[#allocation2 + $0x280] sm:$0xff]
    %v271 = vld [vmem:[#allocation2 + $0x288] sm:$0xff]
    %v272 = vld [vmem:[#allocation2 + $0x290] sm:$0xff]
    %v273 = vld [vmem:[#allocation2 + $0x298] sm:$0xff]
    %v274 = vld [vmem:[#allocation2 + $0x2a0] sm:$0xff]
    %v275 = vld [vmem:[#allocation2 + $0x2a8] sm:$0xff]
    %v276 = vld [vmem:[#allocation2 + $0x2b0] sm:$0xff]
    %v277 = vld [vmem:[#allocation2 + $0x2b8] sm:$0xff]
    %v278 = vld [vmem:[#allocation2 + $0x2c0] sm:$0xff]
    %v279 = vld [vmem:[#allocation2 + $0x2c8] sm:$0xff]
    %v280 = vld [vmem:[#allocation2 + $0x2d0] sm:$0xff]
    %v281 = vld [vmem:[#allocation2 + $0x2d8] sm:$0xff]
    %v282 = vld [vmem:[#allocation2 + $0x2e0] sm:$0xff]
    %v283 = vld [vmem:[#allocation2 + $0x2e8] sm:$0xff]
    %v284 = vld [vmem:[#allocation2 + $0x2f0] sm:$0xff]
    %v285 = vld [vmem:[#allocation2 + $0x2f8] sm:$0xff]
    %v286 = vld [vmem:[#allocation2 + $0x300] sm:$0xff]
    %v287 = vld [vmem:[#allocation2 + $0x308] sm:$0xff]
    %v288 = vld [vmem:[#allocation2 + $0x310] sm:$0xff]
    %v289 = vld [vmem:[#allocation2 + $0x318] sm:$0xff]
    %v290 = vld [vmem:[#allocation2 + $0x320] sm:$0xff]
    %v291 = vld [vmem:[#allocation2 + $0x328] sm:$0xff]
    %v292 = vld [vmem:[#allocation2 + $0x330] sm:$0xff]
    %v293 = vld [vmem:[#allocation2 + $0x338] sm:$0xff]
    %v294 = vld [vmem:[#allocation2 + $0x340] sm:$0xff]
    %v295 = vld [vmem:[#allocation2 + $0x348] sm:$0xff]
    %v296 = vld [vmem:[#allocation2 + $0x350] sm:$0xff]
    %v297 = vld [vmem:[#allocation2 + $0x358] sm:$0xff]
    %v298 = vld [vmem:[#allocation2 + $0x360] sm:$0xff]
    %v299 = vld [vmem:[#allocation2 + $0x368] sm:$0xff]
    %v300 = vld [vmem:[#allocation2 + $0x370] sm:$0xff]
    %v301 = vld [vmem:[#allocation2 + $0x378] sm:$0xff]
    %v302 = vld [vmem:[#allocation2 + $0x380] sm:$0xff]
    %v303 = vld [vmem:[#allocation2 + $0x388] sm:$0xff]
    %v304 = vld [vmem:[#allocation2 + $0x390] sm:$0xff]
    %v305 = vld [vmem:[#allocation2 + $0x398] sm:$0xff]
    %v306 = vld [vmem:[#allocation2 + $0x3a0] sm:$0xff]
    %v307 = vld [vmem:[#allocation2 + $0x3a8] sm:$0xff]
    %v308 = vld [vmem:[#allocation2 + $0x3b0] sm:$0xff]
    %v309 = vld [vmem:[#allocation2 + $0x3b8] sm:$0xff]
    %v310 = vld [vmem:[#allocation2 + $0x3c0] sm:$0xff]
    %v311 = vld [vmem:[#allocation2 + $0x3c8] sm:$0xff]
    %v312 = vld [vmem:[#allocation2 + $0x3d0] sm:$0xff]
    %v313 = vld [vmem:[#allocation2 + $0x3d8] sm:$0xff]
    %v314 = vld [vmem:[#allocation2 + $0x3e0] sm:$0xff]
    %v315 = vld [vmem:[#allocation2 + $0x3e8] sm:$0xff]
    %v316 = vld [vmem:[#allocation2 + $0x3f0] sm:$0xff]
    %v317 = vld [vmem:[#allocation2 + $0x3f8] sm:$0xff]
    %v318 = vld [vmem:[#allocation2 + $0x400] sm:$0xff]
    %v319 = vld [vmem:[#allocation2 + $0x408] sm:$0xff]
    %v320 = vld [vmem:[#allocation2 + $0x410] sm:$0xff]
    %v321 = vld [vmem:[#allocation2 + $0x418] sm:$0xff]
    %v322 = vld [vmem:[#allocation2 + $0x420] sm:$0xff]
    %v323 = vld [vmem:[#allocation2 + $0x428] sm:$0xff]
    %v324 = vld [vmem:[#allocation2 + $0x430] sm:$0xff]
    %v325 = vld [vmem:[#allocation2 + $0x438] sm:$0xff]
    %v326 = vld [vmem:[#allocation2 + $0x440] sm:$0xff]
    %v327 = vld [vmem:[#allocation2 + $0x448] sm:$0xff]
    %v328 = vld [vmem:[#allocation2 + $0x450] sm:$0xff]
    %v329 = vld [vmem:[#allocation2 + $0x458] sm:$0xff]
    %v330 = vld [vmem:[#allocation2 + $0x460] sm:$0xff]
    %v331 = vld [vmem:[#allocation2 + $0x468] sm:$0xff]
    %v332 = vld [vmem:[#allocation2 + $0x470] sm:$0xff]
    %v333 = vld [vmem:[#allocation2 + $0x478] sm:$0xff]
    %v334 = vld [vmem:[#allocation2 + $0x480] sm:$0xff]
    %v335 = vld [vmem:[#allocation2 + $0x488] sm:$0xff]
    %v336 = vld [vmem:[#allocation2 + $0x490] sm:$0xff]
    %v337 = vld [vmem:[#allocation5] sm:$0xff]
    %v338 = vld [vmem:[#allocation5 + $0x8] sm:$0xff]
    %v339 = vld [vmem:[#allocation5 + $0x10] sm:$0xff]
    %v340 = vld [vmem:[#allocation5 + $0x18] sm:$0xff]
    %v341 = vld [vmem:[#allocation5 + $0x20] sm:$0xff]
    %v342 = vld [vmem:[#allocation5 + $0x28] sm:$0xff]
    %v343 = vld [vmem:[#allocation5 + $0x30] sm:$0xff]
    %v344 = vld [vmem:[#allocation5 + $0x38] sm:$0xff]
    %v345 = vld [vmem:[#allocation5 + $0x40] sm:$0xff]
    %v346 = vld [vmem:[#allocation5 + $0x48] sm:$0xff]
    %v347 = vld [vmem:[#allocation5 + $0x50] sm:$0xff]
    %v348 = vld [vmem:[#allocation5 + $0x58] sm:$0xff]
    %v349 = vld [vmem:[#allocation5 + $0x60] sm:$0xff]
    %v350 = vld [vmem:[#allocation5 + $0x68] sm:$0xff]
    %v351 = vld [vmem:[#allocation5 + $0x70] sm:$0xff]
    %v352 = vld [vmem:[#allocation5 + $0x78] sm:$0xff]
    %v353 = vld [vmem:[#allocation5 + $0x80] sm:$0xff]
    %v354 = vld [vmem:[#allocation5 + $0x88] sm:$0xff]
    %v355 = vld [vmem:[#allocation5 + $0x90] sm:$0xff]
    %v356 = vld [vmem:[#allocation5 + $0x98] sm:$0xff]
    %v357 = vld [vmem:[#allocation5 + $0xa0] sm:$0xff]
    %v358 = vld [vmem:[#allocation5 + $0xa8] sm:$0xff]
    %v359 = vld [vmem:[#allocation5 + $0xb0] sm:$0xff]
    %v360 = vld [vmem:[#allocation5 + $0xb8] sm:$0xff]
    %v361 = vld [vmem:[#allocation5 + $0xc0] sm:$0xff]
    %v362 = vld [vmem:[#allocation5 + $0xc8] sm:$0xff]
    %v363 = vld [vmem:[#allocation5 + $0xd0] sm:$0xff]
    %v364 = vld [vmem:[#allocation5 + $0xd8] sm:$0xff]
    %v365 = vld [vmem:[#allocation5 + $0xe0] sm:$0xff]
    %v366 = vld [vmem:[#allocation5 + $0xe8] sm:$0xff]
    %v367 = vld [vmem:[#allocation5 + $0xf0] sm:$0xff]
    %v368 = vld [vmem:[#allocation5 + $0xf8] sm:$0xff]
    %v369 = vld [vmem:[#allocation5 + $0x100] sm:$0xff]
    %v370 = vld [vmem:[#allocation5 + $0x108] sm:$0xff]
    %v371 = vld [vmem:[#allocation5 + $0x110] sm:$0xff]
    %v372 = vld [vmem:[#allocation5 + $0x118] sm:$0xff]
    %v373 = vld [vmem:[#allocation5 + $0x120] sm:$0xff]
    %v374 = vld [vmem:[#allocation5 + $0x128] sm:$0xff]
    %v375 = vld [vmem:[#allocation5 + $0x130] sm:$0xff]
    %v376 = vld [vmem:[#allocation5 + $0x138] sm:$0xff]
    %v377 = vld [vmem:[#allocation5 + $0x140] sm:$0xff]
    %v378 = vld [vmem:[#allocation5 + $0x148] sm:$0xff]
    %v379 = vld [vmem:[#allocation5 + $0x150] sm:$0xff]
    %v380 = vld [vmem:[#allocation5 + $0x158] sm:$0xff]
    %v381 = vld [vmem:[#allocation5 + $0x160] sm:$0xff]
    %v382 = vld [vmem:[#allocation5 + $0x168] sm:$0xff]
    %v383 = vld [vmem:[#allocation5 + $0x170] sm:$0xff]
    %v384 = vld [vmem:[#allocation5 + $0x178] sm:$0xff]
    %v385 = vld [vmem:[#allocation5 + $0x180] sm:$0xff]
    %v386 = vld [vmem:[#allocation5 + $0x188] sm:$0xff]
    %v387 = vld [vmem:[#allocation5 + $0x190] sm:$0xff]
    %v388 = vld [vmem:[#allocation5 + $0x198] sm:$0xff]
    %v389 = vld [vmem:[#allocation5 + $0x1a0] sm:$0xff]
    %v390 = vld [vmem:[#allocation5 + $0x1a8] sm:$0xff]
    %v391 = vld [vmem:[#allocation5 + $0x1b0] sm:$0xff]
    %v392 = vld [vmem:[#allocation5 + $0x1b8] sm:$0xff]
    %v393 = vld [vmem:[#allocation5 + $0x1c0] sm:$0xff]
    %v394 = vld [vmem:[#allocation5 + $0x1c8] sm:$0xff]
    %v395 = vld [vmem:[#allocation5 + $0x1d0] sm:$0xff]
    %v396 = vld [vmem:[#allocation5 + $0x1d8] sm:$0xff]
    %v397 = vld [vmem:[#allocation5 + $0x1e0] sm:$0xff]
    %v398 = vld [vmem:[#allocation5 + $0x1e8] sm:$0xff]
    %v399 = vld [vmem:[#allocation5 + $0x1f0] sm:$0xff]
    %v400 = vld [vmem:[#allocation5 + $0x1f8] sm:$0xff]
    %v401 = vld [vmem:[#allocation5 + $0x200] sm:$0xff]
    %v402 = vld [vmem:[#allocation5 + $0x208] sm:$0xff]
    %v403 = vld [vmem:[#allocation5 + $0x210] sm:$0xff]
    %v404 = vld [vmem:[#allocation5 + $0x218] sm:$0xff]
    %v405 = vld [vmem:[#allocation5 + $0x220] sm:$0xff]
    %v406 = vld [vmem:[#allocation5 + $0x228] sm:$0xff]
    %v407 = vld [vmem:[#allocation5 + $0x230] sm:$0xff]
    %v408 = vld [vmem:[#allocation5 + $0x238] sm:$0xff]
    %v409 = vld [vmem:[#allocation5 + $0x240] sm:$0xff]
    %v410 = vld [vmem:[#allocation5 + $0x248] sm:$0xff]
    %v411 = vld [vmem:[#allocation5 + $0x250] sm:$0xff]
    %v412 = vld [vmem:[#allocation5 + $0x258] sm:$0xff]
    %v413 = vld [vmem:[#allocation5 + $0x260] sm:$0xff]
    %v414 = vld [vmem:[#allocation5 + $0x268] sm:$0xff]
    %v415 = vld [vmem:[#allocation5 + $0x270] sm:$0xff]
    %v416 = vld [vmem:[#allocation5 + $0x278] sm:$0xff]
    %v417 = vld [vmem:[#allocation5 + $0x280] sm:$0xff]
    %v418 = vld [vmem:[#allocation5 + $0x288] sm:$0xff]
    %v419 = vld [vmem:[#allocation5 + $0x290] sm:$0xff]
    %v420 = vld [vmem:[#allocation5 + $0x298] sm:$0xff]
    %v421 = vld [vmem:[#allocation5 + $0x2a0] sm:$0xff]
    %v422 = vld [vmem:[#allocation5 + $0x2a8] sm:$0xff]
    %v423 = vld [vmem:[#allocation5 + $0x2b0] sm:$0xff]
    %v424 = vld [vmem:[#allocation5 + $0x2b8] sm:$0xff]
    %v425 = vld [vmem:[#allocation5 + $0x2c0] sm:$0xff]
    %v426 = vld [vmem:[#allocation5 + $0x2c8] sm:$0xff]
    %v427 = vld [vmem:[#allocation5 + $0x2d0] sm:$0xff]
    %v428 = vld [vmem:[#allocation5 + $0x2d8] sm:$0xff]
    %v429 = vld [vmem:[#allocation5 + $0x2e0] sm:$0xff]
    %v430 = vld [vmem:[#allocation5 + $0x2e8] sm:$0xff]
    %v431 = vld [vmem:[#allocation5 + $0x2f0] sm:$0xff]
    %v432 = vld [vmem:[#allocation5 + $0x2f8] sm:$0xff]
    %v433 = vld [vmem:[#allocation5 + $0x300] sm:$0xff]
    %v434 = vld [vmem:[#allocation5 + $0x308] sm:$0xff]
    %v435 = vld [vmem:[#allocation5 + $0x310] sm:$0xff]
    %v436 = vld [vmem:[#allocation5 + $0x318] sm:$0xff]
    %v437 = vld [vmem:[#allocation5 + $0x320] sm:$0xff]
    %v438 = vld [vmem:[#allocation5 + $0x328] sm:$0xff]
    %v439 = vld [vmem:[#allocation5 + $0x330] sm:$0xff]
    %v440 = vld [vmem:[#allocation5 + $0x338] sm:$0xff]
    %v441 = vld [vmem:[#allocation5 + $0x340] sm:$0xff]
    %v442 = vld [vmem:[#allocation5 + $0x348] sm:$0xff]
    %v443 = vld [vmem:[#allocation5 + $0x350] sm:$0xff]
    %v444 = vld [vmem:[#allocation5 + $0x358] sm:$0xff]
    %v445 = vld [vmem:[#allocation5 + $0x360] sm:$0xff]
    %v446 = vld [vmem:[#allocation5 + $0x368] sm:$0xff]
    %v447 = vld [vmem:[#allocation5 + $0x370] sm:$0xff]
    %v448 = vld [vmem:[#allocation5 + $0x378] sm:$0xff]
    %v449 = vld [vmem:[#allocation5 + $0x380] sm:$0xff]
    %v450 = vld [vmem:[#allocation5 + $0x388] sm:$0xff]
    %v451 = vld [vmem:[#allocation5 + $0x390] sm:$0xff]
    %v452 = vld [vmem:[#allocation5 + $0x398] sm:$0xff]
    %v453 = vld [vmem:[#allocation5 + $0x3a0] sm:$0xff]
    %v454 = vld [vmem:[#allocation5 + $0x3a8] sm:$0xff]
    %v455 = vld [vmem:[#allocation5 + $0x3b0] sm:$0xff]
    %v456 = vld [vmem:[#allocation5 + $0x3b8] sm:$0xff]
    %v457 = vld [vmem:[#allocation5 + $0x3c0] sm:$0xff]
    %v458 = vld [vmem:[#allocation5 + $0x3c8] sm:$0xff]
    %v459 = vld [vmem:[#allocation5 + $0x3d0] sm:$0xff]
    %v460 = vld [vmem:[#allocation5 + $0x3d8] sm:$0xff]
    %v461 = vld [vmem:[#allocation5 + $0x3e0] sm:$0xff]
    %v462 = vld [vmem:[#allocation5 + $0x3e8] sm:$0xff]
    %v463 = vld [vmem:[#allocation5 + $0x3f0] sm:$0xff]
    %v464 = vld [vmem:[#allocation5 + $0x3f8] sm:$0xff]
    %v465 = vld [vmem:[#allocation5 + $0x400] sm:$0xff]
    %v466 = vld [vmem:[#allocation5 + $0x408] sm:$0xff]
    %v467 = vld [vmem:[#allocation5 + $0x410] sm:$0xff]
    %v468 = vld [vmem:[#allocation5 + $0x418] sm:$0xff]
    %v469 = vld [vmem:[#allocation5 + $0x420] sm:$0xff]
    %v470 = vld [vmem:[#allocation5 + $0x428] sm:$0xff]
    %v471 = vld [vmem:[#allocation5 + $0x430] sm:$0xff]
    %v472 = vld [vmem:[#allocation5 + $0x438] sm:$0xff]
    %v473 = vld [vmem:[#allocation5 + $0x440] sm:$0xff]
    %v474 = vld [vmem:[#allocation5 + $0x448] sm:$0xff]
    %v475 = vld [vmem:[#allocation5 + $0x450] sm:$0xff]
    %v476 = vld [vmem:[#allocation5 + $0x458] sm:$0xff]
    %v477 = vld [vmem:[#allocation5 + $0x460] sm:$0xff]
    %v478 = vld [vmem:[#allocation5 + $0x468] sm:$0xff]
    %v479 = vld [vmem:[#allocation5 + $0x470] sm:$0xff]
    %v480 = vld [vmem:[#allocation5 + $0x478] sm:$0xff]
    %v481 = vld [vmem:[#allocation5 + $0x480] sm:$0xff]
    %v482 = vld [vmem:[#allocation5 + $0x488] sm:$0xff]
    %v483 = vld [vmem:[#allocation5 + $0x490] sm:$0xff]
    %v484 = vld [vmem:[#allocation5 + $0x498] sm:$0xff]
    %v485 = vld [vmem:[#allocation5 + $0x4a0] sm:$0xff]
    %v486 = vld [vmem:[#allocation5 + $0x4a8] sm:$0xff]
    %v487 = vld [vmem:[#allocation5 + $0x4b0] sm:$0xff]
    %v488 = vld [vmem:[#allocation5 + $0x4b8] sm:$0xff]
    %v489 = vld [vmem:[#allocation5 + $0x4c0] sm:$0xff]
    %v490 = vld [vmem:[#allocation5 + $0x4c8] sm:$0xff]
    %v491 = vld [vmem:[#allocation5 + $0x4d0] sm:$0xff]
    %v492 = vld [vmem:[#allocation5 + $0x4d8] sm:$0xff]
    %v493 = vld [vmem:[#allocation5 + $0x4e0] sm:$0xff]
    %v494 = vld [vmem:[#allocation5 + $0x4e8] sm:$0xff]
    %v495 = vld [vmem:[#allocation5 + $0x4f0] sm:$0xff]
    %v496 = vld [vmem:[#allocation5 + $0x4f8] sm:$0xff]
    %v497 = vld [vmem:[#allocation5 + $0x500] sm:$0xff]
    %v498 = vld [vmem:[#allocation5 + $0x508] sm:$0xff]
    %v499 = vld [vmem:[#allocation5 + $0x510] sm:$0xff]
    %v500 = vld [vmem:[#allocation5 + $0x518] sm:$0xff]
    %v501 = vld [vmem:[#allocation5 + $0x520] sm:$0xff]
    %v502 = vld [vmem:[#allocation5 + $0x528] sm:$0xff]
    %v503 = vld [vmem:[#allocation5 + $0x530] sm:$0xff]
    %v504 = vld [vmem:[#allocation5 + $0x538] sm:$0xff]
    %v505 = vld [vmem:[#allocation5 + $0x540] sm:$0xff]
    %v506 = vld [vmem:[#allocation5 + $0x548] sm:$0xff]
    %v507 = vld [vmem:[#allocation5 + $0x550] sm:$0xff]
    %v508 = vld [vmem:[#allocation5 + $0x558] sm:$0xff]
    %v509 = vld [vmem:[#allocation5 + $0x560] sm:$0xff]
    %v510 = vld [vmem:[#allocation5 + $0x568] sm:$0xff]
    %v511 = vld [vmem:[#allocation5 + $0x570] sm:$0xff]
    %v512 = vld [vmem:[#allocation5 + $0x578] sm:$0xff]
    %v513 = vld [vmem:[#allocation5 + $0x580] sm:$0xff]
    %v514 = vld [vmem:[#allocation5 + $0x588] sm:$0xff]
    %v515 = vld [vmem:[#allocation5 + $0x590] sm:$0xff]
    %v516 = vld [vmem:[#allocation5 + $0x598] sm:$0xff]
    %v517 = vld [vmem:[#allocation5 + $0x5a0] sm:$0xff]
    %v518 = vld [vmem:[#allocation5 + $0x5a8] sm:$0xff]
    %v519 = vld [vmem:[#allocation5 + $0x5b0] sm:$0xff]
    %v520 = vld [vmem:[#allocation5 + $0x5b8] sm:$0xff]
    %v521 = vld [vmem:[#allocation5 + $0x5c0] sm:$0xff]
    %v522 = vld [vmem:[#allocation5 + $0x5c8] sm:$0xff]
    %v523 = vld [vmem:[#allocation5 + $0x5d0] sm:$0xff]
    %v524 = vld [vmem:[#allocation5 + $0x5d8] sm:$0xff]
    %v525 = vld [vmem:[#allocation5 + $0x5e0] sm:$0xff]
    %v526 = vld [vmem:[#allocation5 + $0x5e8] sm:$0xff]
    %v527 = vld [vmem:[#allocation5 + $0x5f0] sm:$0xff]
    %v528 = vld [vmem:[#allocation5 + $0x5f8] sm:$0xff]
    %v529 = vld [vmem:[#allocation5 + $0x600] sm:$0xff]
    %v530 = vld [vmem:[#allocation5 + $0x608] sm:$0xff]
    %v531 = vld [vmem:[#allocation5 + $0x610] sm:$0xff]
    %v532 = vld [vmem:[#allocation5 + $0x618] sm:$0xff]
    %v533 = vld [vmem:[#allocation5 + $0x620] sm:$0xff]
    %v534 = vld [vmem:[#allocation5 + $0x628] sm:$0xff]
    %v535 = vld [vmem:[#allocation5 + $0x630] sm:$0xff]
    %v536 = vld [vmem:[#allocation5 + $0x638] sm:$0xff]
    %v537 = vld [vmem:[#allocation5 + $0x640] sm:$0xff]
    %v538 = vld [vmem:[#allocation5 + $0x648] sm:$0xff]
    %v539 = vld [vmem:[#allocation5 + $0x650] sm:$0xff]
    %v540 = vld [vmem:[#allocation5 + $0x658] sm:$0xff]
    %v541 = vld [vmem:[#allocation5 + $0x660] sm:$0xff]
    %v542 = vld [vmem:[#allocation5 + $0x668] sm:$0xff]
    %v543 = vld [vmem:[#allocation5 + $0x670] sm:$0xff]
    %v544 = vld [vmem:[#allocation5 + $0x678] sm:$0xff]
    %v545 = vld [vmem:[#allocation5 + $0x680] sm:$0xff]
    %v546 = vld [vmem:[#allocation5 + $0x688] sm:$0xff]
    %v547 = vld [vmem:[#allocation5 + $0x690] sm:$0xff]
    %v548 = vld [vmem:[#allocation5 + $0x698] sm:$0xff]
    %v549 = vld [vmem:[#allocation5 + $0x6a0] sm:$0xff]
    %v550 = vld [vmem:[#allocation5 + $0x6a8] sm:$0xff]
    %v551 = vld [vmem:[#allocation5 + $0x6b0] sm:$0xff]
    %v552 = vld [vmem:[#allocation5 + $0x6b8] sm:$0xff]
    %v553 = vld [vmem:[#allocation5 + $0x6c0] sm:$0xff]
    %v554 = vld [vmem:[#allocation5 + $0x6c8] sm:$0xff]
    %v555 = vld [vmem:[#allocation5 + $0x6d0] sm:$0xff]
    %v556 = vld [vmem:[#allocation5 + $0x6d8] sm:$0xff]
    %v557 = vld [vmem:[#allocation5 + $0x6e0] sm:$0xff]
    %v558 = vld [vmem:[#allocation5 + $0x6e8] sm:$0xff]
    %v559 = vld [vmem:[#allocation5 + $0x6f0] sm:$0xff]
    %v560 = vld [vmem:[#allocation5 + $0x6f8] sm:$0xff]
    %v561 = vld [vmem:[#allocation5 + $0x700] sm:$0xff]
    %v562 = vld [vmem:[#allocation5 + $0x708] sm:$0xff]
    %v563 = vld [vmem:[#allocation5 + $0x710] sm:$0xff]
    %v564 = vld [vmem:[#allocation5 + $0x718] sm:$0xff]
    %v565 = vld [vmem:[#allocation5 + $0x720] sm:$0xff]
    %v566 = vld [vmem:[#allocation5 + $0x728] sm:$0xff]
    %v567 = vld [vmem:[#allocation5 + $0x730] sm:$0xff]
    %v568 = vld [vmem:[#allocation5 + $0x738] sm:$0xff]
    %v569 = vld [vmem:[#allocation5 + $0x740] sm:$0xff]
    %v570 = vld [vmem:[#allocation5 + $0x748] sm:$0xff]
    %v571 = vld [vmem:[#allocation5 + $0x750] sm:$0xff]
    %v572 = vld [vmem:[#allocation5 + $0x758] sm:$0xff]
    %v573 = vld [vmem:[#allocation5 + $0x760] sm:$0xff]
    %v574 = vld [vmem:[#allocation5 + $0x768] sm:$0xff]
    %v575 = vld [vmem:[#allocation5 + $0x770] sm:$0xff]
    %v576 = vld [vmem:[#allocation5 + $0x778] sm:$0xff]
    %v577 = vld [vmem:[#allocation5 + $0x780] sm:$0xff]
    %v578 = vld [vmem:[#allocation5 + $0x788] sm:$0xff]
    %v579 = vld [vmem:[#allocation5 + $0x790] sm:$0xff]
    %v580 = vld [vmem:[#allocation5 + $0x798] sm:$0xff]
    %v581 = vld [vmem:[#allocation5 + $0x7a0] sm:$0xff]
    %v582 = vld [vmem:[#allocation5 + $0x7a8] sm:$0xff]
    %v583 = vld [vmem:[#allocation5 + $0x7b0] sm:$0xff]
    %v584 = vld [vmem:[#allocation5 + $0x7b8] sm:$0xff]
    %v585 = vld [vmem:[#allocation5 + $0x7c0] sm:$0xff]
    %v586 = vld [vmem:[#allocation5 + $0x7c8] sm:$0xff]
    %v587 = vld [vmem:[#allocation5 + $0x7d0] sm:$0xff]
    %v588 = vld [vmem:[#allocation5 + $0x7d8] sm:$0xff]
    %v589 = vld [vmem:[#allocation5 + $0x7e0] sm:$0xff]
    %v590 = vld [vmem:[#allocation5 + $0x7e8] sm:$0xff]
    %v591 = vld [vmem:[#allocation5 + $0x7f0] sm:$0xff]
    %v592 = vld [vmem:[#allocation5 + $0x7f8] sm:$0xff]
    %v593 = vld [vmem:[#allocation5 + $0x800] sm:$0xff]
    %v594 = vld [vmem:[#allocation5 + $0x808] sm:$0xff]
    %v595 = vld [vmem:[#allocation5 + $0x810] sm:$0xff]
    %v596 = vld [vmem:[#allocation5 + $0x818] sm:$0xff]
    %v597 = vld [vmem:[#allocation5 + $0x820] sm:$0xff]
    %v598 = vld [vmem:[#allocation5 + $0x828] sm:$0xff]
    %v599 = vld [vmem:[#allocation5 + $0x830] sm:$0xff]
    %v600 = vld [vmem:[#allocation5 + $0x838] sm:$0xff]
    %v601 = vld [vmem:[#allocation5 + $0x840] sm:$0xff]
    %v602 = vld [vmem:[#allocation5 + $0x848] sm:$0xff]
    %v603 = vld [vmem:[#allocation5 + $0x850] sm:$0xff]
    %v604 = vld [vmem:[#allocation5 + $0x858] sm:$0xff]
    %v605 = vld [vmem:[#allocation5 + $0x860] sm:$0xff]
    %v606 = vld [vmem:[#allocation5 + $0x868] sm:$0xff]
    %v607 = vld [vmem:[#allocation5 + $0x870] sm:$0xff]
    %v608 = vld [vmem:[#allocation5 + $0x878] sm:$0xff]
    %v609 = vld [vmem:[#allocation5 + $0x880] sm:$0xff]
    %v610 = vld [vmem:[#allocation5 + $0x888] sm:$0xff]
    %v611 = vld [vmem:[#allocation5 + $0x890] sm:$0xff]
    %v612 = vld [vmem:[#allocation5 + $0x898] sm:$0xff]
    %v613 = vld [vmem:[#allocation5 + $0x8a0] sm:$0xff]
    %v614 = vld [vmem:[#allocation5 + $0x8a8] sm:$0xff]
    %v615 = vld [vmem:[#allocation5 + $0x8b0] sm:$0xff]
    %v616 = vld [vmem:[#allocation5 + $0x8b8] sm:$0xff]
    %v617 = vld [vmem:[#allocation5 + $0x8c0] sm:$0xff]
    %v618 = vld [vmem:[#allocation5 + $0x8c8] sm:$0xff]
    %v619 = vld [vmem:[#allocation5 + $0x8d0] sm:$0xff]
    %v620 = vld [vmem:[#allocation5 + $0x8d8] sm:$0xff]
    %v621 = vld [vmem:[#allocation5 + $0x8e0] sm:$0xff]
    %v622 = vld [vmem:[#allocation5 + $0x8e8] sm:$0xff]
    %v623 = vld [vmem:[#allocation5 + $0x8f0] sm:$0xff]
    %v624 = vld [vmem:[#allocation5 + $0x8f8] sm:$0xff]
    %v772 = vunpack.c.l.b16 %v190
    %v773 = vunpack.c.h.b16 %v190
    %v774 = vunpack.c.l.b16 %v191
    %v775 = vunpack.c.h.b16 %v191
    %v776 = vunpack.c.l.b16 %v192
    %v777 = vunpack.c.h.b16 %v192
    %v778 = vunpack.c.l.b16 %v193
    %v779 = vunpack.c.h.b16 %v193
    %v780 = vunpack.c.l.b16 %v194
    %v781 = vunpack.c.h.b16 %v194
    %v782 = vunpack.c.l.b16 %v195
    %v783 = vunpack.c.h.b16 %v195
    %v784 = vunpack.c.l.b16 %v196
    %v785 = vunpack.c.h.b16 %v196
    %v786 = vunpack.c.l.b16 %v197
    %v787 = vunpack.c.h.b16 %v197
    %v788 = vunpack.c.l.b16 %v198
    %v789 = vunpack.c.h.b16 %v198
    %v790 = vunpack.c.l.b16 %v199
    %v791 = vunpack.c.h.b16 %v199
    %v792 = vunpack.c.l.b16 %v200
    %v793 = vunpack.c.h.b16 %v200
    %v794 = vunpack.c.l.b16 %v201
    %v795 = vunpack.c.h.b16 %v201
    %v796 = vunpack.c.l.b16 %v202
    %v797 = vunpack.c.h.b16 %v202
    %v798 = vunpack.c.l.b16 %v203
    %v799 = vunpack.c.h.b16 %v203
    %v800 = vunpack.c.l.b16 %v204
    %v801 = vunpack.c.h.b16 %v204
    %v802 = vunpack.c.l.b16 %v205
    %v803 = vunpack.c.h.b16 %v205
    %v804 = vunpack.c.l.b16 %v206
    %v805 = vunpack.c.h.b16 %v206
    %v806 = vunpack.c.l.b16 %v207
    %v807 = vunpack.c.h.b16 %v207
    %v808 = vunpack.c.l.b16 %v208
    %v809 = vunpack.c.h.b16 %v208
    %v810 = vunpack.c.l.b16 %v209
    %v811 = vunpack.c.h.b16 %v209
    %v812 = vunpack.c.l.b16 %v210
    %v813 = vunpack.c.h.b16 %v210
    %v814 = vunpack.c.l.b16 %v211
    %v815 = vunpack.c.h.b16 %v211
    %v816 = vunpack.c.l.b16 %v212
    %v817 = vunpack.c.h.b16 %v212
    %v818 = vunpack.c.l.b16 %v213
    %v819 = vunpack.c.h.b16 %v213
    %v820 = vunpack.c.l.b16 %v214
    %v821 = vunpack.c.h.b16 %v214
    %v822 = vunpack.c.l.b16 %v215
    %v823 = vunpack.c.h.b16 %v215
    %v824 = vunpack.c.l.b16 %v216
    %v825 = vunpack.c.h.b16 %v216
    %v826 = vunpack.c.l.b16 %v217
    %v827 = vunpack.c.h.b16 %v217
    %v828 = vunpack.c.l.b16 %v218
    %v829 = vunpack.c.h.b16 %v218
    %v830 = vunpack.c.l.b16 %v219
    %v831 = vunpack.c.h.b16 %v219
    %v832 = vunpack.c.l.b16 %v220
    %v833 = vunpack.c.h.b16 %v220
    %v834 = vunpack.c.l.b16 %v221
    %v835 = vunpack.c.h.b16 %v221
    %v836 = vunpack.c.l.b16 %v222
    %v837 = vunpack.c.h.b16 %v222
    %v838 = vunpack.c.l.b16 %v223
    %v839 = vunpack.c.h.b16 %v223
    %v840 = vunpack.c.l.b16 %v224
    %v841 = vunpack.c.h.b16 %v224
    %v842 = vunpack.c.l.b16 %v225
    %v843 = vunpack.c.h.b16 %v225
    %v844 = vunpack.c.l.b16 %v226
    %v845 = vunpack.c.h.b16 %v226
    %v846 = vunpack.c.l.b16 %v227
    %v847 = vunpack.c.h.b16 %v227
    %v848 = vunpack.c.l.b16 %v228
    %v849 = vunpack.c.h.b16 %v228
    %v850 = vunpack.c.l.b16 %v229
    %v851 = vunpack.c.h.b16 %v229
    %v852 = vunpack.c.l.b16 %v230
    %v853 = vunpack.c.h.b16 %v230
    %v854 = vunpack.c.l.b16 %v231
    %v855 = vunpack.c.h.b16 %v231
    %v856 = vunpack.c.l.b16 %v232
    %v857 = vunpack.c.h.b16 %v232
    %v858 = vunpack.c.l.b16 %v233
    %v859 = vunpack.c.h.b16 %v233
    %v860 = vunpack.c.l.b16 %v234
    %v861 = vunpack.c.h.b16 %v234
    %v862 = vunpack.c.l.b16 %v235
    %v863 = vunpack.c.h.b16 %v235
    %v864 = vunpack.c.l.b16 %v236
    %v865 = vunpack.c.h.b16 %v236
    %v866 = vunpack.c.l.b16 %v237
    %v867 = vunpack.c.h.b16 %v237
    %v868 = vunpack.c.l.b16 %v238
    %v869 = vunpack.c.h.b16 %v238
    %v870 = vunpack.c.l.b16 %v239
    %v871 = vunpack.c.h.b16 %v239
    %v872 = vunpack.c.l.b16 %v240
    %v873 = vunpack.c.h.b16 %v240
    %v874 = vunpack.c.l.b16 %v241
    %v875 = vunpack.c.h.b16 %v241
    %v876 = vunpack.c.l.b16 %v242
    %v877 = vunpack.c.h.b16 %v242
    %v878 = vunpack.c.l.b16 %v243
    %v879 = vunpack.c.h.b16 %v243
    %v880 = vunpack.c.l.b16 %v244
    %v881 = vunpack.c.h.b16 %v244
    %v882 = vunpack.c.l.b16 %v245
    %v883 = vunpack.c.h.b16 %v245
    %v884 = vunpack.c.l.b16 %v246
    %v885 = vunpack.c.h.b16 %v246
    %v886 = vunpack.c.l.b16 %v247
    %v887 = vunpack.c.h.b16 %v247
    %v888 = vunpack.c.l.b16 %v248
    %v889 = vunpack.c.h.b16 %v248
    %v890 = vunpack.c.l.b16 %v249
    %v891 = vunpack.c.h.b16 %v249
    %v892 = vunpack.c.l.b16 %v250
    %v893 = vunpack.c.h.b16 %v250
    %v894 = vunpack.c.l.b16 %v251
    %v895 = vunpack.c.h.b16 %v251
    %v896 = vunpack.c.l.b16 %v252
    %v897 = vunpack.c.h.b16 %v252
    %v898 = vunpack.c.l.b16 %v253
    %v899 = vunpack.c.h.b16 %v253
    %v900 = vunpack.c.l.b16 %v254
    %v901 = vunpack.c.h.b16 %v254
    %v902 = vunpack.c.l.b16 %v255
    %v903 = vunpack.c.h.b16 %v255
    %v904 = vunpack.c.l.b16 %v256
    %v905 = vunpack.c.h.b16 %v256
    %v906 = vunpack.c.l.b16 %v257
    %v907 = vunpack.c.h.b16 %v257
    %v908 = vunpack.c.l.b16 %v258
    %v909 = vunpack.c.h.b16 %v258
    %v910 = vunpack.c.l.b16 %v259
    %v911 = vunpack.c.h.b16 %v259
    %v912 = vunpack.c.l.b16 %v260
    %v913 = vunpack.c.h.b16 %v260
    %v914 = vunpack.c.l.b16 %v261
    %v915 = vunpack.c.h.b16 %v261
    %v916 = vunpack.c.l.b16 %v262
    %v917 = vunpack.c.h.b16 %v262
    %v918 = vunpack.c.l.b16 %v263
    %v919 = vunpack.c.h.b16 %v263
    %v920 = vunpack.c.l.b16 %v264
    %v921 = vunpack.c.h.b16 %v264
    %v922 = vunpack.c.l.b16 %v265
    %v923 = vunpack.c.h.b16 %v265
    %v924 = vunpack.c.l.b16 %v266
    %v925 = vunpack.c.h.b16 %v266
    %v926 = vunpack.c.l.b16 %v267
    %v927 = vunpack.c.h.b16 %v267
    %v928 = vunpack.c.l.b16 %v268
    %v929 = vunpack.c.h.b16 %v268
    %v930 = vunpack.c.l.b16 %v269
    %v931 = vunpack.c.h.b16 %v269
    %v932 = vunpack.c.l.b16 %v270
    %v933 = vunpack.c.h.b16 %v270
    %v934 = vunpack.c.l.b16 %v271
    %v935 = vunpack.c.h.b16 %v271
    %v936 = vunpack.c.l.b16 %v272
    %v937 = vunpack.c.h.b16 %v272
    %v938 = vunpack.c.l.b16 %v273
    %v939 = vunpack.c.h.b16 %v273
    %v940 = vunpack.c.l.b16 %v274
    %v941 = vunpack.c.h.b16 %v274
    %v942 = vunpack.c.l.b16 %v275
    %v943 = vunpack.c.h.b16 %v275
    %v944 = vunpack.c.l.b16 %v276
    %v945 = vunpack.c.h.b16 %v276
    %v946 = vunpack.c.l.b16 %v277
    %v947 = vunpack.c.h.b16 %v277
    %v948 = vunpack.c.l.b16 %v278
    %v949 = vunpack.c.h.b16 %v278
    %v950 = vunpack.c.l.b16 %v279
    %v951 = vunpack.c.h.b16 %v279
    %v952 = vunpack.c.l.b16 %v280
    %v953 = vunpack.c.h.b16 %v280
    %v954 = vunpack.c.l.b16 %v281
    %v955 = vunpack.c.h.b16 %v281
    %v956 = vunpack.c.l.b16 %v282
    %v957 = vunpack.c.h.b16 %v282
    %v958 = vunpack.c.l.b16 %v283
    %v959 = vunpack.c.h.b16 %v283
    %v960 = vunpack.c.l.b16 %v284
    %v961 = vunpack.c.h.b16 %v284
    %v962 = vunpack.c.l.b16 %v285
    %v963 = vunpack.c.h.b16 %v285
    %v964 = vunpack.c.l.b16 %v286
    %v965 = vunpack.c.h.b16 %v286
    %v966 = vunpack.c.l.b16 %v287
    %v967 = vunpack.c.h.b16 %v287
    %v968 = vunpack.c.l.b16 %v288
    %v969 = vunpack.c.h.b16 %v288
    %v970 = vunpack.c.l.b16 %v289
    %v971 = vunpack.c.h.b16 %v289
    %v972 = vunpack.c.l.b16 %v290
    %v973 = vunpack.c.h.b16 %v290
    %v974 = vunpack.c.l.b16 %v291
    %v975 = vunpack.c.h.b16 %v291
    %v976 = vunpack.c.l.b16 %v292
    %v977 = vunpack.c.h.b16 %v292
    %v978 = vunpack.c.l.b16 %v293
    %v979 = vunpack.c.h.b16 %v293
    %v980 = vunpack.c.l.b16 %v294
    %v981 = vunpack.c.h.b16 %v294
    %v982 = vunpack.c.l.b16 %v295
    %v983 = vunpack.c.h.b16 %v295
    %v984 = vunpack.c.l.b16 %v296
    %v985 = vunpack.c.h.b16 %v296
    %v986 = vunpack.c.l.b16 %v297
    %v987 = vunpack.c.h.b16 %v297
    %v988 = vunpack.c.l.b16 %v298
    %v989 = vunpack.c.h.b16 %v298
    %v990 = vunpack.c.l.b16 %v299
    %v991 = vunpack.c.h.b16 %v299
    %v992 = vunpack.c.l.b16 %v300
    %v993 = vunpack.c.h.b16 %v300
    %v994 = vunpack.c.l.b16 %v301
    %v995 = vunpack.c.h.b16 %v301
    %v996 = vunpack.c.l.b16 %v302
    %v997 = vunpack.c.h.b16 %v302
    %v998 = vunpack.c.l.b16 %v303
    %v999 = vunpack.c.h.b16 %v303
    %v1000 = vunpack.c.l.b16 %v304
    %v1001 = vunpack.c.h.b16 %v304
    %v1002 = vunpack.c.l.b16 %v305
    %v1003 = vunpack.c.h.b16 %v305
    %v1004 = vunpack.c.l.b16 %v306
    %v1005 = vunpack.c.h.b16 %v306
    %v1006 = vunpack.c.l.b16 %v307
    %v1007 = vunpack.c.h.b16 %v307
    %v1008 = vunpack.c.l.b16 %v308
    %v1009 = vunpack.c.h.b16 %v308
    %v1010 = vunpack.c.l.b16 %v309
    %v1011 = vunpack.c.h.b16 %v309
    %v1012 = vunpack.c.l.b16 %v310
    %v1013 = vunpack.c.h.b16 %v310
    %v1014 = vunpack.c.l.b16 %v311
    %v1015 = vunpack.c.h.b16 %v311
    %v1016 = vunpack.c.l.b16 %v312
    %v1017 = vunpack.c.h.b16 %v312
    %v1018 = vunpack.c.l.b16 %v313
    %v1019 = vunpack.c.h.b16 %v313
    %v1020 = vunpack.c.l.b16 %v314
    %v1021 = vunpack.c.h.b16 %v314
    %v1022 = vunpack.c.l.b16 %v315
    %v1023 = vunpack.c.h.b16 %v315
    %v1024 = vunpack.c.l.b16 %v316
    %v1025 = vunpack.c.h.b16 %v316
    %v1026 = vunpack.c.l.b16 %v317
    %v1027 = vunpack.c.h.b16 %v317
    %v1028 = vunpack.c.l.b16 %v318
    %v1029 = vunpack.c.h.b16 %v318
    %v1030 = vunpack.c.l.b16 %v319
    %v1031 = vunpack.c.h.b16 %v319
    %v1032 = vunpack.c.l.b16 %v320
    %v1033 = vunpack.c.h.b16 %v320
    %v1034 = vunpack.c.l.b16 %v321
    %v1035 = vunpack.c.h.b16 %v321
    %v1036 = vunpack.c.l.b16 %v322
    %v1037 = vunpack.c.h.b16 %v322
    %v1038 = vunpack.c.l.b16 %v323
    %v1039 = vunpack.c.h.b16 %v323
    %v1040 = vunpack.c.l.b16 %v324
    %v1041 = vunpack.c.h.b16 %v324
    %v1042 = vunpack.c.l.b16 %v325
    %v1043 = vunpack.c.h.b16 %v325
    %v1044 = vunpack.c.l.b16 %v326
    %v1045 = vunpack.c.h.b16 %v326
    %v1046 = vunpack.c.l.b16 %v327
    %v1047 = vunpack.c.h.b16 %v327
    %v1048 = vunpack.c.l.b16 %v328
    %v1049 = vunpack.c.h.b16 %v328
    %v1050 = vunpack.c.l.b16 %v329
    %v1051 = vunpack.c.h.b16 %v329
    %v1052 = vunpack.c.l.b16 %v330
    %v1053 = vunpack.c.h.b16 %v330
    %v1054 = vunpack.c.l.b16 %v331
    %v1055 = vunpack.c.h.b16 %v331
    %v1056 = vunpack.c.l.b16 %v332
    %v1057 = vunpack.c.h.b16 %v332
    %v1058 = vunpack.c.l.b16 %v333
    %v1059 = vunpack.c.h.b16 %v333
    %v1060 = vunpack.c.l.b16 %v334
    %v1061 = vunpack.c.h.b16 %v334
    %v1062 = vunpack.c.l.b16 %v335
    %v1063 = vunpack.c.h.b16 %v335
    %v1064 = vunpack.c.l.b16 %v336
    %v1065 = vunpack.c.h.b16 %v336
    %v1066 = vpack.c.b16 %v778, %v772
    %v1067 = vpack.c.b16 %v779, %v773
    %v1068 = vpack.c.b16 %v780, %v774
    %v1069 = vpack.c.b16 %v781, %v775
    %v1070 = vpack.c.b16 %v782, %v776
    %v1071 = vpack.c.b16 %v783, %v777
    %v1072 = vpack.c.b16 %v790, %v784
    %v1073 = vpack.c.b16 %v791, %v785
    %v1074 = vpack.c.b16 %v792, %v786
    %v1075 = vpack.c.b16 %v793, %v787
    %v1076 = vpack.c.b16 %v794, %v788
    %v1077 = vpack.c.b16 %v795, %v789
    %v1078 = vpack.c.b16 %v802, %v796
    %v1079 = vpack.c.b16 %v803, %v797
    %v1080 = vpack.c.b16 %v804, %v798
    %v1081 = vpack.c.b16 %v805, %v799
    %v1082 = vpack.c.b16 %v806, %v800
    %v1083 = vpack.c.b16 %v807, %v801
    %v1084 = vpack.c.b16 %v814, %v808
    %v1085 = vpack.c.b16 %v815, %v809
    %v1086 = vpack.c.b16 %v816, %v810
    %v1087 = vpack.c.b16 %v817, %v811
    %v1088 = vpack.c.b16 %v818, %v812
    %v1089 = vpack.c.b16 %v819, %v813
    %v1090 = vpack.c.b16 %v826, %v820
    %v1091 = vpack.c.b16 %v827, %v821
    %v1092 = vpack.c.b16 %v828, %v822
    %v1093 = vpack.c.b16 %v829, %v823
    %v1094 = vpack.c.b16 %v830, %v824
    %v1095 = vpack.c.b16 %v831, %v825
    %v1096 = vpack.c.b16 %v838, %v832
    %v1097 = vpack.c.b16 %v839, %v833
    %v1098 = vpack.c.b16 %v840, %v834
    %v1099 = vpack.c.b16 %v841, %v835
    %v1100 = vpack.c.b16 %v842, %v836
    %v1101 = vpack.c.b16 %v843, %v837
    %v1102 = vpack.c.b16 %v850, %v844
    %v1103 = vpack.c.b16 %v851, %v845
    %v1104 = vpack.c.b16 %v852, %v846
    %v1105 = vpack.c.b16 %v853, %v847
    %v1106 = vpack.c.b16 %v854, %v848
    %v1107 = vpack.c.b16 %v855, %v849
    %v1108 = vpack.c.b16 %v862, %v856
    %v1109 = vpack.c.b16 %v863, %v857
    %v1110 = vpack.c.b16 %v864, %v858
    %v1111 = vpack.c.b16 %v865, %v859
    %v1112 = vpack.c.b16 %v866, %v860
    %v1113 = vpack.c.b16 %v867, %v861
    %v1114 = vpack.c.b16 %v874, %v868
    %v1115 = vpack.c.b16 %v875, %v869
    %v1116 = vpack.c.b16 %v876, %v870
    %v1117 = vpack.c.b16 %v877, %v871
    %v1118 = vpack.c.b16 %v878, %v872
    %v1119 = vpack.c.b16 %v879, %v873
    %v1120 = vpack.c.b16 %v886, %v880
    %v1121 = vpack.c.b16 %v887, %v881
    %v1122 = vpack.c.b16 %v888, %v882
    %v1123 = vpack.c.b16 %v889, %v883
    %v1124 = vpack.c.b16 %v890, %v884
    %v1125 = vpack.c.b16 %v891, %v885
    %v1126 = vpack.c.b16 %v898, %v892
    %v1127 = vpack.c.b16 %v899, %v893
    %v1128 = vpack.c.b16 %v900, %v894
    %v1129 = vpack.c.b16 %v901, %v895
    %v1130 = vpack.c.b16 %v902, %v896
    %v1131 = vpack.c.b16 %v903, %v897
    %v1132 = vpack.c.b16 %v910, %v904
    %v1133 = vpack.c.b16 %v911, %v905
    %v1134 = vpack.c.b16 %v912, %v906
    %v1135 = vpack.c.b16 %v913, %v907
    %v1136 = vpack.c.b16 %v914, %v908
    %v1137 = vpack.c.b16 %v915, %v909
    %v1138 = vpack.c.b16 %v922, %v916
    %v1139 = vpack.c.b16 %v923, %v917
    %v1140 = vpack.c.b16 %v924, %v918
    %v1141 = vpack.c.b16 %v925, %v919
    %v1142 = vpack.c.b16 %v926, %v920
    %v1143 = vpack.c.b16 %v927, %v921
    %v1144 = vpack.c.b16 %v934, %v928
    %v1145 = vpack.c.b16 %v935, %v929
    %v1146 = vpack.c.b16 %v936, %v930
    %v1147 = vpack.c.b16 %v937, %v931
    %v1148 = vpack.c.b16 %v938, %v932
    %v1149 = vpack.c.b16 %v939, %v933
    %v1150 = vpack.c.b16 %v946, %v940
    %v1151 = vpack.c.b16 %v947, %v941
    %v1152 = vpack.c.b16 %v948, %v942
    %v1153 = vpack.c.b16 %v949, %v943
    %v1154 = vpack.c.b16 %v950, %v944
    %v1155 = vpack.c.b16 %v951, %v945
    %v1156 = vpack.c.b16 %v958, %v952
    %v1157 = vpack.c.b16 %v959, %v953
    %v1158 = vpack.c.b16 %v960, %v954
    %v1159 = vpack.c.b16 %v961, %v955
    %v1160 = vpack.c.b16 %v962, %v956
    %v1161 = vpack.c.b16 %v963, %v957
    %v1162 = vpack.c.b16 %v970, %v964
    %v1163 = vpack.c.b16 %v971, %v965
    %v1164 = vpack.c.b16 %v972, %v966
    %v1165 = vpack.c.b16 %v973, %v967
    %v1166 = vpack.c.b16 %v974, %v968
    %v1167 = vpack.c.b16 %v975, %v969
    %v1168 = vpack.c.b16 %v982, %v976
    %v1169 = vpack.c.b16 %v983, %v977
    %v1170 = vpack.c.b16 %v984, %v978
    %v1171 = vpack.c.b16 %v985, %v979
    %v1172 = vpack.c.b16 %v986, %v980
    %v1173 = vpack.c.b16 %v987, %v981
    %v1174 = vpack.c.b16 %v994, %v988
    %v1175 = vpack.c.b16 %v995, %v989
    %v1176 = vpack.c.b16 %v996, %v990
    %v1177 = vpack.c.b16 %v997, %v991
    %v1178 = vpack.c.b16 %v998, %v992
    %v1179 = vpack.c.b16 %v999, %v993
    %v1180 = vpack.c.b16 %v1006, %v1000
    %v1181 = vpack.c.b16 %v1007, %v1001
    %v1182 = vpack.c.b16 %v1008, %v1002
    %v1183 = vpack.c.b16 %v1009, %v1003
    %v1184 = vpack.c.b16 %v1010, %v1004
    %v1185 = vpack.c.b16 %v1011, %v1005
    %v1186 = vpack.c.b16 %v1018, %v1012
    %v1187 = vpack.c.b16 %v1019, %v1013
    %v1188 = vpack.c.b16 %v1020, %v1014
    %v1189 = vpack.c.b16 %v1021, %v1015
    %v1190 = vpack.c.b16 %v1022, %v1016
    %v1191 = vpack.c.b16 %v1023, %v1017
    %v1192 = vpack.c.b16 %v1030, %v1024
    %v1193 = vpack.c.b16 %v1031, %v1025
    %v1194 = vpack.c.b16 %v1032, %v1026
    %v1195 = vpack.c.b16 %v1033, %v1027
    %v1196 = vpack.c.b16 %v1034, %v1028
    %v1197 = vpack.c.b16 %v1035, %v1029
    %v1198 = vpack.c.b16 %v1042, %v1036
    %v1199 = vpack.c.b16 %v1043, %v1037
    %v1200 = vpack.c.b16 %v1044, %v1038
    %v1201 = vpack.c.b16 %v1045, %v1039
    %v1202 = vpack.c.b16 %v1046, %v1040
    %v1203 = vpack.c.b16 %v1047, %v1041
    %v1204 = vpack.c.b16 %v1054, %v1048
    %v1205 = vpack.c.b16 %v1055, %v1049
    %v1206 = vpack.c.b16 %v1056, %v1050
    %v1207 = vpack.c.b16 %v1057, %v1051
    %v1208 = vpack.c.b16 %v1058, %v1052
    %v1209 = vpack.c.b16 %v1059, %v1053
    %v1210 = vpack.c.b16 %v1060, %v1060
    %v1211 = vpack.c.b16 %v1061, %v1061
    %v1212 = vpack.c.b16 %v1062, %v1062
    %v1213 = vpack.c.b16 %v1063, %v1063
    %v1214 = vpack.c.b16 %v1064, %v1064
    %v1215 = vpack.c.b16 %v1065, %v1065
    %v1654 = vunpack.c.l.b16 %v337
    %v1655 = vunpack.c.h.b16 %v337
    %v1656 = vunpack.c.l.b16 %v338
    %v1657 = vunpack.c.h.b16 %v338
    %v1658 = vunpack.c.l.b16 %v339
    %v1659 = vunpack.c.h.b16 %v339
    %v1660 = vunpack.c.l.b16 %v340
    %v1661 = vunpack.c.h.b16 %v340
    %v1662 = vunpack.c.l.b16 %v341
    %v1663 = vunpack.c.h.b16 %v341
    %v1664 = vunpack.c.l.b16 %v342
    %v1665 = vunpack.c.h.b16 %v342
    %v1666 = vunpack.c.l.b16 %v343
    %v1667 = vunpack.c.h.b16 %v343
    %v1668 = vunpack.c.l.b16 %v344
    %v1669 = vunpack.c.h.b16 %v344
    %v1670 = vunpack.c.l.b16 %v345
    %v1671 = vunpack.c.h.b16 %v345
    %v1672 = vunpack.c.l.b16 %v346
    %v1673 = vunpack.c.h.b16 %v346
    %v1674 = vunpack.c.l.b16 %v347
    %v1675 = vunpack.c.h.b16 %v347
    %v1676 = vunpack.c.l.b16 %v348
    %v1677 = vunpack.c.h.b16 %v348
    %v1678 = vunpack.c.l.b16 %v349
    %v1679 = vunpack.c.h.b16 %v349
    %v1680 = vunpack.c.l.b16 %v350
    %v1681 = vunpack.c.h.b16 %v350
    %v1682 = vunpack.c.l.b16 %v351
    %v1683 = vunpack.c.h.b16 %v351
    %v1684 = vunpack.c.l.b16 %v352
    %v1685 = vunpack.c.h.b16 %v352
    %v1686 = vunpack.c.l.b16 %v353
    %v1687 = vunpack.c.h.b16 %v353
    %v1688 = vunpack.c.l.b16 %v354
    %v1689 = vunpack.c.h.b16 %v354
    %v1690 = vunpack.c.l.b16 %v355
    %v1691 = vunpack.c.h.b16 %v355
    %v1692 = vunpack.c.l.b16 %v356
    %v1693 = vunpack.c.h.b16 %v356
    %v1694 = vunpack.c.l.b16 %v357
    %v1695 = vunpack.c.h.b16 %v357
    %v1696 = vunpack.c.l.b16 %v358
    %v1697 = vunpack.c.h.b16 %v358
    %v1698 = vunpack.c.l.b16 %v359
    %v1699 = vunpack.c.h.b16 %v359
    %v1700 = vunpack.c.l.b16 %v360
    %v1701 = vunpack.c.h.b16 %v360
    %v1702 = vunpack.c.l.b16 %v361
    %v1703 = vunpack.c.h.b16 %v361
    %v1704 = vunpack.c.l.b16 %v362
    %v1705 = vunpack.c.h.b16 %v362
    %v1706 = vunpack.c.l.b16 %v363
    %v1707 = vunpack.c.h.b16 %v363
    %v1708 = vunpack.c.l.b16 %v364
    %v1709 = vunpack.c.h.b16 %v364
    %v1710 = vunpack.c.l.b16 %v365
    %v1711 = vunpack.c.h.b16 %v365
    %v1712 = vunpack.c.l.b16 %v366
    %v1713 = vunpack.c.h.b16 %v366
    %v1714 = vunpack.c.l.b16 %v367
    %v1715 = vunpack.c.h.b16 %v367
    %v1716 = vunpack.c.l.b16 %v368
    %v1717 = vunpack.c.h.b16 %v368
    %v1718 = vunpack.c.l.b16 %v369
    %v1719 = vunpack.c.h.b16 %v369
    %v1720 = vunpack.c.l.b16 %v370
    %v1721 = vunpack.c.h.b16 %v370
    %v1722 = vunpack.c.l.b16 %v371
    %v1723 = vunpack.c.h.b16 %v371
    %v1724 = vunpack.c.l.b16 %v372
    %v1725 = vunpack.c.h.b16 %v372
    %v1726 = vunpack.c.l.b16 %v373
    %v1727 = vunpack.c.h.b16 %v373
    %v1728 = vunpack.c.l.b16 %v374
    %v1729 = vunpack.c.h.b16 %v374
    %v1730 = vunpack.c.l.b16 %v375
    %v1731 = vunpack.c.h.b16 %v375
    %v1732 = vunpack.c.l.b16 %v376
    %v1733 = vunpack.c.h.b16 %v376
    %v1734 = vunpack.c.l.b16 %v377
    %v1735 = vunpack.c.h.b16 %v377
    %v1736 = vunpack.c.l.b16 %v378
    %v1737 = vunpack.c.h.b16 %v378
    %v1738 = vunpack.c.l.b16 %v379
    %v1739 = vunpack.c.h.b16 %v379
    %v1740 = vunpack.c.l.b16 %v380
    %v1741 = vunpack.c.h.b16 %v380
    %v1742 = vunpack.c.l.b16 %v381
    %v1743 = vunpack.c.h.b16 %v381
    %v1744 = vunpack.c.l.b16 %v382
    %v1745 = vunpack.c.h.b16 %v382
    %v1746 = vunpack.c.l.b16 %v383
    %v1747 = vunpack.c.h.b16 %v383
    %v1748 = vunpack.c.l.b16 %v384
    %v1749 = vunpack.c.h.b16 %v384
    %v1750 = vunpack.c.l.b16 %v385
    %v1751 = vunpack.c.h.b16 %v385
    %v1752 = vunpack.c.l.b16 %v386
    %v1753 = vunpack.c.h.b16 %v386
    %v1754 = vunpack.c.l.b16 %v387
    %v1755 = vunpack.c.h.b16 %v387
    %v1756 = vunpack.c.l.b16 %v388
    %v1757 = vunpack.c.h.b16 %v388
    %v1758 = vunpack.c.l.b16 %v389
    %v1759 = vunpack.c.h.b16 %v389
    %v1760 = vunpack.c.l.b16 %v390
    %v1761 = vunpack.c.h.b16 %v390
    %v1762 = vunpack.c.l.b16 %v391
    %v1763 = vunpack.c.h.b16 %v391
    %v1764 = vunpack.c.l.b16 %v392
    %v1765 = vunpack.c.h.b16 %v392
    %v1766 = vunpack.c.l.b16 %v393
    %v1767 = vunpack.c.h.b16 %v393
    %v1768 = vunpack.c.l.b16 %v394
    %v1769 = vunpack.c.h.b16 %v394
    %v1770 = vunpack.c.l.b16 %v395
    %v1771 = vunpack.c.h.b16 %v395
    %v1772 = vunpack.c.l.b16 %v396
    %v1773 = vunpack.c.h.b16 %v396
    %v1774 = vunpack.c.l.b16 %v397
    %v1775 = vunpack.c.h.b16 %v397
    %v1776 = vunpack.c.l.b16 %v398
    %v1777 = vunpack.c.h.b16 %v398
    %v1778 = vunpack.c.l.b16 %v399
    %v1779 = vunpack.c.h.b16 %v399
    %v1780 = vunpack.c.l.b16 %v400
    %v1781 = vunpack.c.h.b16 %v400
    %v1782 = vunpack.c.l.b16 %v401
    %v1783 = vunpack.c.h.b16 %v401
    %v1784 = vunpack.c.l.b16 %v402
    %v1785 = vunpack.c.h.b16 %v402
    %v1786 = vunpack.c.l.b16 %v403
    %v1787 = vunpack.c.h.b16 %v403
    %v1788 = vunpack.c.l.b16 %v404
    %v1789 = vunpack.c.h.b16 %v404
    %v1790 = vunpack.c.l.b16 %v405
    %v1791 = vunpack.c.h.b16 %v405
    %v1792 = vunpack.c.l.b16 %v406
    %v1793 = vunpack.c.h.b16 %v406
    %v1794 = vunpack.c.l.b16 %v407
    %v1795 = vunpack.c.h.b16 %v407
    %v1796 = vunpack.c.l.b16 %v408
    %v1797 = vunpack.c.h.b16 %v408
    %v1798 = vunpack.c.l.b16 %v409
    %v1799 = vunpack.c.h.b16 %v409
    %v1800 = vunpack.c.l.b16 %v410
    %v1801 = vunpack.c.h.b16 %v410
    %v1802 = vunpack.c.l.b16 %v411
    %v1803 = vunpack.c.h.b16 %v411
    %v1804 = vunpack.c.l.b16 %v412
    %v1805 = vunpack.c.h.b16 %v412
    %v1806 = vunpack.c.l.b16 %v413
    %v1807 = vunpack.c.h.b16 %v413
    %v1808 = vunpack.c.l.b16 %v414
    %v1809 = vunpack.c.h.b16 %v414
    %v1810 = vunpack.c.l.b16 %v415
    %v1811 = vunpack.c.h.b16 %v415
    %v1812 = vunpack.c.l.b16 %v416
    %v1813 = vunpack.c.h.b16 %v416
    %v1814 = vunpack.c.l.b16 %v417
    %v1815 = vunpack.c.h.b16 %v417
    %v1816 = vunpack.c.l.b16 %v418
    %v1817 = vunpack.c.h.b16 %v418
    %v1818 = vunpack.c.l.b16 %v419
    %v1819 = vunpack.c.h.b16 %v419
    %v1820 = vunpack.c.l.b16 %v420
    %v1821 = vunpack.c.h.b16 %v420
    %v1822 = vunpack.c.l.b16 %v421
    %v1823 = vunpack.c.h.b16 %v421
    %v1824 = vunpack.c.l.b16 %v422
    %v1825 = vunpack.c.h.b16 %v422
    %v1826 = vunpack.c.l.b16 %v423
    %v1827 = vunpack.c.h.b16 %v423
    %v1828 = vunpack.c.l.b16 %v424
    %v1829 = vunpack.c.h.b16 %v424
    %v1830 = vunpack.c.l.b16 %v425
    %v1831 = vunpack.c.h.b16 %v425
    %v1832 = vunpack.c.l.b16 %v426
    %v1833 = vunpack.c.h.b16 %v426
    %v1834 = vunpack.c.l.b16 %v427
    %v1835 = vunpack.c.h.b16 %v427
    %v1836 = vunpack.c.l.b16 %v428
    %v1837 = vunpack.c.h.b16 %v428
    %v1838 = vunpack.c.l.b16 %v429
    %v1839 = vunpack.c.h.b16 %v429
    %v1840 = vunpack.c.l.b16 %v430
    %v1841 = vunpack.c.h.b16 %v430
    %v1842 = vunpack.c.l.b16 %v431
    %v1843 = vunpack.c.h.b16 %v431
    %v1844 = vunpack.c.l.b16 %v432
    %v1845 = vunpack.c.h.b16 %v432
    %v1846 = vunpack.c.l.b16 %v433
    %v1847 = vunpack.c.h.b16 %v433
    %v1848 = vunpack.c.l.b16 %v434
    %v1849 = vunpack.c.h.b16 %v434
    %v1850 = vunpack.c.l.b16 %v435
    %v1851 = vunpack.c.h.b16 %v435
    %v1852 = vunpack.c.l.b16 %v436
    %v1853 = vunpack.c.h.b16 %v436
    %v1854 = vunpack.c.l.b16 %v437
    %v1855 = vunpack.c.h.b16 %v437
    %v1856 = vunpack.c.l.b16 %v438
    %v1857 = vunpack.c.h.b16 %v438
    %v1858 = vunpack.c.l.b16 %v439
    %v1859 = vunpack.c.h.b16 %v439
    %v1860 = vunpack.c.l.b16 %v440
    %v1861 = vunpack.c.h.b16 %v440
    %v1862 = vunpack.c.l.b16 %v441
    %v1863 = vunpack.c.h.b16 %v441
    %v1864 = vunpack.c.l.b16 %v442
    %v1865 = vunpack.c.h.b16 %v442
    %v1866 = vunpack.c.l.b16 %v443
    %v1867 = vunpack.c.h.b16 %v443
    %v1868 = vunpack.c.l.b16 %v444
    %v1869 = vunpack.c.h.b16 %v444
    %v1870 = vunpack.c.l.b16 %v445
    %v1871 = vunpack.c.h.b16 %v445
    %v1872 = vunpack.c.l.b16 %v446
    %v1873 = vunpack.c.h.b16 %v446
    %v1874 = vunpack.c.l.b16 %v447
    %v1875 = vunpack.c.h.b16 %v447
    %v1876 = vunpack.c.l.b16 %v448
    %v1877 = vunpack.c.h.b16 %v448
    %v1878 = vunpack.c.l.b16 %v449
    %v1879 = vunpack.c.h.b16 %v449
    %v1880 = vunpack.c.l.b16 %v450
    %v1881 = vunpack.c.h.b16 %v450
    %v1882 = vunpack.c.l.b16 %v451
    %v1883 = vunpack.c.h.b16 %v451
    %v1884 = vunpack.c.l.b16 %v452
    %v1885 = vunpack.c.h.b16 %v452
    %v1886 = vunpack.c.l.b16 %v453
    %v1887 = vunpack.c.h.b16 %v453
    %v1888 = vunpack.c.l.b16 %v454
    %v1889 = vunpack.c.h.b16 %v454
    %v1890 = vunpack.c.l.b16 %v455
    %v1891 = vunpack.c.h.b16 %v455
    %v1892 = vunpack.c.l.b16 %v456
    %v1893 = vunpack.c.h.b16 %v456
    %v1894 = vunpack.c.l.b16 %v457
    %v1895 = vunpack.c.h.b16 %v457
    %v1896 = vunpack.c.l.b16 %v458
    %v1897 = vunpack.c.h.b16 %v458
    %v1898 = vunpack.c.l.b16 %v459
    %v1899 = vunpack.c.h.b16 %v459
    %v1900 = vunpack.c.l.b16 %v460
    %v1901 = vunpack.c.h.b16 %v460
    %v1902 = vunpack.c.l.b16 %v461
    %v1903 = vunpack.c.h.b16 %v461
    %v1904 = vunpack.c.l.b16 %v462
    %v1905 = vunpack.c.h.b16 %v462
    %v1906 = vunpack.c.l.b16 %v463
    %v1907 = vunpack.c.h.b16 %v463
    %v1908 = vunpack.c.l.b16 %v464
    %v1909 = vunpack.c.h.b16 %v464
    %v1910 = vunpack.c.l.b16 %v465
    %v1911 = vunpack.c.h.b16 %v465
    %v1912 = vunpack.c.l.b16 %v466
    %v1913 = vunpack.c.h.b16 %v466
    %v1914 = vunpack.c.l.b16 %v467
    %v1915 = vunpack.c.h.b16 %v467
    %v1916 = vunpack.c.l.b16 %v468
    %v1917 = vunpack.c.h.b16 %v468
    %v1918 = vunpack.c.l.b16 %v469
    %v1919 = vunpack.c.h.b16 %v469
    %v1920 = vunpack.c.l.b16 %v470
    %v1921 = vunpack.c.h.b16 %v470
    %v1922 = vunpack.c.l.b16 %v471
    %v1923 = vunpack.c.h.b16 %v471
    %v1924 = vunpack.c.l.b16 %v472
    %v1925 = vunpack.c.h.b16 %v472
    %v1926 = vunpack.c.l.b16 %v473
    %v1927 = vunpack.c.h.b16 %v473
    %v1928 = vunpack.c.l.b16 %v474
    %v1929 = vunpack.c.h.b16 %v474
    %v1930 = vunpack.c.l.b16 %v475
    %v1931 = vunpack.c.h.b16 %v475
    %v1932 = vunpack.c.l.b16 %v476
    %v1933 = vunpack.c.h.b16 %v476
    %v1934 = vunpack.c.l.b16 %v477
    %v1935 = vunpack.c.h.b16 %v477
    %v1936 = vunpack.c.l.b16 %v478
    %v1937 = vunpack.c.h.b16 %v478
    %v1938 = vunpack.c.l.b16 %v479
    %v1939 = vunpack.c.h.b16 %v479
    %v1940 = vunpack.c.l.b16 %v480
    %v1941 = vunpack.c.h.b16 %v480
    %v1942 = vunpack.c.l.b16 %v481
    %v1943 = vunpack.c.h.b16 %v481
    %v1944 = vunpack.c.l.b16 %v482
    %v1945 = vunpack.c.h.b16 %v482
    %v1946 = vunpack.c.l.b16 %v483
    %v1947 = vunpack.c.h.b16 %v483
    %v1948 = vunpack.c.l.b16 %v484
    %v1949 = vunpack.c.h.b16 %v484
    %v1950 = vunpack.c.l.b16 %v485
    %v1951 = vunpack.c.h.b16 %v485
    %v1952 = vunpack.c.l.b16 %v486
    %v1953 = vunpack.c.h.b16 %v486
    %v1954 = vunpack.c.l.b16 %v487
    %v1955 = vunpack.c.h.b16 %v487
    %v1956 = vunpack.c.l.b16 %v488
    %v1957 = vunpack.c.h.b16 %v488
    %v1958 = vunpack.c.l.b16 %v489
    %v1959 = vunpack.c.h.b16 %v489
    %v1960 = vunpack.c.l.b16 %v490
    %v1961 = vunpack.c.h.b16 %v490
    %v1962 = vunpack.c.l.b16 %v491
    %v1963 = vunpack.c.h.b16 %v491
    %v1964 = vunpack.c.l.b16 %v492
    %v1965 = vunpack.c.h.b16 %v492
    %v1966 = vunpack.c.l.b16 %v493
    %v1967 = vunpack.c.h.b16 %v493
    %v1968 = vunpack.c.l.b16 %v494
    %v1969 = vunpack.c.h.b16 %v494
    %v1970 = vunpack.c.l.b16 %v495
    %v1971 = vunpack.c.h.b16 %v495
    %v1972 = vunpack.c.l.b16 %v496
    %v1973 = vunpack.c.h.b16 %v496
    %v1974 = vunpack.c.l.b16 %v497
    %v1975 = vunpack.c.h.b16 %v497
    %v1976 = vunpack.c.l.b16 %v498
    %v1977 = vunpack.c.h.b16 %v498
    %v1978 = vunpack.c.l.b16 %v499
    %v1979 = vunpack.c.h.b16 %v499
    %v1980 = vunpack.c.l.b16 %v500
    %v1981 = vunpack.c.h.b16 %v500
    %v1982 = vunpack.c.l.b16 %v501
    %v1983 = vunpack.c.h.b16 %v501
    %v1984 = vunpack.c.l.b16 %v502
    %v1985 = vunpack.c.h.b16 %v502
    %v1986 = vunpack.c.l.b16 %v503
    %v1987 = vunpack.c.h.b16 %v503
    %v1988 = vunpack.c.l.b16 %v504
    %v1989 = vunpack.c.h.b16 %v504
    %v1990 = vunpack.c.l.b16 %v505
    %v1991 = vunpack.c.h.b16 %v505
    %v1992 = vunpack.c.l.b16 %v506
    %v1993 = vunpack.c.h.b16 %v506
    %v1994 = vunpack.c.l.b16 %v507
    %v1995 = vunpack.c.h.b16 %v507
    %v1996 = vunpack.c.l.b16 %v508
    %v1997 = vunpack.c.h.b16 %v508
    %v1998 = vunpack.c.l.b16 %v509
    %v1999 = vunpack.c.h.b16 %v509
    %v2000 = vunpack.c.l.b16 %v510
    %v2001 = vunpack.c.h.b16 %v510
    %v2002 = vunpack.c.l.b16 %v511
    %v2003 = vunpack.c.h.b16 %v511
    %v2004 = vunpack.c.l.b16 %v512
    %v2005 = vunpack.c.h.b16 %v512
    %v2006 = vunpack.c.l.b16 %v513
    %v2007 = vunpack.c.h.b16 %v513
    %v2008 = vunpack.c.l.b16 %v514
    %v2009 = vunpack.c.h.b16 %v514
    %v2010 = vunpack.c.l.b16 %v515
    %v2011 = vunpack.c.h.b16 %v515
    %v2012 = vunpack.c.l.b16 %v516
    %v2013 = vunpack.c.h.b16 %v516
    %v2014 = vunpack.c.l.b16 %v517
    %v2015 = vunpack.c.h.b16 %v517
    %v2016 = vunpack.c.l.b16 %v518
    %v2017 = vunpack.c.h.b16 %v518
    %v2018 = vunpack.c.l.b16 %v519
    %v2019 = vunpack.c.h.b16 %v519
    %v2020 = vunpack.c.l.b16 %v520
    %v2021 = vunpack.c.h.b16 %v520
    %v2022 = vunpack.c.l.b16 %v521
    %v2023 = vunpack.c.h.b16 %v521
    %v2024 = vunpack.c.l.b16 %v522
    %v2025 = vunpack.c.h.b16 %v522
    %v2026 = vunpack.c.l.b16 %v523
    %v2027 = vunpack.c.h.b16 %v523
    %v2028 = vunpack.c.l.b16 %v524
    %v2029 = vunpack.c.h.b16 %v524
    %v2030 = vunpack.c.l.b16 %v525
    %v2031 = vunpack.c.h.b16 %v525
    %v2032 = vunpack.c.l.b16 %v526
    %v2033 = vunpack.c.h.b16 %v526
    %v2034 = vunpack.c.l.b16 %v527
    %v2035 = vunpack.c.h.b16 %v527
    %v2036 = vunpack.c.l.b16 %v528
    %v2037 = vunpack.c.h.b16 %v528
    %v2038 = vunpack.c.l.b16 %v529
    %v2039 = vunpack.c.h.b16 %v529
    %v2040 = vunpack.c.l.b16 %v530
    %v2041 = vunpack.c.h.b16 %v530
    %v2042 = vunpack.c.l.b16 %v531
    %v2043 = vunpack.c.h.b16 %v531
    %v2044 = vunpack.c.l.b16 %v532
    %v2045 = vunpack.c.h.b16 %v532
    %v2046 = vunpack.c.l.b16 %v533
    %v2047 = vunpack.c.h.b16 %v533
    %v2048 = vunpack.c.l.b16 %v534
    %v2049 = vunpack.c.h.b16 %v534
    %v2050 = vunpack.c.l.b16 %v535
    %v2051 = vunpack.c.h.b16 %v535
    %v2052 = vunpack.c.l.b16 %v536
    %v2053 = vunpack.c.h.b16 %v536
    %v2054 = vunpack.c.l.b16 %v537
    %v2055 = vunpack.c.h.b16 %v537
    %v2056 = vunpack.c.l.b16 %v538
    %v2057 = vunpack.c.h.b16 %v538
    %v2058 = vunpack.c.l.b16 %v539
    %v2059 = vunpack.c.h.b16 %v539
    %v2060 = vunpack.c.l.b16 %v540
    %v2061 = vunpack.c.h.b16 %v540
    %v2062 = vunpack.c.l.b16 %v541
    %v2063 = vunpack.c.h.b16 %v541
    %v2064 = vunpack.c.l.b16 %v542
    %v2065 = vunpack.c.h.b16 %v542
    %v2066 = vunpack.c.l.b16 %v543
    %v2067 = vunpack.c.h.b16 %v543
    %v2068 = vunpack.c.l.b16 %v544
    %v2069 = vunpack.c.h.b16 %v544
    %v2070 = vunpack.c.l.b16 %v545
    %v2071 = vunpack.c.h.b16 %v545
    %v2072 = vunpack.c.l.b16 %v546
    %v2073 = vunpack.c.h.b16 %v546
    %v2074 = vunpack.c.l.b16 %v547
    %v2075 = vunpack.c.h.b16 %v547
    %v2076 = vunpack.c.l.b16 %v548
    %v2077 = vunpack.c.h.b16 %v548
    %v2078 = vunpack.c.l.b16 %v549
    %v2079 = vunpack.c.h.b16 %v549
    %v2080 = vunpack.c.l.b16 %v550
    %v2081 = vunpack.c.h.b16 %v550
    %v2082 = vunpack.c.l.b16 %v551
    %v2083 = vunpack.c.h.b16 %v551
    %v2084 = vunpack.c.l.b16 %v552
    %v2085 = vunpack.c.h.b16 %v552
    %v2086 = vunpack.c.l.b16 %v553
    %v2087 = vunpack.c.h.b16 %v553
    %v2088 = vunpack.c.l.b16 %v554
    %v2089 = vunpack.c.h.b16 %v554
    %v2090 = vunpack.c.l.b16 %v555
    %v2091 = vunpack.c.h.b16 %v555
    %v2092 = vunpack.c.l.b16 %v556
    %v2093 = vunpack.c.h.b16 %v556
    %v2094 = vunpack.c.l.b16 %v557
    %v2095 = vunpack.c.h.b16 %v557
    %v2096 = vunpack.c.l.b16 %v558
    %v2097 = vunpack.c.h.b16 %v558
    %v2098 = vunpack.c.l.b16 %v559
    %v2099 = vunpack.c.h.b16 %v559
    %v2100 = vunpack.c.l.b16 %v560
    %v2101 = vunpack.c.h.b16 %v560
    %v2102 = vunpack.c.l.b16 %v561
    %v2103 = vunpack.c.h.b16 %v561
    %v2104 = vunpack.c.l.b16 %v562
    %v2105 = vunpack.c.h.b16 %v562
    %v2106 = vunpack.c.l.b16 %v563
    %v2107 = vunpack.c.h.b16 %v563
    %v2108 = vunpack.c.l.b16 %v564
    %v2109 = vunpack.c.h.b16 %v564
    %v2110 = vunpack.c.l.b16 %v565
    %v2111 = vunpack.c.h.b16 %v565
    %v2112 = vunpack.c.l.b16 %v566
    %v2113 = vunpack.c.h.b16 %v566
    %v2114 = vunpack.c.l.b16 %v567
    %v2115 = vunpack.c.h.b16 %v567
    %v2116 = vunpack.c.l.b16 %v568
    %v2117 = vunpack.c.h.b16 %v568
    %v2118 = vunpack.c.l.b16 %v569
    %v2119 = vunpack.c.h.b16 %v569
    %v2120 = vunpack.c.l.b16 %v570
    %v2121 = vunpack.c.h.b16 %v570
    %v2122 = vunpack.c.l.b16 %v571
    %v2123 = vunpack.c.h.b16 %v571
    %v2124 = vunpack.c.l.b16 %v572
    %v2125 = vunpack.c.h.b16 %v572
    %v2126 = vunpack.c.l.b16 %v573
    %v2127 = vunpack.c.h.b16 %v573
    %v2128 = vunpack.c.l.b16 %v574
    %v2129 = vunpack.c.h.b16 %v574
    %v2130 = vunpack.c.l.b16 %v575
    %v2131 = vunpack.c.h.b16 %v575
    %v2132 = vunpack.c.l.b16 %v576
    %v2133 = vunpack.c.h.b16 %v576
    %v2134 = vunpack.c.l.b16 %v577
    %v2135 = vunpack.c.h.b16 %v577
    %v2136 = vunpack.c.l.b16 %v578
    %v2137 = vunpack.c.h.b16 %v578
    %v2138 = vunpack.c.l.b16 %v579
    %v2139 = vunpack.c.h.b16 %v579
    %v2140 = vunpack.c.l.b16 %v580
    %v2141 = vunpack.c.h.b16 %v580
    %v2142 = vunpack.c.l.b16 %v581
    %v2143 = vunpack.c.h.b16 %v581
    %v2144 = vunpack.c.l.b16 %v582
    %v2145 = vunpack.c.h.b16 %v582
    %v2146 = vunpack.c.l.b16 %v583
    %v2147 = vunpack.c.h.b16 %v583
    %v2148 = vunpack.c.l.b16 %v584
    %v2149 = vunpack.c.h.b16 %v584
    %v2150 = vunpack.c.l.b16 %v585
    %v2151 = vunpack.c.h.b16 %v585
    %v2152 = vunpack.c.l.b16 %v586
    %v2153 = vunpack.c.h.b16 %v586
    %v2154 = vunpack.c.l.b16 %v587
    %v2155 = vunpack.c.h.b16 %v587
    %v2156 = vunpack.c.l.b16 %v588
    %v2157 = vunpack.c.h.b16 %v588
    %v2158 = vunpack.c.l.b16 %v589
    %v2159 = vunpack.c.h.b16 %v589
    %v2160 = vunpack.c.l.b16 %v590
    %v2161 = vunpack.c.h.b16 %v590
    %v2162 = vunpack.c.l.b16 %v591
    %v2163 = vunpack.c.h.b16 %v591
    %v2164 = vunpack.c.l.b16 %v592
    %v2165 = vunpack.c.h.b16 %v592
    %v2166 = vunpack.c.l.b16 %v593
    %v2167 = vunpack.c.h.b16 %v593
    %v2168 = vunpack.c.l.b16 %v594
    %v2169 = vunpack.c.h.b16 %v594
    %v2170 = vunpack.c.l.b16 %v595
    %v2171 = vunpack.c.h.b16 %v595
    %v2172 = vunpack.c.l.b16 %v596
    %v2173 = vunpack.c.h.b16 %v596
    %v2174 = vunpack.c.l.b16 %v597
    %v2175 = vunpack.c.h.b16 %v597
    %v2176 = vunpack.c.l.b16 %v598
    %v2177 = vunpack.c.h.b16 %v598
    %v2178 = vunpack.c.l.b16 %v599
    %v2179 = vunpack.c.h.b16 %v599
    %v2180 = vunpack.c.l.b16 %v600
    %v2181 = vunpack.c.h.b16 %v600
    %v2182 = vunpack.c.l.b16 %v601
    %v2183 = vunpack.c.h.b16 %v601
    %v2184 = vunpack.c.l.b16 %v602
    %v2185 = vunpack.c.h.b16 %v602
    %v2186 = vunpack.c.l.b16 %v603
    %v2187 = vunpack.c.h.b16 %v603
    %v2188 = vunpack.c.l.b16 %v604
    %v2189 = vunpack.c.h.b16 %v604
    %v2190 = vunpack.c.l.b16 %v605
    %v2191 = vunpack.c.h.b16 %v605
    %v2192 = vunpack.c.l.b16 %v606
    %v2193 = vunpack.c.h.b16 %v606
    %v2194 = vunpack.c.l.b16 %v607
    %v2195 = vunpack.c.h.b16 %v607
    %v2196 = vunpack.c.l.b16 %v608
    %v2197 = vunpack.c.h.b16 %v608
    %v2198 = vunpack.c.l.b16 %v609
    %v2199 = vunpack.c.h.b16 %v609
    %v2200 = vunpack.c.l.b16 %v610
    %v2201 = vunpack.c.h.b16 %v610
    %v2202 = vunpack.c.l.b16 %v611
    %v2203 = vunpack.c.h.b16 %v611
    %v2204 = vunpack.c.l.b16 %v612
    %v2205 = vunpack.c.h.b16 %v612
    %v2206 = vunpack.c.l.b16 %v613
    %v2207 = vunpack.c.h.b16 %v613
    %v2208 = vunpack.c.l.b16 %v614
    %v2209 = vunpack.c.h.b16 %v614
    %v2210 = vunpack.c.l.b16 %v615
    %v2211 = vunpack.c.h.b16 %v615
    %v2212 = vunpack.c.l.b16 %v616
    %v2213 = vunpack.c.h.b16 %v616
    %v2214 = vunpack.c.l.b16 %v617
    %v2215 = vunpack.c.h.b16 %v617
    %v2216 = vunpack.c.l.b16 %v618
    %v2217 = vunpack.c.h.b16 %v618
    %v2218 = vunpack.c.l.b16 %v619
    %v2219 = vunpack.c.h.b16 %v619
    %v2220 = vunpack.c.l.b16 %v620
    %v2221 = vunpack.c.h.b16 %v620
    %v2222 = vunpack.c.l.b16 %v621
    %v2223 = vunpack.c.h.b16 %v621
    %v2224 = vunpack.c.l.b16 %v622
    %v2225 = vunpack.c.h.b16 %v622
    %v2226 = vunpack.c.l.b16 %v623
    %v2227 = vunpack.c.h.b16 %v623
    %v2228 = vunpack.c.l.b16 %v624
    %v2229 = vunpack.c.h.b16 %v624
    %v2230 = vpack.c.b16 %v1660, %v1654
    %v2231 = vpack.c.b16 %v1661, %v1655
    %v2232 = vpack.c.b16 %v1662, %v1656
    %v2233 = vpack.c.b16 %v1663, %v1657
    %v2234 = vpack.c.b16 %v1664, %v1658
    %v2235 = vpack.c.b16 %v1665, %v1659
    %v2236 = vpack.c.b16 %v1672, %v1666
    %v2237 = vpack.c.b16 %v1673, %v1667
    %v2238 = vpack.c.b16 %v1674, %v1668
    %v2239 = vpack.c.b16 %v1675, %v1669
    %v2240 = vpack.c.b16 %v1676, %v1670
    %v2241 = vpack.c.b16 %v1677, %v1671
    %v2242 = vpack.c.b16 %v1684, %v1678
    %v2243 = vpack.c.b16 %v1685, %v1679
    %v2244 = vpack.c.b16 %v1686, %v1680
    %v2245 = vpack.c.b16 %v1687, %v1681
    %v2246 = vpack.c.b16 %v1688, %v1682
    %v2247 = vpack.c.b16 %v1689, %v1683
    %v2248 = vpack.c.b16 %v1696, %v1690
    %v2249 = vpack.c.b16 %v1697, %v1691
    %v2250 = vpack.c.b16 %v1698, %v1692
    %v2251 = vpack.c.b16 %v1699, %v1693
    %v2252 = vpack.c.b16 %v1700, %v1694
    %v2253 = vpack.c.b16 %v1701, %v1695
    %v2254 = vpack.c.b16 %v1708, %v1702
    %v2255 = vpack.c.b16 %v1709, %v1703
    %v2256 = vpack.c.b16 %v1710, %v1704
    %v2257 = vpack.c.b16 %v1711, %v1705
    %v2258 = vpack.c.b16 %v1712, %v1706
    %v2259 = vpack.c.b16 %v1713, %v1707
    %v2260 = vpack.c.b16 %v1720, %v1714
    %v2261 = vpack.c.b16 %v1721, %v1715
    %v2262 = vpack.c.b16 %v1722, %v1716
    %v2263 = vpack.c.b16 %v1723, %v1717
    %v2264 = vpack.c.b16 %v1724, %v1718
    %v2265 = vpack.c.b16 %v1725, %v1719
    %v2266 = vpack.c.b16 %v1732, %v1726
    %v2267 = vpack.c.b16 %v1733, %v1727
    %v2268 = vpack.c.b16 %v1734, %v1728
    %v2269 = vpack.c.b16 %v1735, %v1729
    %v2270 = vpack.c.b16 %v1736, %v1730
    %v2271 = vpack.c.b16 %v1737, %v1731
    %v2272 = vpack.c.b16 %v1744, %v1738
    %v2273 = vpack.c.b16 %v1745, %v1739
    %v2274 = vpack.c.b16 %v1746, %v1740
    %v2275 = vpack.c.b16 %v1747, %v1741
    %v2276 = vpack.c.b16 %v1748, %v1742
    %v2277 = vpack.c.b16 %v1749, %v1743
    %v2278 = vpack.c.b16 %v1756, %v1750
    %v2279 = vpack.c.b16 %v1757, %v1751
    %v2280 = vpack.c.b16 %v1758, %v1752
    %v2281 = vpack.c.b16 %v1759, %v1753
    %v2282 = vpack.c.b16 %v1760, %v1754
    %v2283 = vpack.c.b16 %v1761, %v1755
    %v2284 = vpack.c.b16 %v1768, %v1762
    %v2285 = vpack.c.b16 %v1769, %v1763
    %v2286 = vpack.c.b16 %v1770, %v1764
    %v2287 = vpack.c.b16 %v1771, %v1765
    %v2288 = vpack.c.b16 %v1772, %v1766
    %v2289 = vpack.c.b16 %v1773, %v1767
    %v2290 = vpack.c.b16 %v1780, %v1774
    %v2291 = vpack.c.b16 %v1781, %v1775
    %v2292 = vpack.c.b16 %v1782, %v1776
    %v2293 = vpack.c.b16 %v1783, %v1777
    %v2294 = vpack.c.b16 %v1784, %v1778
    %v2295 = vpack.c.b16 %v1785, %v1779
    %v2296 = vpack.c.b16 %v1792, %v1786
    %v2297 = vpack.c.b16 %v1793, %v1787
    %v2298 = vpack.c.b16 %v1794, %v1788
    %v2299 = vpack.c.b16 %v1795, %v1789
    %v2300 = vpack.c.b16 %v1796, %v1790
    %v2301 = vpack.c.b16 %v1797, %v1791
    %v2302 = vpack.c.b16 %v1804, %v1798
    %v2303 = vpack.c.b16 %v1805, %v1799
    %v2304 = vpack.c.b16 %v1806, %v1800
    %v2305 = vpack.c.b16 %v1807, %v1801
    %v2306 = vpack.c.b16 %v1808, %v1802
    %v2307 = vpack.c.b16 %v1809, %v1803
    %v2308 = vpack.c.b16 %v1816, %v1810
    %v2309 = vpack.c.b16 %v1817, %v1811
    %v2310 = vpack.c.b16 %v1818, %v1812
    %v2311 = vpack.c.b16 %v1819, %v1813
    %v2312 = vpack.c.b16 %v1820, %v1814
    %v2313 = vpack.c.b16 %v1821, %v1815
    %v2314 = vpack.c.b16 %v1828, %v1822
    %v2315 = vpack.c.b16 %v1829, %v1823
    %v2316 = vpack.c.b16 %v1830, %v1824
    %v2317 = vpack.c.b16 %v1831, %v1825
    %v2318 = vpack.c.b16 %v1832, %v1826
    %v2319 = vpack.c.b16 %v1833, %v1827
    %v2320 = vpack.c.b16 %v1840, %v1834
    %v2321 = vpack.c.b16 %v1841, %v1835
    %v2322 = vpack.c.b16 %v1842, %v1836
    %v2323 = vpack.c.b16 %v1843, %v1837
    %v2324 = vpack.c.b16 %v1844, %v1838
    %v2325 = vpack.c.b16 %v1845, %v1839
    %v2326 = vpack.c.b16 %v1852, %v1846
    %v2327 = vpack.c.b16 %v1853, %v1847
    %v2328 = vpack.c.b16 %v1854, %v1848
    %v2329 = vpack.c.b16 %v1855, %v1849
    %v2330 = vpack.c.b16 %v1856, %v1850
    %v2331 = vpack.c.b16 %v1857, %v1851
    %v2332 = vpack.c.b16 %v1864, %v1858
    %v2333 = vpack.c.b16 %v1865, %v1859
    %v2334 = vpack.c.b16 %v1866, %v1860
    %v2335 = vpack.c.b16 %v1867, %v1861
    %v2336 = vpack.c.b16 %v1868, %v1862
    %v2337 = vpack.c.b16 %v1869, %v1863
    %v2338 = vpack.c.b16 %v1876, %v1870
    %v2339 = vpack.c.b16 %v1877, %v1871
    %v2340 = vpack.c.b16 %v1878, %v1872
    %v2341 = vpack.c.b16 %v1879, %v1873
    %v2342 = vpack.c.b16 %v1880, %v1874
    %v2343 = vpack.c.b16 %v1881, %v1875
    %v2344 = vpack.c.b16 %v1888, %v1882
    %v2345 = vpack.c.b16 %v1889, %v1883
    %v2346 = vpack.c.b16 %v1890, %v1884
    %v2347 = vpack.c.b16 %v1891, %v1885
    %v2348 = vpack.c.b16 %v1892, %v1886
    %v2349 = vpack.c.b16 %v1893, %v1887
    %v2350 = vpack.c.b16 %v1900, %v1894
    %v2351 = vpack.c.b16 %v1901, %v1895
    %v2352 = vpack.c.b16 %v1902, %v1896
    %v2353 = vpack.c.b16 %v1903, %v1897
    %v2354 = vpack.c.b16 %v1904, %v1898
    %v2355 = vpack.c.b16 %v1905, %v1899
    %v2356 = vpack.c.b16 %v1912, %v1906
    %v2357 = vpack.c.b16 %v1913, %v1907
    %v2358 = vpack.c.b16 %v1914, %v1908
    %v2359 = vpack.c.b16 %v1915, %v1909
    %v2360 = vpack.c.b16 %v1916, %v1910
    %v2361 = vpack.c.b16 %v1917, %v1911
    %v2362 = vpack.c.b16 %v1924, %v1918
    %v2363 = vpack.c.b16 %v1925, %v1919
    %v2364 = vpack.c.b16 %v1926, %v1920
    %v2365 = vpack.c.b16 %v1927, %v1921
    %v2366 = vpack.c.b16 %v1928, %v1922
    %v2367 = vpack.c.b16 %v1929, %v1923
    %v2368 = vpack.c.b16 %v1936, %v1930
    %v2369 = vpack.c.b16 %v1937, %v1931
    %v2370 = vpack.c.b16 %v1938, %v1932
    %v2371 = vpack.c.b16 %v1939, %v1933
    %v2372 = vpack.c.b16 %v1940, %v1934
    %v2373 = vpack.c.b16 %v1941, %v1935
    %v2374 = vpack.c.b16 %v1948, %v1942
    %v2375 = vpack.c.b16 %v1949, %v1943
    %v2376 = vpack.c.b16 %v1950, %v1944
    %v2377 = vpack.c.b16 %v1951, %v1945
    %v2378 = vpack.c.b16 %v1952, %v1946
    %v2379 = vpack.c.b16 %v1953, %v1947
    %v2380 = vpack.c.b16 %v1960, %v1954
    %v2381 = vpack.c.b16 %v1961, %v1955
    %v2382 = vpack.c.b16 %v1962, %v1956
    %v2383 = vpack.c.b16 %v1963, %v1957
    %v2384 = vpack.c.b16 %v1964, %v1958
    %v2385 = vpack.c.b16 %v1965, %v1959
    %v2386 = vpack.c.b16 %v1972, %v1966
    %v2387 = vpack.c.b16 %v1973, %v1967
    %v2388 = vpack.c.b16 %v1974, %v1968
    %v2389 = vpack.c.b16 %v1975, %v1969
    %v2390 = vpack.c.b16 %v1976, %v1970
    %v2391 = vpack.c.b16 %v1977, %v1971
    %v2392 = vpack.c.b16 %v1984, %v1978
    %v2393 = vpack.c.b16 %v1985, %v1979
    %v2394 = vpack.c.b16 %v1986, %v1980
    %v2395 = vpack.c.b16 %v1987, %v1981
    %v2396 = vpack.c.b16 %v1988, %v1982
    %v2397 = vpack.c.b16 %v1989, %v1983
    %v2398 = vpack.c.b16 %v1996, %v1990
    %v2399 = vpack.c.b16 %v1997, %v1991
    %v2400 = vpack.c.b16 %v1998, %v1992
    %v2401 = vpack.c.b16 %v1999, %v1993
    %v2402 = vpack.c.b16 %v2000, %v1994
    %v2403 = vpack.c.b16 %v2001, %v1995
    %v2404 = vpack.c.b16 %v2008, %v2002
    %v2405 = vpack.c.b16 %v2009, %v2003
    %v2406 = vpack.c.b16 %v2010, %v2004
    %v2407 = vpack.c.b16 %v2011, %v2005
    %v2408 = vpack.c.b16 %v2012, %v2006
    %v2409 = vpack.c.b16 %v2013, %v2007
    %v2410 = vpack.c.b16 %v2020, %v2014
    %v2411 = vpack.c.b16 %v2021, %v2015
    %v2412 = vpack.c.b16 %v2022, %v2016
    %v2413 = vpack.c.b16 %v2023, %v2017
    %v2414 = vpack.c.b16 %v2024, %v2018
    %v2415 = vpack.c.b16 %v2025, %v2019
    %v2416 = vpack.c.b16 %v2032, %v2026
    %v2417 = vpack.c.b16 %v2033, %v2027
    %v2418 = vpack.c.b16 %v2034, %v2028
    %v2419 = vpack.c.b16 %v2035, %v2029
    %v2420 = vpack.c.b16 %v2036, %v2030
    %v2421 = vpack.c.b16 %v2037, %v2031
    %v2422 = vpack.c.b16 %v2044, %v2038
    %v2423 = vpack.c.b16 %v2045, %v2039
    %v2424 = vpack.c.b16 %v2046, %v2040
    %v2425 = vpack.c.b16 %v2047, %v2041
    %v2426 = vpack.c.b16 %v2048, %v2042
    %v2427 = vpack.c.b16 %v2049, %v2043
    %v2428 = vpack.c.b16 %v2056, %v2050
    %v2429 = vpack.c.b16 %v2057, %v2051
    %v2430 = vpack.c.b16 %v2058, %v2052
    %v2431 = vpack.c.b16 %v2059, %v2053
    %v2432 = vpack.c.b16 %v2060, %v2054
    %v2433 = vpack.c.b16 %v2061, %v2055
    %v2434 = vpack.c.b16 %v2068, %v2062
    %v2435 = vpack.c.b16 %v2069, %v2063
    %v2436 = vpack.c.b16 %v2070, %v2064
    %v2437 = vpack.c.b16 %v2071, %v2065
    %v2438 = vpack.c.b16 %v2072, %v2066
    %v2439 = vpack.c.b16 %v2073, %v2067
    %v2440 = vpack.c.b16 %v2080, %v2074
    %v2441 = vpack.c.b16 %v2081, %v2075
    %v2442 = vpack.c.b16 %v2082, %v2076
    %v2443 = vpack.c.b16 %v2083, %v2077
    %v2444 = vpack.c.b16 %v2084, %v2078
    %v2445 = vpack.c.b16 %v2085, %v2079
    %v2446 = vpack.c.b16 %v2092, %v2086
    %v2447 = vpack.c.b16 %v2093, %v2087
    %v2448 = vpack.c.b16 %v2094, %v2088
    %v2449 = vpack.c.b16 %v2095, %v2089
    %v2450 = vpack.c.b16 %v2096, %v2090
    %v2451 = vpack.c.b16 %v2097, %v2091
    %v2452 = vpack.c.b16 %v2104, %v2098
    %v2453 = vpack.c.b16 %v2105, %v2099
    %v2454 = vpack.c.b16 %v2106, %v2100
    %v2455 = vpack.c.b16 %v2107, %v2101
    %v2456 = vpack.c.b16 %v2108, %v2102
    %v2457 = vpack.c.b16 %v2109, %v2103
    %v2458 = vpack.c.b16 %v2116, %v2110
    %v2459 = vpack.c.b16 %v2117, %v2111
    %v2460 = vpack.c.b16 %v2118, %v2112
    %v2461 = vpack.c.b16 %v2119, %v2113
    %v2462 = vpack.c.b16 %v2120, %v2114
    %v2463 = vpack.c.b16 %v2121, %v2115
    %v2464 = vpack.c.b16 %v2128, %v2122
    %v2465 = vpack.c.b16 %v2129, %v2123
    %v2466 = vpack.c.b16 %v2130, %v2124
    %v2467 = vpack.c.b16 %v2131, %v2125
    %v2468 = vpack.c.b16 %v2132, %v2126
    %v2469 = vpack.c.b16 %v2133, %v2127
    %v2470 = vpack.c.b16 %v2140, %v2134
    %v2471 = vpack.c.b16 %v2141, %v2135
    %v2472 = vpack.c.b16 %v2142, %v2136
    %v2473 = vpack.c.b16 %v2143, %v2137
    %v2474 = vpack.c.b16 %v2144, %v2138
    %v2475 = vpack.c.b16 %v2145, %v2139
    %v2476 = vpack.c.b16 %v2152, %v2146
    %v2477 = vpack.c.b16 %v2153, %v2147
    %v2478 = vpack.c.b16 %v2154, %v2148
    %v2479 = vpack.c.b16 %v2155, %v2149
    %v2480 = vpack.c.b16 %v2156, %v2150
    %v2481 = vpack.c.b16 %v2157, %v2151
    %v2482 = vpack.c.b16 %v2164, %v2158
    %v2483 = vpack.c.b16 %v2165, %v2159
    %v2484 = vpack.c.b16 %v2166, %v2160
    %v2485 = vpack.c.b16 %v2167, %v2161
    %v2486 = vpack.c.b16 %v2168, %v2162
    %v2487 = vpack.c.b16 %v2169, %v2163
    %v2488 = vpack.c.b16 %v2176, %v2170
    %v2489 = vpack.c.b16 %v2177, %v2171
    %v2490 = vpack.c.b16 %v2178, %v2172
    %v2491 = vpack.c.b16 %v2179, %v2173
    %v2492 = vpack.c.b16 %v2180, %v2174
    %v2493 = vpack.c.b16 %v2181, %v2175
    %v2494 = vpack.c.b16 %v2188, %v2182
    %v2495 = vpack.c.b16 %v2189, %v2183
    %v2496 = vpack.c.b16 %v2190, %v2184
    %v2497 = vpack.c.b16 %v2191, %v2185
    %v2498 = vpack.c.b16 %v2192, %v2186
    %v2499 = vpack.c.b16 %v2193, %v2187
    %v2500 = vpack.c.b16 %v2200, %v2194
    %v2501 = vpack.c.b16 %v2201, %v2195
    %v2502 = vpack.c.b16 %v2202, %v2196
    %v2503 = vpack.c.b16 %v2203, %v2197
    %v2504 = vpack.c.b16 %v2204, %v2198
    %v2505 = vpack.c.b16 %v2205, %v2199
    %v2506 = vpack.c.b16 %v2212, %v2206
    %v2507 = vpack.c.b16 %v2213, %v2207
    %v2508 = vpack.c.b16 %v2214, %v2208
    %v2509 = vpack.c.b16 %v2215, %v2209
    %v2510 = vpack.c.b16 %v2216, %v2210
    %v2511 = vpack.c.b16 %v2217, %v2211
    %v2512 = vpack.c.b16 %v2224, %v2218
    %v2513 = vpack.c.b16 %v2225, %v2219
    %v2514 = vpack.c.b16 %v2226, %v2220
    %v2515 = vpack.c.b16 %v2227, %v2221
    %v2516 = vpack.c.b16 %v2228, %v2222
    %v2517 = vpack.c.b16 %v2229, %v2223
    %2806 = vmatprep.subr.bf16.mxu0 %v2273
    %2807 = vmatpush1.bf16.msra.mxu0 %v2272
    %2808 = vmatprep.subr.bf16.mxu0 %v2267
    %2809 = vmatpush1.bf16.msra.mxu0 %v2266
    %2810 = vmatprep.subr.bf16.mxu0 %v2261
    %2811 = vmatpush1.bf16.msra.mxu0 %v2260
    %2812 = vmatprep.subr.bf16.mxu0 %v2255
    %2813 = vmatpush1.bf16.msra.mxu0 %v2254
    %2814 = vmatprep.subr.bf16.mxu0 %v2249
    %2815 = vmatpush1.bf16.msra.mxu0 %v2248
    %2816 = vmatprep.subr.bf16.mxu0 %v2243
    %2817 = vmatpush1.bf16.msra.mxu0 %v2242
    %2818 = vmatprep.subr.bf16.mxu0 %v2237
    %2819 = vmatpush1.bf16.msra.mxu0 %v2236
    %2820 = vmatprep.subr.bf16.mxu0 %v2231
    %2821 = vmatpush1.bf16.msra.mxu0 %v2230
    %2822 = vmatprep.subr.bf16.mxu0 %v2321
    %2823 = vmatpush2.bf16.msra.mxu0 %v2320
    %2824 = vmatprep.subr.bf16.mxu0 %v2315
    %2825 = vmatpush2.bf16.msra.mxu0 %v2314
    %2826 = vmatprep.subr.bf16.mxu0 %v2309
    %2827 = vmatpush2.bf16.msra.mxu0 %v2308
    %2828 = vmatprep.subr.bf16.mxu0 %v2303
    %2829 = vmatpush2.bf16.msra.mxu0 %v2302
    %2830 = vmatprep.subr.bf16.mxu0 %v2297
    %2831 = vmatpush2.bf16.msra.mxu0 %v2296
    %2832 = vmatprep.subr.bf16.mxu0 %v2291
    %2833 = vmatpush2.bf16.msra.mxu0 %v2290
    %2834 = vmatprep.subr.bf16.mxu0 %v2285
    %2835 = vmatpush2.bf16.msra.mxu0 %v2284
    %2836 = vmatprep.subr.bf16.mxu0 %v2279
    %2837 = vmatpush2.bf16.msra.mxu0 %v2278
    %2838 = vmatprep.mubr.bf16.mxu0 %v1067
    %2839 = vmatmul.mubr.bf16.gmra.mxu0 %v1066
    %v2840 = vpop.f32.mrf.mxu0
    %v2841 = vadd.f32 0.0, %v2840
    %v2842 = vpop.f32.mrf.mxu0
    %v2843 = vadd.f32 0.0, %v2842
    %v2844 = vpop.f32.mrf.mxu0
    %v2845 = vadd.f32 0.0, %v2844
    %v2846 = vpop.f32.mrf.mxu0
    %v2847 = vadd.f32 0.0, %v2846
    %2848 = vmatprep.mubr.bf16.mxu0 %v1073
    %2849 = vmatmul.mubr.bf16.gmra.mxu0 %v1072
    %v2850 = vpop.f32.mrf.mxu0
    %v2851 = vadd.f32 0.0, %v2850
    %v2852 = vpop.f32.mrf.mxu0
    %v2853 = vadd.f32 0.0, %v2852
    %v2854 = vpop.f32.mrf.mxu0
    %v2855 = vadd.f32 0.0, %v2854
    %v2856 = vpop.f32.mrf.mxu0
    %v2857 = vadd.f32 0.0, %v2856
    %2858 = vmatprep.mubr.bf16.mxu0 %v1079
    %2859 = vmatmul.mubr.bf16.gmra.mxu0 %v1078
    %v2860 = vpop.f32.mrf.mxu0
    %v2861 = vadd.f32 0.0, %v2860
    %v2862 = vpop.f32.mrf.mxu0
    %v2863 = vadd.f32 0.0, %v2862
    %v2864 = vpop.f32.mrf.mxu0
    %v2865 = vadd.f32 0.0, %v2864
    %v2866 = vpop.f32.mrf.mxu0
    %v2867 = vadd.f32 0.0, %v2866
    %2868 = vmatprep.mubr.bf16.mxu0 %v1085
    %2869 = vmatmul.mubr.bf16.gmra.mxu0 %v1084
    %v2870 = vpop.f32.mrf.mxu0
    %v2871 = vadd.f32 0.0, %v2870
    %v2872 = vpop.f32.mrf.mxu0
    %v2873 = vadd.f32 0.0, %v2872
    %v2874 = vpop.f32.mrf.mxu0
    %v2875 = vadd.f32 0.0, %v2874
    %v2876 = vpop.f32.mrf.mxu0
    %v2877 = vadd.f32 0.0, %v2876
    %2878 = vmatprep.mubr.bf16.mxu0 %v1091
    %2879 = vmatmul.mubr.bf16.gmra.mxu0 %v1090
    %v2880 = vpop.f32.mrf.mxu0
    %v2881 = vadd.f32 0.0, %v2880
    %v2882 = vpop.f32.mrf.mxu0
    %v2883 = vadd.f32 0.0, %v2882
    %v2884 = vpop.f32.mrf.mxu0
    %v2885 = vadd.f32 0.0, %v2884
    %v2886 = vpop.f32.mrf.mxu0
    %v2887 = vadd.f32 0.0, %v2886
    %2888 = vmatprep.mubr.bf16.mxu0 %v1097
    %2889 = vmatmul.mubr.bf16.gmra.mxu0 %v1096
    %v2890 = vpop.f32.mrf.mxu0
    %v2891 = vadd.f32 0.0, %v2890
    %v2892 = vpop.f32.mrf.mxu0
    %v2893 = vadd.f32 0.0, %v2892
    %v2894 = vpop.f32.mrf.mxu0
    %v2895 = vadd.f32 0.0, %v2894
    %v2896 = vpop.f32.mrf.mxu0
    %v2897 = vadd.f32 0.0, %v2896
    %2898 = vmatprep.mubr.bf16.mxu0 %v1103
    %2899 = vmatmul.mubr.bf16.gmra.mxu0 %v1102
    %v2900 = vpop.f32.mrf.mxu0
    %v2901 = vadd.f32 0.0, %v2900
    %v2902 = vpop.f32.mrf.mxu0
    %v2903 = vadd.f32 0.0, %v2902
    %v2904 = vpop.f32.mrf.mxu0
    %v2905 = vadd.f32 0.0, %v2904
    %v2906 = vpop.f32.mrf.mxu0
    %v2907 = vadd.f32 0.0, %v2906
    %2908 = vmatprep.mubr.bf16.mxu0 %v1109
    %2909 = vmatmul.mubr.bf16.gmra.mxu0 %v1108
    %v2910 = vpop.f32.mrf.mxu0
    %v2911 = vadd.f32 0.0, %v2910
    %v2912 = vpop.f32.mrf.mxu0
    %v2913 = vadd.f32 0.0, %v2912
    %v2914 = vpop.f32.mrf.mxu0
    %v2915 = vadd.f32 0.0, %v2914
    %v2916 = vpop.f32.mrf.mxu0
    %v2917 = vadd.f32 0.0, %v2916
    %2918 = vmatprep.mubr.bf16.mxu0 %v1115
    %2919 = vmatmul.mubr.bf16.gmra.mxu0 %v1114
    %v2920 = vpop.f32.mrf.mxu0
    %v2921 = vadd.f32 0.0, %v2920
    %v2922 = vpop.f32.mrf.mxu0
    %v2923 = vadd.f32 0.0, %v2922
    %v2924 = vpop.f32.mrf.mxu0
    %v2925 = vadd.f32 0.0, %v2924
    %v2926 = vpop.f32.mrf.mxu0
    %v2927 = vadd.f32 0.0, %v2926
    %2928 = vmatprep.mubr.bf16.mxu0 %v1121
    %2929 = vmatmul.mubr.bf16.gmra.mxu0 %v1120
    %v2930 = vpop.f32.mrf.mxu0
    %v2931 = vadd.f32 0.0, %v2930
    %v2932 = vpop.f32.mrf.mxu0
    %v2933 = vadd.f32 0.0, %v2932
    %v2934 = vpop.f32.mrf.mxu0
    %v2935 = vadd.f32 0.0, %v2934
    %v2936 = vpop.f32.mrf.mxu0
    %v2937 = vadd.f32 0.0, %v2936
    %2938 = vmatprep.mubr.bf16.mxu0 %v1127
    %2939 = vmatmul.mubr.bf16.gmra.mxu0 %v1126
    %v2940 = vpop.f32.mrf.mxu0
    %v2941 = vadd.f32 0.0, %v2940
    %v2942 = vpop.f32.mrf.mxu0
    %v2943 = vadd.f32 0.0, %v2942
    %v2944 = vpop.f32.mrf.mxu0
    %v2945 = vadd.f32 0.0, %v2944
    %v2946 = vpop.f32.mrf.mxu0
    %v2947 = vadd.f32 0.0, %v2946
    %2948 = vmatprep.mubr.bf16.mxu0 %v1133
    %2949 = vmatmul.mubr.bf16.gmra.mxu0 %v1132
    %v2950 = vpop.f32.mrf.mxu0
    %v2951 = vadd.f32 0.0, %v2950
    %v2952 = vpop.f32.mrf.mxu0
    %v2953 = vadd.f32 0.0, %v2952
    %v2954 = vpop.f32.mrf.mxu0
    %v2955 = vadd.f32 0.0, %v2954
    %v2956 = vpop.f32.mrf.mxu0
    %v2957 = vadd.f32 0.0, %v2956
    %2958 = vmatprep.mubr.bf16.mxu0 %v1139
    %2959 = vmatmul.mubr.bf16.gmra.mxu0 %v1138
    %v2960 = vpop.f32.mrf.mxu0
    %v2961 = vadd.f32 0.0, %v2960
    %v2962 = vpop.f32.mrf.mxu0
    %v2963 = vadd.f32 0.0, %v2962
    %v2964 = vpop.f32.mrf.mxu0
    %v2965 = vadd.f32 0.0, %v2964
    %v2966 = vpop.f32.mrf.mxu0
    %v2967 = vadd.f32 0.0, %v2966
    %2968 = vmatprep.mubr.bf16.mxu0 %v1145
    %2969 = vmatmul.mubr.bf16.gmra.mxu0 %v1144
    %v2970 = vpop.f32.mrf.mxu0
    %v2971 = vadd.f32 0.0, %v2970
    %v2972 = vpop.f32.mrf.mxu0
    %v2973 = vadd.f32 0.0, %v2972
    %v2974 = vpop.f32.mrf.mxu0
    %v2975 = vadd.f32 0.0, %v2974
    %v2976 = vpop.f32.mrf.mxu0
    %v2977 = vadd.f32 0.0, %v2976
    %2978 = vmatprep.mubr.bf16.mxu0 %v1151
    %2979 = vmatmul.mubr.bf16.gmra.mxu0 %v1150
    %v2980 = vpop.f32.mrf.mxu0
    %v2981 = vadd.f32 0.0, %v2980
    %v2982 = vpop.f32.mrf.mxu0
    %v2983 = vadd.f32 0.0, %v2982
    %v2984 = vpop.f32.mrf.mxu0
    %v2985 = vadd.f32 0.0, %v2984
    %v2986 = vpop.f32.mrf.mxu0
    %v2987 = vadd.f32 0.0, %v2986
    %2988 = vmatprep.mubr.bf16.mxu0 %v1157
    %2989 = vmatmul.mubr.bf16.gmra.mxu0 %v1156
    %v2990 = vpop.f32.mrf.mxu0
    %v2991 = vadd.f32 0.0, %v2990
    %v2992 = vpop.f32.mrf.mxu0
    %v2993 = vadd.f32 0.0, %v2992
    %v2994 = vpop.f32.mrf.mxu0
    %v2995 = vadd.f32 0.0, %v2994
    %v2996 = vpop.f32.mrf.mxu0
    %v2997 = vadd.f32 0.0, %v2996
    %2998 = vmatprep.mubr.bf16.mxu0 %v1163
    %2999 = vmatmul.mubr.bf16.gmra.mxu0 %v1162
    %v3000 = vpop.f32.mrf.mxu0
    %v3001 = vadd.f32 0.0, %v3000
    %v3002 = vpop.f32.mrf.mxu0
    %v3003 = vadd.f32 0.0, %v3002
    %v3004 = vpop.f32.mrf.mxu0
    %v3005 = vadd.f32 0.0, %v3004
    %v3006 = vpop.f32.mrf.mxu0
    %v3007 = vadd.f32 0.0, %v3006
    %3008 = vmatprep.mubr.bf16.mxu0 %v1169
    %3009 = vmatmul.mubr.bf16.gmra.mxu0 %v1168
    %v3010 = vpop.f32.mrf.mxu0
    %v3011 = vadd.f32 0.0, %v3010
    %v3012 = vpop.f32.mrf.mxu0
    %v3013 = vadd.f32 0.0, %v3012
    %v3014 = vpop.f32.mrf.mxu0
    %v3015 = vadd.f32 0.0, %v3014
    %v3016 = vpop.f32.mrf.mxu0
    %v3017 = vadd.f32 0.0, %v3016
    %3018 = vmatprep.mubr.bf16.mxu0 %v1175
    %3019 = vmatmul.mubr.bf16.gmra.mxu0 %v1174
    %v3020 = vpop.f32.mrf.mxu0
    %v3021 = vadd.f32 0.0, %v3020
    %v3022 = vpop.f32.mrf.mxu0
    %v3023 = vadd.f32 0.0, %v3022
    %v3024 = vpop.f32.mrf.mxu0
    %v3025 = vadd.f32 0.0, %v3024
    %v3026 = vpop.f32.mrf.mxu0
    %v3027 = vadd.f32 0.0, %v3026
    %3028 = vmatprep.mubr.bf16.mxu0 %v1181
    %3029 = vmatmul.mubr.bf16.gmra.mxu0 %v1180
    %v3030 = vpop.f32.mrf.mxu0
    %v3031 = vadd.f32 0.0, %v3030
    %v3032 = vpop.f32.mrf.mxu0
    %v3033 = vadd.f32 0.0, %v3032
    %v3034 = vpop.f32.mrf.mxu0
    %v3035 = vadd.f32 0.0, %v3034
    %v3036 = vpop.f32.mrf.mxu0
    %v3037 = vadd.f32 0.0, %v3036
    %3038 = vmatprep.mubr.bf16.mxu0 %v1187
    %3039 = vmatmul.mubr.bf16.gmra.mxu0 %v1186
    %v3040 = vpop.f32.mrf.mxu0
    %v3041 = vadd.f32 0.0, %v3040
    %v3042 = vpop.f32.mrf.mxu0
    %v3043 = vadd.f32 0.0, %v3042
    %v3044 = vpop.f32.mrf.mxu0
    %v3045 = vadd.f32 0.0, %v3044
    %v3046 = vpop.f32.mrf.mxu0
    %v3047 = vadd.f32 0.0, %v3046
    %3048 = vmatprep.mubr.bf16.mxu0 %v1193
    %3049 = vmatmul.mubr.bf16.gmra.mxu0 %v1192
    %v3050 = vpop.f32.mrf.mxu0
    %v3051 = vadd.f32 0.0, %v3050
    %v3052 = vpop.f32.mrf.mxu0
    %v3053 = vadd.f32 0.0, %v3052
    %v3054 = vpop.f32.mrf.mxu0
    %v3055 = vadd.f32 0.0, %v3054
    %v3056 = vpop.f32.mrf.mxu0
    %v3057 = vadd.f32 0.0, %v3056
    %3058 = vmatprep.mubr.bf16.mxu0 %v1199
    %3059 = vmatmul.mubr.bf16.gmra.mxu0 %v1198
    %v3060 = vpop.f32.mrf.mxu0
    %v3061 = vadd.f32 0.0, %v3060
    %v3062 = vpop.f32.mrf.mxu0
    %v3063 = vadd.f32 0.0, %v3062
    %v3064 = vpop.f32.mrf.mxu0
    %v3065 = vadd.f32 0.0, %v3064
    %v3066 = vpop.f32.mrf.mxu0
    %v3067 = vadd.f32 0.0, %v3066
    %3068 = vmatprep.mubr.bf16.mxu0 %v1205
    %3069 = vmatmul.mubr.bf16.gmra.mxu0 %v1204
    %v3070 = vpop.f32.mrf.mxu0
    %v3071 = vadd.f32 0.0, %v3070
    %v3072 = vpop.f32.mrf.mxu0
    %v3073 = vadd.f32 0.0, %v3072
    %v3074 = vpop.f32.mrf.mxu0
    %v3075 = vadd.f32 0.0, %v3074
    %v3076 = vpop.f32.mrf.mxu0
    %v3077 = vadd.f32 0.0, %v3076
    %3078 = vmatprep.mubr.bf16.mxu0 %v1211
    %3079 = vmatmul.mubr.bf16.gmra.mxu0 %v1210
    %v3080 = vpop.f32.mrf.mxu0
    %v3081 = vadd.f32 0.0, %v3080
    %v3082 = vpop.f32.mrf.mxu0
    %v3083 = vadd.f32 0.0, %v3082
    %v3084 = vpop.f32.mrf.mxu0
    %v3085 = vpop.f32.mrf.mxu0
    %3086 = vdwg.mxu0
    %3087 = vmatprep.subr.bf16.mxu0 %v2369
    %3088 = vmatpush1.bf16.msra.mxu0 %v2368
    %3089 = vmatprep.subr.bf16.mxu0 %v2363
    %3090 = vmatpush1.bf16.msra.mxu0 %v2362
    %3091 = vmatprep.subr.bf16.mxu0 %v2357
    %3092 = vmatpush1.bf16.msra.mxu0 %v2356
    %3093 = vmatprep.subr.bf16.mxu0 %v2351
    %3094 = vmatpush1.bf16.msra.mxu0 %v2350
    %3095 = vmatprep.subr.bf16.mxu0 %v2345
    %3096 = vmatpush1.bf16.msra.mxu0 %v2344
    %3097 = vmatprep.subr.bf16.mxu0 %v2339
    %3098 = vmatpush1.bf16.msra.mxu0 %v2338
    %3099 = vmatprep.subr.bf16.mxu0 %v2333
    %3100 = vmatpush1.bf16.msra.mxu0 %v2332
    %3101 = vmatprep.subr.bf16.mxu0 %v2327
    %3102 = vmatpush1.bf16.msra.mxu0 %v2326
    %3103 = vmatprep.subr.bf16.mxu0 %v2417
    %3104 = vmatpush2.bf16.msra.mxu0 %v2416
    %3105 = vmatprep.subr.bf16.mxu0 %v2411
    %3106 = vmatpush2.bf16.msra.mxu0 %v2410
    %3107 = vmatprep.subr.bf16.mxu0 %v2405
    %3108 = vmatpush2.bf16.msra.mxu0 %v2404
    %3109 = vmatprep.subr.bf16.mxu0 %v2399
    %3110 = vmatpush2.bf16.msra.mxu0 %v2398
    %3111 = vmatprep.subr.bf16.mxu0 %v2393
    %3112 = vmatpush2.bf16.msra.mxu0 %v2392
    %3113 = vmatprep.subr.bf16.mxu0 %v2387
    %3114 = vmatpush2.bf16.msra.mxu0 %v2386
    %3115 = vmatprep.subr.bf16.mxu0 %v2381
    %3116 = vmatpush2.bf16.msra.mxu0 %v2380
    %3117 = vmatprep.subr.bf16.mxu0 %v2375
    %3118 = vmatpush2.bf16.msra.mxu0 %v2374
    %3119 = vmatprep.mubr.bf16.mxu0 %v1069
    %3120 = vmatmul.mubr.bf16.gmra.mxu0 %v1068
    %v3121 = vpop.f32.mrf.mxu0
    %v3122 = vadd.f32 %v2841, %v3121
    %v3123 = vpop.f32.mrf.mxu0
    %v3124 = vadd.f32 %v2843, %v3123
    %v3125 = vpop.f32.mrf.mxu0
    %v3126 = vadd.f32 %v2845, %v3125
    %v3127 = vpop.f32.mrf.mxu0
    %v3128 = vadd.f32 %v2847, %v3127
    %3129 = vmatprep.mubr.bf16.mxu0 %v1075
    %3130 = vmatmul.mubr.bf16.gmra.mxu0 %v1074
    %v3131 = vpop.f32.mrf.mxu0
    %v3132 = vadd.f32 %v2851, %v3131
    %v3133 = vpop.f32.mrf.mxu0
    %v3134 = vadd.f32 %v2853, %v3133
    %v3135 = vpop.f32.mrf.mxu0
    %v3136 = vadd.f32 %v2855, %v3135
    %v3137 = vpop.f32.mrf.mxu0
    %v3138 = vadd.f32 %v2857, %v3137
    %3139 = vmatprep.mubr.bf16.mxu0 %v1081
    %3140 = vmatmul.mubr.bf16.gmra.mxu0 %v1080
    %v3141 = vpop.f32.mrf.mxu0
    %v3142 = vadd.f32 %v2861, %v3141
    %v3143 = vpop.f32.mrf.mxu0
    %v3144 = vadd.f32 %v2863, %v3143
    %v3145 = vpop.f32.mrf.mxu0
    %v3146 = vadd.f32 %v2865, %v3145
    %v3147 = vpop.f32.mrf.mxu0
    %v3148 = vadd.f32 %v2867, %v3147
    %3149 = vmatprep.mubr.bf16.mxu0 %v1087
    %3150 = vmatmul.mubr.bf16.gmra.mxu0 %v1086
    %v3151 = vpop.f32.mrf.mxu0
    %v3152 = vadd.f32 %v2871, %v3151
    %v3153 = vpop.f32.mrf.mxu0
    %v3154 = vadd.f32 %v2873, %v3153
    %v3155 = vpop.f32.mrf.mxu0
    %v3156 = vadd.f32 %v2875, %v3155
    %v3157 = vpop.f32.mrf.mxu0
    %v3158 = vadd.f32 %v2877, %v3157
    %3159 = vmatprep.mubr.bf16.mxu0 %v1093
    %3160 = vmatmul.mubr.bf16.gmra.mxu0 %v1092
    %v3161 = vpop.f32.mrf.mxu0
    %v3162 = vadd.f32 %v2881, %v3161
    %v3163 = vpop.f32.mrf.mxu0
    %v3164 = vadd.f32 %v2883, %v3163
    %v3165 = vpop.f32.mrf.mxu0
    %v3166 = vadd.f32 %v2885, %v3165
    %v3167 = vpop.f32.mrf.mxu0
    %v3168 = vadd.f32 %v2887, %v3167
    %3169 = vmatprep.mubr.bf16.mxu0 %v1099
    %3170 = vmatmul.mubr.bf16.gmra.mxu0 %v1098
    %v3171 = vpop.f32.mrf.mxu0
    %v3172 = vadd.f32 %v2891, %v3171
    %v3173 = vpop.f32.mrf.mxu0
    %v3174 = vadd.f32 %v2893, %v3173
    %v3175 = vpop.f32.mrf.mxu0
    %v3176 = vadd.f32 %v2895, %v3175
    %v3177 = vpop.f32.mrf.mxu0
    %v3178 = vadd.f32 %v2897, %v3177
    %3179 = vmatprep.mubr.bf16.mxu0 %v1105
    %3180 = vmatmul.mubr.bf16.gmra.mxu0 %v1104
    %v3181 = vpop.f32.mrf.mxu0
    %v3182 = vadd.f32 %v2901, %v3181
    %v3183 = vpop.f32.mrf.mxu0
    %v3184 = vadd.f32 %v2903, %v3183
    %v3185 = vpop.f32.mrf.mxu0
    %v3186 = vadd.f32 %v2905, %v3185
    %v3187 = vpop.f32.mrf.mxu0
    %v3188 = vadd.f32 %v2907, %v3187
    %3189 = vmatprep.mubr.bf16.mxu0 %v1111
    %3190 = vmatmul.mubr.bf16.gmra.mxu0 %v1110
    %v3191 = vpop.f32.mrf.mxu0
    %v3192 = vadd.f32 %v2911, %v3191
    %v3193 = vpop.f32.mrf.mxu0
    %v3194 = vadd.f32 %v2913, %v3193
    %v3195 = vpop.f32.mrf.mxu0
    %v3196 = vadd.f32 %v2915, %v3195
    %v3197 = vpop.f32.mrf.mxu0
    %v3198 = vadd.f32 %v2917, %v3197
    %3199 = vmatprep.mubr.bf16.mxu0 %v1117
    %3200 = vmatmul.mubr.bf16.gmra.mxu0 %v1116
    %v3201 = vpop.f32.mrf.mxu0
    %v3202 = vadd.f32 %v2921, %v3201
    %v3203 = vpop.f32.mrf.mxu0
    %v3204 = vadd.f32 %v2923, %v3203
    %v3205 = vpop.f32.mrf.mxu0
    %v3206 = vadd.f32 %v2925, %v3205
    %v3207 = vpop.f32.mrf.mxu0
    %v3208 = vadd.f32 %v2927, %v3207
    %3209 = vmatprep.mubr.bf16.mxu0 %v1123
    %3210 = vmatmul.mubr.bf16.gmra.mxu0 %v1122
    %v3211 = vpop.f32.mrf.mxu0
    %v3212 = vadd.f32 %v2931, %v3211
    %v3213 = vpop.f32.mrf.mxu0
    %v3214 = vadd.f32 %v2933, %v3213
    %v3215 = vpop.f32.mrf.mxu0
    %v3216 = vadd.f32 %v2935, %v3215
    %v3217 = vpop.f32.mrf.mxu0
    %v3218 = vadd.f32 %v2937, %v3217
    %3219 = vmatprep.mubr.bf16.mxu0 %v1129
    %3220 = vmatmul.mubr.bf16.gmra.mxu0 %v1128
    %v3221 = vpop.f32.mrf.mxu0
    %v3222 = vadd.f32 %v2941, %v3221
    %v3223 = vpop.f32.mrf.mxu0
    %v3224 = vadd.f32 %v2943, %v3223
    %v3225 = vpop.f32.mrf.mxu0
    %v3226 = vadd.f32 %v2945, %v3225
    %v3227 = vpop.f32.mrf.mxu0
    %v3228 = vadd.f32 %v2947, %v3227
    %3229 = vmatprep.mubr.bf16.mxu0 %v1135
    %3230 = vmatmul.mubr.bf16.gmra.mxu0 %v1134
    %v3231 = vpop.f32.mrf.mxu0
    %v3232 = vadd.f32 %v2951, %v3231
    %v3233 = vpop.f32.mrf.mxu0
    %v3234 = vadd.f32 %v2953, %v3233
    %v3235 = vpop.f32.mrf.mxu0
    %v3236 = vadd.f32 %v2955, %v3235
    %v3237 = vpop.f32.mrf.mxu0
    %v3238 = vadd.f32 %v2957, %v3237
    %3239 = vmatprep.mubr.bf16.mxu0 %v1141
    %3240 = vmatmul.mubr.bf16.gmra.mxu0 %v1140
    %v3241 = vpop.f32.mrf.mxu0
    %v3242 = vadd.f32 %v2961, %v3241
    %v3243 = vpop.f32.mrf.mxu0
    %v3244 = vadd.f32 %v2963, %v3243
    %v3245 = vpop.f32.mrf.mxu0
    %v3246 = vadd.f32 %v2965, %v3245
    %v3247 = vpop.f32.mrf.mxu0
    %v3248 = vadd.f32 %v2967, %v3247
    %3249 = vmatprep.mubr.bf16.mxu0 %v1147
    %3250 = vmatmul.mubr.bf16.gmra.mxu0 %v1146
    %v3251 = vpop.f32.mrf.mxu0
    %v3252 = vadd.f32 %v2971, %v3251
    %v3253 = vpop.f32.mrf.mxu0
    %v3254 = vadd.f32 %v2973, %v3253
    %v3255 = vpop.f32.mrf.mxu0
    %v3256 = vadd.f32 %v2975, %v3255
    %v3257 = vpop.f32.mrf.mxu0
    %v3258 = vadd.f32 %v2977, %v3257
    %3259 = vmatprep.mubr.bf16.mxu0 %v1153
    %3260 = vmatmul.mubr.bf16.gmra.mxu0 %v1152
    %v3261 = vpop.f32.mrf.mxu0
    %v3262 = vadd.f32 %v2981, %v3261
    %v3263 = vpop.f32.mrf.mxu0
    %v3264 = vadd.f32 %v2983, %v3263
    %v3265 = vpop.f32.mrf.mxu0
    %v3266 = vadd.f32 %v2985, %v3265
    %v3267 = vpop.f32.mrf.mxu0
    %v3268 = vadd.f32 %v2987, %v3267
    %3269 = vmatprep.mubr.bf16.mxu0 %v1159
    %3270 = vmatmul.mubr.bf16.gmra.mxu0 %v1158
    %v3271 = vpop.f32.mrf.mxu0
    %v3272 = vadd.f32 %v2991, %v3271
    %v3273 = vpop.f32.mrf.mxu0
    %v3274 = vadd.f32 %v2993, %v3273
    %v3275 = vpop.f32.mrf.mxu0
    %v3276 = vadd.f32 %v2995, %v3275
    %v3277 = vpop.f32.mrf.mxu0
    %v3278 = vadd.f32 %v2997, %v3277
    %3279 = vmatprep.mubr.bf16.mxu0 %v1165
    %3280 = vmatmul.mubr.bf16.gmra.mxu0 %v1164
    %v3281 = vpop.f32.mrf.mxu0
    %v3282 = vadd.f32 %v3001, %v3281
    %v3283 = vpop.f32.mrf.mxu0
    %v3284 = vadd.f32 %v3003, %v3283
    %v3285 = vpop.f32.mrf.mxu0
    %v3286 = vadd.f32 %v3005, %v3285
    %v3287 = vpop.f32.mrf.mxu0
    %v3288 = vadd.f32 %v3007, %v3287
    %3289 = vmatprep.mubr.bf16.mxu0 %v1171
    %3290 = vmatmul.mubr.bf16.gmra.mxu0 %v1170
    %v3291 = vpop.f32.mrf.mxu0
    %v3292 = vadd.f32 %v3011, %v3291
    %v3293 = vpop.f32.mrf.mxu0
    %v3294 = vadd.f32 %v3013, %v3293
    %v3295 = vpop.f32.mrf.mxu0
    %v3296 = vadd.f32 %v3015, %v3295
    %v3297 = vpop.f32.mrf.mxu0
    %v3298 = vadd.f32 %v3017, %v3297
    %3299 = vmatprep.mubr.bf16.mxu0 %v1177
    %3300 = vmatmul.mubr.bf16.gmra.mxu0 %v1176
    %v3301 = vpop.f32.mrf.mxu0
    %v3302 = vadd.f32 %v3021, %v3301
    %v3303 = vpop.f32.mrf.mxu0
    %v3304 = vadd.f32 %v3023, %v3303
    %v3305 = vpop.f32.mrf.mxu0
    %v3306 = vadd.f32 %v3025, %v3305
    %v3307 = vpop.f32.mrf.mxu0
    %v3308 = vadd.f32 %v3027, %v3307
    %3309 = vmatprep.mubr.bf16.mxu0 %v1183
    %3310 = vmatmul.mubr.bf16.gmra.mxu0 %v1182
    %v3311 = vpop.f32.mrf.mxu0
    %v3312 = vadd.f32 %v3031, %v3311
    %v3313 = vpop.f32.mrf.mxu0
    %v3314 = vadd.f32 %v3033, %v3313
    %v3315 = vpop.f32.mrf.mxu0
    %v3316 = vadd.f32 %v3035, %v3315
    %v3317 = vpop.f32.mrf.mxu0
    %v3318 = vadd.f32 %v3037, %v3317
    %3319 = vmatprep.mubr.bf16.mxu0 %v1189
    %3320 = vmatmul.mubr.bf16.gmra.mxu0 %v1188
    %v3321 = vpop.f32.mrf.mxu0
    %v3322 = vadd.f32 %v3041, %v3321
    %v3323 = vpop.f32.mrf.mxu0
    %v3324 = vadd.f32 %v3043, %v3323
    %v3325 = vpop.f32.mrf.mxu0
    %v3326 = vadd.f32 %v3045, %v3325
    %v3327 = vpop.f32.mrf.mxu0
    %v3328 = vadd.f32 %v3047, %v3327
    %3329 = vmatprep.mubr.bf16.mxu0 %v1195
    %3330 = vmatmul.mubr.bf16.gmra.mxu0 %v1194
    %v3331 = vpop.f32.mrf.mxu0
    %v3332 = vadd.f32 %v3051, %v3331
    %v3333 = vpop.f32.mrf.mxu0
    %v3334 = vadd.f32 %v3053, %v3333
    %v3335 = vpop.f32.mrf.mxu0
    %v3336 = vadd.f32 %v3055, %v3335
    %v3337 = vpop.f32.mrf.mxu0
    %v3338 = vadd.f32 %v3057, %v3337
    %3339 = vmatprep.mubr.bf16.mxu0 %v1201
    %3340 = vmatmul.mubr.bf16.gmra.mxu0 %v1200
    %v3341 = vpop.f32.mrf.mxu0
    %v3342 = vadd.f32 %v3061, %v3341
    %v3343 = vpop.f32.mrf.mxu0
    %v3344 = vadd.f32 %v3063, %v3343
    %v3345 = vpop.f32.mrf.mxu0
    %v3346 = vadd.f32 %v3065, %v3345
    %v3347 = vpop.f32.mrf.mxu0
    %v3348 = vadd.f32 %v3067, %v3347
    %3349 = vmatprep.mubr.bf16.mxu0 %v1207
    %3350 = vmatmul.mubr.bf16.gmra.mxu0 %v1206
    %v3351 = vpop.f32.mrf.mxu0
    %v3352 = vadd.f32 %v3071, %v3351
    %v3353 = vpop.f32.mrf.mxu0
    %v3354 = vadd.f32 %v3073, %v3353
    %v3355 = vpop.f32.mrf.mxu0
    %v3356 = vadd.f32 %v3075, %v3355
    %v3357 = vpop.f32.mrf.mxu0
    %v3358 = vadd.f32 %v3077, %v3357
    %3359 = vmatprep.mubr.bf16.mxu0 %v1213
    %3360 = vmatmul.mubr.bf16.gmra.mxu0 %v1212
    %v3361 = vpop.f32.mrf.mxu0
    %v3362 = vadd.f32 %v3081, %v3361
    %v3363 = vpop.f32.mrf.mxu0
    %v3364 = vadd.f32 %v3083, %v3363
    %v3365 = vpop.f32.mrf.mxu0
    %v3366 = vpop.f32.mrf.mxu0
    %3367 = vdwg.mxu0
    %3368 = vmatprep.subr.bf16.mxu0 %v2465
    %3369 = vmatpush1.bf16.msra.mxu0 %v2464
    %3370 = vmatprep.subr.bf16.mxu0 %v2459
    %3371 = vmatpush1.bf16.msra.mxu0 %v2458
    %3372 = vmatprep.subr.bf16.mxu0 %v2453
    %3373 = vmatpush1.bf16.msra.mxu0 %v2452
    %3374 = vmatprep.subr.bf16.mxu0 %v2447
    %3375 = vmatpush1.bf16.msra.mxu0 %v2446
    %3376 = vmatprep.subr.bf16.mxu0 %v2441
    %3377 = vmatpush1.bf16.msra.mxu0 %v2440
    %3378 = vmatprep.subr.bf16.mxu0 %v2435
    %3379 = vmatpush1.bf16.msra.mxu0 %v2434
    %3380 = vmatprep.subr.bf16.mxu0 %v2429
    %3381 = vmatpush1.bf16.msra.mxu0 %v2428
    %3382 = vmatprep.subr.bf16.mxu0 %v2423
    %3383 = vmatpush1.bf16.msra.mxu0 %v2422
    %3384 = vmatprep.subr.bf16.mxu0 %v2513
    %3385 = vmatpush2.bf16.msra.mxu0 %v2512
    %3386 = vmatprep.subr.bf16.mxu0 %v2507
    %3387 = vmatpush2.bf16.msra.mxu0 %v2506
    %3388 = vmatprep.subr.bf16.mxu0 %v2501
    %3389 = vmatpush2.bf16.msra.mxu0 %v2500
    %3390 = vmatprep.subr.bf16.mxu0 %v2495
    %3391 = vmatpush2.bf16.msra.mxu0 %v2494
    %3392 = vmatprep.subr.bf16.mxu0 %v2489
    %3393 = vmatpush2.bf16.msra.mxu0 %v2488
    %3394 = vmatprep.subr.bf16.mxu0 %v2483
    %3395 = vmatpush2.bf16.msra.mxu0 %v2482
    %3396 = vmatprep.subr.bf16.mxu0 %v2477
    %3397 = vmatpush2.bf16.msra.mxu0 %v2476
    %3398 = vmatprep.subr.bf16.mxu0 %v2471
    %3399 = vmatpush2.bf16.msra.mxu0 %v2470
    %3400 = vmatprep.mubr.bf16.mxu0 %v1071
    %3401 = vmatmul.mubr.bf16.gmra.mxu0 %v1070
    %v3402 = vpop.f32.mrf.mxu0
    %v3403 = vadd.f32 %v3122, %v3402
    %v3404 = vpop.f32.mrf.mxu0
    %v3405 = vadd.f32 %v3124, %v3404
    %v3406 = vpop.f32.mrf.mxu0
    %v3407 = vadd.f32 %v3126, %v3406
    %v3408 = vpop.f32.mrf.mxu0
    %v3409 = vadd.f32 %v3128, %v3408
    %3410 = vmatprep.mubr.bf16.mxu0 %v1077
    %3411 = vmatmul.mubr.bf16.gmra.mxu0 %v1076
    %v3412 = vpop.f32.mrf.mxu0
    %v3413 = vadd.f32 %v3132, %v3412
    %v3414 = vpop.f32.mrf.mxu0
    %v3415 = vadd.f32 %v3134, %v3414
    %v3416 = vpop.f32.mrf.mxu0
    %v3417 = vadd.f32 %v3136, %v3416
    %v3418 = vpop.f32.mrf.mxu0
    %v3419 = vadd.f32 %v3138, %v3418
    %3420 = vmatprep.mubr.bf16.mxu0 %v1083
    %3421 = vmatmul.mubr.bf16.gmra.mxu0 %v1082
    %v3422 = vpop.f32.mrf.mxu0
    %v3423 = vadd.f32 %v3142, %v3422
    %v3424 = vpop.f32.mrf.mxu0
    %v3425 = vadd.f32 %v3144, %v3424
    %v3426 = vpop.f32.mrf.mxu0
    %v3427 = vadd.f32 %v3146, %v3426
    %v3428 = vpop.f32.mrf.mxu0
    %v3429 = vadd.f32 %v3148, %v3428
    %3430 = vmatprep.mubr.bf16.mxu0 %v1089
    %3431 = vmatmul.mubr.bf16.gmra.mxu0 %v1088
    %v3432 = vpop.f32.mrf.mxu0
    %v3433 = vadd.f32 %v3152, %v3432
    %v3434 = vpop.f32.mrf.mxu0
    %v3435 = vadd.f32 %v3154, %v3434
    %v3436 = vpop.f32.mrf.mxu0
    %v3437 = vadd.f32 %v3156, %v3436
    %v3438 = vpop.f32.mrf.mxu0
    %v3439 = vadd.f32 %v3158, %v3438
    %3440 = vmatprep.mubr.bf16.mxu0 %v1095
    %3441 = vmatmul.mubr.bf16.gmra.mxu0 %v1094
    %v3442 = vpop.f32.mrf.mxu0
    %v3443 = vadd.f32 %v3162, %v3442
    %v3444 = vpop.f32.mrf.mxu0
    %v3445 = vadd.f32 %v3164, %v3444
    %v3446 = vpop.f32.mrf.mxu0
    %v3447 = vadd.f32 %v3166, %v3446
    %v3448 = vpop.f32.mrf.mxu0
    %v3449 = vadd.f32 %v3168, %v3448
    %3450 = vmatprep.mubr.bf16.mxu0 %v1101
    %3451 = vmatmul.mubr.bf16.gmra.mxu0 %v1100
    %v3452 = vpop.f32.mrf.mxu0
    %v3453 = vadd.f32 %v3172, %v3452
    %v3454 = vpop.f32.mrf.mxu0
    %v3455 = vadd.f32 %v3174, %v3454
    %v3456 = vpop.f32.mrf.mxu0
    %v3457 = vadd.f32 %v3176, %v3456
    %v3458 = vpop.f32.mrf.mxu0
    %v3459 = vadd.f32 %v3178, %v3458
    %3460 = vmatprep.mubr.bf16.mxu0 %v1107
    %3461 = vmatmul.mubr.bf16.gmra.mxu0 %v1106
    %v3462 = vpop.f32.mrf.mxu0
    %v3463 = vadd.f32 %v3182, %v3462
    %v3464 = vpop.f32.mrf.mxu0
    %v3465 = vadd.f32 %v3184, %v3464
    %v3466 = vpop.f32.mrf.mxu0
    %v3467 = vadd.f32 %v3186, %v3466
    %v3468 = vpop.f32.mrf.mxu0
    %v3469 = vadd.f32 %v3188, %v3468
    %3470 = vmatprep.mubr.bf16.mxu0 %v1113
    %3471 = vmatmul.mubr.bf16.gmra.mxu0 %v1112
    %v3472 = vpop.f32.mrf.mxu0
    %v3473 = vadd.f32 %v3192, %v3472
    %v3474 = vpop.f32.mrf.mxu0
    %v3475 = vadd.f32 %v3194, %v3474
    %v3476 = vpop.f32.mrf.mxu0
    %v3477 = vadd.f32 %v3196, %v3476
    %v3478 = vpop.f32.mrf.mxu0
    %v3479 = vadd.f32 %v3198, %v3478
    %3480 = vmatprep.mubr.bf16.mxu0 %v1119
    %3481 = vmatmul.mubr.bf16.gmra.mxu0 %v1118
    %v3482 = vpop.f32.mrf.mxu0
    %v3483 = vadd.f32 %v3202, %v3482
    %v3484 = vpop.f32.mrf.mxu0
    %v3485 = vadd.f32 %v3204, %v3484
    %v3486 = vpop.f32.mrf.mxu0
    %v3487 = vadd.f32 %v3206, %v3486
    %v3488 = vpop.f32.mrf.mxu0
    %v3489 = vadd.f32 %v3208, %v3488
    %3490 = vmatprep.mubr.bf16.mxu0 %v1125
    %3491 = vmatmul.mubr.bf16.gmra.mxu0 %v1124
    %v3492 = vpop.f32.mrf.mxu0
    %v3493 = vadd.f32 %v3212, %v3492
    %v3494 = vpop.f32.mrf.mxu0
    %v3495 = vadd.f32 %v3214, %v3494
    %v3496 = vpop.f32.mrf.mxu0
    %v3497 = vadd.f32 %v3216, %v3496
    %v3498 = vpop.f32.mrf.mxu0
    %v3499 = vadd.f32 %v3218, %v3498
    %3500 = vmatprep.mubr.bf16.mxu0 %v1131
    %3501 = vmatmul.mubr.bf16.gmra.mxu0 %v1130
    %v3502 = vpop.f32.mrf.mxu0
    %v3503 = vadd.f32 %v3222, %v3502
    %v3504 = vpop.f32.mrf.mxu0
    %v3505 = vadd.f32 %v3224, %v3504
    %v3506 = vpop.f32.mrf.mxu0
    %v3507 = vadd.f32 %v3226, %v3506
    %v3508 = vpop.f32.mrf.mxu0
    %v3509 = vadd.f32 %v3228, %v3508
    %3510 = vmatprep.mubr.bf16.mxu0 %v1137
    %3511 = vmatmul.mubr.bf16.gmra.mxu0 %v1136
    %v3512 = vpop.f32.mrf.mxu0
    %v3513 = vadd.f32 %v3232, %v3512
    %v3514 = vpop.f32.mrf.mxu0
    %v3515 = vadd.f32 %v3234, %v3514
    %v3516 = vpop.f32.mrf.mxu0
    %v3517 = vadd.f32 %v3236, %v3516
    %v3518 = vpop.f32.mrf.mxu0
    %v3519 = vadd.f32 %v3238, %v3518
    %3520 = vmatprep.mubr.bf16.mxu0 %v1143
    %3521 = vmatmul.mubr.bf16.gmra.mxu0 %v1142
    %v3522 = vpop.f32.mrf.mxu0
    %v3523 = vadd.f32 %v3242, %v3522
    %v3524 = vpop.f32.mrf.mxu0
    %v3525 = vadd.f32 %v3244, %v3524
    %v3526 = vpop.f32.mrf.mxu0
    %v3527 = vadd.f32 %v3246, %v3526
    %v3528 = vpop.f32.mrf.mxu0
    %v3529 = vadd.f32 %v3248, %v3528
    %3530 = vmatprep.mubr.bf16.mxu0 %v1149
    %3531 = vmatmul.mubr.bf16.gmra.mxu0 %v1148
    %v3532 = vpop.f32.mrf.mxu0
    %v3533 = vadd.f32 %v3252, %v3532
    %v3534 = vpop.f32.mrf.mxu0
    %v3535 = vadd.f32 %v3254, %v3534
    %v3536 = vpop.f32.mrf.mxu0
    %v3537 = vadd.f32 %v3256, %v3536
    %v3538 = vpop.f32.mrf.mxu0
    %v3539 = vadd.f32 %v3258, %v3538
    %3540 = vmatprep.mubr.bf16.mxu0 %v1155
    %3541 = vmatmul.mubr.bf16.gmra.mxu0 %v1154
    %v3542 = vpop.f32.mrf.mxu0
    %v3543 = vadd.f32 %v3262, %v3542
    %v3544 = vpop.f32.mrf.mxu0
    %v3545 = vadd.f32 %v3264, %v3544
    %v3546 = vpop.f32.mrf.mxu0
    %v3547 = vadd.f32 %v3266, %v3546
    %v3548 = vpop.f32.mrf.mxu0
    %v3549 = vadd.f32 %v3268, %v3548
    %3550 = vmatprep.mubr.bf16.mxu0 %v1161
    %3551 = vmatmul.mubr.bf16.gmra.mxu0 %v1160
    %v3552 = vpop.f32.mrf.mxu0
    %v3553 = vadd.f32 %v3272, %v3552
    %v3554 = vpop.f32.mrf.mxu0
    %v3555 = vadd.f32 %v3274, %v3554
    %v3556 = vpop.f32.mrf.mxu0
    %v3557 = vadd.f32 %v3276, %v3556
    %v3558 = vpop.f32.mrf.mxu0
    %v3559 = vadd.f32 %v3278, %v3558
    %3560 = vmatprep.mubr.bf16.mxu0 %v1167
    %3561 = vmatmul.mubr.bf16.gmra.mxu0 %v1166
    %v3562 = vpop.f32.mrf.mxu0
    %v3563 = vadd.f32 %v3282, %v3562
    %v3564 = vpop.f32.mrf.mxu0
    %v3565 = vadd.f32 %v3284, %v3564
    %v3566 = vpop.f32.mrf.mxu0
    %v3567 = vadd.f32 %v3286, %v3566
    %v3568 = vpop.f32.mrf.mxu0
    %v3569 = vadd.f32 %v3288, %v3568
    %3570 = vmatprep.mubr.bf16.mxu0 %v1173
    %3571 = vmatmul.mubr.bf16.gmra.mxu0 %v1172
    %v3572 = vpop.f32.mrf.mxu0
    %v3573 = vadd.f32 %v3292, %v3572
    %v3574 = vpop.f32.mrf.mxu0
    %v3575 = vadd.f32 %v3294, %v3574
    %v3576 = vpop.f32.mrf.mxu0
    %v3577 = vadd.f32 %v3296, %v3576
    %v3578 = vpop.f32.mrf.mxu0
    %v3579 = vadd.f32 %v3298, %v3578
    %3580 = vmatprep.mubr.bf16.mxu0 %v1179
    %3581 = vmatmul.mubr.bf16.gmra.mxu0 %v1178
    %v3582 = vpop.f32.mrf.mxu0
    %v3583 = vadd.f32 %v3302, %v3582
    %v3584 = vpop.f32.mrf.mxu0
    %v3585 = vadd.f32 %v3304, %v3584
    %v3586 = vpop.f32.mrf.mxu0
    %v3587 = vadd.f32 %v3306, %v3586
    %v3588 = vpop.f32.mrf.mxu0
    %v3589 = vadd.f32 %v3308, %v3588
    %3590 = vmatprep.mubr.bf16.mxu0 %v1185
    %3591 = vmatmul.mubr.bf16.gmra.mxu0 %v1184
    %v3592 = vpop.f32.mrf.mxu0
    %v3593 = vadd.f32 %v3312, %v3592
    %v3594 = vpop.f32.mrf.mxu0
    %v3595 = vadd.f32 %v3314, %v3594
    %v3596 = vpop.f32.mrf.mxu0
    %v3597 = vadd.f32 %v3316, %v3596
    %v3598 = vpop.f32.mrf.mxu0
    %v3599 = vadd.f32 %v3318, %v3598
    %3600 = vmatprep.mubr.bf16.mxu0 %v1191
    %3601 = vmatmul.mubr.bf16.gmra.mxu0 %v1190
    %v3602 = vpop.f32.mrf.mxu0
    %v3603 = vadd.f32 %v3322, %v3602
    %v3604 = vpop.f32.mrf.mxu0
    %v3605 = vadd.f32 %v3324, %v3604
    %v3606 = vpop.f32.mrf.mxu0
    %v3607 = vadd.f32 %v3326, %v3606
    %v3608 = vpop.f32.mrf.mxu0
    %v3609 = vadd.f32 %v3328, %v3608
    %3610 = vmatprep.mubr.bf16.mxu0 %v1197
    %3611 = vmatmul.mubr.bf16.gmra.mxu0 %v1196
    %v3612 = vpop.f32.mrf.mxu0
    %v3613 = vadd.f32 %v3332, %v3612
    %v3614 = vpop.f32.mrf.mxu0
    %v3615 = vadd.f32 %v3334, %v3614
    %v3616 = vpop.f32.mrf.mxu0
    %v3617 = vadd.f32 %v3336, %v3616
    %v3618 = vpop.f32.mrf.mxu0
    %v3619 = vadd.f32 %v3338, %v3618
    %3620 = vmatprep.mubr.bf16.mxu0 %v1203
    %3621 = vmatmul.mubr.bf16.gmra.mxu0 %v1202
    %v3622 = vpop.f32.mrf.mxu0
    %v3623 = vadd.f32 %v3342, %v3622
    %v3624 = vpop.f32.mrf.mxu0
    %v3625 = vadd.f32 %v3344, %v3624
    %v3626 = vpop.f32.mrf.mxu0
    %v3627 = vadd.f32 %v3346, %v3626
    %v3628 = vpop.f32.mrf.mxu0
    %v3629 = vadd.f32 %v3348, %v3628
    %3630 = vmatprep.mubr.bf16.mxu0 %v1209
    %3631 = vmatmul.mubr.bf16.gmra.mxu0 %v1208
    %v3632 = vpop.f32.mrf.mxu0
    %v3633 = vadd.f32 %v3352, %v3632
    %v3634 = vpop.f32.mrf.mxu0
    %v3635 = vadd.f32 %v3354, %v3634
    %v3636 = vpop.f32.mrf.mxu0
    %v3637 = vadd.f32 %v3356, %v3636
    %v3638 = vpop.f32.mrf.mxu0
    %v3639 = vadd.f32 %v3358, %v3638
    %3640 = vmatprep.mubr.bf16.mxu0 %v1215
    %3641 = vmatmul.mubr.bf16.gmra.mxu0 %v1214
    %v3642 = vpop.f32.mrf.mxu0
    %v3643 = vadd.f32 %v3362, %v3642
    %v3644 = vpop.f32.mrf.mxu0
    %v3645 = vadd.f32 %v3364, %v3644
    %v3646 = vpop.f32.mrf.mxu0
    %v3647 = vpop.f32.mrf.mxu0
    %3648 = vdwg.mxu0
    %3649 = vmatprep.subr.bf16.mxu0 %v2275
    %3650 = vmatpush1.bf16.msra.mxu0 %v2274
    %3651 = vmatprep.subr.bf16.mxu0 %v2269
    %3652 = vmatpush1.bf16.msra.mxu0 %v2268
    %3653 = vmatprep.subr.bf16.mxu0 %v2263
    %3654 = vmatpush1.bf16.msra.mxu0 %v2262
    %3655 = vmatprep.subr.bf16.mxu0 %v2257
    %3656 = vmatpush1.bf16.msra.mxu0 %v2256
    %3657 = vmatprep.subr.bf16.mxu0 %v2251
    %3658 = vmatpush1.bf16.msra.mxu0 %v2250
    %3659 = vmatprep.subr.bf16.mxu0 %v2245
    %3660 = vmatpush1.bf16.msra.mxu0 %v2244
    %3661 = vmatprep.subr.bf16.mxu0 %v2239
    %3662 = vmatpush1.bf16.msra.mxu0 %v2238
    %3663 = vmatprep.subr.bf16.mxu0 %v2233
    %3664 = vmatpush1.bf16.msra.mxu0 %v2232
    %3665 = vmatprep.subr.bf16.mxu0 %v2323
    %3666 = vmatpush2.bf16.msra.mxu0 %v2322
    %3667 = vmatprep.subr.bf16.mxu0 %v2317
    %3668 = vmatpush2.bf16.msra.mxu0 %v2316
    %3669 = vmatprep.subr.bf16.mxu0 %v2311
    %3670 = vmatpush2.bf16.msra.mxu0 %v2310
    %3671 = vmatprep.subr.bf16.mxu0 %v2305
    %3672 = vmatpush2.bf16.msra.mxu0 %v2304
    %3673 = vmatprep.subr.bf16.mxu0 %v2299
    %3674 = vmatpush2.bf16.msra.mxu0 %v2298
    %3675 = vmatprep.subr.bf16.mxu0 %v2293
    %3676 = vmatpush2.bf16.msra.mxu0 %v2292
    %3677 = vmatprep.subr.bf16.mxu0 %v2287
    %3678 = vmatpush2.bf16.msra.mxu0 %v2286
    %3679 = vmatprep.subr.bf16.mxu0 %v2281
    %3680 = vmatpush2.bf16.msra.mxu0 %v2280
    %3681 = vmatprep.mubr.bf16.mxu0 %v1067
    %3682 = vmatmul.mubr.bf16.gmra.mxu0 %v1066
    %v3683 = vpop.f32.mrf.mxu0
    %v3684 = vadd.f32 0.0, %v3683
    %v3685 = vpop.f32.mrf.mxu0
    %v3686 = vadd.f32 0.0, %v3685
    %v3687 = vpop.f32.mrf.mxu0
    %v3688 = vadd.f32 0.0, %v3687
    %v3689 = vpop.f32.mrf.mxu0
    %v3690 = vadd.f32 0.0, %v3689
    %3691 = vmatprep.mubr.bf16.mxu0 %v1073
    %3692 = vmatmul.mubr.bf16.gmra.mxu0 %v1072
    %v3693 = vpop.f32.mrf.mxu0
    %v3694 = vadd.f32 0.0, %v3693
    %v3695 = vpop.f32.mrf.mxu0
    %v3696 = vadd.f32 0.0, %v3695
    %v3697 = vpop.f32.mrf.mxu0
    %v3698 = vadd.f32 0.0, %v3697
    %v3699 = vpop.f32.mrf.mxu0
    %v3700 = vadd.f32 0.0, %v3699
    %3701 = vmatprep.mubr.bf16.mxu0 %v1079
    %3702 = vmatmul.mubr.bf16.gmra.mxu0 %v1078
    %v3703 = vpop.f32.mrf.mxu0
    %v3704 = vadd.f32 0.0, %v3703
    %v3705 = vpop.f32.mrf.mxu0
    %v3706 = vadd.f32 0.0, %v3705
    %v3707 = vpop.f32.mrf.mxu0
    %v3708 = vadd.f32 0.0, %v3707
    %v3709 = vpop.f32.mrf.mxu0
    %v3710 = vadd.f32 0.0, %v3709
    %3711 = vmatprep.mubr.bf16.mxu0 %v1085
    %3712 = vmatmul.mubr.bf16.gmra.mxu0 %v1084
    %v3713 = vpop.f32.mrf.mxu0
    %v3714 = vadd.f32 0.0, %v3713
    %v3715 = vpop.f32.mrf.mxu0
    %v3716 = vadd.f32 0.0, %v3715
    %v3717 = vpop.f32.mrf.mxu0
    %v3718 = vadd.f32 0.0, %v3717
    %v3719 = vpop.f32.mrf.mxu0
    %v3720 = vadd.f32 0.0, %v3719
    %3721 = vmatprep.mubr.bf16.mxu0 %v1091
    %3722 = vmatmul.mubr.bf16.gmra.mxu0 %v1090
    %v3723 = vpop.f32.mrf.mxu0
    %v3724 = vadd.f32 0.0, %v3723
    %v3725 = vpop.f32.mrf.mxu0
    %v3726 = vadd.f32 0.0, %v3725
    %v3727 = vpop.f32.mrf.mxu0
    %v3728 = vadd.f32 0.0, %v3727
    %v3729 = vpop.f32.mrf.mxu0
    %v3730 = vadd.f32 0.0, %v3729
    %3731 = vmatprep.mubr.bf16.mxu0 %v1097
    %3732 = vmatmul.mubr.bf16.gmra.mxu0 %v1096
    %v3733 = vpop.f32.mrf.mxu0
    %v3734 = vadd.f32 0.0, %v3733
    %v3735 = vpop.f32.mrf.mxu0
    %v3736 = vadd.f32 0.0, %v3735
    %v3737 = vpop.f32.mrf.mxu0
    %v3738 = vadd.f32 0.0, %v3737
    %v3739 = vpop.f32.mrf.mxu0
    %v3740 = vadd.f32 0.0, %v3739
    %3741 = vmatprep.mubr.bf16.mxu0 %v1103
    %3742 = vmatmul.mubr.bf16.gmra.mxu0 %v1102
    %v3743 = vpop.f32.mrf.mxu0
    %v3744 = vadd.f32 0.0, %v3743
    %v3745 = vpop.f32.mrf.mxu0
    %v3746 = vadd.f32 0.0, %v3745
    %v3747 = vpop.f32.mrf.mxu0
    %v3748 = vadd.f32 0.0, %v3747
    %v3749 = vpop.f32.mrf.mxu0
    %v3750 = vadd.f32 0.0, %v3749
    %3751 = vmatprep.mubr.bf16.mxu0 %v1109
    %3752 = vmatmul.mubr.bf16.gmra.mxu0 %v1108
    %v3753 = vpop.f32.mrf.mxu0
    %v3754 = vadd.f32 0.0, %v3753
    %v3755 = vpop.f32.mrf.mxu0
    %v3756 = vadd.f32 0.0, %v3755
    %v3757 = vpop.f32.mrf.mxu0
    %v3758 = vadd.f32 0.0, %v3757
    %v3759 = vpop.f32.mrf.mxu0
    %v3760 = vadd.f32 0.0, %v3759
    %3761 = vmatprep.mubr.bf16.mxu0 %v1115
    %3762 = vmatmul.mubr.bf16.gmra.mxu0 %v1114
    %v3763 = vpop.f32.mrf.mxu0
    %v3764 = vadd.f32 0.0, %v3763
    %v3765 = vpop.f32.mrf.mxu0
    %v3766 = vadd.f32 0.0, %v3765
    %v3767 = vpop.f32.mrf.mxu0
    %v3768 = vadd.f32 0.0, %v3767
    %v3769 = vpop.f32.mrf.mxu0
    %v3770 = vadd.f32 0.0, %v3769
    %3771 = vmatprep.mubr.bf16.mxu0 %v1121
    %3772 = vmatmul.mubr.bf16.gmra.mxu0 %v1120
    %v3773 = vpop.f32.mrf.mxu0
    %v3774 = vadd.f32 0.0, %v3773
    %v3775 = vpop.f32.mrf.mxu0
    %v3776 = vadd.f32 0.0, %v3775
    %v3777 = vpop.f32.mrf.mxu0
    %v3778 = vadd.f32 0.0, %v3777
    %v3779 = vpop.f32.mrf.mxu0
    %v3780 = vadd.f32 0.0, %v3779
    %3781 = vmatprep.mubr.bf16.mxu0 %v1127
    %3782 = vmatmul.mubr.bf16.gmra.mxu0 %v1126
    %v3783 = vpop.f32.mrf.mxu0
    %v3784 = vadd.f32 0.0, %v3783
    %v3785 = vpop.f32.mrf.mxu0
    %v3786 = vadd.f32 0.0, %v3785
    %v3787 = vpop.f32.mrf.mxu0
    %v3788 = vadd.f32 0.0, %v3787
    %v3789 = vpop.f32.mrf.mxu0
    %v3790 = vadd.f32 0.0, %v3789
    %3791 = vmatprep.mubr.bf16.mxu0 %v1133
    %3792 = vmatmul.mubr.bf16.gmra.mxu0 %v1132
    %v3793 = vpop.f32.mrf.mxu0
    %v3794 = vadd.f32 0.0, %v3793
    %v3795 = vpop.f32.mrf.mxu0
    %v3796 = vadd.f32 0.0, %v3795
    %v3797 = vpop.f32.mrf.mxu0
    %v3798 = vadd.f32 0.0, %v3797
    %v3799 = vpop.f32.mrf.mxu0
    %v3800 = vadd.f32 0.0, %v3799
    %3801 = vmatprep.mubr.bf16.mxu0 %v1139
    %3802 = vmatmul.mubr.bf16.gmra.mxu0 %v1138
    %v3803 = vpop.f32.mrf.mxu0
    %v3804 = vadd.f32 0.0, %v3803
    %v3805 = vpop.f32.mrf.mxu0
    %v3806 = vadd.f32 0.0, %v3805
    %v3807 = vpop.f32.mrf.mxu0
    %v3808 = vadd.f32 0.0, %v3807
    %v3809 = vpop.f32.mrf.mxu0
    %v3810 = vadd.f32 0.0, %v3809
    %3811 = vmatprep.mubr.bf16.mxu0 %v1145
    %3812 = vmatmul.mubr.bf16.gmra.mxu0 %v1144
    %v3813 = vpop.f32.mrf.mxu0
    %v3814 = vadd.f32 0.0, %v3813
    %v3815 = vpop.f32.mrf.mxu0
    %v3816 = vadd.f32 0.0, %v3815
    %v3817 = vpop.f32.mrf.mxu0
    %v3818 = vadd.f32 0.0, %v3817
    %v3819 = vpop.f32.mrf.mxu0
    %v3820 = vadd.f32 0.0, %v3819
    %3821 = vmatprep.mubr.bf16.mxu0 %v1151
    %3822 = vmatmul.mubr.bf16.gmra.mxu0 %v1150
    %v3823 = vpop.f32.mrf.mxu0
    %v3824 = vadd.f32 0.0, %v3823
    %v3825 = vpop.f32.mrf.mxu0
    %v3826 = vadd.f32 0.0, %v3825
    %v3827 = vpop.f32.mrf.mxu0
    %v3828 = vadd.f32 0.0, %v3827
    %v3829 = vpop.f32.mrf.mxu0
    %v3830 = vadd.f32 0.0, %v3829
    %3831 = vmatprep.mubr.bf16.mxu0 %v1157
    %3832 = vmatmul.mubr.bf16.gmra.mxu0 %v1156
    %v3833 = vpop.f32.mrf.mxu0
    %v3834 = vadd.f32 0.0, %v3833
    %v3835 = vpop.f32.mrf.mxu0
    %v3836 = vadd.f32 0.0, %v3835
    %v3837 = vpop.f32.mrf.mxu0
    %v3838 = vadd.f32 0.0, %v3837
    %v3839 = vpop.f32.mrf.mxu0
    %v3840 = vadd.f32 0.0, %v3839
    %3841 = vmatprep.mubr.bf16.mxu0 %v1163
    %3842 = vmatmul.mubr.bf16.gmra.mxu0 %v1162
    %v3843 = vpop.f32.mrf.mxu0
    %v3844 = vadd.f32 0.0, %v3843
    %v3845 = vpop.f32.mrf.mxu0
    %v3846 = vadd.f32 0.0, %v3845
    %v3847 = vpop.f32.mrf.mxu0
    %v3848 = vadd.f32 0.0, %v3847
    %v3849 = vpop.f32.mrf.mxu0
    %v3850 = vadd.f32 0.0, %v3849
    %3851 = vmatprep.mubr.bf16.mxu0 %v1169
    %3852 = vmatmul.mubr.bf16.gmra.mxu0 %v1168
    %v3853 = vpop.f32.mrf.mxu0
    %v3854 = vadd.f32 0.0, %v3853
    %v3855 = vpop.f32.mrf.mxu0
    %v3856 = vadd.f32 0.0, %v3855
    %v3857 = vpop.f32.mrf.mxu0
    %v3858 = vadd.f32 0.0, %v3857
    %v3859 = vpop.f32.mrf.mxu0
    %v3860 = vadd.f32 0.0, %v3859
    %3861 = vmatprep.mubr.bf16.mxu0 %v1175
    %3862 = vmatmul.mubr.bf16.gmra.mxu0 %v1174
    %v3863 = vpop.f32.mrf.mxu0
    %v3864 = vadd.f32 0.0, %v3863
    %v3865 = vpop.f32.mrf.mxu0
    %v3866 = vadd.f32 0.0, %v3865
    %v3867 = vpop.f32.mrf.mxu0
    %v3868 = vadd.f32 0.0, %v3867
    %v3869 = vpop.f32.mrf.mxu0
    %v3870 = vadd.f32 0.0, %v3869
    %3871 = vmatprep.mubr.bf16.mxu0 %v1181
    %3872 = vmatmul.mubr.bf16.gmra.mxu0 %v1180
    %v3873 = vpop.f32.mrf.mxu0
    %v3874 = vadd.f32 0.0, %v3873
    %v3875 = vpop.f32.mrf.mxu0
    %v3876 = vadd.f32 0.0, %v3875
    %v3877 = vpop.f32.mrf.mxu0
    %v3878 = vadd.f32 0.0, %v3877
    %v3879 = vpop.f32.mrf.mxu0
    %v3880 = vadd.f32 0.0, %v3879
    %3881 = vmatprep.mubr.bf16.mxu0 %v1187
    %3882 = vmatmul.mubr.bf16.gmra.mxu0 %v1186
    %v3883 = vpop.f32.mrf.mxu0
    %v3884 = vadd.f32 0.0, %v3883
    %v3885 = vpop.f32.mrf.mxu0
    %v3886 = vadd.f32 0.0, %v3885
    %v3887 = vpop.f32.mrf.mxu0
    %v3888 = vadd.f32 0.0, %v3887
    %v3889 = vpop.f32.mrf.mxu0
    %v3890 = vadd.f32 0.0, %v3889
    %3891 = vmatprep.mubr.bf16.mxu0 %v1193
    %3892 = vmatmul.mubr.bf16.gmra.mxu0 %v1192
    %v3893 = vpop.f32.mrf.mxu0
    %v3894 = vadd.f32 0.0, %v3893
    %v3895 = vpop.f32.mrf.mxu0
    %v3896 = vadd.f32 0.0, %v3895
    %v3897 = vpop.f32.mrf.mxu0
    %v3898 = vadd.f32 0.0, %v3897
    %v3899 = vpop.f32.mrf.mxu0
    %v3900 = vadd.f32 0.0, %v3899
    %3901 = vmatprep.mubr.bf16.mxu0 %v1199
    %3902 = vmatmul.mubr.bf16.gmra.mxu0 %v1198
    %v3903 = vpop.f32.mrf.mxu0
    %v3904 = vadd.f32 0.0, %v3903
    %v3905 = vpop.f32.mrf.mxu0
    %v3906 = vadd.f32 0.0, %v3905
    %v3907 = vpop.f32.mrf.mxu0
    %v3908 = vadd.f32 0.0, %v3907
    %v3909 = vpop.f32.mrf.mxu0
    %v3910 = vadd.f32 0.0, %v3909
    %3911 = vmatprep.mubr.bf16.mxu0 %v1205
    %3912 = vmatmul.mubr.bf16.gmra.mxu0 %v1204
    %v3913 = vpop.f32.mrf.mxu0
    %v3914 = vadd.f32 0.0, %v3913
    %v3915 = vpop.f32.mrf.mxu0
    %v3916 = vadd.f32 0.0, %v3915
    %v3917 = vpop.f32.mrf.mxu0
    %v3918 = vadd.f32 0.0, %v3917
    %v3919 = vpop.f32.mrf.mxu0
    %v3920 = vadd.f32 0.0, %v3919
    %3921 = vmatprep.mubr.bf16.mxu0 %v1211
    %3922 = vmatmul.mubr.bf16.gmra.mxu0 %v1210
    %v3923 = vpop.f32.mrf.mxu0
    %v3924 = vadd.f32 0.0, %v3923
    %v3925 = vpop.f32.mrf.mxu0
    %v3926 = vadd.f32 0.0, %v3925
    %v3927 = vpop.f32.mrf.mxu0
    %v3928 = vpop.f32.mrf.mxu0
    %3929 = vdwg.mxu0
    %3930 = vmatprep.subr.bf16.mxu0 %v2371
    %3931 = vmatpush1.bf16.msra.mxu0 %v2370
    %3932 = vmatprep.subr.bf16.mxu0 %v2365
    %3933 = vmatpush1.bf16.msra.mxu0 %v2364
    %3934 = vmatprep.subr.bf16.mxu0 %v2359
    %3935 = vmatpush1.bf16.msra.mxu0 %v2358
    %3936 = vmatprep.subr.bf16.mxu0 %v2353
    %3937 = vmatpush1.bf16.msra.mxu0 %v2352
    %3938 = vmatprep.subr.bf16.mxu0 %v2347
    %3939 = vmatpush1.bf16.msra.mxu0 %v2346
    %3940 = vmatprep.subr.bf16.mxu0 %v2341
    %3941 = vmatpush1.bf16.msra.mxu0 %v2340
    %3942 = vmatprep.subr.bf16.mxu0 %v2335
    %3943 = vmatpush1.bf16.msra.mxu0 %v2334
    %3944 = vmatprep.subr.bf16.mxu0 %v2329
    %3945 = vmatpush1.bf16.msra.mxu0 %v2328
    %3946 = vmatprep.subr.bf16.mxu0 %v2419
    %3947 = vmatpush2.bf16.msra.mxu0 %v2418
    %3948 = vmatprep.subr.bf16.mxu0 %v2413
    %3949 = vmatpush2.bf16.msra.mxu0 %v2412
    %3950 = vmatprep.subr.bf16.mxu0 %v2407
    %3951 = vmatpush2.bf16.msra.mxu0 %v2406
    %3952 = vmatprep.subr.bf16.mxu0 %v2401
    %3953 = vmatpush2.bf16.msra.mxu0 %v2400
    %3954 = vmatprep.subr.bf16.mxu0 %v2395
    %3955 = vmatpush2.bf16.msra.mxu0 %v2394
    %3956 = vmatprep.subr.bf16.mxu0 %v2389
    %3957 = vmatpush2.bf16.msra.mxu0 %v2388
    %3958 = vmatprep.subr.bf16.mxu0 %v2383
    %3959 = vmatpush2.bf16.msra.mxu0 %v2382
    %3960 = vmatprep.subr.bf16.mxu0 %v2377
    %3961 = vmatpush2.bf16.msra.mxu0 %v2376
    %3962 = vmatprep.mubr.bf16.mxu0 %v1069
    %3963 = vmatmul.mubr.bf16.gmra.mxu0 %v1068
    %v3964 = vpop.f32.mrf.mxu0
    %v3965 = vadd.f32 %v3684, %v3964
    %v3966 = vpop.f32.mrf.mxu0
    %v3967 = vadd.f32 %v3686, %v3966
    %v3968 = vpop.f32.mrf.mxu0
    %v3969 = vadd.f32 %v3688, %v3968
    %v3970 = vpop.f32.mrf.mxu0
    %v3971 = vadd.f32 %v3690, %v3970
    %3972 = vmatprep.mubr.bf16.mxu0 %v1075
    %3973 = vmatmul.mubr.bf16.gmra.mxu0 %v1074
    %v3974 = vpop.f32.mrf.mxu0
    %v3975 = vadd.f32 %v3694, %v3974
    %v3976 = vpop.f32.mrf.mxu0
    %v3977 = vadd.f32 %v3696, %v3976
    %v3978 = vpop.f32.mrf.mxu0
    %v3979 = vadd.f32 %v3698, %v3978
    %v3980 = vpop.f32.mrf.mxu0
    %v3981 = vadd.f32 %v3700, %v3980
    %3982 = vmatprep.mubr.bf16.mxu0 %v1081
    %3983 = vmatmul.mubr.bf16.gmra.mxu0 %v1080
    %v3984 = vpop.f32.mrf.mxu0
    %v3985 = vadd.f32 %v3704, %v3984
    %v3986 = vpop.f32.mrf.mxu0
    %v3987 = vadd.f32 %v3706, %v3986
    %v3988 = vpop.f32.mrf.mxu0
    %v3989 = vadd.f32 %v3708, %v3988
    %v3990 = vpop.f32.mrf.mxu0
    %v3991 = vadd.f32 %v3710, %v3990
    %3992 = vmatprep.mubr.bf16.mxu0 %v1087
    %3993 = vmatmul.mubr.bf16.gmra.mxu0 %v1086
    %v3994 = vpop.f32.mrf.mxu0
    %v3995 = vadd.f32 %v3714, %v3994
    %v3996 = vpop.f32.mrf.mxu0
    %v3997 = vadd.f32 %v3716, %v3996
    %v3998 = vpop.f32.mrf.mxu0
    %v3999 = vadd.f32 %v3718, %v3998
    %v4000 = vpop.f32.mrf.mxu0
    %v4001 = vadd.f32 %v3720, %v4000
    %4002 = vmatprep.mubr.bf16.mxu0 %v1093
    %4003 = vmatmul.mubr.bf16.gmra.mxu0 %v1092
    %v4004 = vpop.f32.mrf.mxu0
    %v4005 = vadd.f32 %v3724, %v4004
    %v4006 = vpop.f32.mrf.mxu0
    %v4007 = vadd.f32 %v3726, %v4006
    %v4008 = vpop.f32.mrf.mxu0
    %v4009 = vadd.f32 %v3728, %v4008
    %v4010 = vpop.f32.mrf.mxu0
    %v4011 = vadd.f32 %v3730, %v4010
    %4012 = vmatprep.mubr.bf16.mxu0 %v1099
    %4013 = vmatmul.mubr.bf16.gmra.mxu0 %v1098
    %v4014 = vpop.f32.mrf.mxu0
    %v4015 = vadd.f32 %v3734, %v4014
    %v4016 = vpop.f32.mrf.mxu0
    %v4017 = vadd.f32 %v3736, %v4016
    %v4018 = vpop.f32.mrf.mxu0
    %v4019 = vadd.f32 %v3738, %v4018
    %v4020 = vpop.f32.mrf.mxu0
    %v4021 = vadd.f32 %v3740, %v4020
    %4022 = vmatprep.mubr.bf16.mxu0 %v1105
    %4023 = vmatmul.mubr.bf16.gmra.mxu0 %v1104
    %v4024 = vpop.f32.mrf.mxu0
    %v4025 = vadd.f32 %v3744, %v4024
    %v4026 = vpop.f32.mrf.mxu0
    %v4027 = vadd.f32 %v3746, %v4026
    %v4028 = vpop.f32.mrf.mxu0
    %v4029 = vadd.f32 %v3748, %v4028
    %v4030 = vpop.f32.mrf.mxu0
    %v4031 = vadd.f32 %v3750, %v4030
    %4032 = vmatprep.mubr.bf16.mxu0 %v1111
    %4033 = vmatmul.mubr.bf16.gmra.mxu0 %v1110
    %v4034 = vpop.f32.mrf.mxu0
    %v4035 = vadd.f32 %v3754, %v4034
    %v4036 = vpop.f32.mrf.mxu0
    %v4037 = vadd.f32 %v3756, %v4036
    %v4038 = vpop.f32.mrf.mxu0
    %v4039 = vadd.f32 %v3758, %v4038
    %v4040 = vpop.f32.mrf.mxu0
    %v4041 = vadd.f32 %v3760, %v4040
    %4042 = vmatprep.mubr.bf16.mxu0 %v1117
    %4043 = vmatmul.mubr.bf16.gmra.mxu0 %v1116
    %v4044 = vpop.f32.mrf.mxu0
    %v4045 = vadd.f32 %v3764, %v4044
    %v4046 = vpop.f32.mrf.mxu0
    %v4047 = vadd.f32 %v3766, %v4046
    %v4048 = vpop.f32.mrf.mxu0
    %v4049 = vadd.f32 %v3768, %v4048
    %v4050 = vpop.f32.mrf.mxu0
    %v4051 = vadd.f32 %v3770, %v4050
    %4052 = vmatprep.mubr.bf16.mxu0 %v1123
    %4053 = vmatmul.mubr.bf16.gmra.mxu0 %v1122
    %v4054 = vpop.f32.mrf.mxu0
    %v4055 = vadd.f32 %v3774, %v4054
    %v4056 = vpop.f32.mrf.mxu0
    %v4057 = vadd.f32 %v3776, %v4056
    %v4058 = vpop.f32.mrf.mxu0
    %v4059 = vadd.f32 %v3778, %v4058
    %v4060 = vpop.f32.mrf.mxu0
    %v4061 = vadd.f32 %v3780, %v4060
    %4062 = vmatprep.mubr.bf16.mxu0 %v1129
    %4063 = vmatmul.mubr.bf16.gmra.mxu0 %v1128
    %v4064 = vpop.f32.mrf.mxu0
    %v4065 = vadd.f32 %v3784, %v4064
    %v4066 = vpop.f32.mrf.mxu0
    %v4067 = vadd.f32 %v3786, %v4066
    %v4068 = vpop.f32.mrf.mxu0
    %v4069 = vadd.f32 %v3788, %v4068
    %v4070 = vpop.f32.mrf.mxu0
    %v4071 = vadd.f32 %v3790, %v4070
    %4072 = vmatprep.mubr.bf16.mxu0 %v1135
    %4073 = vmatmul.mubr.bf16.gmra.mxu0 %v1134
    %v4074 = vpop.f32.mrf.mxu0
    %v4075 = vadd.f32 %v3794, %v4074
    %v4076 = vpop.f32.mrf.mxu0
    %v4077 = vadd.f32 %v3796, %v4076
    %v4078 = vpop.f32.mrf.mxu0
    %v4079 = vadd.f32 %v3798, %v4078
    %v4080 = vpop.f32.mrf.mxu0
    %v4081 = vadd.f32 %v3800, %v4080
    %4082 = vmatprep.mubr.bf16.mxu0 %v1141
    %4083 = vmatmul.mubr.bf16.gmra.mxu0 %v1140
    %v4084 = vpop.f32.mrf.mxu0
    %v4085 = vadd.f32 %v3804, %v4084
    %v4086 = vpop.f32.mrf.mxu0
    %v4087 = vadd.f32 %v3806, %v4086
    %v4088 = vpop.f32.mrf.mxu0
    %v4089 = vadd.f32 %v3808, %v4088
    %v4090 = vpop.f32.mrf.mxu0
    %v4091 = vadd.f32 %v3810, %v4090
    %4092 = vmatprep.mubr.bf16.mxu0 %v1147
    %4093 = vmatmul.mubr.bf16.gmra.mxu0 %v1146
    %v4094 = vpop.f32.mrf.mxu0
    %v4095 = vadd.f32 %v3814, %v4094
    %v4096 = vpop.f32.mrf.mxu0
    %v4097 = vadd.f32 %v3816, %v4096
    %v4098 = vpop.f32.mrf.mxu0
    %v4099 = vadd.f32 %v3818, %v4098
    %v4100 = vpop.f32.mrf.mxu0
    %v4101 = vadd.f32 %v3820, %v4100
    %4102 = vmatprep.mubr.bf16.mxu0 %v1153
    %4103 = vmatmul.mubr.bf16.gmra.mxu0 %v1152
    %v4104 = vpop.f32.mrf.mxu0
    %v4105 = vadd.f32 %v3824, %v4104
    %v4106 = vpop.f32.mrf.mxu0
    %v4107 = vadd.f32 %v3826, %v4106
    %v4108 = vpop.f32.mrf.mxu0
    %v4109 = vadd.f32 %v3828, %v4108
    %v4110 = vpop.f32.mrf.mxu0
    %v4111 = vadd.f32 %v3830, %v4110
    %4112 = vmatprep.mubr.bf16.mxu0 %v1159
    %4113 = vmatmul.mubr.bf16.gmra.mxu0 %v1158
    %v4114 = vpop.f32.mrf.mxu0
    %v4115 = vadd.f32 %v3834, %v4114
    %v4116 = vpop.f32.mrf.mxu0
    %v4117 = vadd.f32 %v3836, %v4116
    %v4118 = vpop.f32.mrf.mxu0
    %v4119 = vadd.f32 %v3838, %v4118
    %v4120 = vpop.f32.mrf.mxu0
    %v4121 = vadd.f32 %v3840, %v4120
    %4122 = vmatprep.mubr.bf16.mxu0 %v1165
    %4123 = vmatmul.mubr.bf16.gmra.mxu0 %v1164
    %v4124 = vpop.f32.mrf.mxu0
    %v4125 = vadd.f32 %v3844, %v4124
    %v4126 = vpop.f32.mrf.mxu0
    %v4127 = vadd.f32 %v3846, %v4126
    %v4128 = vpop.f32.mrf.mxu0
    %v4129 = vadd.f32 %v3848, %v4128
    %v4130 = vpop.f32.mrf.mxu0
    %v4131 = vadd.f32 %v3850, %v4130
    %4132 = vmatprep.mubr.bf16.mxu0 %v1171
    %4133 = vmatmul.mubr.bf16.gmra.mxu0 %v1170
    %v4134 = vpop.f32.mrf.mxu0
    %v4135 = vadd.f32 %v3854, %v4134
    %v4136 = vpop.f32.mrf.mxu0
    %v4137 = vadd.f32 %v3856, %v4136
    %v4138 = vpop.f32.mrf.mxu0
    %v4139 = vadd.f32 %v3858, %v4138
    %v4140 = vpop.f32.mrf.mxu0
    %v4141 = vadd.f32 %v3860, %v4140
    %4142 = vmatprep.mubr.bf16.mxu0 %v1177
    %4143 = vmatmul.mubr.bf16.gmra.mxu0 %v1176
    %v4144 = vpop.f32.mrf.mxu0
    %v4145 = vadd.f32 %v3864, %v4144
    %v4146 = vpop.f32.mrf.mxu0
    %v4147 = vadd.f32 %v3866, %v4146
    %v4148 = vpop.f32.mrf.mxu0
    %v4149 = vadd.f32 %v3868, %v4148
    %v4150 = vpop.f32.mrf.mxu0
    %v4151 = vadd.f32 %v3870, %v4150
    %4152 = vmatprep.mubr.bf16.mxu0 %v1183
    %4153 = vmatmul.mubr.bf16.gmra.mxu0 %v1182
    %v4154 = vpop.f32.mrf.mxu0
    %v4155 = vadd.f32 %v3874, %v4154
    %v4156 = vpop.f32.mrf.mxu0
    %v4157 = vadd.f32 %v3876, %v4156
    %v4158 = vpop.f32.mrf.mxu0
    %v4159 = vadd.f32 %v3878, %v4158
    %v4160 = vpop.f32.mrf.mxu0
    %v4161 = vadd.f32 %v3880, %v4160
    %4162 = vmatprep.mubr.bf16.mxu0 %v1189
    %4163 = vmatmul.mubr.bf16.gmra.mxu0 %v1188
    %v4164 = vpop.f32.mrf.mxu0
    %v4165 = vadd.f32 %v3884, %v4164
    %v4166 = vpop.f32.mrf.mxu0
    %v4167 = vadd.f32 %v3886, %v4166
    %v4168 = vpop.f32.mrf.mxu0
    %v4169 = vadd.f32 %v3888, %v4168
    %v4170 = vpop.f32.mrf.mxu0
    %v4171 = vadd.f32 %v3890, %v4170
    %4172 = vmatprep.mubr.bf16.mxu0 %v1195
    %4173 = vmatmul.mubr.bf16.gmra.mxu0 %v1194
    %v4174 = vpop.f32.mrf.mxu0
    %v4175 = vadd.f32 %v3894, %v4174
    %v4176 = vpop.f32.mrf.mxu0
    %v4177 = vadd.f32 %v3896, %v4176
    %v4178 = vpop.f32.mrf.mxu0
    %v4179 = vadd.f32 %v3898, %v4178
    %v4180 = vpop.f32.mrf.mxu0
    %v4181 = vadd.f32 %v3900, %v4180
    %4182 = vmatprep.mubr.bf16.mxu0 %v1201
    %4183 = vmatmul.mubr.bf16.gmra.mxu0 %v1200
    %v4184 = vpop.f32.mrf.mxu0
    %v4185 = vadd.f32 %v3904, %v4184
    %v4186 = vpop.f32.mrf.mxu0
    %v4187 = vadd.f32 %v3906, %v4186
    %v4188 = vpop.f32.mrf.mxu0
    %v4189 = vadd.f32 %v3908, %v4188
    %v4190 = vpop.f32.mrf.mxu0
    %v4191 = vadd.f32 %v3910, %v4190
    %4192 = vmatprep.mubr.bf16.mxu0 %v1207
    %4193 = vmatmul.mubr.bf16.gmra.mxu0 %v1206
    %v4194 = vpop.f32.mrf.mxu0
    %v4195 = vadd.f32 %v3914, %v4194
    %v4196 = vpop.f32.mrf.mxu0
    %v4197 = vadd.f32 %v3916, %v4196
    %v4198 = vpop.f32.mrf.mxu0
    %v4199 = vadd.f32 %v3918, %v4198
    %v4200 = vpop.f32.mrf.mxu0
    %v4201 = vadd.f32 %v3920, %v4200
    %4202 = vmatprep.mubr.bf16.mxu0 %v1213
    %4203 = vmatmul.mubr.bf16.gmra.mxu0 %v1212
    %v4204 = vpop.f32.mrf.mxu0
    %v4205 = vadd.f32 %v3924, %v4204
    %v4206 = vpop.f32.mrf.mxu0
    %v4207 = vadd.f32 %v3926, %v4206
    %v4208 = vpop.f32.mrf.mxu0
    %v4209 = vpop.f32.mrf.mxu0
    %4210 = vdwg.mxu0
    %4211 = vmatprep.subr.bf16.mxu0 %v2467
    %4212 = vmatpush1.bf16.msra.mxu0 %v2466
    %4213 = vmatprep.subr.bf16.mxu0 %v2461
    %4214 = vmatpush1.bf16.msra.mxu0 %v2460
    %4215 = vmatprep.subr.bf16.mxu0 %v2455
    %4216 = vmatpush1.bf16.msra.mxu0 %v2454
    %4217 = vmatprep.subr.bf16.mxu0 %v2449
    %4218 = vmatpush1.bf16.msra.mxu0 %v2448
    %4219 = vmatprep.subr.bf16.mxu0 %v2443
    %4220 = vmatpush1.bf16.msra.mxu0 %v2442
    %4221 = vmatprep.subr.bf16.mxu0 %v2437
    %4222 = vmatpush1.bf16.msra.mxu0 %v2436
    %4223 = vmatprep.subr.bf16.mxu0 %v2431
    %4224 = vmatpush1.bf16.msra.mxu0 %v2430
    %4225 = vmatprep.subr.bf16.mxu0 %v2425
    %4226 = vmatpush1.bf16.msra.mxu0 %v2424
    %4227 = vmatprep.subr.bf16.mxu0 %v2515
    %4228 = vmatpush2.bf16.msra.mxu0 %v2514
    %4229 = vmatprep.subr.bf16.mxu0 %v2509
    %4230 = vmatpush2.bf16.msra.mxu0 %v2508
    %4231 = vmatprep.subr.bf16.mxu0 %v2503
    %4232 = vmatpush2.bf16.msra.mxu0 %v2502
    %4233 = vmatprep.subr.bf16.mxu0 %v2497
    %4234 = vmatpush2.bf16.msra.mxu0 %v2496
    %4235 = vmatprep.subr.bf16.mxu0 %v2491
    %4236 = vmatpush2.bf16.msra.mxu0 %v2490
    %4237 = vmatprep.subr.bf16.mxu0 %v2485
    %4238 = vmatpush2.bf16.msra.mxu0 %v2484
    %4239 = vmatprep.subr.bf16.mxu0 %v2479
    %4240 = vmatpush2.bf16.msra.mxu0 %v2478
    %4241 = vmatprep.subr.bf16.mxu0 %v2473
    %4242 = vmatpush2.bf16.msra.mxu0 %v2472
    %4243 = vmatprep.mubr.bf16.mxu0 %v1071
    %4244 = vmatmul.mubr.bf16.gmra.mxu0 %v1070
    %v4245 = vpop.f32.mrf.mxu0
    %v4246 = vadd.f32 %v3965, %v4245
    %v4247 = vpop.f32.mrf.mxu0
    %v4248 = vadd.f32 %v3967, %v4247
    %v4249 = vpop.f32.mrf.mxu0
    %v4250 = vadd.f32 %v3969, %v4249
    %v4251 = vpop.f32.mrf.mxu0
    %v4252 = vadd.f32 %v3971, %v4251
    %4253 = vmatprep.mubr.bf16.mxu0 %v1077
    %4254 = vmatmul.mubr.bf16.gmra.mxu0 %v1076
    %v4255 = vpop.f32.mrf.mxu0
    %v4256 = vadd.f32 %v3975, %v4255
    %v4257 = vpop.f32.mrf.mxu0
    %v4258 = vadd.f32 %v3977, %v4257
    %v4259 = vpop.f32.mrf.mxu0
    %v4260 = vadd.f32 %v3979, %v4259
    %v4261 = vpop.f32.mrf.mxu0
    %v4262 = vadd.f32 %v3981, %v4261
    %4263 = vmatprep.mubr.bf16.mxu0 %v1083
    %4264 = vmatmul.mubr.bf16.gmra.mxu0 %v1082
    %v4265 = vpop.f32.mrf.mxu0
    %v4266 = vadd.f32 %v3985, %v4265
    %v4267 = vpop.f32.mrf.mxu0
    %v4268 = vadd.f32 %v3987, %v4267
    %v4269 = vpop.f32.mrf.mxu0
    %v4270 = vadd.f32 %v3989, %v4269
    %v4271 = vpop.f32.mrf.mxu0
    %v4272 = vadd.f32 %v3991, %v4271
    %4273 = vmatprep.mubr.bf16.mxu0 %v1089
    %4274 = vmatmul.mubr.bf16.gmra.mxu0 %v1088
    %v4275 = vpop.f32.mrf.mxu0
    %v4276 = vadd.f32 %v3995, %v4275
    %v4277 = vpop.f32.mrf.mxu0
    %v4278 = vadd.f32 %v3997, %v4277
    %v4279 = vpop.f32.mrf.mxu0
    %v4280 = vadd.f32 %v3999, %v4279
    %v4281 = vpop.f32.mrf.mxu0
    %v4282 = vadd.f32 %v4001, %v4281
    %4283 = vmatprep.mubr.bf16.mxu0 %v1095
    %4284 = vmatmul.mubr.bf16.gmra.mxu0 %v1094
    %v4285 = vpop.f32.mrf.mxu0
    %v4286 = vadd.f32 %v4005, %v4285
    %v4287 = vpop.f32.mrf.mxu0
    %v4288 = vadd.f32 %v4007, %v4287
    %v4289 = vpop.f32.mrf.mxu0
    %v4290 = vadd.f32 %v4009, %v4289
    %v4291 = vpop.f32.mrf.mxu0
    %v4292 = vadd.f32 %v4011, %v4291
    %4293 = vmatprep.mubr.bf16.mxu0 %v1101
    %4294 = vmatmul.mubr.bf16.gmra.mxu0 %v1100
    %v4295 = vpop.f32.mrf.mxu0
    %v4296 = vadd.f32 %v4015, %v4295
    %v4297 = vpop.f32.mrf.mxu0
    %v4298 = vadd.f32 %v4017, %v4297
    %v4299 = vpop.f32.mrf.mxu0
    %v4300 = vadd.f32 %v4019, %v4299
    %v4301 = vpop.f32.mrf.mxu0
    %v4302 = vadd.f32 %v4021, %v4301
    %4303 = vmatprep.mubr.bf16.mxu0 %v1107
    %4304 = vmatmul.mubr.bf16.gmra.mxu0 %v1106
    %v4305 = vpop.f32.mrf.mxu0
    %v4306 = vadd.f32 %v4025, %v4305
    %v4307 = vpop.f32.mrf.mxu0
    %v4308 = vadd.f32 %v4027, %v4307
    %v4309 = vpop.f32.mrf.mxu0
    %v4310 = vadd.f32 %v4029, %v4309
    %v4311 = vpop.f32.mrf.mxu0
    %v4312 = vadd.f32 %v4031, %v4311
    %4313 = vmatprep.mubr.bf16.mxu0 %v1113
    %4314 = vmatmul.mubr.bf16.gmra.mxu0 %v1112
    %v4315 = vpop.f32.mrf.mxu0
    %v4316 = vadd.f32 %v4035, %v4315
    %v4317 = vpop.f32.mrf.mxu0
    %v4318 = vadd.f32 %v4037, %v4317
    %v4319 = vpop.f32.mrf.mxu0
    %v4320 = vadd.f32 %v4039, %v4319
    %v4321 = vpop.f32.mrf.mxu0
    %v4322 = vadd.f32 %v4041, %v4321
    %4323 = vmatprep.mubr.bf16.mxu0 %v1119
    %4324 = vmatmul.mubr.bf16.gmra.mxu0 %v1118
    %v4325 = vpop.f32.mrf.mxu0
    %v4326 = vadd.f32 %v4045, %v4325
    %v4327 = vpop.f32.mrf.mxu0
    %v4328 = vadd.f32 %v4047, %v4327
    %v4329 = vpop.f32.mrf.mxu0
    %v4330 = vadd.f32 %v4049, %v4329
    %v4331 = vpop.f32.mrf.mxu0
    %v4332 = vadd.f32 %v4051, %v4331
    %4333 = vmatprep.mubr.bf16.mxu0 %v1125
    %4334 = vmatmul.mubr.bf16.gmra.mxu0 %v1124
    %v4335 = vpop.f32.mrf.mxu0
    %v4336 = vadd.f32 %v4055, %v4335
    %v4337 = vpop.f32.mrf.mxu0
    %v4338 = vadd.f32 %v4057, %v4337
    %v4339 = vpop.f32.mrf.mxu0
    %v4340 = vadd.f32 %v4059, %v4339
    %v4341 = vpop.f32.mrf.mxu0
    %v4342 = vadd.f32 %v4061, %v4341
    %4343 = vmatprep.mubr.bf16.mxu0 %v1131
    %4344 = vmatmul.mubr.bf16.gmra.mxu0 %v1130
    %v4345 = vpop.f32.mrf.mxu0
    %v4346 = vadd.f32 %v4065, %v4345
    %v4347 = vpop.f32.mrf.mxu0
    %v4348 = vadd.f32 %v4067, %v4347
    %v4349 = vpop.f32.mrf.mxu0
    %v4350 = vadd.f32 %v4069, %v4349
    %v4351 = vpop.f32.mrf.mxu0
    %v4352 = vadd.f32 %v4071, %v4351
    %4353 = vmatprep.mubr.bf16.mxu0 %v1137
    %4354 = vmatmul.mubr.bf16.gmra.mxu0 %v1136
    %v4355 = vpop.f32.mrf.mxu0
    %v4356 = vadd.f32 %v4075, %v4355
    %v4357 = vpop.f32.mrf.mxu0
    %v4358 = vadd.f32 %v4077, %v4357
    %v4359 = vpop.f32.mrf.mxu0
    %v4360 = vadd.f32 %v4079, %v4359
    %v4361 = vpop.f32.mrf.mxu0
    %v4362 = vadd.f32 %v4081, %v4361
    %4363 = vmatprep.mubr.bf16.mxu0 %v1143
    %4364 = vmatmul.mubr.bf16.gmra.mxu0 %v1142
    %v4365 = vpop.f32.mrf.mxu0
    %v4366 = vadd.f32 %v4085, %v4365
    %v4367 = vpop.f32.mrf.mxu0
    %v4368 = vadd.f32 %v4087, %v4367
    %v4369 = vpop.f32.mrf.mxu0
    %v4370 = vadd.f32 %v4089, %v4369
    %v4371 = vpop.f32.mrf.mxu0
    %v4372 = vadd.f32 %v4091, %v4371
    %4373 = vmatprep.mubr.bf16.mxu0 %v1149
    %4374 = vmatmul.mubr.bf16.gmra.mxu0 %v1148
    %v4375 = vpop.f32.mrf.mxu0
    %v4376 = vadd.f32 %v4095, %v4375
    %v4377 = vpop.f32.mrf.mxu0
    %v4378 = vadd.f32 %v4097, %v4377
    %v4379 = vpop.f32.mrf.mxu0
    %v4380 = vadd.f32 %v4099, %v4379
    %v4381 = vpop.f32.mrf.mxu0
    %v4382 = vadd.f32 %v4101, %v4381
    %4383 = vmatprep.mubr.bf16.mxu0 %v1155
    %4384 = vmatmul.mubr.bf16.gmra.mxu0 %v1154
    %v4385 = vpop.f32.mrf.mxu0
    %v4386 = vadd.f32 %v4105, %v4385
    %v4387 = vpop.f32.mrf.mxu0
    %v4388 = vadd.f32 %v4107, %v4387
    %v4389 = vpop.f32.mrf.mxu0
    %v4390 = vadd.f32 %v4109, %v4389
    %v4391 = vpop.f32.mrf.mxu0
    %v4392 = vadd.f32 %v4111, %v4391
    %4393 = vmatprep.mubr.bf16.mxu0 %v1161
    %4394 = vmatmul.mubr.bf16.gmra.mxu0 %v1160
    %v4395 = vpop.f32.mrf.mxu0
    %v4396 = vadd.f32 %v4115, %v4395
    %v4397 = vpop.f32.mrf.mxu0
    %v4398 = vadd.f32 %v4117, %v4397
    %v4399 = vpop.f32.mrf.mxu0
    %v4400 = vadd.f32 %v4119, %v4399
    %v4401 = vpop.f32.mrf.mxu0
    %v4402 = vadd.f32 %v4121, %v4401
    %4403 = vmatprep.mubr.bf16.mxu0 %v1167
    %4404 = vmatmul.mubr.bf16.gmra.mxu0 %v1166
    %v4405 = vpop.f32.mrf.mxu0
    %v4406 = vadd.f32 %v4125, %v4405
    %v4407 = vpop.f32.mrf.mxu0
    %v4408 = vadd.f32 %v4127, %v4407
    %v4409 = vpop.f32.mrf.mxu0
    %v4410 = vadd.f32 %v4129, %v4409
    %v4411 = vpop.f32.mrf.mxu0
    %v4412 = vadd.f32 %v4131, %v4411
    %4413 = vmatprep.mubr.bf16.mxu0 %v1173
    %4414 = vmatmul.mubr.bf16.gmra.mxu0 %v1172
    %v4415 = vpop.f32.mrf.mxu0
    %v4416 = vadd.f32 %v4135, %v4415
    %v4417 = vpop.f32.mrf.mxu0
    %v4418 = vadd.f32 %v4137, %v4417
    %v4419 = vpop.f32.mrf.mxu0
    %v4420 = vadd.f32 %v4139, %v4419
    %v4421 = vpop.f32.mrf.mxu0
    %v4422 = vadd.f32 %v4141, %v4421
    %4423 = vmatprep.mubr.bf16.mxu0 %v1179
    %4424 = vmatmul.mubr.bf16.gmra.mxu0 %v1178
    %v4425 = vpop.f32.mrf.mxu0
    %v4426 = vadd.f32 %v4145, %v4425
    %v4427 = vpop.f32.mrf.mxu0
    %v4428 = vadd.f32 %v4147, %v4427
    %v4429 = vpop.f32.mrf.mxu0
    %v4430 = vadd.f32 %v4149, %v4429
    %v4431 = vpop.f32.mrf.mxu0
    %v4432 = vadd.f32 %v4151, %v4431
    %4433 = vmatprep.mubr.bf16.mxu0 %v1185
    %4434 = vmatmul.mubr.bf16.gmra.mxu0 %v1184
    %v4435 = vpop.f32.mrf.mxu0
    %v4436 = vadd.f32 %v4155, %v4435
    %v4437 = vpop.f32.mrf.mxu0
    %v4438 = vadd.f32 %v4157, %v4437
    %v4439 = vpop.f32.mrf.mxu0
    %v4440 = vadd.f32 %v4159, %v4439
    %v4441 = vpop.f32.mrf.mxu0
    %v4442 = vadd.f32 %v4161, %v4441
    %4443 = vmatprep.mubr.bf16.mxu0 %v1191
    %4444 = vmatmul.mubr.bf16.gmra.mxu0 %v1190
    %v4445 = vpop.f32.mrf.mxu0
    %v4446 = vadd.f32 %v4165, %v4445
    %v4447 = vpop.f32.mrf.mxu0
    %v4448 = vadd.f32 %v4167, %v4447
    %v4449 = vpop.f32.mrf.mxu0
    %v4450 = vadd.f32 %v4169, %v4449
    %v4451 = vpop.f32.mrf.mxu0
    %v4452 = vadd.f32 %v4171, %v4451
    %4453 = vmatprep.mubr.bf16.mxu0 %v1197
    %4454 = vmatmul.mubr.bf16.gmra.mxu0 %v1196
    %v4455 = vpop.f32.mrf.mxu0
    %v4456 = vadd.f32 %v4175, %v4455
    %v4457 = vpop.f32.mrf.mxu0
    %v4458 = vadd.f32 %v4177, %v4457
    %v4459 = vpop.f32.mrf.mxu0
    %v4460 = vadd.f32 %v4179, %v4459
    %v4461 = vpop.f32.mrf.mxu0
    %v4462 = vadd.f32 %v4181, %v4461
    %4463 = vmatprep.mubr.bf16.mxu0 %v1203
    %4464 = vmatmul.mubr.bf16.gmra.mxu0 %v1202
    %v4465 = vpop.f32.mrf.mxu0
    %v4466 = vadd.f32 %v4185, %v4465
    %v4467 = vpop.f32.mrf.mxu0
    %v4468 = vadd.f32 %v4187, %v4467
    %v4469 = vpop.f32.mrf.mxu0
    %v4470 = vadd.f32 %v4189, %v4469
    %v4471 = vpop.f32.mrf.mxu0
    %v4472 = vadd.f32 %v4191, %v4471
    %4473 = vmatprep.mubr.bf16.mxu0 %v1209
    %4474 = vmatmul.mubr.bf16.gmra.mxu0 %v1208
    %v4475 = vpop.f32.mrf.mxu0
    %v4476 = vadd.f32 %v4195, %v4475
    %v4477 = vpop.f32.mrf.mxu0
    %v4478 = vadd.f32 %v4197, %v4477
    %v4479 = vpop.f32.mrf.mxu0
    %v4480 = vadd.f32 %v4199, %v4479
    %v4481 = vpop.f32.mrf.mxu0
    %v4482 = vadd.f32 %v4201, %v4481
    %4483 = vmatprep.mubr.bf16.mxu0 %v1215
    %4484 = vmatmul.mubr.bf16.gmra.mxu0 %v1214
    %v4485 = vpop.f32.mrf.mxu0
    %v4486 = vadd.f32 %v4205, %v4485
    %v4487 = vpop.f32.mrf.mxu0
    %v4488 = vadd.f32 %v4207, %v4487
    %v4489 = vpop.f32.mrf.mxu0
    %v4490 = vpop.f32.mrf.mxu0
    %4491 = vdwg.mxu0
    %4492 = vmatprep.subr.bf16.mxu0 %v2277
    %4493 = vmatpush1.bf16.msra.mxu0 %v2276
    %4494 = vmatprep.subr.bf16.mxu0 %v2271
    %4495 = vmatpush1.bf16.msra.mxu0 %v2270
    %4496 = vmatprep.subr.bf16.mxu0 %v2265
    %4497 = vmatpush1.bf16.msra.mxu0 %v2264
    %4498 = vmatprep.subr.bf16.mxu0 %v2259
    %4499 = vmatpush1.bf16.msra.mxu0 %v2258
    %4500 = vmatprep.subr.bf16.mxu0 %v2253
    %4501 = vmatpush1.bf16.msra.mxu0 %v2252
    %4502 = vmatprep.subr.bf16.mxu0 %v2247
    %4503 = vmatpush1.bf16.msra.mxu0 %v2246
    %4504 = vmatprep.subr.bf16.mxu0 %v2241
    %4505 = vmatpush1.bf16.msra.mxu0 %v2240
    %4506 = vmatprep.subr.bf16.mxu0 %v2235
    %4507 = vmatpush1.bf16.msra.mxu0 %v2234
    %4508 = vmatprep.subr.bf16.mxu0 %v2325
    %4509 = vmatpush2.bf16.msra.mxu0 %v2324
    %4510 = vmatprep.subr.bf16.mxu0 %v2319
    %4511 = vmatpush2.bf16.msra.mxu0 %v2318
    %4512 = vmatprep.subr.bf16.mxu0 %v2313
    %4513 = vmatpush2.bf16.msra.mxu0 %v2312
    %4514 = vmatprep.subr.bf16.mxu0 %v2307
    %4515 = vmatpush2.bf16.msra.mxu0 %v2306
    %4516 = vmatprep.subr.bf16.mxu0 %v2301
    %4517 = vmatpush2.bf16.msra.mxu0 %v2300
    %4518 = vmatprep.subr.bf16.mxu0 %v2295
    %4519 = vmatpush2.bf16.msra.mxu0 %v2294
    %4520 = vmatprep.subr.bf16.mxu0 %v2289
    %4521 = vmatpush2.bf16.msra.mxu0 %v2288
    %4522 = vmatprep.subr.bf16.mxu0 %v2283
    %4523 = vmatpush2.bf16.msra.mxu0 %v2282
    %4524 = vmatprep.mubr.bf16.mxu0 %v1067
    %4525 = vmatmul.mubr.bf16.gmra.mxu0 %v1066
    %v4526 = vpop.f32.mrf.mxu0
    %v4527 = vadd.f32 0.0, %v4526
    %v4528 = vpop.f32.mrf.mxu0
    %v4529 = vadd.f32 0.0, %v4528
    %v4530 = vpop.f32.mrf.mxu0
    %v4531 = vadd.f32 0.0, %v4530
    %v4532 = vpop.f32.mrf.mxu0
    %v4533 = vadd.f32 0.0, %v4532
    %4534 = vmatprep.mubr.bf16.mxu0 %v1073
    %4535 = vmatmul.mubr.bf16.gmra.mxu0 %v1072
    %v4536 = vpop.f32.mrf.mxu0
    %v4537 = vadd.f32 0.0, %v4536
    %v4538 = vpop.f32.mrf.mxu0
    %v4539 = vadd.f32 0.0, %v4538
    %v4540 = vpop.f32.mrf.mxu0
    %v4541 = vadd.f32 0.0, %v4540
    %v4542 = vpop.f32.mrf.mxu0
    %v4543 = vadd.f32 0.0, %v4542
    %4544 = vmatprep.mubr.bf16.mxu0 %v1079
    %4545 = vmatmul.mubr.bf16.gmra.mxu0 %v1078
    %v4546 = vpop.f32.mrf.mxu0
    %v4547 = vadd.f32 0.0, %v4546
    %v4548 = vpop.f32.mrf.mxu0
    %v4549 = vadd.f32 0.0, %v4548
    %v4550 = vpop.f32.mrf.mxu0
    %v4551 = vadd.f32 0.0, %v4550
    %v4552 = vpop.f32.mrf.mxu0
    %v4553 = vadd.f32 0.0, %v4552
    %4554 = vmatprep.mubr.bf16.mxu0 %v1085
    %4555 = vmatmul.mubr.bf16.gmra.mxu0 %v1084
    %v4556 = vpop.f32.mrf.mxu0
    %v4557 = vadd.f32 0.0, %v4556
    %v4558 = vpop.f32.mrf.mxu0
    %v4559 = vadd.f32 0.0, %v4558
    %v4560 = vpop.f32.mrf.mxu0
    %v4561 = vadd.f32 0.0, %v4560
    %v4562 = vpop.f32.mrf.mxu0
    %v4563 = vadd.f32 0.0, %v4562
    %4564 = vmatprep.mubr.bf16.mxu0 %v1091
    %4565 = vmatmul.mubr.bf16.gmra.mxu0 %v1090
    %v4566 = vpop.f32.mrf.mxu0
    %v4567 = vadd.f32 0.0, %v4566
    %v4568 = vpop.f32.mrf.mxu0
    %v4569 = vadd.f32 0.0, %v4568
    %v4570 = vpop.f32.mrf.mxu0
    %v4571 = vadd.f32 0.0, %v4570
    %v4572 = vpop.f32.mrf.mxu0
    %v4573 = vadd.f32 0.0, %v4572
    %4574 = vmatprep.mubr.bf16.mxu0 %v1097
    %4575 = vmatmul.mubr.bf16.gmra.mxu0 %v1096
    %v4576 = vpop.f32.mrf.mxu0
    %v4577 = vadd.f32 0.0, %v4576
    %v4578 = vpop.f32.mrf.mxu0
    %v4579 = vadd.f32 0.0, %v4578
    %v4580 = vpop.f32.mrf.mxu0
    %v4581 = vadd.f32 0.0, %v4580
    %v4582 = vpop.f32.mrf.mxu0
    %v4583 = vadd.f32 0.0, %v4582
    %4584 = vmatprep.mubr.bf16.mxu0 %v1103
    %4585 = vmatmul.mubr.bf16.gmra.mxu0 %v1102
    %v4586 = vpop.f32.mrf.mxu0
    %v4587 = vadd.f32 0.0, %v4586
    %v4588 = vpop.f32.mrf.mxu0
    %v4589 = vadd.f32 0.0, %v4588
    %v4590 = vpop.f32.mrf.mxu0
    %v4591 = vadd.f32 0.0, %v4590
    %v4592 = vpop.f32.mrf.mxu0
    %v4593 = vadd.f32 0.0, %v4592
    %4594 = vmatprep.mubr.bf16.mxu0 %v1109
    %4595 = vmatmul.mubr.bf16.gmra.mxu0 %v1108
    %v4596 = vpop.f32.mrf.mxu0
    %v4597 = vadd.f32 0.0, %v4596
    %v4598 = vpop.f32.mrf.mxu0
    %v4599 = vadd.f32 0.0, %v4598
    %v4600 = vpop.f32.mrf.mxu0
    %v4601 = vadd.f32 0.0, %v4600
    %v4602 = vpop.f32.mrf.mxu0
    %v4603 = vadd.f32 0.0, %v4602
    %4604 = vmatprep.mubr.bf16.mxu0 %v1115
    %4605 = vmatmul.mubr.bf16.gmra.mxu0 %v1114
    %v4606 = vpop.f32.mrf.mxu0
    %v4607 = vadd.f32 0.0, %v4606
    %v4608 = vpop.f32.mrf.mxu0
    %v4609 = vadd.f32 0.0, %v4608
    %v4610 = vpop.f32.mrf.mxu0
    %v4611 = vadd.f32 0.0, %v4610
    %v4612 = vpop.f32.mrf.mxu0
    %v4613 = vadd.f32 0.0, %v4612
    %4614 = vmatprep.mubr.bf16.mxu0 %v1121
    %4615 = vmatmul.mubr.bf16.gmra.mxu0 %v1120
    %v4616 = vpop.f32.mrf.mxu0
    %v4617 = vadd.f32 0.0, %v4616
    %v4618 = vpop.f32.mrf.mxu0
    %v4619 = vadd.f32 0.0, %v4618
    %v4620 = vpop.f32.mrf.mxu0
    %v4621 = vadd.f32 0.0, %v4620
    %v4622 = vpop.f32.mrf.mxu0
    %v4623 = vadd.f32 0.0, %v4622
    %4624 = vmatprep.mubr.bf16.mxu0 %v1127
    %4625 = vmatmul.mubr.bf16.gmra.mxu0 %v1126
    %v4626 = vpop.f32.mrf.mxu0
    %v4627 = vadd.f32 0.0, %v4626
    %v4628 = vpop.f32.mrf.mxu0
    %v4629 = vadd.f32 0.0, %v4628
    %v4630 = vpop.f32.mrf.mxu0
    %v4631 = vadd.f32 0.0, %v4630
    %v4632 = vpop.f32.mrf.mxu0
    %v4633 = vadd.f32 0.0, %v4632
    %4634 = vmatprep.mubr.bf16.mxu0 %v1133
    %4635 = vmatmul.mubr.bf16.gmra.mxu0 %v1132
    %v4636 = vpop.f32.mrf.mxu0
    %v4637 = vadd.f32 0.0, %v4636
    %v4638 = vpop.f32.mrf.mxu0
    %v4639 = vadd.f32 0.0, %v4638
    %v4640 = vpop.f32.mrf.mxu0
    %v4641 = vadd.f32 0.0, %v4640
    %v4642 = vpop.f32.mrf.mxu0
    %v4643 = vadd.f32 0.0, %v4642
    %4644 = vmatprep.mubr.bf16.mxu0 %v1139
    %4645 = vmatmul.mubr.bf16.gmra.mxu0 %v1138
    %v4646 = vpop.f32.mrf.mxu0
    %v4647 = vadd.f32 0.0, %v4646
    %v4648 = vpop.f32.mrf.mxu0
    %v4649 = vadd.f32 0.0, %v4648
    %v4650 = vpop.f32.mrf.mxu0
    %v4651 = vadd.f32 0.0, %v4650
    %v4652 = vpop.f32.mrf.mxu0
    %v4653 = vadd.f32 0.0, %v4652
    %4654 = vmatprep.mubr.bf16.mxu0 %v1145
    %4655 = vmatmul.mubr.bf16.gmra.mxu0 %v1144
    %v4656 = vpop.f32.mrf.mxu0
    %v4657 = vadd.f32 0.0, %v4656
    %v4658 = vpop.f32.mrf.mxu0
    %v4659 = vadd.f32 0.0, %v4658
    %v4660 = vpop.f32.mrf.mxu0
    %v4661 = vadd.f32 0.0, %v4660
    %v4662 = vpop.f32.mrf.mxu0
    %v4663 = vadd.f32 0.0, %v4662
    %4664 = vmatprep.mubr.bf16.mxu0 %v1151
    %4665 = vmatmul.mubr.bf16.gmra.mxu0 %v1150
    %v4666 = vpop.f32.mrf.mxu0
    %v4667 = vadd.f32 0.0, %v4666
    %v4668 = vpop.f32.mrf.mxu0
    %v4669 = vadd.f32 0.0, %v4668
    %v4670 = vpop.f32.mrf.mxu0
    %v4671 = vadd.f32 0.0, %v4670
    %v4672 = vpop.f32.mrf.mxu0
    %v4673 = vadd.f32 0.0, %v4672
    %4674 = vmatprep.mubr.bf16.mxu0 %v1157
    %4675 = vmatmul.mubr.bf16.gmra.mxu0 %v1156
    %v4676 = vpop.f32.mrf.mxu0
    %v4677 = vadd.f32 0.0, %v4676
    %v4678 = vpop.f32.mrf.mxu0
    %v4679 = vadd.f32 0.0, %v4678
    %v4680 = vpop.f32.mrf.mxu0
    %v4681 = vadd.f32 0.0, %v4680
    %v4682 = vpop.f32.mrf.mxu0
    %v4683 = vadd.f32 0.0, %v4682
    %4684 = vmatprep.mubr.bf16.mxu0 %v1163
    %4685 = vmatmul.mubr.bf16.gmra.mxu0 %v1162
    %v4686 = vpop.f32.mrf.mxu0
    %v4687 = vadd.f32 0.0, %v4686
    %v4688 = vpop.f32.mrf.mxu0
    %v4689 = vadd.f32 0.0, %v4688
    %v4690 = vpop.f32.mrf.mxu0
    %v4691 = vadd.f32 0.0, %v4690
    %v4692 = vpop.f32.mrf.mxu0
    %v4693 = vadd.f32 0.0, %v4692
    %4694 = vmatprep.mubr.bf16.mxu0 %v1169
    %4695 = vmatmul.mubr.bf16.gmra.mxu0 %v1168
    %v4696 = vpop.f32.mrf.mxu0
    %v4697 = vadd.f32 0.0, %v4696
    %v4698 = vpop.f32.mrf.mxu0
    %v4699 = vadd.f32 0.0, %v4698
    %v4700 = vpop.f32.mrf.mxu0
    %v4701 = vadd.f32 0.0, %v4700
    %v4702 = vpop.f32.mrf.mxu0
    %v4703 = vadd.f32 0.0, %v4702
    %4704 = vmatprep.mubr.bf16.mxu0 %v1175
    %4705 = vmatmul.mubr.bf16.gmra.mxu0 %v1174
    %v4706 = vpop.f32.mrf.mxu0
    %v4707 = vadd.f32 0.0, %v4706
    %v4708 = vpop.f32.mrf.mxu0
    %v4709 = vadd.f32 0.0, %v4708
    %v4710 = vpop.f32.mrf.mxu0
    %v4711 = vadd.f32 0.0, %v4710
    %v4712 = vpop.f32.mrf.mxu0
    %v4713 = vadd.f32 0.0, %v4712
    %4714 = vmatprep.mubr.bf16.mxu0 %v1181
    %4715 = vmatmul.mubr.bf16.gmra.mxu0 %v1180
    %v4716 = vpop.f32.mrf.mxu0
    %v4717 = vadd.f32 0.0, %v4716
    %v4718 = vpop.f32.mrf.mxu0
    %v4719 = vadd.f32 0.0, %v4718
    %v4720 = vpop.f32.mrf.mxu0
    %v4721 = vadd.f32 0.0, %v4720
    %v4722 = vpop.f32.mrf.mxu0
    %v4723 = vadd.f32 0.0, %v4722
    %4724 = vmatprep.mubr.bf16.mxu0 %v1187
    %4725 = vmatmul.mubr.bf16.gmra.mxu0 %v1186
    %v4726 = vpop.f32.mrf.mxu0
    %v4727 = vadd.f32 0.0, %v4726
    %v4728 = vpop.f32.mrf.mxu0
    %v4729 = vadd.f32 0.0, %v4728
    %v4730 = vpop.f32.mrf.mxu0
    %v4731 = vadd.f32 0.0, %v4730
    %v4732 = vpop.f32.mrf.mxu0
    %v4733 = vadd.f32 0.0, %v4732
    %4734 = vmatprep.mubr.bf16.mxu0 %v1193
    %4735 = vmatmul.mubr.bf16.gmra.mxu0 %v1192
    %v4736 = vpop.f32.mrf.mxu0
    %v4737 = vadd.f32 0.0, %v4736
    %v4738 = vpop.f32.mrf.mxu0
    %v4739 = vadd.f32 0.0, %v4738
    %v4740 = vpop.f32.mrf.mxu0
    %v4741 = vadd.f32 0.0, %v4740
    %v4742 = vpop.f32.mrf.mxu0
    %v4743 = vadd.f32 0.0, %v4742
    %4744 = vmatprep.mubr.bf16.mxu0 %v1199
    %4745 = vmatmul.mubr.bf16.gmra.mxu0 %v1198
    %v4746 = vpop.f32.mrf.mxu0
    %v4747 = vadd.f32 0.0, %v4746
    %v4748 = vpop.f32.mrf.mxu0
    %v4749 = vadd.f32 0.0, %v4748
    %v4750 = vpop.f32.mrf.mxu0
    %v4751 = vadd.f32 0.0, %v4750
    %v4752 = vpop.f32.mrf.mxu0
    %v4753 = vadd.f32 0.0, %v4752
    %4754 = vmatprep.mubr.bf16.mxu0 %v1205
    %4755 = vmatmul.mubr.bf16.gmra.mxu0 %v1204
    %v4756 = vpop.f32.mrf.mxu0
    %v4757 = vadd.f32 0.0, %v4756
    %v4758 = vpop.f32.mrf.mxu0
    %v4759 = vadd.f32 0.0, %v4758
    %v4760 = vpop.f32.mrf.mxu0
    %v4761 = vadd.f32 0.0, %v4760
    %v4762 = vpop.f32.mrf.mxu0
    %v4763 = vadd.f32 0.0, %v4762
    %4764 = vmatprep.mubr.bf16.mxu0 %v1211
    %4765 = vmatmul.mubr.bf16.gmra.mxu0 %v1210
    %v4766 = vpop.f32.mrf.mxu0
    %v4767 = vadd.f32 0.0, %v4766
    %v4768 = vpop.f32.mrf.mxu0
    %v4769 = vadd.f32 0.0, %v4768
    %v4770 = vpop.f32.mrf.mxu0
    %v4771 = vpop.f32.mrf.mxu0
    %4772 = vdwg.mxu0
    %4773 = vmatprep.subr.bf16.mxu0 %v2373
    %4774 = vmatpush1.bf16.msra.mxu0 %v2372
    %4775 = vmatprep.subr.bf16.mxu0 %v2367
    %4776 = vmatpush1.bf16.msra.mxu0 %v2366
    %4777 = vmatprep.subr.bf16.mxu0 %v2361
    %4778 = vmatpush1.bf16.msra.mxu0 %v2360
    %4779 = vmatprep.subr.bf16.mxu0 %v2355
    %4780 = vmatpush1.bf16.msra.mxu0 %v2354
    %4781 = vmatprep.subr.bf16.mxu0 %v2349
    %4782 = vmatpush1.bf16.msra.mxu0 %v2348
    %4783 = vmatprep.subr.bf16.mxu0 %v2343
    %4784 = vmatpush1.bf16.msra.mxu0 %v2342
    %4785 = vmatprep.subr.bf16.mxu0 %v2337
    %4786 = vmatpush1.bf16.msra.mxu0 %v2336
    %4787 = vmatprep.subr.bf16.mxu0 %v2331
    %4788 = vmatpush1.bf16.msra.mxu0 %v2330
    %4789 = vmatprep.subr.bf16.mxu0 %v2421
    %4790 = vmatpush2.bf16.msra.mxu0 %v2420
    %4791 = vmatprep.subr.bf16.mxu0 %v2415
    %4792 = vmatpush2.bf16.msra.mxu0 %v2414
    %4793 = vmatprep.subr.bf16.mxu0 %v2409
    %4794 = vmatpush2.bf16.msra.mxu0 %v2408
    %4795 = vmatprep.subr.bf16.mxu0 %v2403
    %4796 = vmatpush2.bf16.msra.mxu0 %v2402
    %4797 = vmatprep.subr.bf16.mxu0 %v2397
    %4798 = vmatpush2.bf16.msra.mxu0 %v2396
    %4799 = vmatprep.subr.bf16.mxu0 %v2391
    %4800 = vmatpush2.bf16.msra.mxu0 %v2390
    %4801 = vmatprep.subr.bf16.mxu0 %v2385
    %4802 = vmatpush2.bf16.msra.mxu0 %v2384
    %4803 = vmatprep.subr.bf16.mxu0 %v2379
    %4804 = vmatpush2.bf16.msra.mxu0 %v2378
    %4805 = vmatprep.mubr.bf16.mxu0 %v1069
    %4806 = vmatmul.mubr.bf16.gmra.mxu0 %v1068
    %v4807 = vpop.f32.mrf.mxu0
    %v4808 = vadd.f32 %v4527, %v4807
    %v4809 = vpop.f32.mrf.mxu0
    %v4810 = vadd.f32 %v4529, %v4809
    %v4811 = vpop.f32.mrf.mxu0
    %v4812 = vadd.f32 %v4531, %v4811
    %v4813 = vpop.f32.mrf.mxu0
    %v4814 = vadd.f32 %v4533, %v4813
    %4815 = vmatprep.mubr.bf16.mxu0 %v1075
    %4816 = vmatmul.mubr.bf16.gmra.mxu0 %v1074
    %v4817 = vpop.f32.mrf.mxu0
    %v4818 = vadd.f32 %v4537, %v4817
    %v4819 = vpop.f32.mrf.mxu0
    %v4820 = vadd.f32 %v4539, %v4819
    %v4821 = vpop.f32.mrf.mxu0
    %v4822 = vadd.f32 %v4541, %v4821
    %v4823 = vpop.f32.mrf.mxu0
    %v4824 = vadd.f32 %v4543, %v4823
    %4825 = vmatprep.mubr.bf16.mxu0 %v1081
    %4826 = vmatmul.mubr.bf16.gmra.mxu0 %v1080
    %v4827 = vpop.f32.mrf.mxu0
    %v4828 = vadd.f32 %v4547, %v4827
    %v4829 = vpop.f32.mrf.mxu0
    %v4830 = vadd.f32 %v4549, %v4829
    %v4831 = vpop.f32.mrf.mxu0
    %v4832 = vadd.f32 %v4551, %v4831
    %v4833 = vpop.f32.mrf.mxu0
    %v4834 = vadd.f32 %v4553, %v4833
    %4835 = vmatprep.mubr.bf16.mxu0 %v1087
    %4836 = vmatmul.mubr.bf16.gmra.mxu0 %v1086
    %v4837 = vpop.f32.mrf.mxu0
    %v4838 = vadd.f32 %v4557, %v4837
    %v4839 = vpop.f32.mrf.mxu0
    %v4840 = vadd.f32 %v4559, %v4839
    %v4841 = vpop.f32.mrf.mxu0
    %v4842 = vadd.f32 %v4561, %v4841
    %v4843 = vpop.f32.mrf.mxu0
    %v4844 = vadd.f32 %v4563, %v4843
    %4845 = vmatprep.mubr.bf16.mxu0 %v1093
    %4846 = vmatmul.mubr.bf16.gmra.mxu0 %v1092
    %v4847 = vpop.f32.mrf.mxu0
    %v4848 = vadd.f32 %v4567, %v4847
    %v4849 = vpop.f32.mrf.mxu0
    %v4850 = vadd.f32 %v4569, %v4849
    %v4851 = vpop.f32.mrf.mxu0
    %v4852 = vadd.f32 %v4571, %v4851
    %v4853 = vpop.f32.mrf.mxu0
    %v4854 = vadd.f32 %v4573, %v4853
    %4855 = vmatprep.mubr.bf16.mxu0 %v1099
    %4856 = vmatmul.mubr.bf16.gmra.mxu0 %v1098
    %v4857 = vpop.f32.mrf.mxu0
    %v4858 = vadd.f32 %v4577, %v4857
    %v4859 = vpop.f32.mrf.mxu0
    %v4860 = vadd.f32 %v4579, %v4859
    %v4861 = vpop.f32.mrf.mxu0
    %v4862 = vadd.f32 %v4581, %v4861
    %v4863 = vpop.f32.mrf.mxu0
    %v4864 = vadd.f32 %v4583, %v4863
    %4865 = vmatprep.mubr.bf16.mxu0 %v1105
    %4866 = vmatmul.mubr.bf16.gmra.mxu0 %v1104
    %v4867 = vpop.f32.mrf.mxu0
    %v4868 = vadd.f32 %v4587, %v4867
    %v4869 = vpop.f32.mrf.mxu0
    %v4870 = vadd.f32 %v4589, %v4869
    %v4871 = vpop.f32.mrf.mxu0
    %v4872 = vadd.f32 %v4591, %v4871
    %v4873 = vpop.f32.mrf.mxu0
    %v4874 = vadd.f32 %v4593, %v4873
    %4875 = vmatprep.mubr.bf16.mxu0 %v1111
    %4876 = vmatmul.mubr.bf16.gmra.mxu0 %v1110
    %v4877 = vpop.f32.mrf.mxu0
    %v4878 = vadd.f32 %v4597, %v4877
    %v4879 = vpop.f32.mrf.mxu0
    %v4880 = vadd.f32 %v4599, %v4879
    %v4881 = vpop.f32.mrf.mxu0
    %v4882 = vadd.f32 %v4601, %v4881
    %v4883 = vpop.f32.mrf.mxu0
    %v4884 = vadd.f32 %v4603, %v4883
    %4885 = vmatprep.mubr.bf16.mxu0 %v1117
    %4886 = vmatmul.mubr.bf16.gmra.mxu0 %v1116
    %v4887 = vpop.f32.mrf.mxu0
    %v4888 = vadd.f32 %v4607, %v4887
    %v4889 = vpop.f32.mrf.mxu0
    %v4890 = vadd.f32 %v4609, %v4889
    %v4891 = vpop.f32.mrf.mxu0
    %v4892 = vadd.f32 %v4611, %v4891
    %v4893 = vpop.f32.mrf.mxu0
    %v4894 = vadd.f32 %v4613, %v4893
    %4895 = vmatprep.mubr.bf16.mxu0 %v1123
    %4896 = vmatmul.mubr.bf16.gmra.mxu0 %v1122
    %v4897 = vpop.f32.mrf.mxu0
    %v4898 = vadd.f32 %v4617, %v4897
    %v4899 = vpop.f32.mrf.mxu0
    %v4900 = vadd.f32 %v4619, %v4899
    %v4901 = vpop.f32.mrf.mxu0
    %v4902 = vadd.f32 %v4621, %v4901
    %v4903 = vpop.f32.mrf.mxu0
    %v4904 = vadd.f32 %v4623, %v4903
    %4905 = vmatprep.mubr.bf16.mxu0 %v1129
    %4906 = vmatmul.mubr.bf16.gmra.mxu0 %v1128
    %v4907 = vpop.f32.mrf.mxu0
    %v4908 = vadd.f32 %v4627, %v4907
    %v4909 = vpop.f32.mrf.mxu0
    %v4910 = vadd.f32 %v4629, %v4909
    %v4911 = vpop.f32.mrf.mxu0
    %v4912 = vadd.f32 %v4631, %v4911
    %v4913 = vpop.f32.mrf.mxu0
    %v4914 = vadd.f32 %v4633, %v4913
    %4915 = vmatprep.mubr.bf16.mxu0 %v1135
    %4916 = vmatmul.mubr.bf16.gmra.mxu0 %v1134
    %v4917 = vpop.f32.mrf.mxu0
    %v4918 = vadd.f32 %v4637, %v4917
    %v4919 = vpop.f32.mrf.mxu0
    %v4920 = vadd.f32 %v4639, %v4919
    %v4921 = vpop.f32.mrf.mxu0
    %v4922 = vadd.f32 %v4641, %v4921
    %v4923 = vpop.f32.mrf.mxu0
    %v4924 = vadd.f32 %v4643, %v4923
    %4925 = vmatprep.mubr.bf16.mxu0 %v1141
    %4926 = vmatmul.mubr.bf16.gmra.mxu0 %v1140
    %v4927 = vpop.f32.mrf.mxu0
    %v4928 = vadd.f32 %v4647, %v4927
    %v4929 = vpop.f32.mrf.mxu0
    %v4930 = vadd.f32 %v4649, %v4929
    %v4931 = vpop.f32.mrf.mxu0
    %v4932 = vadd.f32 %v4651, %v4931
    %v4933 = vpop.f32.mrf.mxu0
    %v4934 = vadd.f32 %v4653, %v4933
    %4935 = vmatprep.mubr.bf16.mxu0 %v1147
    %4936 = vmatmul.mubr.bf16.gmra.mxu0 %v1146
    %v4937 = vpop.f32.mrf.mxu0
    %v4938 = vadd.f32 %v4657, %v4937
    %v4939 = vpop.f32.mrf.mxu0
    %v4940 = vadd.f32 %v4659, %v4939
    %v4941 = vpop.f32.mrf.mxu0
    %v4942 = vadd.f32 %v4661, %v4941
    %v4943 = vpop.f32.mrf.mxu0
    %v4944 = vadd.f32 %v4663, %v4943
    %4945 = vmatprep.mubr.bf16.mxu0 %v1153
    %4946 = vmatmul.mubr.bf16.gmra.mxu0 %v1152
    %v4947 = vpop.f32.mrf.mxu0
    %v4948 = vadd.f32 %v4667, %v4947
    %v4949 = vpop.f32.mrf.mxu0
    %v4950 = vadd.f32 %v4669, %v4949
    %v4951 = vpop.f32.mrf.mxu0
    %v4952 = vadd.f32 %v4671, %v4951
    %v4953 = vpop.f32.mrf.mxu0
    %v4954 = vadd.f32 %v4673, %v4953
    %4955 = vmatprep.mubr.bf16.mxu0 %v1159
    %4956 = vmatmul.mubr.bf16.gmra.mxu0 %v1158
    %v4957 = vpop.f32.mrf.mxu0
    %v4958 = vadd.f32 %v4677, %v4957
    %v4959 = vpop.f32.mrf.mxu0
    %v4960 = vadd.f32 %v4679, %v4959
    %v4961 = vpop.f32.mrf.mxu0
    %v4962 = vadd.f32 %v4681, %v4961
    %v4963 = vpop.f32.mrf.mxu0
    %v4964 = vadd.f32 %v4683, %v4963
    %4965 = vmatprep.mubr.bf16.mxu0 %v1165
    %4966 = vmatmul.mubr.bf16.gmra.mxu0 %v1164
    %v4967 = vpop.f32.mrf.mxu0
    %v4968 = vadd.f32 %v4687, %v4967
    %v4969 = vpop.f32.mrf.mxu0
    %v4970 = vadd.f32 %v4689, %v4969
    %v4971 = vpop.f32.mrf.mxu0
    %v4972 = vadd.f32 %v4691, %v4971
    %v4973 = vpop.f32.mrf.mxu0
    %v4974 = vadd.f32 %v4693, %v4973
    %4975 = vmatprep.mubr.bf16.mxu0 %v1171
    %4976 = vmatmul.mubr.bf16.gmra.mxu0 %v1170
    %v4977 = vpop.f32.mrf.mxu0
    %v4978 = vadd.f32 %v4697, %v4977
    %v4979 = vpop.f32.mrf.mxu0
    %v4980 = vadd.f32 %v4699, %v4979
    %v4981 = vpop.f32.mrf.mxu0
    %v4982 = vadd.f32 %v4701, %v4981
    %v4983 = vpop.f32.mrf.mxu0
    %v4984 = vadd.f32 %v4703, %v4983
    %4985 = vmatprep.mubr.bf16.mxu0 %v1177
    %4986 = vmatmul.mubr.bf16.gmra.mxu0 %v1176
    %v4987 = vpop.f32.mrf.mxu0
    %v4988 = vadd.f32 %v4707, %v4987
    %v4989 = vpop.f32.mrf.mxu0
    %v4990 = vadd.f32 %v4709, %v4989
    %v4991 = vpop.f32.mrf.mxu0
    %v4992 = vadd.f32 %v4711, %v4991
    %v4993 = vpop.f32.mrf.mxu0
    %v4994 = vadd.f32 %v4713, %v4993
    %4995 = vmatprep.mubr.bf16.mxu0 %v1183
    %4996 = vmatmul.mubr.bf16.gmra.mxu0 %v1182
    %v4997 = vpop.f32.mrf.mxu0
    %v4998 = vadd.f32 %v4717, %v4997
    %v4999 = vpop.f32.mrf.mxu0
    %v5000 = vadd.f32 %v4719, %v4999
    %v5001 = vpop.f32.mrf.mxu0
    %v5002 = vadd.f32 %v4721, %v5001
    %v5003 = vpop.f32.mrf.mxu0
    %v5004 = vadd.f32 %v4723, %v5003
    %5005 = vmatprep.mubr.bf16.mxu0 %v1189
    %5006 = vmatmul.mubr.bf16.gmra.mxu0 %v1188
    %v5007 = vpop.f32.mrf.mxu0
    %v5008 = vadd.f32 %v4727, %v5007
    %v5009 = vpop.f32.mrf.mxu0
    %v5010 = vadd.f32 %v4729, %v5009
    %v5011 = vpop.f32.mrf.mxu0
    %v5012 = vadd.f32 %v4731, %v5011
    %v5013 = vpop.f32.mrf.mxu0
    %v5014 = vadd.f32 %v4733, %v5013
    %5015 = vmatprep.mubr.bf16.mxu0 %v1195
    %5016 = vmatmul.mubr.bf16.gmra.mxu0 %v1194
    %v5017 = vpop.f32.mrf.mxu0
    %v5018 = vadd.f32 %v4737, %v5017
    %v5019 = vpop.f32.mrf.mxu0
    %v5020 = vadd.f32 %v4739, %v5019
    %v5021 = vpop.f32.mrf.mxu0
    %v5022 = vadd.f32 %v4741, %v5021
    %v5023 = vpop.f32.mrf.mxu0
    %v5024 = vadd.f32 %v4743, %v5023
    %5025 = vmatprep.mubr.bf16.mxu0 %v1201
    %5026 = vmatmul.mubr.bf16.gmra.mxu0 %v1200
    %v5027 = vpop.f32.mrf.mxu0
    %v5028 = vadd.f32 %v4747, %v5027
    %v5029 = vpop.f32.mrf.mxu0
    %v5030 = vadd.f32 %v4749, %v5029
    %v5031 = vpop.f32.mrf.mxu0
    %v5032 = vadd.f32 %v4751, %v5031
    %v5033 = vpop.f32.mrf.mxu0
    %v5034 = vadd.f32 %v4753, %v5033
    %5035 = vmatprep.mubr.bf16.mxu0 %v1207
    %5036 = vmatmul.mubr.bf16.gmra.mxu0 %v1206
    %v5037 = vpop.f32.mrf.mxu0
    %v5038 = vadd.f32 %v4757, %v5037
    %v5039 = vpop.f32.mrf.mxu0
    %v5040 = vadd.f32 %v4759, %v5039
    %v5041 = vpop.f32.mrf.mxu0
    %v5042 = vadd.f32 %v4761, %v5041
    %v5043 = vpop.f32.mrf.mxu0
    %v5044 = vadd.f32 %v4763, %v5043
    %5045 = vmatprep.mubr.bf16.mxu0 %v1213
    %5046 = vmatmul.mubr.bf16.gmra.mxu0 %v1212
    %v5047 = vpop.f32.mrf.mxu0
    %v5048 = vadd.f32 %v4767, %v5047
    %v5049 = vpop.f32.mrf.mxu0
    %v5050 = vadd.f32 %v4769, %v5049
    %v5051 = vpop.f32.mrf.mxu0
    %v5052 = vpop.f32.mrf.mxu0
    %5053 = vdwg.mxu0
    %5054 = vmatprep.subr.bf16.mxu0 %v2469
    %5055 = vmatpush1.bf16.msra.mxu0 %v2468
    %5056 = vmatprep.subr.bf16.mxu0 %v2463
    %5057 = vmatpush1.bf16.msra.mxu0 %v2462
    %5058 = vmatprep.subr.bf16.mxu0 %v2457
    %5059 = vmatpush1.bf16.msra.mxu0 %v2456
    %5060 = vmatprep.subr.bf16.mxu0 %v2451
    %5061 = vmatpush1.bf16.msra.mxu0 %v2450
    %5062 = vmatprep.subr.bf16.mxu0 %v2445
    %5063 = vmatpush1.bf16.msra.mxu0 %v2444
    %5064 = vmatprep.subr.bf16.mxu0 %v2439
    %5065 = vmatpush1.bf16.msra.mxu0 %v2438
    %5066 = vmatprep.subr.bf16.mxu0 %v2433
    %5067 = vmatpush1.bf16.msra.mxu0 %v2432
    %5068 = vmatprep.subr.bf16.mxu0 %v2427
    %5069 = vmatpush1.bf16.msra.mxu0 %v2426
    %5070 = vmatprep.subr.bf16.mxu0 %v2517
    %5071 = vmatpush2.bf16.msra.mxu0 %v2516
    %5072 = vmatprep.subr.bf16.mxu0 %v2511
    %5073 = vmatpush2.bf16.msra.mxu0 %v2510
    %5074 = vmatprep.subr.bf16.mxu0 %v2505
    %5075 = vmatpush2.bf16.msra.mxu0 %v2504
    %5076 = vmatprep.subr.bf16.mxu0 %v2499
    %5077 = vmatpush2.bf16.msra.mxu0 %v2498
    %5078 = vmatprep.subr.bf16.mxu0 %v2493
    %5079 = vmatpush2.bf16.msra.mxu0 %v2492
    %5080 = vmatprep.subr.bf16.mxu0 %v2487
    %5081 = vmatpush2.bf16.msra.mxu0 %v2486
    %5082 = vmatprep.subr.bf16.mxu0 %v2481
    %5083 = vmatpush2.bf16.msra.mxu0 %v2480
    %5084 = vmatprep.subr.bf16.mxu0 %v2475
    %5085 = vmatpush2.bf16.msra.mxu0 %v2474
    %5086 = vmatprep.mubr.bf16.mxu0 %v1071
    %5087 = vmatmul.mubr.bf16.gmra.mxu0 %v1070
    %v5088 = vpop.f32.mrf.mxu0
    %v5089 = vadd.f32 %v4808, %v5088
    %v5090 = vpop.f32.mrf.mxu0
    %v5091 = vadd.f32 %v4810, %v5090
    %v5092 = vpop.f32.mrf.mxu0
    %v5093 = vadd.f32 %v4812, %v5092
    %v5094 = vpop.f32.mrf.mxu0
    %v5095 = vadd.f32 %v4814, %v5094
    %5096 = vmatprep.mubr.bf16.mxu0 %v1077
    %5097 = vmatmul.mubr.bf16.gmra.mxu0 %v1076
    %v5098 = vpop.f32.mrf.mxu0
    %v5099 = vadd.f32 %v4818, %v5098
    %v5100 = vpop.f32.mrf.mxu0
    %v5101 = vadd.f32 %v4820, %v5100
    %v5102 = vpop.f32.mrf.mxu0
    %v5103 = vadd.f32 %v4822, %v5102
    %v5104 = vpop.f32.mrf.mxu0
    %v5105 = vadd.f32 %v4824, %v5104
    %5106 = vmatprep.mubr.bf16.mxu0 %v1083
    %5107 = vmatmul.mubr.bf16.gmra.mxu0 %v1082
    %v5108 = vpop.f32.mrf.mxu0
    %v5109 = vadd.f32 %v4828, %v5108
    %v5110 = vpop.f32.mrf.mxu0
    %v5111 = vadd.f32 %v4830, %v5110
    %v5112 = vpop.f32.mrf.mxu0
    %v5113 = vadd.f32 %v4832, %v5112
    %v5114 = vpop.f32.mrf.mxu0
    %v5115 = vadd.f32 %v4834, %v5114
    %5116 = vmatprep.mubr.bf16.mxu0 %v1089
    %5117 = vmatmul.mubr.bf16.gmra.mxu0 %v1088
    %v5118 = vpop.f32.mrf.mxu0
    %v5119 = vadd.f32 %v4838, %v5118
    %v5120 = vpop.f32.mrf.mxu0
    %v5121 = vadd.f32 %v4840, %v5120
    %v5122 = vpop.f32.mrf.mxu0
    %v5123 = vadd.f32 %v4842, %v5122
    %v5124 = vpop.f32.mrf.mxu0
    %v5125 = vadd.f32 %v4844, %v5124
    %5126 = vmatprep.mubr.bf16.mxu0 %v1095
    %5127 = vmatmul.mubr.bf16.gmra.mxu0 %v1094
    %v5128 = vpop.f32.mrf.mxu0
    %v5129 = vadd.f32 %v4848, %v5128
    %v5130 = vpop.f32.mrf.mxu0
    %v5131 = vadd.f32 %v4850, %v5130
    %v5132 = vpop.f32.mrf.mxu0
    %v5133 = vadd.f32 %v4852, %v5132
    %v5134 = vpop.f32.mrf.mxu0
    %v5135 = vadd.f32 %v4854, %v5134
    %5136 = vmatprep.mubr.bf16.mxu0 %v1101
    %5137 = vmatmul.mubr.bf16.gmra.mxu0 %v1100
    %v5138 = vpop.f32.mrf.mxu0
    %v5139 = vadd.f32 %v4858, %v5138
    %v5140 = vpop.f32.mrf.mxu0
    %v5141 = vadd.f32 %v4860, %v5140
    %v5142 = vpop.f32.mrf.mxu0
    %v5143 = vadd.f32 %v4862, %v5142
    %v5144 = vpop.f32.mrf.mxu0
    %v5145 = vadd.f32 %v4864, %v5144
    %5146 = vmatprep.mubr.bf16.mxu0 %v1107
    %5147 = vmatmul.mubr.bf16.gmra.mxu0 %v1106
    %v5148 = vpop.f32.mrf.mxu0
    %v5149 = vadd.f32 %v4868, %v5148
    %v5150 = vpop.f32.mrf.mxu0
    %v5151 = vadd.f32 %v4870, %v5150
    %v5152 = vpop.f32.mrf.mxu0
    %v5153 = vadd.f32 %v4872, %v5152
    %v5154 = vpop.f32.mrf.mxu0
    %v5155 = vadd.f32 %v4874, %v5154
    %5156 = vmatprep.mubr.bf16.mxu0 %v1113
    %5157 = vmatmul.mubr.bf16.gmra.mxu0 %v1112
    %v5158 = vpop.f32.mrf.mxu0
    %v5159 = vadd.f32 %v4878, %v5158
    %v5160 = vpop.f32.mrf.mxu0
    %v5161 = vadd.f32 %v4880, %v5160
    %v5162 = vpop.f32.mrf.mxu0
    %v5163 = vadd.f32 %v4882, %v5162
    %v5164 = vpop.f32.mrf.mxu0
    %v5165 = vadd.f32 %v4884, %v5164
    %5166 = vmatprep.mubr.bf16.mxu0 %v1119
    %5167 = vmatmul.mubr.bf16.gmra.mxu0 %v1118
    %v5168 = vpop.f32.mrf.mxu0
    %v5169 = vadd.f32 %v4888, %v5168
    %v5170 = vpop.f32.mrf.mxu0
    %v5171 = vadd.f32 %v4890, %v5170
    %v5172 = vpop.f32.mrf.mxu0
    %v5173 = vadd.f32 %v4892, %v5172
    %v5174 = vpop.f32.mrf.mxu0
    %v5175 = vadd.f32 %v4894, %v5174
    %5176 = vmatprep.mubr.bf16.mxu0 %v1125
    %5177 = vmatmul.mubr.bf16.gmra.mxu0 %v1124
    %v5178 = vpop.f32.mrf.mxu0
    %v5179 = vadd.f32 %v4898, %v5178
    %v5180 = vpop.f32.mrf.mxu0
    %v5181 = vadd.f32 %v4900, %v5180
    %v5182 = vpop.f32.mrf.mxu0
    %v5183 = vadd.f32 %v4902, %v5182
    %v5184 = vpop.f32.mrf.mxu0
    %v5185 = vadd.f32 %v4904, %v5184
    %5186 = vmatprep.mubr.bf16.mxu0 %v1131
    %5187 = vmatmul.mubr.bf16.gmra.mxu0 %v1130
    %v5188 = vpop.f32.mrf.mxu0
    %v5189 = vadd.f32 %v4908, %v5188
    %v5190 = vpop.f32.mrf.mxu0
    %v5191 = vadd.f32 %v4910, %v5190
    %v5192 = vpop.f32.mrf.mxu0
    %v5193 = vadd.f32 %v4912, %v5192
    %v5194 = vpop.f32.mrf.mxu0
    %v5195 = vadd.f32 %v4914, %v5194
    %5196 = vmatprep.mubr.bf16.mxu0 %v1137
    %5197 = vmatmul.mubr.bf16.gmra.mxu0 %v1136
    %v5198 = vpop.f32.mrf.mxu0
    %v5199 = vadd.f32 %v4918, %v5198
    %v5200 = vpop.f32.mrf.mxu0
    %v5201 = vadd.f32 %v4920, %v5200
    %v5202 = vpop.f32.mrf.mxu0
    %v5203 = vadd.f32 %v4922, %v5202
    %v5204 = vpop.f32.mrf.mxu0
    %v5205 = vadd.f32 %v4924, %v5204
    %5206 = vmatprep.mubr.bf16.mxu0 %v1143
    %5207 = vmatmul.mubr.bf16.gmra.mxu0 %v1142
    %v5208 = vpop.f32.mrf.mxu0
    %v5209 = vadd.f32 %v4928, %v5208
    %v5210 = vpop.f32.mrf.mxu0
    %v5211 = vadd.f32 %v4930, %v5210
    %v5212 = vpop.f32.mrf.mxu0
    %v5213 = vadd.f32 %v4932, %v5212
    %v5214 = vpop.f32.mrf.mxu0
    %v5215 = vadd.f32 %v4934, %v5214
    %5216 = vmatprep.mubr.bf16.mxu0 %v1149
    %5217 = vmatmul.mubr.bf16.gmra.mxu0 %v1148
    %v5218 = vpop.f32.mrf.mxu0
    %v5219 = vadd.f32 %v4938, %v5218
    %v5220 = vpop.f32.mrf.mxu0
    %v5221 = vadd.f32 %v4940, %v5220
    %v5222 = vpop.f32.mrf.mxu0
    %v5223 = vadd.f32 %v4942, %v5222
    %v5224 = vpop.f32.mrf.mxu0
    %v5225 = vadd.f32 %v4944, %v5224
    %5226 = vmatprep.mubr.bf16.mxu0 %v1155
    %5227 = vmatmul.mubr.bf16.gmra.mxu0 %v1154
    %v5228 = vpop.f32.mrf.mxu0
    %v5229 = vadd.f32 %v4948, %v5228
    %v5230 = vpop.f32.mrf.mxu0
    %v5231 = vadd.f32 %v4950, %v5230
    %v5232 = vpop.f32.mrf.mxu0
    %v5233 = vadd.f32 %v4952, %v5232
    %v5234 = vpop.f32.mrf.mxu0
    %v5235 = vadd.f32 %v4954, %v5234
    %5236 = vmatprep.mubr.bf16.mxu0 %v1161
    %5237 = vmatmul.mubr.bf16.gmra.mxu0 %v1160
    %v5238 = vpop.f32.mrf.mxu0
    %v5239 = vadd.f32 %v4958, %v5238
    %v5240 = vpop.f32.mrf.mxu0
    %v5241 = vadd.f32 %v4960, %v5240
    %v5242 = vpop.f32.mrf.mxu0
    %v5243 = vadd.f32 %v4962, %v5242
    %v5244 = vpop.f32.mrf.mxu0
    %v5245 = vadd.f32 %v4964, %v5244
    %5246 = vmatprep.mubr.bf16.mxu0 %v1167
    %5247 = vmatmul.mubr.bf16.gmra.mxu0 %v1166
    %v5248 = vpop.f32.mrf.mxu0
    %v5249 = vadd.f32 %v4968, %v5248
    %v5250 = vpop.f32.mrf.mxu0
    %v5251 = vadd.f32 %v4970, %v5250
    %v5252 = vpop.f32.mrf.mxu0
    %v5253 = vadd.f32 %v4972, %v5252
    %v5254 = vpop.f32.mrf.mxu0
    %v5255 = vadd.f32 %v4974, %v5254
    %5256 = vmatprep.mubr.bf16.mxu0 %v1173
    %5257 = vmatmul.mubr.bf16.gmra.mxu0 %v1172
    %v5258 = vpop.f32.mrf.mxu0
    %v5259 = vadd.f32 %v4978, %v5258
    %v5260 = vpop.f32.mrf.mxu0
    %v5261 = vadd.f32 %v4980, %v5260
    %v5262 = vpop.f32.mrf.mxu0
    %v5263 = vadd.f32 %v4982, %v5262
    %v5264 = vpop.f32.mrf.mxu0
    %v5265 = vadd.f32 %v4984, %v5264
    %5266 = vmatprep.mubr.bf16.mxu0 %v1179
    %5267 = vmatmul.mubr.bf16.gmra.mxu0 %v1178
    %v5268 = vpop.f32.mrf.mxu0
    %v5269 = vadd.f32 %v4988, %v5268
    %v5270 = vpop.f32.mrf.mxu0
    %v5271 = vadd.f32 %v4990, %v5270
    %v5272 = vpop.f32.mrf.mxu0
    %v5273 = vadd.f32 %v4992, %v5272
    %v5274 = vpop.f32.mrf.mxu0
    %v5275 = vadd.f32 %v4994, %v5274
    %5276 = vmatprep.mubr.bf16.mxu0 %v1185
    %5277 = vmatmul.mubr.bf16.gmra.mxu0 %v1184
    %v5278 = vpop.f32.mrf.mxu0
    %v5279 = vadd.f32 %v4998, %v5278
    %v5280 = vpop.f32.mrf.mxu0
    %v5281 = vadd.f32 %v5000, %v5280
    %v5282 = vpop.f32.mrf.mxu0
    %v5283 = vadd.f32 %v5002, %v5282
    %v5284 = vpop.f32.mrf.mxu0
    %v5285 = vadd.f32 %v5004, %v5284
    %5286 = vmatprep.mubr.bf16.mxu0 %v1191
    %5287 = vmatmul.mubr.bf16.gmra.mxu0 %v1190
    %v5288 = vpop.f32.mrf.mxu0
    %v5289 = vadd.f32 %v5008, %v5288
    %v5290 = vpop.f32.mrf.mxu0
    %v5291 = vadd.f32 %v5010, %v5290
    %v5292 = vpop.f32.mrf.mxu0
    %v5293 = vadd.f32 %v5012, %v5292
    %v5294 = vpop.f32.mrf.mxu0
    %v5295 = vadd.f32 %v5014, %v5294
    %5296 = vmatprep.mubr.bf16.mxu0 %v1197
    %5297 = vmatmul.mubr.bf16.gmra.mxu0 %v1196
    %v5298 = vpop.f32.mrf.mxu0
    %v5299 = vadd.f32 %v5018, %v5298
    %v5300 = vpop.f32.mrf.mxu0
    %v5301 = vadd.f32 %v5020, %v5300
    %v5302 = vpop.f32.mrf.mxu0
    %v5303 = vadd.f32 %v5022, %v5302
    %v5304 = vpop.f32.mrf.mxu0
    %v5305 = vadd.f32 %v5024, %v5304
    %5306 = vmatprep.mubr.bf16.mxu0 %v1203
    %5307 = vmatmul.mubr.bf16.gmra.mxu0 %v1202
    %v5308 = vpop.f32.mrf.mxu0
    %v5309 = vadd.f32 %v5028, %v5308
    %v5310 = vpop.f32.mrf.mxu0
    %v5311 = vadd.f32 %v5030, %v5310
    %v5312 = vpop.f32.mrf.mxu0
    %v5313 = vadd.f32 %v5032, %v5312
    %v5314 = vpop.f32.mrf.mxu0
    %v5315 = vadd.f32 %v5034, %v5314
    %5316 = vmatprep.mubr.bf16.mxu0 %v1209
    %5317 = vmatmul.mubr.bf16.gmra.mxu0 %v1208
    %v5318 = vpop.f32.mrf.mxu0
    %v5319 = vadd.f32 %v5038, %v5318
    %v5320 = vpop.f32.mrf.mxu0
    %v5321 = vadd.f32 %v5040, %v5320
    %v5322 = vpop.f32.mrf.mxu0
    %v5323 = vadd.f32 %v5042, %v5322
    %v5324 = vpop.f32.mrf.mxu0
    %v5325 = vadd.f32 %v5044, %v5324
    %5326 = vmatprep.mubr.bf16.mxu0 %v1215
    %5327 = vmatmul.mubr.bf16.gmra.mxu0 %v1214
    %v5328 = vpop.f32.mrf.mxu0
    %v5329 = vadd.f32 %v5048, %v5328
    %v5330 = vpop.f32.mrf.mxu0
    %v5331 = vadd.f32 %v5050, %v5330
    %v5332 = vpop.f32.mrf.mxu0
    %v5333 = vpop.f32.mrf.mxu0
    %5334 = vdwg.mxu0
    %v5335 = vlaneseq
    %v5336 = vand.u32 %v5335, 127
    %v5337 = vadd.s32 %v5336, 128
    %v5338 = vadd.s32 %v5336, 256
    %v5339 = vadd.s32 %v5336, 384
    %v5340 = vlaneseq
    %v5341 = vshrl.u32 %v5340, 7
    %v5342 = vmul.u32 %v5341, 196
    %vm5343 = vcmp.ge.s32.totalorder %v5336, %v5342
    %vm5344 = vcmp.ge.s32.totalorder %v5337, %v5342
    %vm5345 = vcmp.ge.s32.totalorder %v5338, %v5342
    %vm5346 = vcmp.ge.s32.totalorder %v5339, %v5342
    %v5347 = vadd.s32 %v5342, 196
    %vm5348 = vcmp.lt.s32.totalorder %v5336, %v5347
    %vm5349 = vcmp.lt.s32.totalorder %v5337, %v5347
    %vm5350 = vcmp.lt.s32.totalorder %v5338, %v5347
    %vm5351 = vcmp.lt.s32.totalorder %v5339, %v5347
    %vm5352 = vmand %vm5343, %vm5348
    %vm5353 = vmand %vm5344, %vm5349
    %vm5354 = vmand %vm5345, %vm5350
    %vm5355 = vmand %vm5346, %vm5351
    %v5356 = vsel %vm5352, 1, 0
    %v5357 = vsel %vm5353, 1, 0
    %v5358 = vsel %vm5354, 1, 0
    %v5359 = vsel %vm5355, 1, 0
    %v5360 = vcvt.s32.f32 %v5356
    %v5361 = vcvt.s32.f32 %v5357
    %v5362 = vcvt.s32.f32 %v5358
    %v5363 = vcvt.s32.f32 %v5359
    %5364 = vmatprep.subr.mxu0 0.0
    %5365 = vmatpush1.msra.mxu0 1.0
    %5366 = vmatprep.subr.mxu0 0.0
    %5367 = vmatpush1.msra.mxu0 1.0
    %5368 = vmatprep.subr.mxu0 0.0
    %5369 = vmatpush1.msra.mxu0 1.0
    %5370 = vmatprep.subr.mxu0 0.0
    %5371 = vmatpush1.msra.mxu0 1.0
    %5372 = vmatprep.subr.mxu0 0.0
    %5373 = vmatpush1.msra.mxu0 1.0
    %5374 = vmatprep.subr.mxu0 0.0
    %5375 = vmatpush1.msra.mxu0 1.0
    %5376 = vmatprep.subr.mxu0 0.0
    %5377 = vmatpush1.msra.mxu0 1.0
    %5378 = vmatprep.subr.mxu0 0.0
    %5379 = vmatpush1.msra.mxu0 1.0
    %5380 = vmatprep.subr.mxu0 0.0
    %5381 = vmatpush1.msra.mxu0 1.0
    %5382 = vmatprep.subr.mxu0 0.0
    %5383 = vmatpush1.msra.mxu0 1.0
    %5384 = vmatprep.subr.mxu0 0.0
    %5385 = vmatpush1.msra.mxu0 1.0
    %5386 = vmatprep.subr.mxu0 0.0
    %5387 = vmatpush1.msra.mxu0 1.0
    %5388 = vmatprep.subr.mxu0 0.0
    %5389 = vmatpush1.msra.mxu0 1.0
    %5390 = vmatprep.subr.mxu0 0.0
    %5391 = vmatpush1.msra.mxu0 1.0
    %5392 = vmatprep.subr.mxu0 0.0
    %5393 = vmatpush1.msra.mxu0 1.0
    %5394 = vmatprep.subr.mxu0 0.0
    %5395 = vmatpush1.msra.mxu0 1.0
    %5396 = vmatprep.subr.mxu0 0.0
    %5397 = vmatpush2.msra.mxu0 1.0
    %5398 = vmatprep.subr.mxu0 0.0
    %5399 = vmatpush2.msra.mxu0 1.0
    %5400 = vmatprep.subr.mxu0 0.0
    %5401 = vmatpush2.msra.mxu0 1.0
    %5402 = vmatprep.subr.mxu0 0.0
    %5403 = vmatpush2.msra.mxu0 1.0
    %5404 = vmatprep.subr.mxu0 0.0
    %5405 = vmatpush2.msra.mxu0 1.0
    %5406 = vmatprep.subr.mxu0 0.0
    %5407 = vmatpush2.msra.mxu0 1.0
    %5408 = vmatprep.subr.mxu0 0.0
    %5409 = vmatpush2.msra.mxu0 1.0
    %5410 = vmatprep.subr.mxu0 0.0
    %5411 = vmatpush2.msra.mxu0 1.0
    %5412 = vmatprep.subr.mxu0 0.0
    %5413 = vmatpush2.msra.mxu0 1.0
    %5414 = vmatprep.subr.mxu0 0.0
    %5415 = vmatpush2.msra.mxu0 1.0
    %5416 = vmatprep.subr.mxu0 0.0
    %5417 = vmatpush2.msra.mxu0 1.0
    %5418 = vmatprep.subr.mxu0 0.0
    %5419 = vmatpush2.msra.mxu0 1.0
    %5420 = vmatprep.subr.mxu0 0.0
    %5421 = vmatpush2.msra.mxu0 1.0
    %5422 = vmatprep.subr.mxu0 0.0
    %5423 = vmatpush2.msra.mxu0 1.0
    %5424 = vmatprep.subr.mxu0 0.0
    %5425 = vmatpush2.msra.mxu0 1.0
    %5426 = vmatprep.subr.mxu0 0.0
    %5427 = vmatpush2.msra.mxu0 1.0
    %5428 = vmatprep.mubr.f32.mxu0 %v3405
    %5429 = vmatmul.mubr.f32.gmra.mxu0 %v3403
    %v5430 = vpop.f32.mrf.mxu0
    %v5431 = vadd.f32 0.0, %v5430
    %v5432 = vpop.f32.mrf.mxu0
    %5433 = vmatprep.mubr.f32.mxu0 %v3409
    %5434 = vmatmul.mubr.f32.gmra.mxu0 %v3407
    %v5435 = vpop.f32.mrf.mxu0
    %v5436 = vadd.f32 0.0, %v5435
    %v5437 = vpop.f32.mrf.mxu0
    %5438 = vmatprep.mubr.f32.mxu0 %v3415
    %5439 = vmatmul.mubr.f32.gmra.mxu0 %v3413
    %v5440 = vpop.f32.mrf.mxu0
    %v5441 = vadd.f32 0.0, %v5440
    %v5442 = vpop.f32.mrf.mxu0
    %5443 = vmatprep.mubr.f32.mxu0 %v3419
    %5444 = vmatmul.mubr.f32.gmra.mxu0 %v3417
    %v5445 = vpop.f32.mrf.mxu0
    %v5446 = vadd.f32 0.0, %v5445
    %v5447 = vpop.f32.mrf.mxu0
    %5448 = vmatprep.mubr.f32.mxu0 %v3425
    %5449 = vmatmul.mubr.f32.gmra.mxu0 %v3423
    %v5450 = vpop.f32.mrf.mxu0
    %v5451 = vadd.f32 0.0, %v5450
    %v5452 = vpop.f32.mrf.mxu0
    %5453 = vmatprep.mubr.f32.mxu0 %v3429
    %5454 = vmatmul.mubr.f32.gmra.mxu0 %v3427
    %v5455 = vpop.f32.mrf.mxu0
    %v5456 = vadd.f32 0.0, %v5455
    %v5457 = vpop.f32.mrf.mxu0
    %5458 = vmatprep.mubr.f32.mxu0 %v3435
    %5459 = vmatmul.mubr.f32.gmra.mxu0 %v3433
    %v5460 = vpop.f32.mrf.mxu0
    %v5461 = vadd.f32 0.0, %v5460
    %v5462 = vpop.f32.mrf.mxu0
    %5463 = vmatprep.mubr.f32.mxu0 %v3439
    %5464 = vmatmul.mubr.f32.gmra.mxu0 %v3437
    %v5465 = vpop.f32.mrf.mxu0
    %v5466 = vadd.f32 0.0, %v5465
    %v5467 = vpop.f32.mrf.mxu0
    %5468 = vmatprep.mubr.f32.mxu0 %v3445
    %5469 = vmatmul.mubr.f32.gmra.mxu0 %v3443
    %v5470 = vpop.f32.mrf.mxu0
    %v5471 = vadd.f32 0.0, %v5470
    %v5472 = vpop.f32.mrf.mxu0
    %5473 = vmatprep.mubr.f32.mxu0 %v3449
    %5474 = vmatmul.mubr.f32.gmra.mxu0 %v3447
    %v5475 = vpop.f32.mrf.mxu0
    %v5476 = vadd.f32 0.0, %v5475
    %v5477 = vpop.f32.mrf.mxu0
    %5478 = vmatprep.mubr.f32.mxu0 %v3455
    %5479 = vmatmul.mubr.f32.gmra.mxu0 %v3453
    %v5480 = vpop.f32.mrf.mxu0
    %v5481 = vadd.f32 0.0, %v5480
    %v5482 = vpop.f32.mrf.mxu0
    %5483 = vmatprep.mubr.f32.mxu0 %v3459
    %5484 = vmatmul.mubr.f32.gmra.mxu0 %v3457
    %v5485 = vpop.f32.mrf.mxu0
    %v5486 = vadd.f32 0.0, %v5485
    %v5487 = vpop.f32.mrf.mxu0
    %5488 = vmatprep.mubr.f32.mxu0 %v3465
    %5489 = vmatmul.mubr.f32.gmra.mxu0 %v3463
    %v5490 = vpop.f32.mrf.mxu0
    %v5491 = vadd.f32 0.0, %v5490
    %v5492 = vpop.f32.mrf.mxu0
    %5493 = vmatprep.mubr.f32.mxu0 %v3469
    %5494 = vmatmul.mubr.f32.gmra.mxu0 %v3467
    %v5495 = vpop.f32.mrf.mxu0
    %v5496 = vadd.f32 0.0, %v5495
    %v5497 = vpop.f32.mrf.mxu0
    %5498 = vmatprep.mubr.f32.mxu0 %v3475
    %5499 = vmatmul.mubr.f32.gmra.mxu0 %v3473
    %v5500 = vpop.f32.mrf.mxu0
    %v5501 = vadd.f32 0.0, %v5500
    %v5502 = vpop.f32.mrf.mxu0
    %5503 = vmatprep.mubr.f32.mxu0 %v3479
    %5504 = vmatmul.mubr.f32.gmra.mxu0 %v3477
    %v5505 = vpop.f32.mrf.mxu0
    %v5506 = vadd.f32 0.0, %v5505
    %v5507 = vpop.f32.mrf.mxu0
    %5508 = vmatprep.mubr.f32.mxu0 %v3485
    %5509 = vmatmul.mubr.f32.gmra.mxu0 %v3483
    %v5510 = vpop.f32.mrf.mxu0
    %v5511 = vadd.f32 0.0, %v5510
    %v5512 = vpop.f32.mrf.mxu0
    %5513 = vmatprep.mubr.f32.mxu0 %v3489
    %5514 = vmatmul.mubr.f32.gmra.mxu0 %v3487
    %v5515 = vpop.f32.mrf.mxu0
    %v5516 = vadd.f32 0.0, %v5515
    %v5517 = vpop.f32.mrf.mxu0
    %5518 = vmatprep.mubr.f32.mxu0 %v3495
    %5519 = vmatmul.mubr.f32.gmra.mxu0 %v3493
    %v5520 = vpop.f32.mrf.mxu0
    %v5521 = vadd.f32 0.0, %v5520
    %v5522 = vpop.f32.mrf.mxu0
    %5523 = vmatprep.mubr.f32.mxu0 %v3499
    %5524 = vmatmul.mubr.f32.gmra.mxu0 %v3497
    %v5525 = vpop.f32.mrf.mxu0
    %v5526 = vadd.f32 0.0, %v5525
    %v5527 = vpop.f32.mrf.mxu0
    %5528 = vmatprep.mubr.f32.mxu0 %v3505
    %5529 = vmatmul.mubr.f32.gmra.mxu0 %v3503
    %v5530 = vpop.f32.mrf.mxu0
    %v5531 = vadd.f32 0.0, %v5530
    %v5532 = vpop.f32.mrf.mxu0
    %5533 = vmatprep.mubr.f32.mxu0 %v3509
    %5534 = vmatmul.mubr.f32.gmra.mxu0 %v3507
    %v5535 = vpop.f32.mrf.mxu0
    %v5536 = vadd.f32 0.0, %v5535
    %v5537 = vpop.f32.mrf.mxu0
    %5538 = vmatprep.mubr.f32.mxu0 %v3515
    %5539 = vmatmul.mubr.f32.gmra.mxu0 %v3513
    %v5540 = vpop.f32.mrf.mxu0
    %v5541 = vadd.f32 0.0, %v5540
    %v5542 = vpop.f32.mrf.mxu0
    %5543 = vmatprep.mubr.f32.mxu0 %v3519
    %5544 = vmatmul.mubr.f32.gmra.mxu0 %v3517
    %v5545 = vpop.f32.mrf.mxu0
    %v5546 = vadd.f32 0.0, %v5545
    %v5547 = vpop.f32.mrf.mxu0
    %5548 = vmatprep.mubr.f32.mxu0 %v3525
    %5549 = vmatmul.mubr.f32.gmra.mxu0 %v3523
    %v5550 = vpop.f32.mrf.mxu0
    %v5551 = vadd.f32 0.0, %v5550
    %v5552 = vpop.f32.mrf.mxu0
    %5553 = vmatprep.mubr.f32.mxu0 %v3529
    %5554 = vmatmul.mubr.f32.gmra.mxu0 %v3527
    %v5555 = vpop.f32.mrf.mxu0
    %v5556 = vadd.f32 0.0, %v5555
    %v5557 = vpop.f32.mrf.mxu0
    %5558 = vmatprep.mubr.f32.mxu0 %v3535
    %5559 = vmatmul.mubr.f32.gmra.mxu0 %v3533
    %v5560 = vpop.f32.mrf.mxu0
    %v5561 = vadd.f32 0.0, %v5560
    %v5562 = vpop.f32.mrf.mxu0
    %5563 = vmatprep.mubr.f32.mxu0 %v3539
    %5564 = vmatmul.mubr.f32.gmra.mxu0 %v3537
    %v5565 = vpop.f32.mrf.mxu0
    %v5566 = vadd.f32 0.0, %v5565
    %v5567 = vpop.f32.mrf.mxu0
    %5568 = vmatprep.mubr.f32.mxu0 %v3545
    %5569 = vmatmul.mubr.f32.gmra.mxu0 %v3543
    %v5570 = vpop.f32.mrf.mxu0
    %v5571 = vadd.f32 0.0, %v5570
    %v5572 = vpop.f32.mrf.mxu0
    %5573 = vmatprep.mubr.f32.mxu0 %v3549
    %5574 = vmatmul.mubr.f32.gmra.mxu0 %v3547
    %v5575 = vpop.f32.mrf.mxu0
    %v5576 = vadd.f32 0.0, %v5575
    %v5577 = vpop.f32.mrf.mxu0
    %5578 = vmatprep.mubr.f32.mxu0 %v3555
    %5579 = vmatmul.mubr.f32.gmra.mxu0 %v3553
    %v5580 = vpop.f32.mrf.mxu0
    %v5581 = vadd.f32 0.0, %v5580
    %v5582 = vpop.f32.mrf.mxu0
    %5583 = vmatprep.mubr.f32.mxu0 %v3559
    %5584 = vmatmul.mubr.f32.gmra.mxu0 %v3557
    %v5585 = vpop.f32.mrf.mxu0
    %v5586 = vadd.f32 0.0, %v5585
    %v5587 = vpop.f32.mrf.mxu0
    %5588 = vmatprep.mubr.f32.mxu0 %v3565
    %5589 = vmatmul.mubr.f32.gmra.mxu0 %v3563
    %v5590 = vpop.f32.mrf.mxu0
    %v5591 = vadd.f32 0.0, %v5590
    %v5592 = vpop.f32.mrf.mxu0
    %5593 = vmatprep.mubr.f32.mxu0 %v3569
    %5594 = vmatmul.mubr.f32.gmra.mxu0 %v3567
    %v5595 = vpop.f32.mrf.mxu0
    %v5596 = vadd.f32 0.0, %v5595
    %v5597 = vpop.f32.mrf.mxu0
    %5598 = vmatprep.mubr.f32.mxu0 %v3575
    %5599 = vmatmul.mubr.f32.gmra.mxu0 %v3573
    %v5600 = vpop.f32.mrf.mxu0
    %v5601 = vadd.f32 0.0, %v5600
    %v5602 = vpop.f32.mrf.mxu0
    %5603 = vmatprep.mubr.f32.mxu0 %v3579
    %5604 = vmatmul.mubr.f32.gmra.mxu0 %v3577
    %v5605 = vpop.f32.mrf.mxu0
    %v5606 = vadd.f32 0.0, %v5605
    %v5607 = vpop.f32.mrf.mxu0
    %5608 = vmatprep.mubr.f32.mxu0 %v3585
    %5609 = vmatmul.mubr.f32.gmra.mxu0 %v3583
    %v5610 = vpop.f32.mrf.mxu0
    %v5611 = vadd.f32 0.0, %v5610
    %v5612 = vpop.f32.mrf.mxu0
    %5613 = vmatprep.mubr.f32.mxu0 %v3589
    %5614 = vmatmul.mubr.f32.gmra.mxu0 %v3587
    %v5615 = vpop.f32.mrf.mxu0
    %v5616 = vadd.f32 0.0, %v5615
    %v5617 = vpop.f32.mrf.mxu0
    %5618 = vmatprep.mubr.f32.mxu0 %v3595
    %5619 = vmatmul.mubr.f32.gmra.mxu0 %v3593
    %v5620 = vpop.f32.mrf.mxu0
    %v5621 = vadd.f32 0.0, %v5620
    %v5622 = vpop.f32.mrf.mxu0
    %5623 = vmatprep.mubr.f32.mxu0 %v3599
    %5624 = vmatmul.mubr.f32.gmra.mxu0 %v3597
    %v5625 = vpop.f32.mrf.mxu0
    %v5626 = vadd.f32 0.0, %v5625
    %v5627 = vpop.f32.mrf.mxu0
    %5628 = vmatprep.mubr.f32.mxu0 %v3605
    %5629 = vmatmul.mubr.f32.gmra.mxu0 %v3603
    %v5630 = vpop.f32.mrf.mxu0
    %v5631 = vadd.f32 0.0, %v5630
    %v5632 = vpop.f32.mrf.mxu0
    %5633 = vmatprep.mubr.f32.mxu0 %v3609
    %5634 = vmatmul.mubr.f32.gmra.mxu0 %v3607
    %v5635 = vpop.f32.mrf.mxu0
    %v5636 = vadd.f32 0.0, %v5635
    %v5637 = vpop.f32.mrf.mxu0
    %5638 = vmatprep.mubr.f32.mxu0 %v3615
    %5639 = vmatmul.mubr.f32.gmra.mxu0 %v3613
    %v5640 = vpop.f32.mrf.mxu0
    %v5641 = vadd.f32 0.0, %v5640
    %v5642 = vpop.f32.mrf.mxu0
    %5643 = vmatprep.mubr.f32.mxu0 %v3619
    %5644 = vmatmul.mubr.f32.gmra.mxu0 %v3617
    %v5645 = vpop.f32.mrf.mxu0
    %v5646 = vadd.f32 0.0, %v5645
    %v5647 = vpop.f32.mrf.mxu0
    %5648 = vmatprep.mubr.f32.mxu0 %v3625
    %5649 = vmatmul.mubr.f32.gmra.mxu0 %v3623
    %v5650 = vpop.f32.mrf.mxu0
    %v5651 = vadd.f32 0.0, %v5650
    %v5652 = vpop.f32.mrf.mxu0
    %5653 = vmatprep.mubr.f32.mxu0 %v3629
    %5654 = vmatmul.mubr.f32.gmra.mxu0 %v3627
    %v5655 = vpop.f32.mrf.mxu0
    %v5656 = vadd.f32 0.0, %v5655
    %v5657 = vpop.f32.mrf.mxu0
    %5658 = vmatprep.mubr.f32.mxu0 %v3635
    %5659 = vmatmul.mubr.f32.gmra.mxu0 %v3633
    %v5660 = vpop.f32.mrf.mxu0
    %v5661 = vadd.f32 0.0, %v5660
    %v5662 = vpop.f32.mrf.mxu0
    %5663 = vmatprep.mubr.f32.mxu0 %v3639
    %5664 = vmatmul.mubr.f32.gmra.mxu0 %v3637
    %v5665 = vpop.f32.mrf.mxu0
    %v5666 = vadd.f32 0.0, %v5665
    %v5667 = vpop.f32.mrf.mxu0
    %5668 = vmatprep.mubr.f32.mxu0 %v3645
    %5669 = vmatmul.mubr.f32.gmra.mxu0 %v3643
    %v5670 = vpop.f32.mrf.mxu0
    %v5671 = vadd.f32 0.0, %v5670
    %v5672 = vpop.f32.mrf.mxu0
    %5673 = vdwg.mxu0
    %5674 = vmatprep.subr.mxu0 0.0
    %5675 = vmatpush1.msra.mxu0 1.0
    %5676 = vmatprep.subr.mxu0 0.0
    %5677 = vmatpush1.msra.mxu0 1.0
    %5678 = vmatprep.subr.mxu0 0.0
    %5679 = vmatpush1.msra.mxu0 1.0
    %5680 = vmatprep.subr.mxu0 0.0
    %5681 = vmatpush1.msra.mxu0 1.0
    %5682 = vmatprep.subr.mxu0 0.0
    %5683 = vmatpush1.msra.mxu0 1.0
    %5684 = vmatprep.subr.mxu0 0.0
    %5685 = vmatpush1.msra.mxu0 1.0
    %5686 = vmatprep.subr.mxu0 0.0
    %5687 = vmatpush1.msra.mxu0 1.0
    %5688 = vmatprep.subr.mxu0 0.0
    %5689 = vmatpush1.msra.mxu0 1.0
    %5690 = vmatprep.subr.mxu0 0.0
    %5691 = vmatpush1.msra.mxu0 1.0
    %5692 = vmatprep.subr.mxu0 0.0
    %5693 = vmatpush1.msra.mxu0 1.0
    %5694 = vmatprep.subr.mxu0 0.0
    %5695 = vmatpush1.msra.mxu0 1.0
    %5696 = vmatprep.subr.mxu0 0.0
    %5697 = vmatpush1.msra.mxu0 1.0
    %5698 = vmatprep.subr.mxu0 0.0
    %5699 = vmatpush1.msra.mxu0 1.0
    %5700 = vmatprep.subr.mxu0 0.0
    %5701 = vmatpush1.msra.mxu0 1.0
    %5702 = vmatprep.subr.mxu0 0.0
    %5703 = vmatpush1.msra.mxu0 1.0
    %5704 = vmatprep.subr.mxu0 0.0
    %5705 = vmatpush1.msra.mxu0 1.0
    %5706 = vmatprep.subr.mxu0 0.0
    %5707 = vmatpush2.msra.mxu0 1.0
    %5708 = vmatprep.subr.mxu0 0.0
    %5709 = vmatpush2.msra.mxu0 1.0
    %5710 = vmatprep.subr.mxu0 0.0
    %5711 = vmatpush2.msra.mxu0 1.0
    %5712 = vmatprep.subr.mxu0 0.0
    %5713 = vmatpush2.msra.mxu0 1.0
    %5714 = vmatprep.subr.mxu0 0.0
    %5715 = vmatpush2.msra.mxu0 1.0
    %5716 = vmatprep.subr.mxu0 0.0
    %5717 = vmatpush2.msra.mxu0 1.0
    %5718 = vmatprep.subr.mxu0 0.0
    %5719 = vmatpush2.msra.mxu0 1.0
    %5720 = vmatprep.subr.mxu0 0.0
    %5721 = vmatpush2.msra.mxu0 1.0
    %5722 = vmatprep.subr.mxu0 0.0
    %5723 = vmatpush2.msra.mxu0 1.0
    %5724 = vmatprep.subr.mxu0 0.0
    %5725 = vmatpush2.msra.mxu0 1.0
    %5726 = vmatprep.subr.mxu0 0.0
    %5727 = vmatpush2.msra.mxu0 1.0
    %5728 = vmatprep.subr.mxu0 0.0
    %5729 = vmatpush2.msra.mxu0 1.0
    %5730 = vmatprep.subr.mxu0 0.0
    %5731 = vmatpush2.msra.mxu0 1.0
    %5732 = vmatprep.subr.mxu0 0.0
    %5733 = vmatpush2.msra.mxu0 1.0
    %5734 = vmatprep.subr.mxu0 0.0
    %5735 = vmatpush2.msra.mxu0 1.0
    %5736 = vmatprep.subr.mxu0 0.0
    %5737 = vmatpush2.msra.mxu0 1.0
    %5738 = vmatprep.mubr.f32.mxu0 %v4248
    %5739 = vmatmul.mubr.f32.gmra.mxu0 %v4246
    %v5740 = vpop.f32.mrf.mxu0
    %v5741 = vadd.f32 %v5431, %v5740
    %v5742 = vpop.f32.mrf.mxu0
    %5743 = vmatprep.mubr.f32.mxu0 %v4252
    %5744 = vmatmul.mubr.f32.gmra.mxu0 %v4250
    %v5745 = vpop.f32.mrf.mxu0
    %v5746 = vadd.f32 %v5436, %v5745
    %v5747 = vpop.f32.mrf.mxu0
    %5748 = vmatprep.mubr.f32.mxu0 %v4258
    %5749 = vmatmul.mubr.f32.gmra.mxu0 %v4256
    %v5750 = vpop.f32.mrf.mxu0
    %v5751 = vadd.f32 %v5441, %v5750
    %v5752 = vpop.f32.mrf.mxu0
    %5753 = vmatprep.mubr.f32.mxu0 %v4262
    %5754 = vmatmul.mubr.f32.gmra.mxu0 %v4260
    %v5755 = vpop.f32.mrf.mxu0
    %v5756 = vadd.f32 %v5446, %v5755
    %v5757 = vpop.f32.mrf.mxu0
    %5758 = vmatprep.mubr.f32.mxu0 %v4268
    %5759 = vmatmul.mubr.f32.gmra.mxu0 %v4266
    %v5760 = vpop.f32.mrf.mxu0
    %v5761 = vadd.f32 %v5451, %v5760
    %v5762 = vpop.f32.mrf.mxu0
    %5763 = vmatprep.mubr.f32.mxu0 %v4272
    %5764 = vmatmul.mubr.f32.gmra.mxu0 %v4270
    %v5765 = vpop.f32.mrf.mxu0
    %v5766 = vadd.f32 %v5456, %v5765
    %v5767 = vpop.f32.mrf.mxu0
    %5768 = vmatprep.mubr.f32.mxu0 %v4278
    %5769 = vmatmul.mubr.f32.gmra.mxu0 %v4276
    %v5770 = vpop.f32.mrf.mxu0
    %v5771 = vadd.f32 %v5461, %v5770
    %v5772 = vpop.f32.mrf.mxu0
    %5773 = vmatprep.mubr.f32.mxu0 %v4282
    %5774 = vmatmul.mubr.f32.gmra.mxu0 %v4280
    %v5775 = vpop.f32.mrf.mxu0
    %v5776 = vadd.f32 %v5466, %v5775
    %v5777 = vpop.f32.mrf.mxu0
    %5778 = vmatprep.mubr.f32.mxu0 %v4288
    %5779 = vmatmul.mubr.f32.gmra.mxu0 %v4286
    %v5780 = vpop.f32.mrf.mxu0
    %v5781 = vadd.f32 %v5471, %v5780
    %v5782 = vpop.f32.mrf.mxu0
    %5783 = vmatprep.mubr.f32.mxu0 %v4292
    %5784 = vmatmul.mubr.f32.gmra.mxu0 %v4290
    %v5785 = vpop.f32.mrf.mxu0
    %v5786 = vadd.f32 %v5476, %v5785
    %v5787 = vpop.f32.mrf.mxu0
    %5788 = vmatprep.mubr.f32.mxu0 %v4298
    %5789 = vmatmul.mubr.f32.gmra.mxu0 %v4296
    %v5790 = vpop.f32.mrf.mxu0
    %v5791 = vadd.f32 %v5481, %v5790
    %v5792 = vpop.f32.mrf.mxu0
    %5793 = vmatprep.mubr.f32.mxu0 %v4302
    %5794 = vmatmul.mubr.f32.gmra.mxu0 %v4300
    %v5795 = vpop.f32.mrf.mxu0
    %v5796 = vadd.f32 %v5486, %v5795
    %v5797 = vpop.f32.mrf.mxu0
    %5798 = vmatprep.mubr.f32.mxu0 %v4308
    %5799 = vmatmul.mubr.f32.gmra.mxu0 %v4306
    %v5800 = vpop.f32.mrf.mxu0
    %v5801 = vadd.f32 %v5491, %v5800
    %v5802 = vpop.f32.mrf.mxu0
    %5803 = vmatprep.mubr.f32.mxu0 %v4312
    %5804 = vmatmul.mubr.f32.gmra.mxu0 %v4310
    %v5805 = vpop.f32.mrf.mxu0
    %v5806 = vadd.f32 %v5496, %v5805
    %v5807 = vpop.f32.mrf.mxu0
    %5808 = vmatprep.mubr.f32.mxu0 %v4318
    %5809 = vmatmul.mubr.f32.gmra.mxu0 %v4316
    %v5810 = vpop.f32.mrf.mxu0
    %v5811 = vadd.f32 %v5501, %v5810
    %v5812 = vpop.f32.mrf.mxu0
    %5813 = vmatprep.mubr.f32.mxu0 %v4322
    %5814 = vmatmul.mubr.f32.gmra.mxu0 %v4320
    %v5815 = vpop.f32.mrf.mxu0
    %v5816 = vadd.f32 %v5506, %v5815
    %v5817 = vpop.f32.mrf.mxu0
    %5818 = vmatprep.mubr.f32.mxu0 %v4328
    %5819 = vmatmul.mubr.f32.gmra.mxu0 %v4326
    %v5820 = vpop.f32.mrf.mxu0
    %v5821 = vadd.f32 %v5511, %v5820
    %v5822 = vpop.f32.mrf.mxu0
    %5823 = vmatprep.mubr.f32.mxu0 %v4332
    %5824 = vmatmul.mubr.f32.gmra.mxu0 %v4330
    %v5825 = vpop.f32.mrf.mxu0
    %v5826 = vadd.f32 %v5516, %v5825
    %v5827 = vpop.f32.mrf.mxu0
    %5828 = vmatprep.mubr.f32.mxu0 %v4338
    %5829 = vmatmul.mubr.f32.gmra.mxu0 %v4336
    %v5830 = vpop.f32.mrf.mxu0
    %v5831 = vadd.f32 %v5521, %v5830
    %v5832 = vpop.f32.mrf.mxu0
    %5833 = vmatprep.mubr.f32.mxu0 %v4342
    %5834 = vmatmul.mubr.f32.gmra.mxu0 %v4340
    %v5835 = vpop.f32.mrf.mxu0
    %v5836 = vadd.f32 %v5526, %v5835
    %v5837 = vpop.f32.mrf.mxu0
    %5838 = vmatprep.mubr.f32.mxu0 %v4348
    %5839 = vmatmul.mubr.f32.gmra.mxu0 %v4346
    %v5840 = vpop.f32.mrf.mxu0
    %v5841 = vadd.f32 %v5531, %v5840
    %v5842 = vpop.f32.mrf.mxu0
    %5843 = vmatprep.mubr.f32.mxu0 %v4352
    %5844 = vmatmul.mubr.f32.gmra.mxu0 %v4350
    %v5845 = vpop.f32.mrf.mxu0
    %v5846 = vadd.f32 %v5536, %v5845
    %v5847 = vpop.f32.mrf.mxu0
    %5848 = vmatprep.mubr.f32.mxu0 %v4358
    %5849 = vmatmul.mubr.f32.gmra.mxu0 %v4356
    %v5850 = vpop.f32.mrf.mxu0
    %v5851 = vadd.f32 %v5541, %v5850
    %v5852 = vpop.f32.mrf.mxu0
    %5853 = vmatprep.mubr.f32.mxu0 %v4362
    %5854 = vmatmul.mubr.f32.gmra.mxu0 %v4360
    %v5855 = vpop.f32.mrf.mxu0
    %v5856 = vadd.f32 %v5546, %v5855
    %v5857 = vpop.f32.mrf.mxu0
    %5858 = vmatprep.mubr.f32.mxu0 %v4368
    %5859 = vmatmul.mubr.f32.gmra.mxu0 %v4366
    %v5860 = vpop.f32.mrf.mxu0
    %v5861 = vadd.f32 %v5551, %v5860
    %v5862 = vpop.f32.mrf.mxu0
    %5863 = vmatprep.mubr.f32.mxu0 %v4372
    %5864 = vmatmul.mubr.f32.gmra.mxu0 %v4370
    %v5865 = vpop.f32.mrf.mxu0
    %v5866 = vadd.f32 %v5556, %v5865
    %v5867 = vpop.f32.mrf.mxu0
    %5868 = vmatprep.mubr.f32.mxu0 %v4378
    %5869 = vmatmul.mubr.f32.gmra.mxu0 %v4376
    %v5870 = vpop.f32.mrf.mxu0
    %v5871 = vadd.f32 %v5561, %v5870
    %v5872 = vpop.f32.mrf.mxu0
    %5873 = vmatprep.mubr.f32.mxu0 %v4382
    %5874 = vmatmul.mubr.f32.gmra.mxu0 %v4380
    %v5875 = vpop.f32.mrf.mxu0
    %v5876 = vadd.f32 %v5566, %v5875
    %v5877 = vpop.f32.mrf.mxu0
    %5878 = vmatprep.mubr.f32.mxu0 %v4388
    %5879 = vmatmul.mubr.f32.gmra.mxu0 %v4386
    %v5880 = vpop.f32.mrf.mxu0
    %v5881 = vadd.f32 %v5571, %v5880
    %v5882 = vpop.f32.mrf.mxu0
    %5883 = vmatprep.mubr.f32.mxu0 %v4392
    %5884 = vmatmul.mubr.f32.gmra.mxu0 %v4390
    %v5885 = vpop.f32.mrf.mxu0
    %v5886 = vadd.f32 %v5576, %v5885
    %v5887 = vpop.f32.mrf.mxu0
    %5888 = vmatprep.mubr.f32.mxu0 %v4398
    %5889 = vmatmul.mubr.f32.gmra.mxu0 %v4396
    %v5890 = vpop.f32.mrf.mxu0
    %v5891 = vadd.f32 %v5581, %v5890
    %v5892 = vpop.f32.mrf.mxu0
    %5893 = vmatprep.mubr.f32.mxu0 %v4402
    %5894 = vmatmul.mubr.f32.gmra.mxu0 %v4400
    %v5895 = vpop.f32.mrf.mxu0
    %v5896 = vadd.f32 %v5586, %v5895
    %v5897 = vpop.f32.mrf.mxu0
    %5898 = vmatprep.mubr.f32.mxu0 %v4408
    %5899 = vmatmul.mubr.f32.gmra.mxu0 %v4406
    %v5900 = vpop.f32.mrf.mxu0
    %v5901 = vadd.f32 %v5591, %v5900
    %v5902 = vpop.f32.mrf.mxu0
    %5903 = vmatprep.mubr.f32.mxu0 %v4412
    %5904 = vmatmul.mubr.f32.gmra.mxu0 %v4410
    %v5905 = vpop.f32.mrf.mxu0
    %v5906 = vadd.f32 %v5596, %v5905
    %v5907 = vpop.f32.mrf.mxu0
    %5908 = vmatprep.mubr.f32.mxu0 %v4418
    %5909 = vmatmul.mubr.f32.gmra.mxu0 %v4416
    %v5910 = vpop.f32.mrf.mxu0
    %v5911 = vadd.f32 %v5601, %v5910
    %v5912 = vpop.f32.mrf.mxu0
    %5913 = vmatprep.mubr.f32.mxu0 %v4422
    %5914 = vmatmul.mubr.f32.gmra.mxu0 %v4420
    %v5915 = vpop.f32.mrf.mxu0
    %v5916 = vadd.f32 %v5606, %v5915
    %v5917 = vpop.f32.mrf.mxu0
    %5918 = vmatprep.mubr.f32.mxu0 %v4428
    %5919 = vmatmul.mubr.f32.gmra.mxu0 %v4426
    %v5920 = vpop.f32.mrf.mxu0
    %v5921 = vadd.f32 %v5611, %v5920
    %v5922 = vpop.f32.mrf.mxu0
    %5923 = vmatprep.mubr.f32.mxu0 %v4432
    %5924 = vmatmul.mubr.f32.gmra.mxu0 %v4430
    %v5925 = vpop.f32.mrf.mxu0
    %v5926 = vadd.f32 %v5616, %v5925
    %v5927 = vpop.f32.mrf.mxu0
    %5928 = vmatprep.mubr.f32.mxu0 %v4438
    %5929 = vmatmul.mubr.f32.gmra.mxu0 %v4436
    %v5930 = vpop.f32.mrf.mxu0
    %v5931 = vadd.f32 %v5621, %v5930
    %v5932 = vpop.f32.mrf.mxu0
    %5933 = vmatprep.mubr.f32.mxu0 %v4442
    %5934 = vmatmul.mubr.f32.gmra.mxu0 %v4440
    %v5935 = vpop.f32.mrf.mxu0
    %v5936 = vadd.f32 %v5626, %v5935
    %v5937 = vpop.f32.mrf.mxu0
    %5938 = vmatprep.mubr.f32.mxu0 %v4448
    %5939 = vmatmul.mubr.f32.gmra.mxu0 %v4446
    %v5940 = vpop.f32.mrf.mxu0
    %v5941 = vadd.f32 %v5631, %v5940
    %v5942 = vpop.f32.mrf.mxu0
    %5943 = vmatprep.mubr.f32.mxu0 %v4452
    %5944 = vmatmul.mubr.f32.gmra.mxu0 %v4450
    %v5945 = vpop.f32.mrf.mxu0
    %v5946 = vadd.f32 %v5636, %v5945
    %v5947 = vpop.f32.mrf.mxu0
    %5948 = vmatprep.mubr.f32.mxu0 %v4458
    %5949 = vmatmul.mubr.f32.gmra.mxu0 %v4456
    %v5950 = vpop.f32.mrf.mxu0
    %v5951 = vadd.f32 %v5641, %v5950
    %v5952 = vpop.f32.mrf.mxu0
    %5953 = vmatprep.mubr.f32.mxu0 %v4462
    %5954 = vmatmul.mubr.f32.gmra.mxu0 %v4460
    %v5955 = vpop.f32.mrf.mxu0
    %v5956 = vadd.f32 %v5646, %v5955
    %v5957 = vpop.f32.mrf.mxu0
    %5958 = vmatprep.mubr.f32.mxu0 %v4468
    %5959 = vmatmul.mubr.f32.gmra.mxu0 %v4466
    %v5960 = vpop.f32.mrf.mxu0
    %v5961 = vadd.f32 %v5651, %v5960
    %v5962 = vpop.f32.mrf.mxu0
    %5963 = vmatprep.mubr.f32.mxu0 %v4472
    %5964 = vmatmul.mubr.f32.gmra.mxu0 %v4470
    %v5965 = vpop.f32.mrf.mxu0
    %v5966 = vadd.f32 %v5656, %v5965
    %v5967 = vpop.f32.mrf.mxu0
    %5968 = vmatprep.mubr.f32.mxu0 %v4478
    %5969 = vmatmul.mubr.f32.gmra.mxu0 %v4476
    %v5970 = vpop.f32.mrf.mxu0
    %v5971 = vadd.f32 %v5661, %v5970
    %v5972 = vpop.f32.mrf.mxu0
    %5973 = vmatprep.mubr.f32.mxu0 %v4482
    %5974 = vmatmul.mubr.f32.gmra.mxu0 %v4480
    %v5975 = vpop.f32.mrf.mxu0
    %v5976 = vadd.f32 %v5666, %v5975
    %v5977 = vpop.f32.mrf.mxu0
    %5978 = vmatprep.mubr.f32.mxu0 %v4488
    %5979 = vmatmul.mubr.f32.gmra.mxu0 %v4486
    %v5980 = vpop.f32.mrf.mxu0
    %v5981 = vadd.f32 %v5671, %v5980
    %v5982 = vpop.f32.mrf.mxu0
    %5983 = vdwg.mxu0
    %5984 = vmatprep.subr.mxu0 0.0
    %5985 = vmatpush1.msra.mxu0 1.0
    %5986 = vmatprep.subr.mxu0 0.0
    %5987 = vmatpush1.msra.mxu0 1.0
    %5988 = vmatprep.subr.mxu0 0.0
    %5989 = vmatpush1.msra.mxu0 1.0
    %5990 = vmatprep.subr.mxu0 0.0
    %5991 = vmatpush1.msra.mxu0 1.0
    %5992 = vmatprep.subr.mxu0 0.0
    %5993 = vmatpush1.msra.mxu0 1.0
    %5994 = vmatprep.subr.mxu0 0.0
    %5995 = vmatpush1.msra.mxu0 1.0
    %5996 = vmatprep.subr.mxu0 0.0
    %5997 = vmatpush1.msra.mxu0 1.0
    %5998 = vmatprep.subr.mxu0 0.0
    %5999 = vmatpush1.msra.mxu0 1.0
    %6000 = vmatprep.subr.mxu0 0.0
    %6001 = vmatpush1.msra.mxu0 1.0
    %6002 = vmatprep.subr.mxu0 0.0
    %6003 = vmatpush1.msra.mxu0 1.0
    %6004 = vmatprep.subr.mxu0 0.0
    %6005 = vmatpush1.msra.mxu0 1.0
    %6006 = vmatprep.subr.mxu0 0.0
    %6007 = vmatpush1.msra.mxu0 1.0
    %6008 = vmatprep.subr.mxu0 0.0
    %6009 = vmatpush1.msra.mxu0 1.0
    %6010 = vmatprep.subr.mxu0 0.0
    %6011 = vmatpush1.msra.mxu0 1.0
    %6012 = vmatprep.subr.mxu0 0.0
    %6013 = vmatpush1.msra.mxu0 1.0
    %6014 = vmatprep.subr.mxu0 0.0
    %6015 = vmatpush1.msra.mxu0 1.0
    %6016 = vmatprep.subr.mxu0 0.0
    %6017 = vmatpush2.msra.mxu0 1.0
    %6018 = vmatprep.subr.mxu0 0.0
    %6019 = vmatpush2.msra.mxu0 1.0
    %6020 = vmatprep.subr.mxu0 0.0
    %6021 = vmatpush2.msra.mxu0 1.0
    %6022 = vmatprep.subr.mxu0 0.0
    %6023 = vmatpush2.msra.mxu0 1.0
    %6024 = vmatprep.subr.mxu0 0.0
    %6025 = vmatpush2.msra.mxu0 1.0
    %6026 = vmatprep.subr.mxu0 0.0
    %6027 = vmatpush2.msra.mxu0 1.0
    %6028 = vmatprep.subr.mxu0 0.0
    %6029 = vmatpush2.msra.mxu0 1.0
    %6030 = vmatprep.subr.mxu0 0.0
    %6031 = vmatpush2.msra.mxu0 1.0
    %6032 = vmatprep.subr.mxu0 0.0
    %6033 = vmatpush2.msra.mxu0 1.0
    %6034 = vmatprep.subr.mxu0 0.0
    %6035 = vmatpush2.msra.mxu0 1.0
    %6036 = vmatprep.subr.mxu0 0.0
    %6037 = vmatpush2.msra.mxu0 1.0
    %6038 = vmatprep.subr.mxu0 0.0
    %6039 = vmatpush2.msra.mxu0 1.0
    %6040 = vmatprep.subr.mxu0 0.0
    %6041 = vmatpush2.msra.mxu0 1.0
    %6042 = vmatprep.subr.mxu0 0.0
    %6043 = vmatpush2.msra.mxu0 1.0
    %6044 = vmatprep.subr.mxu0 0.0
    %6045 = vmatpush2.msra.mxu0 1.0
    %6046 = vmatprep.subr.mxu0 0.0
    %6047 = vmatpush2.msra.mxu0 1.0
    %6048 = vmatprep.mubr.f32.mxu0 %v5091
    %6049 = vmatmul.mubr.f32.gmra.mxu0 %v5089
    %v6050 = vpop.f32.mrf.mxu0
    %v6051 = vadd.f32 %v5741, %v6050
    %v6052 = vpop.f32.mrf.mxu0
    %6053 = vmatprep.mubr.f32.mxu0 %v5095
    %6054 = vmatmul.mubr.f32.gmra.mxu0 %v5093
    %v6055 = vpop.f32.mrf.mxu0
    %v6056 = vadd.f32 %v5746, %v6055
    %v6057 = vpop.f32.mrf.mxu0
    %6058 = vmatprep.mubr.f32.mxu0 %v5101
    %6059 = vmatmul.mubr.f32.gmra.mxu0 %v5099
    %v6060 = vpop.f32.mrf.mxu0
    %v6061 = vadd.f32 %v5751, %v6060
    %v6062 = vpop.f32.mrf.mxu0
    %6063 = vmatprep.mubr.f32.mxu0 %v5105
    %6064 = vmatmul.mubr.f32.gmra.mxu0 %v5103
    %v6065 = vpop.f32.mrf.mxu0
    %v6066 = vadd.f32 %v5756, %v6065
    %v6067 = vpop.f32.mrf.mxu0
    %6068 = vmatprep.mubr.f32.mxu0 %v5111
    %6069 = vmatmul.mubr.f32.gmra.mxu0 %v5109
    %v6070 = vpop.f32.mrf.mxu0
    %v6071 = vadd.f32 %v5761, %v6070
    %v6072 = vpop.f32.mrf.mxu0
    %6073 = vmatprep.mubr.f32.mxu0 %v5115
    %6074 = vmatmul.mubr.f32.gmra.mxu0 %v5113
    %v6075 = vpop.f32.mrf.mxu0
    %v6076 = vadd.f32 %v5766, %v6075
    %v6077 = vpop.f32.mrf.mxu0
    %6078 = vmatprep.mubr.f32.mxu0 %v5121
    %6079 = vmatmul.mubr.f32.gmra.mxu0 %v5119
    %v6080 = vpop.f32.mrf.mxu0
    %v6081 = vadd.f32 %v5771, %v6080
    %v6082 = vpop.f32.mrf.mxu0
    %6083 = vmatprep.mubr.f32.mxu0 %v5125
    %6084 = vmatmul.mubr.f32.gmra.mxu0 %v5123
    %v6085 = vpop.f32.mrf.mxu0
    %v6086 = vadd.f32 %v5776, %v6085
    %v6087 = vpop.f32.mrf.mxu0
    %6088 = vmatprep.mubr.f32.mxu0 %v5131
    %6089 = vmatmul.mubr.f32.gmra.mxu0 %v5129
    %v6090 = vpop.f32.mrf.mxu0
    %v6091 = vadd.f32 %v5781, %v6090
    %v6092 = vpop.f32.mrf.mxu0
    %6093 = vmatprep.mubr.f32.mxu0 %v5135
    %6094 = vmatmul.mubr.f32.gmra.mxu0 %v5133
    %v6095 = vpop.f32.mrf.mxu0
    %v6096 = vadd.f32 %v5786, %v6095
    %v6097 = vpop.f32.mrf.mxu0
    %6098 = vmatprep.mubr.f32.mxu0 %v5141
    %6099 = vmatmul.mubr.f32.gmra.mxu0 %v5139
    %v6100 = vpop.f32.mrf.mxu0
    %v6101 = vadd.f32 %v5791, %v6100
    %v6102 = vpop.f32.mrf.mxu0
    %6103 = vmatprep.mubr.f32.mxu0 %v5145
    %6104 = vmatmul.mubr.f32.gmra.mxu0 %v5143
    %v6105 = vpop.f32.mrf.mxu0
    %v6106 = vadd.f32 %v5796, %v6105
    %v6107 = vpop.f32.mrf.mxu0
    %6108 = vmatprep.mubr.f32.mxu0 %v5151
    %6109 = vmatmul.mubr.f32.gmra.mxu0 %v5149
    %v6110 = vpop.f32.mrf.mxu0
    %v6111 = vadd.f32 %v5801, %v6110
    %v6112 = vpop.f32.mrf.mxu0
    %6113 = vmatprep.mubr.f32.mxu0 %v5155
    %6114 = vmatmul.mubr.f32.gmra.mxu0 %v5153
    %v6115 = vpop.f32.mrf.mxu0
    %v6116 = vadd.f32 %v5806, %v6115
    %v6117 = vpop.f32.mrf.mxu0
    %6118 = vmatprep.mubr.f32.mxu0 %v5161
    %6119 = vmatmul.mubr.f32.gmra.mxu0 %v5159
    %v6120 = vpop.f32.mrf.mxu0
    %v6121 = vadd.f32 %v5811, %v6120
    %v6122 = vpop.f32.mrf.mxu0
    %6123 = vmatprep.mubr.f32.mxu0 %v5165
    %6124 = vmatmul.mubr.f32.gmra.mxu0 %v5163
    %v6125 = vpop.f32.mrf.mxu0
    %v6126 = vadd.f32 %v5816, %v6125
    %v6127 = vpop.f32.mrf.mxu0
    %6128 = vmatprep.mubr.f32.mxu0 %v5171
    %6129 = vmatmul.mubr.f32.gmra.mxu0 %v5169
    %v6130 = vpop.f32.mrf.mxu0
    %v6131 = vadd.f32 %v5821, %v6130
    %v6132 = vpop.f32.mrf.mxu0
    %6133 = vmatprep.mubr.f32.mxu0 %v5175
    %6134 = vmatmul.mubr.f32.gmra.mxu0 %v5173
    %v6135 = vpop.f32.mrf.mxu0
    %v6136 = vadd.f32 %v5826, %v6135
    %v6137 = vpop.f32.mrf.mxu0
    %6138 = vmatprep.mubr.f32.mxu0 %v5181
    %6139 = vmatmul.mubr.f32.gmra.mxu0 %v5179
    %v6140 = vpop.f32.mrf.mxu0
    %v6141 = vadd.f32 %v5831, %v6140
    %v6142 = vpop.f32.mrf.mxu0
    %6143 = vmatprep.mubr.f32.mxu0 %v5185
    %6144 = vmatmul.mubr.f32.gmra.mxu0 %v5183
    %v6145 = vpop.f32.mrf.mxu0
    %v6146 = vadd.f32 %v5836, %v6145
    %v6147 = vpop.f32.mrf.mxu0
    %6148 = vmatprep.mubr.f32.mxu0 %v5191
    %6149 = vmatmul.mubr.f32.gmra.mxu0 %v5189
    %v6150 = vpop.f32.mrf.mxu0
    %v6151 = vadd.f32 %v5841, %v6150
    %v6152 = vpop.f32.mrf.mxu0
    %6153 = vmatprep.mubr.f32.mxu0 %v5195
    %6154 = vmatmul.mubr.f32.gmra.mxu0 %v5193
    %v6155 = vpop.f32.mrf.mxu0
    %v6156 = vadd.f32 %v5846, %v6155
    %v6157 = vpop.f32.mrf.mxu0
    %6158 = vmatprep.mubr.f32.mxu0 %v5201
    %6159 = vmatmul.mubr.f32.gmra.mxu0 %v5199
    %v6160 = vpop.f32.mrf.mxu0
    %v6161 = vadd.f32 %v5851, %v6160
    %v6162 = vpop.f32.mrf.mxu0
    %6163 = vmatprep.mubr.f32.mxu0 %v5205
    %6164 = vmatmul.mubr.f32.gmra.mxu0 %v5203
    %v6165 = vpop.f32.mrf.mxu0
    %v6166 = vadd.f32 %v5856, %v6165
    %v6167 = vpop.f32.mrf.mxu0
    %6168 = vmatprep.mubr.f32.mxu0 %v5211
    %6169 = vmatmul.mubr.f32.gmra.mxu0 %v5209
    %v6170 = vpop.f32.mrf.mxu0
    %v6171 = vadd.f32 %v5861, %v6170
    %v6172 = vpop.f32.mrf.mxu0
    %6173 = vmatprep.mubr.f32.mxu0 %v5215
    %6174 = vmatmul.mubr.f32.gmra.mxu0 %v5213
    %v6175 = vpop.f32.mrf.mxu0
    %v6176 = vadd.f32 %v5866, %v6175
    %v6177 = vpop.f32.mrf.mxu0
    %6178 = vmatprep.mubr.f32.mxu0 %v5221
    %6179 = vmatmul.mubr.f32.gmra.mxu0 %v5219
    %v6180 = vpop.f32.mrf.mxu0
    %v6181 = vadd.f32 %v5871, %v6180
    %v6182 = vpop.f32.mrf.mxu0
    %6183 = vmatprep.mubr.f32.mxu0 %v5225
    %6184 = vmatmul.mubr.f32.gmra.mxu0 %v5223
    %v6185 = vpop.f32.mrf.mxu0
    %v6186 = vadd.f32 %v5876, %v6185
    %v6187 = vpop.f32.mrf.mxu0
    %6188 = vmatprep.mubr.f32.mxu0 %v5231
    %6189 = vmatmul.mubr.f32.gmra.mxu0 %v5229
    %v6190 = vpop.f32.mrf.mxu0
    %v6191 = vadd.f32 %v5881, %v6190
    %v6192 = vpop.f32.mrf.mxu0
    %6193 = vmatprep.mubr.f32.mxu0 %v5235
    %6194 = vmatmul.mubr.f32.gmra.mxu0 %v5233
    %v6195 = vpop.f32.mrf.mxu0
    %v6196 = vadd.f32 %v5886, %v6195
    %v6197 = vpop.f32.mrf.mxu0
    %6198 = vmatprep.mubr.f32.mxu0 %v5241
    %6199 = vmatmul.mubr.f32.gmra.mxu0 %v5239
    %v6200 = vpop.f32.mrf.mxu0
    %v6201 = vadd.f32 %v5891, %v6200
    %v6202 = vpop.f32.mrf.mxu0
    %6203 = vmatprep.mubr.f32.mxu0 %v5245
    %6204 = vmatmul.mubr.f32.gmra.mxu0 %v5243
    %v6205 = vpop.f32.mrf.mxu0
    %v6206 = vadd.f32 %v5896, %v6205
    %v6207 = vpop.f32.mrf.mxu0
    %6208 = vmatprep.mubr.f32.mxu0 %v5251
    %6209 = vmatmul.mubr.f32.gmra.mxu0 %v5249
    %v6210 = vpop.f32.mrf.mxu0
    %v6211 = vadd.f32 %v5901, %v6210
    %v6212 = vpop.f32.mrf.mxu0
    %6213 = vmatprep.mubr.f32.mxu0 %v5255
    %6214 = vmatmul.mubr.f32.gmra.mxu0 %v5253
    %v6215 = vpop.f32.mrf.mxu0
    %v6216 = vadd.f32 %v5906, %v6215
    %v6217 = vpop.f32.mrf.mxu0
    %6218 = vmatprep.mubr.f32.mxu0 %v5261
    %6219 = vmatmul.mubr.f32.gmra.mxu0 %v5259
    %v6220 = vpop.f32.mrf.mxu0
    %v6221 = vadd.f32 %v5911, %v6220
    %v6222 = vpop.f32.mrf.mxu0
    %6223 = vmatprep.mubr.f32.mxu0 %v5265
    %6224 = vmatmul.mubr.f32.gmra.mxu0 %v5263
    %v6225 = vpop.f32.mrf.mxu0
    %v6226 = vadd.f32 %v5916, %v6225
    %v6227 = vpop.f32.mrf.mxu0
    %6228 = vmatprep.mubr.f32.mxu0 %v5271
    %6229 = vmatmul.mubr.f32.gmra.mxu0 %v5269
    %v6230 = vpop.f32.mrf.mxu0
    %v6231 = vadd.f32 %v5921, %v6230
    %v6232 = vpop.f32.mrf.mxu0
    %6233 = vmatprep.mubr.f32.mxu0 %v5275
    %6234 = vmatmul.mubr.f32.gmra.mxu0 %v5273
    %v6235 = vpop.f32.mrf.mxu0
    %v6236 = vadd.f32 %v5926, %v6235
    %v6237 = vpop.f32.mrf.mxu0
    %6238 = vmatprep.mubr.f32.mxu0 %v5281
    %6239 = vmatmul.mubr.f32.gmra.mxu0 %v5279
    %v6240 = vpop.f32.mrf.mxu0
    %v6241 = vadd.f32 %v5931, %v6240
    %v6242 = vpop.f32.mrf.mxu0
    %6243 = vmatprep.mubr.f32.mxu0 %v5285
    %6244 = vmatmul.mubr.f32.gmra.mxu0 %v5283
    %v6245 = vpop.f32.mrf.mxu0
    %v6246 = vadd.f32 %v5936, %v6245
    %v6247 = vpop.f32.mrf.mxu0
    %6248 = vmatprep.mubr.f32.mxu0 %v5291
    %6249 = vmatmul.mubr.f32.gmra.mxu0 %v5289
    %v6250 = vpop.f32.mrf.mxu0
    %v6251 = vadd.f32 %v5941, %v6250
    %v6252 = vpop.f32.mrf.mxu0
    %6253 = vmatprep.mubr.f32.mxu0 %v5295
    %6254 = vmatmul.mubr.f32.gmra.mxu0 %v5293
    %v6255 = vpop.f32.mrf.mxu0
    %v6256 = vadd.f32 %v5946, %v6255
    %v6257 = vpop.f32.mrf.mxu0
    %6258 = vmatprep.mubr.f32.mxu0 %v5301
    %6259 = vmatmul.mubr.f32.gmra.mxu0 %v5299
    %v6260 = vpop.f32.mrf.mxu0
    %v6261 = vadd.f32 %v5951, %v6260
    %v6262 = vpop.f32.mrf.mxu0
    %6263 = vmatprep.mubr.f32.mxu0 %v5305
    %6264 = vmatmul.mubr.f32.gmra.mxu0 %v5303
    %v6265 = vpop.f32.mrf.mxu0
    %v6266 = vadd.f32 %v5956, %v6265
    %v6267 = vpop.f32.mrf.mxu0
    %6268 = vmatprep.mubr.f32.mxu0 %v5311
    %6269 = vmatmul.mubr.f32.gmra.mxu0 %v5309
    %v6270 = vpop.f32.mrf.mxu0
    %v6271 = vadd.f32 %v5961, %v6270
    %v6272 = vpop.f32.mrf.mxu0
    %6273 = vmatprep.mubr.f32.mxu0 %v5315
    %6274 = vmatmul.mubr.f32.gmra.mxu0 %v5313
    %v6275 = vpop.f32.mrf.mxu0
    %v6276 = vadd.f32 %v5966, %v6275
    %v6277 = vpop.f32.mrf.mxu0
    %6278 = vmatprep.mubr.f32.mxu0 %v5321
    %6279 = vmatmul.mubr.f32.gmra.mxu0 %v5319
    %v6280 = vpop.f32.mrf.mxu0
    %v6281 = vadd.f32 %v5971, %v6280
    %v6282 = vpop.f32.mrf.mxu0
    %6283 = vmatprep.mubr.f32.mxu0 %v5325
    %6284 = vmatmul.mubr.f32.gmra.mxu0 %v5323
    %v6285 = vpop.f32.mrf.mxu0
    %v6286 = vadd.f32 %v5976, %v6285
    %v6287 = vpop.f32.mrf.mxu0
    %6288 = vmatprep.mubr.f32.mxu0 %v5331
    %6289 = vmatmul.mubr.f32.gmra.mxu0 %v5329
    %v6290 = vpop.f32.mrf.mxu0
    %v6291 = vadd.f32 %v5981, %v6290
    %v6292 = vpop.f32.mrf.mxu0
    %6293 = vdwg.mxu0
    %v6294 = vld [vmem:[%s3] sm:$0xff]
    %v6295 = vld [vmem:[%s3 + $0x8] sm:$0xff]
    %v6296 = vld [vmem:[%s3 + $0x10] sm:$0xff]
    %v6297 = vld [vmem:[%s3 + $0x18] sm:$0xff]
    %v6298 = vld [vmem:[%s3 + $0x20] sm:$0xff]
    %v6299 = vld [vmem:[%s3 + $0x28] sm:$0xff]
    %v6300 = vld [vmem:[%s3 + $0x30] sm:$0xff]
    %v6301 = vld [vmem:[%s3 + $0x38] sm:$0xff]
    %v6302 = vld [vmem:[%s3 + $0x40] sm:$0xff]
    %v6303 = vld [vmem:[%s3 + $0x48] sm:$0xff]
    %v6304 = vld [vmem:[%s3 + $0x50] sm:$0xff]
    %v6305 = vld [vmem:[%s3 + $0x58] sm:$0xff]
    %v6306 = vld [vmem:[%s3 + $0x60] sm:$0xff]
    %v6307 = vld [vmem:[%s3 + $0x68] sm:$0xff]
    %v6308 = vld [vmem:[%s3 + $0x70] sm:$0xff]
    %v6309 = vld [vmem:[%s3 + $0x78] sm:$0xff]
    %v6310 = vld [vmem:[%s3 + $0x80] sm:$0xff]
    %v6311 = vld [vmem:[%s3 + $0x88] sm:$0xff]
    %v6312 = vld [vmem:[%s3 + $0x90] sm:$0xff]
    %v6313 = vld [vmem:[%s3 + $0x98] sm:$0xff]
    %v6314 = vld [vmem:[%s3 + $0xa0] sm:$0xff]
    %v6315 = vld [vmem:[%s3 + $0xa8] sm:$0xff]
    %v6316 = vld [vmem:[%s3 + $0xb0] sm:$0xff]
    %v6317 = vld [vmem:[%s3 + $0xb8] sm:$0xff]
    %v6318 = vld [vmem:[%s3 + $0xc0] sm:$0xff]
    %v6319 = vld [vmem:[%s3 + $0xc8] sm:$0xff]
    %v6320 = vld [vmem:[%s3 + $0xd0] sm:$0xff]
    %v6321 = vld [vmem:[%s3 + $0xd8] sm:$0xff]
    %v6322 = vld [vmem:[%s3 + $0xe0] sm:$0xff]
    %v6323 = vld [vmem:[%s3 + $0xe8] sm:$0xff]
    %v6324 = vld [vmem:[%s3 + $0xf0] sm:$0xff]
    %v6325 = vld [vmem:[%s3 + $0xf8] sm:$0xff]
    %v6326 = vld [vmem:[%s3 + $0x100] sm:$0xff]
    %v6327 = vld [vmem:[%s3 + $0x108] sm:$0xff]
    %v6328 = vld [vmem:[%s3 + $0x110] sm:$0xff]
    %v6329 = vld [vmem:[%s3 + $0x118] sm:$0xff]
    %v6330 = vld [vmem:[%s3 + $0x120] sm:$0xff]
    %v6331 = vld [vmem:[%s3 + $0x128] sm:$0xff]
    %v6332 = vld [vmem:[%s3 + $0x130] sm:$0xff]
    %v6333 = vld [vmem:[%s3 + $0x138] sm:$0xff]
    %v6334 = vld [vmem:[%s3 + $0x140] sm:$0xff]
    %v6335 = vld [vmem:[%s3 + $0x148] sm:$0xff]
    %v6336 = vld [vmem:[%s3 + $0x150] sm:$0xff]
    %v6337 = vld [vmem:[%s3 + $0x158] sm:$0xff]
    %v6338 = vld [vmem:[%s3 + $0x160] sm:$0xff]
    %v6339 = vld [vmem:[%s3 + $0x168] sm:$0xff]
    %v6340 = vld [vmem:[%s3 + $0x170] sm:$0xff]
    %v6341 = vld [vmem:[%s3 + $0x178] sm:$0xff]
    %v6342 = vld [vmem:[%s3 + $0x180] sm:$0xff]
    %6344 = vset.pattern.permute.xlu0 0
    %6345 = vperm.xlu0 %6344, %v6051
    %v6346 = vpop.permute.xlu0 %6345
    %6349 = vset.pattern.permute.xlu0 0
    %6350 = vperm.xlu0 %6349, %v6056
    %v6351 = vpop.permute.xlu0 %6350
    %6354 = vset.pattern.permute.xlu0 0
    %6355 = vperm.xlu0 %6354, %v6061
    %v6356 = vpop.permute.xlu0 %6355
    %6359 = vset.pattern.permute.xlu0 0
    %6360 = vperm.xlu0 %6359, %v6066
    %v6361 = vpop.permute.xlu0 %6360
    %6364 = vset.pattern.permute.xlu0 0
    %6365 = vperm.xlu0 %6364, %v6071
    %v6366 = vpop.permute.xlu0 %6365
    %6369 = vset.pattern.permute.xlu0 0
    %6370 = vperm.xlu0 %6369, %v6076
    %v6371 = vpop.permute.xlu0 %6370
    %6374 = vset.pattern.permute.xlu0 0
    %6375 = vperm.xlu0 %6374, %v6081
    %v6376 = vpop.permute.xlu0 %6375
    %6379 = vset.pattern.permute.xlu0 0
    %6380 = vperm.xlu0 %6379, %v6086
    %v6381 = vpop.permute.xlu0 %6380
    %6384 = vset.pattern.permute.xlu0 0
    %6385 = vperm.xlu0 %6384, %v6091
    %v6386 = vpop.permute.xlu0 %6385
    %6389 = vset.pattern.permute.xlu0 0
    %6390 = vperm.xlu0 %6389, %v6096
    %v6391 = vpop.permute.xlu0 %6390
    %6394 = vset.pattern.permute.xlu0 0
    %6395 = vperm.xlu0 %6394, %v6101
    %v6396 = vpop.permute.xlu0 %6395
    %6399 = vset.pattern.permute.xlu0 0
    %6400 = vperm.xlu0 %6399, %v6106
    %v6401 = vpop.permute.xlu0 %6400
    %6404 = vset.pattern.permute.xlu0 0
    %6405 = vperm.xlu0 %6404, %v6111
    %v6406 = vpop.permute.xlu0 %6405
    %6409 = vset.pattern.permute.xlu0 0
    %6410 = vperm.xlu0 %6409, %v6116
    %v6411 = vpop.permute.xlu0 %6410
    %6414 = vset.pattern.permute.xlu0 0
    %6415 = vperm.xlu0 %6414, %v6121
    %v6416 = vpop.permute.xlu0 %6415
    %6419 = vset.pattern.permute.xlu0 0
    %6420 = vperm.xlu0 %6419, %v6126
    %v6421 = vpop.permute.xlu0 %6420
    %6424 = vset.pattern.permute.xlu0 0
    %6425 = vperm.xlu0 %6424, %v6131
    %v6426 = vpop.permute.xlu0 %6425
    %6429 = vset.pattern.permute.xlu0 0
    %6430 = vperm.xlu0 %6429, %v6136
    %v6431 = vpop.permute.xlu0 %6430
    %6434 = vset.pattern.permute.xlu0 0
    %6435 = vperm.xlu0 %6434, %v6141
    %v6436 = vpop.permute.xlu0 %6435
    %6439 = vset.pattern.permute.xlu0 0
    %6440 = vperm.xlu0 %6439, %v6146
    %v6441 = vpop.permute.xlu0 %6440
    %6444 = vset.pattern.permute.xlu0 0
    %6445 = vperm.xlu0 %6444, %v6151
    %v6446 = vpop.permute.xlu0 %6445
    %6449 = vset.pattern.permute.xlu0 0
    %6450 = vperm.xlu0 %6449, %v6156
    %v6451 = vpop.permute.xlu0 %6450
    %6454 = vset.pattern.permute.xlu0 0
    %6455 = vperm.xlu0 %6454, %v6161
    %v6456 = vpop.permute.xlu0 %6455
    %6459 = vset.pattern.permute.xlu0 0
    %6460 = vperm.xlu0 %6459, %v6166
    %v6461 = vpop.permute.xlu0 %6460
    %6464 = vset.pattern.permute.xlu0 0
    %6465 = vperm.xlu0 %6464, %v6171
    %v6466 = vpop.permute.xlu0 %6465
    %6469 = vset.pattern.permute.xlu0 0
    %6470 = vperm.xlu0 %6469, %v6176
    %v6471 = vpop.permute.xlu0 %6470
    %6474 = vset.pattern.permute.xlu0 0
    %6475 = vperm.xlu0 %6474, %v6181
    %v6476 = vpop.permute.xlu0 %6475
    %6479 = vset.pattern.permute.xlu0 0
    %6480 = vperm.xlu0 %6479, %v6186
    %v6481 = vpop.permute.xlu0 %6480
    %6484 = vset.pattern.permute.xlu0 0
    %6485 = vperm.xlu0 %6484, %v6191
    %v6486 = vpop.permute.xlu0 %6485
    %6489 = vset.pattern.permute.xlu0 0
    %6490 = vperm.xlu0 %6489, %v6196
    %v6491 = vpop.permute.xlu0 %6490
    %6494 = vset.pattern.permute.xlu0 0
    %6495 = vperm.xlu0 %6494, %v6201
    %v6496 = vpop.permute.xlu0 %6495
    %6499 = vset.pattern.permute.xlu0 0
    %6500 = vperm.xlu0 %6499, %v6206
    %v6501 = vpop.permute.xlu0 %6500
    %6504 = vset.pattern.permute.xlu0 0
    %6505 = vperm.xlu0 %6504, %v6211
    %v6506 = vpop.permute.xlu0 %6505
    %6509 = vset.pattern.permute.xlu0 0
    %6510 = vperm.xlu0 %6509, %v6216
    %v6511 = vpop.permute.xlu0 %6510
    %6514 = vset.pattern.permute.xlu0 0
    %6515 = vperm.xlu0 %6514, %v6221
    %v6516 = vpop.permute.xlu0 %6515
    %6519 = vset.pattern.permute.xlu0 0
    %6520 = vperm.xlu0 %6519, %v6226
    %v6521 = vpop.permute.xlu0 %6520
    %6524 = vset.pattern.permute.xlu0 0
    %6525 = vperm.xlu0 %6524, %v6231
    %v6526 = vpop.permute.xlu0 %6525
    %6529 = vset.pattern.permute.xlu0 0
    %6530 = vperm.xlu0 %6529, %v6236
    %v6531 = vpop.permute.xlu0 %6530
    %6534 = vset.pattern.permute.xlu0 0
    %6535 = vperm.xlu0 %6534, %v6241
    %v6536 = vpop.permute.xlu0 %6535
    %6539 = vset.pattern.permute.xlu0 0
    %6540 = vperm.xlu0 %6539, %v6246
    %v6541 = vpop.permute.xlu0 %6540
    %6544 = vset.pattern.permute.xlu0 0
    %6545 = vperm.xlu0 %6544, %v6251
    %v6546 = vpop.permute.xlu0 %6545
    %6549 = vset.pattern.permute.xlu0 0
    %6550 = vperm.xlu0 %6549, %v6256
    %v6551 = vpop.permute.xlu0 %6550
    %6554 = vset.pattern.permute.xlu0 0
    %6555 = vperm.xlu0 %6554, %v6261
    %v6556 = vpop.permute.xlu0 %6555
    %6559 = vset.pattern.permute.xlu0 0
    %6560 = vperm.xlu0 %6559, %v6266
    %v6561 = vpop.permute.xlu0 %6560
    %6564 = vset.pattern.permute.xlu0 0
    %6565 = vperm.xlu0 %6564, %v6271
    %v6566 = vpop.permute.xlu0 %6565
    %6569 = vset.pattern.permute.xlu0 0
    %6570 = vperm.xlu0 %6569, %v6276
    %v6571 = vpop.permute.xlu0 %6570
    %6574 = vset.pattern.permute.xlu0 0
    %6575 = vperm.xlu0 %6574, %v6281
    %v6576 = vpop.permute.xlu0 %6575
    %6579 = vset.pattern.permute.xlu0 0
    %6580 = vperm.xlu0 %6579, %v6286
    %v6581 = vpop.permute.xlu0 %6580
    %6584 = vset.pattern.permute.xlu0 0
    %6585 = vperm.xlu0 %6584, %v6291
    %v6586 = vpop.permute.xlu0 %6585
    %v6588 = vmul.f32 %v6346, %v6294
    %v6589 = vmul.f32 %v6351, %v6295
    %v6590 = vmul.f32 %v6356, %v6296
    %v6591 = vmul.f32 %v6361, %v6297
    %v6592 = vmul.f32 %v6366, %v6298
    %v6593 = vmul.f32 %v6371, %v6299
    %v6594 = vmul.f32 %v6376, %v6300
    %v6595 = vmul.f32 %v6381, %v6301
    %v6596 = vmul.f32 %v6386, %v6302
    %v6597 = vmul.f32 %v6391, %v6303
    %v6598 = vmul.f32 %v6396, %v6304
    %v6599 = vmul.f32 %v6401, %v6305
    %v6600 = vmul.f32 %v6406, %v6306
    %v6601 = vmul.f32 %v6411, %v6307
    %v6602 = vmul.f32 %v6416, %v6308
    %v6603 = vmul.f32 %v6421, %v6309
    %v6604 = vmul.f32 %v6426, %v6310
    %v6605 = vmul.f32 %v6431, %v6311
    %v6606 = vmul.f32 %v6436, %v6312
    %v6607 = vmul.f32 %v6441, %v6313
    %v6608 = vmul.f32 %v6446, %v6314
    %v6609 = vmul.f32 %v6451, %v6315
    %v6610 = vmul.f32 %v6456, %v6316
    %v6611 = vmul.f32 %v6461, %v6317
    %v6612 = vmul.f32 %v6466, %v6318
    %v6613 = vmul.f32 %v6471, %v6319
    %v6614 = vmul.f32 %v6476, %v6320
    %v6615 = vmul.f32 %v6481, %v6321
    %v6616 = vmul.f32 %v6486, %v6322
    %v6617 = vmul.f32 %v6491, %v6323
    %v6618 = vmul.f32 %v6496, %v6324
    %v6619 = vmul.f32 %v6501, %v6325
    %v6620 = vmul.f32 %v6506, %v6326
    %v6621 = vmul.f32 %v6511, %v6327
    %v6622 = vmul.f32 %v6516, %v6328
    %v6623 = vmul.f32 %v6521, %v6329
    %v6624 = vmul.f32 %v6526, %v6330
    %v6625 = vmul.f32 %v6531, %v6331
    %v6626 = vmul.f32 %v6536, %v6332
    %v6627 = vmul.f32 %v6541, %v6333
    %v6628 = vmul.f32 %v6546, %v6334
    %v6629 = vmul.f32 %v6551, %v6335
    %v6630 = vmul.f32 %v6556, %v6336
    %v6631 = vmul.f32 %v6561, %v6337
    %v6632 = vmul.f32 %v6566, %v6338
    %v6633 = vmul.f32 %v6571, %v6339
    %v6634 = vmul.f32 %v6576, %v6340
    %v6635 = vmul.f32 %v6581, %v6341
    %v6636 = vmul.f32 %v6586, %v6342
    %vm6637 = vcmask 64512
    %v6639 = vsel %vm6637, %v5363, 0
    %6641 = vmatprep.subr.mxu0 0.0
    %6642 = vmatpush1.msra.mxu0 %v6603
    %6643 = vmatprep.subr.mxu0 0.0
    %6644 = vmatpush1.msra.mxu0 %v6602
    %6645 = vmatprep.subr.mxu0 0.0
    %6646 = vmatpush1.msra.mxu0 %v6601
    %6647 = vmatprep.subr.mxu0 0.0
    %6648 = vmatpush1.msra.mxu0 %v6600
    %6649 = vmatprep.subr.mxu0 0.0
    %6650 = vmatpush1.msra.mxu0 %v6599
    %6651 = vmatprep.subr.mxu0 0.0
    %6652 = vmatpush1.msra.mxu0 %v6598
    %6653 = vmatprep.subr.mxu0 0.0
    %6654 = vmatpush1.msra.mxu0 %v6597
    %6655 = vmatprep.subr.mxu0 0.0
    %6656 = vmatpush1.msra.mxu0 %v6596
    %6657 = vmatprep.subr.mxu0 0.0
    %6658 = vmatpush1.msra.mxu0 %v6595
    %6659 = vmatprep.subr.mxu0 0.0
    %6660 = vmatpush1.msra.mxu0 %v6594
    %6661 = vmatprep.subr.mxu0 0.0
    %6662 = vmatpush1.msra.mxu0 %v6593
    %6663 = vmatprep.subr.mxu0 0.0
    %6664 = vmatpush1.msra.mxu0 %v6592
    %6665 = vmatprep.subr.mxu0 0.0
    %6666 = vmatpush1.msra.mxu0 %v6591
    %6667 = vmatprep.subr.mxu0 0.0
    %6668 = vmatpush1.msra.mxu0 %v6590
    %6669 = vmatprep.subr.mxu0 0.0
    %6670 = vmatpush1.msra.mxu0 %v6589
    %6671 = vmatprep.subr.mxu0 0.0
    %6672 = vmatpush1.msra.mxu0 %v6588
    %6673 = vmatprep.subr.mxu0 0.0
    %6674 = vmatpush2.msra.mxu0 %v6619
    %6675 = vmatprep.subr.mxu0 0.0
    %6676 = vmatpush2.msra.mxu0 %v6618
    %6677 = vmatprep.subr.mxu0 0.0
    %6678 = vmatpush2.msra.mxu0 %v6617
    %6679 = vmatprep.subr.mxu0 0.0
    %6680 = vmatpush2.msra.mxu0 %v6616
    %6681 = vmatprep.subr.mxu0 0.0
    %6682 = vmatpush2.msra.mxu0 %v6615
    %6683 = vmatprep.subr.mxu0 0.0
    %6684 = vmatpush2.msra.mxu0 %v6614
    %6685 = vmatprep.subr.mxu0 0.0
    %6686 = vmatpush2.msra.mxu0 %v6613
    %6687 = vmatprep.subr.mxu0 0.0
    %6688 = vmatpush2.msra.mxu0 %v6612
    %6689 = vmatprep.subr.mxu0 0.0
    %6690 = vmatpush2.msra.mxu0 %v6611
    %6691 = vmatprep.subr.mxu0 0.0
    %6692 = vmatpush2.msra.mxu0 %v6610
    %6693 = vmatprep.subr.mxu0 0.0
    %6694 = vmatpush2.msra.mxu0 %v6609
    %6695 = vmatprep.subr.mxu0 0.0
    %6696 = vmatpush2.msra.mxu0 %v6608
    %6697 = vmatprep.subr.mxu0 0.0
    %6698 = vmatpush2.msra.mxu0 %v6607
    %6699 = vmatprep.subr.mxu0 0.0
    %6700 = vmatpush2.msra.mxu0 %v6606
    %6701 = vmatprep.subr.mxu0 0.0
    %6702 = vmatpush2.msra.mxu0 %v6605
    %6703 = vmatprep.subr.mxu0 0.0
    %6704 = vmatpush2.msra.mxu0 %v6604
    %6705 = vmatprep.mubr.f32.mxu0 %v5361
    %6706 = vmatmul.mubr.f32.gmra.mxu0 %v5360
    %v6707 = vpop.f32.mrf.mxu0
    %v6708 = vadd.f32 0.0, %v6707
    %v6709 = vpop.f32.mrf.mxu0
    %6710 = vdwg.mxu0
    %6711 = vmatprep.subr.mxu0 0.0
    %6712 = vmatpush1.msra.mxu0 %v6635
    %6713 = vmatprep.subr.mxu0 0.0
    %6714 = vmatpush1.msra.mxu0 %v6634
    %6715 = vmatprep.subr.mxu0 0.0
    %6716 = vmatpush1.msra.mxu0 %v6633
    %6717 = vmatprep.subr.mxu0 0.0
    %6718 = vmatpush1.msra.mxu0 %v6632
    %6719 = vmatprep.subr.mxu0 0.0
    %6720 = vmatpush1.msra.mxu0 %v6631
    %6721 = vmatprep.subr.mxu0 0.0
    %6722 = vmatpush1.msra.mxu0 %v6630
    %6723 = vmatprep.subr.mxu0 0.0
    %6724 = vmatpush1.msra.mxu0 %v6629
    %6725 = vmatprep.subr.mxu0 0.0
    %6726 = vmatpush1.msra.mxu0 %v6628
    %6727 = vmatprep.subr.mxu0 0.0
    %6728 = vmatpush1.msra.mxu0 %v6627
    %6729 = vmatprep.subr.mxu0 0.0
    %6730 = vmatpush1.msra.mxu0 %v6626
    %6731 = vmatprep.subr.mxu0 0.0
    %6732 = vmatpush1.msra.mxu0 %v6625
    %6733 = vmatprep.subr.mxu0 0.0
    %6734 = vmatpush1.msra.mxu0 %v6624
    %6735 = vmatprep.subr.mxu0 0.0
    %6736 = vmatpush1.msra.mxu0 %v6623
    %6737 = vmatprep.subr.mxu0 0.0
    %6738 = vmatpush1.msra.mxu0 %v6622
    %6739 = vmatprep.subr.mxu0 0.0
    %6740 = vmatpush1.msra.mxu0 %v6621
    %6741 = vmatprep.subr.mxu0 0.0
    %6742 = vmatpush1.msra.mxu0 %v6620
    %6743 = vmatprep.subr.mxu0 0.0
    %6744 = vmatpush2.msra.mxu0 0.0
    %6745 = vmatprep.subr.mxu0 0.0
    %6746 = vmatpush2.msra.mxu0 0.0
    %6747 = vmatprep.subr.mxu0 0.0
    %6748 = vmatpush2.msra.mxu0 0.0
    %6749 = vmatprep.subr.mxu0 0.0
    %6750 = vmatpush2.msra.mxu0 0.0
    %6751 = vmatprep.subr.mxu0 0.0
    %6752 = vmatpush2.msra.mxu0 0.0
    %6753 = vmatprep.subr.mxu0 0.0
    %6754 = vmatpush2.msra.mxu0 0.0
    %6755 = vmatprep.subr.mxu0 0.0
    %6756 = vmatpush2.msra.mxu0 0.0
    %6757 = vmatprep.subr.mxu0 0.0
    %6758 = vmatpush2.msra.mxu0 0.0
    %6759 = vmatprep.subr.mxu0 0.0
    %6760 = vmatpush2.msra.mxu0 0.0
    %6761 = vmatprep.subr.mxu0 0.0
    %6762 = vmatpush2.msra.mxu0 0.0
    %6763 = vmatprep.subr.mxu0 0.0
    %6764 = vmatpush2.msra.mxu0 0.0
    %6765 = vmatprep.subr.mxu0 0.0
    %6766 = vmatpush2.msra.mxu0 0.0
    %6767 = vmatprep.subr.mxu0 0.0
    %6768 = vmatpush2.msra.mxu0 0.0
    %6769 = vmatprep.subr.mxu0 0.0
    %6770 = vmatpush2.msra.mxu0 0.0
    %6771 = vmatprep.subr.mxu0 0.0
    %6772 = vmatpush2.msra.mxu0 0.0
    %6773 = vmatprep.subr.mxu0 0.0
    %6774 = vmatpush2.msra.mxu0 %v6636
    %6775 = vmatprep.mubr.f32.mxu0 %v6639
    %6776 = vmatmul.mubr.f32.gmra.mxu0 %v5362
    %v6777 = vpop.f32.mrf.mxu0
    %v6778 = vadd.f32 %v6708, %v6777
    %v6779 = vpop.f32.mrf.mxu0
    %6780 = vdwg.mxu0
    %v6781 = vmul.f32 %v6778, 0.0013020834
    %v6782 = vld [vmem:[#allocation8] sm:$0x1]
    %v6784 = vlaneseq
    %v6785 = vshrl.u32 %v6784, 7
    %v6786 = vsub.s32 0, %v6785
    %v6787 = vrot.slane %v6782, %v6786
    %v6789 = vadd.f32 %v6781, %v6787
    %v6790 = vmax.f32 %v6789, 0.0
    %v6791 = vld [vmem:[#allocation10] sm:$0xff]
    %v6792 = vld [vmem:[#allocation10 + $0x8] sm:$0xff]
    %v6793 = vld [vmem:[#allocation10 + $0x10] sm:$0xff]
    %v6794 = vld [vmem:[#allocation10 + $0x18] sm:$0xff]
    %v6795 = vld [vmem:[#allocation11] sm:$0x3]
    %v6797 = vlaneseq
    %v6798 = vshrl.u32 %v6797, 7
    %v6799 = vsub.s32 0, %v6798
    %v6800 = vrot.slane %v6795, %v6799
    %v6801 = vlaneseq
    %v6802 = vshrl.u32 %v6801, 7
    %v6803 = vsub.s32 1, %v6802
    %v6804 = vrot.slane %v6795, %v6803
    %vm6807 = vcmask 130048
    %v6809 = vsel %vm6807, %v6790, 0
    %6811 = vmatprep.subr.mxu0 0.0
    %6812 = vmatpush1.msra.mxu0 0.0
    %6813 = vmatprep.subr.mxu0 0.0
    %6814 = vmatpush1.msra.mxu0 0.0
    %6815 = vmatprep.subr.mxu0 0.0
    %6816 = vmatpush1.msra.mxu0 0.0
    %6817 = vmatprep.subr.mxu0 0.0
    %6818 = vmatpush1.msra.mxu0 0.0
    %6819 = vmatprep.subr.mxu0 0.0
    %6820 = vmatpush1.msra.mxu0 0.0
    %6821 = vmatprep.subr.mxu0 0.0
    %6822 = vmatpush1.msra.mxu0 0.0
    %6823 = vmatprep.subr.mxu0 0.0
    %6824 = vmatpush1.msra.mxu0 0.0
    %6825 = vmatprep.subr.mxu0 0.0
    %6826 = vmatpush1.msra.mxu0 0.0
    %6827 = vmatprep.subr.mxu0 0.0
    %6828 = vmatpush1.msra.mxu0 0.0
    %6829 = vmatprep.subr.mxu0 0.0
    %6830 = vmatpush1.msra.mxu0 0.0
    %6831 = vmatprep.subr.mxu0 0.0
    %6832 = vmatpush1.msra.mxu0 0.0
    %6833 = vmatprep.subr.mxu0 0.0
    %6834 = vmatpush1.msra.mxu0 0.0
    %6835 = vmatprep.subr.mxu0 0.0
    %6836 = vmatpush1.msra.mxu0 0.0
    %6837 = vmatprep.subr.mxu0 0.0
    %6838 = vmatpush1.msra.mxu0 0.0
    %6839 = vmatprep.subr.mxu0 %v6794
    %6840 = vmatpush1.msra.mxu0 %v6793
    %6841 = vmatprep.subr.mxu0 %v6792
    %6842 = vmatpush1.msra.mxu0 %v6791
    %6843 = vmatprep.subr.mxu0 0.0
    %6844 = vmatpush2.msra.mxu0 0.0
    %6845 = vmatprep.subr.mxu0 0.0
    %6846 = vmatpush2.msra.mxu0 0.0
    %6847 = vmatprep.subr.mxu0 0.0
    %6848 = vmatpush2.msra.mxu0 0.0
    %6849 = vmatprep.subr.mxu0 0.0
    %6850 = vmatpush2.msra.mxu0 0.0
    %6851 = vmatprep.subr.mxu0 0.0
    %6852 = vmatpush2.msra.mxu0 0.0
    %6853 = vmatprep.subr.mxu0 0.0
    %6854 = vmatpush2.msra.mxu0 0.0
    %6855 = vmatprep.subr.mxu0 0.0
    %6856 = vmatpush2.msra.mxu0 0.0
    %6857 = vmatprep.subr.mxu0 0.0
    %6858 = vmatpush2.msra.mxu0 0.0
    %6859 = vmatprep.subr.mxu0 0.0
    %6860 = vmatpush2.msra.mxu0 0.0
    %6861 = vmatprep.subr.mxu0 0.0
    %6862 = vmatpush2.msra.mxu0 0.0
    %6863 = vmatprep.subr.mxu0 0.0
    %6864 = vmatpush2.msra.mxu0 0.0
    %6865 = vmatprep.subr.mxu0 0.0
    %6866 = vmatpush2.msra.mxu0 0.0
    %6867 = vmatprep.subr.mxu0 0.0
    %6868 = vmatpush2.msra.mxu0 0.0
    %6869 = vmatprep.subr.mxu0 0.0
    %6870 = vmatpush2.msra.mxu0 0.0
    %6871 = vmatprep.subr.mxu0 0.0
    %6872 = vmatpush2.msra.mxu0 0.0
    %6873 = vmatprep.subr.mxu0 0.0
    %6874 = vmatpush2.msra.mxu0 0.0
    %6875 = vmatprep.mubr.f32.mxu0 0.0
    %6876 = vmatmul.mubr.f32.gmra.mxu0 %v6809
    %v6877 = vpop.f32.mrf.mxu0
    %v6878 = vadd.f32 %v6800, %v6877
    %v6879 = vpop.f32.mrf.mxu0
    %v6880 = vadd.f32 %v6804, %v6879
    %6881 = vdwg.mxu0
    %v6882 = vxor.u32 %v6878, 2147483648
    %v6883 = vxor.u32 %v6880, 2147483648
    %v6884 = vmul.f32 %v6882, 1.442695
    %v6885 = vpow.pop %v6884
    %v6886 = vmul.f32 %v6883, 1.442695
    %v6887 = vpow.pop %v6886
    %v6888 = vadd.f32 %v6885, 1.0
    %v6889 = vadd.f32 %v6887, 1.0
    %v6890 = vrcp.pop %v6888
    %v6891 = vmul.f32 1.0, %v6890
    %v6892 = vrcp.pop %v6889
    %v6893 = vmul.f32 1.0, %v6892
    %6896 = vrot.lane.b32.xlu0 %v6891, 68
    %v6897 = vpop.permute.xlu0 %6896
    %6898 = vrot.lane.b32.xlu0 %v6893, 68
    %v6899 = vpop.permute.xlu0 %6898
    %vm6900 = vcmask 556032
    %v6901 = vsel %vm6900, %v6897, %v6899
    %v6905 = vsel %vm6900, %v6893, %v6897
    %vm6906 = vcmask 1041408
    %v6907 = vsel %vm6906, %v6891, 0.0
    %vm6908 = vcmask 549888
    %v6909 = vsel %vm6908, %v6893, 0.0
    %v6910 = vadd.f32 %v6907, %v6909
    %6911 = vadd.xlane.f32.xlu0 %v6910
    %v6912 = vpop.xlane.xlu0 %6911
    %6913 = vmatprep.subr.mxu0 %v3479
    %6914 = vmatpush1.msra.mxu0 %v3477
    %6915 = vmatprep.subr.mxu0 %v3475
    %6916 = vmatpush1.msra.mxu0 %v3473
    %6917 = vmatprep.subr.mxu0 %v3469
    %6918 = vmatpush1.msra.mxu0 %v3467
    %6919 = vmatprep.subr.mxu0 %v3465
    %6920 = vmatpush1.msra.mxu0 %v3463
    %6921 = vmatprep.subr.mxu0 %v3459
    %6922 = vmatpush1.msra.mxu0 %v3457
    %6923 = vmatprep.subr.mxu0 %v3455
    %6924 = vmatpush1.msra.mxu0 %v3453
    %6925 = vmatprep.subr.mxu0 %v3449
    %6926 = vmatpush1.msra.mxu0 %v3447
    %6927 = vmatprep.subr.mxu0 %v3445
    %6928 = vmatpush1.msra.mxu0 %v3443
    %6929 = vmatprep.subr.mxu0 %v3439
    %6930 = vmatpush1.msra.mxu0 %v3437
    %6931 = vmatprep.subr.mxu0 %v3435
    %6932 = vmatpush1.msra.mxu0 %v3433
    %6933 = vmatprep.subr.mxu0 %v3429
    %6934 = vmatpush1.msra.mxu0 %v3427
    %6935 = vmatprep.subr.mxu0 %v3425
    %6936 = vmatpush1.msra.mxu0 %v3423
    %6937 = vmatprep.subr.mxu0 %v3419
    %6938 = vmatpush1.msra.mxu0 %v3417
    %6939 = vmatprep.subr.mxu0 %v3415
    %6940 = vmatpush1.msra.mxu0 %v3413
    %6941 = vmatprep.subr.mxu0 %v3409
    %6942 = vmatpush1.msra.mxu0 %v3407
    %6943 = vmatprep.subr.mxu0 %v3405
    %6944 = vmatpush1.msra.mxu0 %v3403
    %6945 = vmatprep.subr.mxu0 %v3559
    %6946 = vmatpush2.msra.mxu0 %v3557
    %6947 = vmatprep.subr.mxu0 %v3555
    %6948 = vmatpush2.msra.mxu0 %v3553
    %6949 = vmatprep.subr.mxu0 %v3549
    %6950 = vmatpush2.msra.mxu0 %v3547
    %6951 = vmatprep.subr.mxu0 %v3545
    %6952 = vmatpush2.msra.mxu0 %v3543
    %6953 = vmatprep.subr.mxu0 %v3539
    %6954 = vmatpush2.msra.mxu0 %v3537
    %6955 = vmatprep.subr.mxu0 %v3535
    %6956 = vmatpush2.msra.mxu0 %v3533
    %6957 = vmatprep.subr.mxu0 %v3529
    %6958 = vmatpush2.msra.mxu0 %v3527
    %6959 = vmatprep.subr.mxu0 %v3525
    %6960 = vmatpush2.msra.mxu0 %v3523
    %6961 = vmatprep.subr.mxu0 %v3519
    %6962 = vmatpush2.msra.mxu0 %v3517
    %6963 = vmatprep.subr.mxu0 %v3515
    %6964 = vmatpush2.msra.mxu0 %v3513
    %6965 = vmatprep.subr.mxu0 %v3509
    %6966 = vmatpush2.msra.mxu0 %v3507
    %6967 = vmatprep.subr.mxu0 %v3505
    %6968 = vmatpush2.msra.mxu0 %v3503
    %6969 = vmatprep.subr.mxu0 %v3499
    %6970 = vmatpush2.msra.mxu0 %v3497
    %6971 = vmatprep.subr.mxu0 %v3495
    %6972 = vmatpush2.msra.mxu0 %v3493
    %6973 = vmatprep.subr.mxu0 %v3489
    %6974 = vmatpush2.msra.mxu0 %v3487
    %6975 = vmatprep.subr.mxu0 %v3485
    %6976 = vmatpush2.msra.mxu0 %v3483
    %6977 = vmatprep.mubr.f32.mxu0 %v5361
    %6978 = vmatmul.mubr.f32.gmra.mxu0 %v5360
    %v6979 = vpop.f32.mrf.mxu0
    %v6980 = vadd.f32 0.0, %v6979
    %v6981 = vpop.f32.mrf.mxu0
    %v6982 = vadd.f32 0.0, %v6981
    %6983 = vdwg.mxu0
    %6984 = vmatprep.subr.mxu0 %v3639
    %6985 = vmatpush1.msra.mxu0 %v3637
    %6986 = vmatprep.subr.mxu0 %v3635
    %6987 = vmatpush1.msra.mxu0 %v3633
    %6988 = vmatprep.subr.mxu0 %v3629
    %6989 = vmatpush1.msra.mxu0 %v3627
    %6990 = vmatprep.subr.mxu0 %v3625
    %6991 = vmatpush1.msra.mxu0 %v3623
    %6992 = vmatprep.subr.mxu0 %v3619
    %6993 = vmatpush1.msra.mxu0 %v3617
    %6994 = vmatprep.subr.mxu0 %v3615
    %6995 = vmatpush1.msra.mxu0 %v3613
    %6996 = vmatprep.subr.mxu0 %v3609
    %6997 = vmatpush1.msra.mxu0 %v3607
    %6998 = vmatprep.subr.mxu0 %v3605
    %6999 = vmatpush1.msra.mxu0 %v3603
    %7000 = vmatprep.subr.mxu0 %v3599
    %7001 = vmatpush1.msra.mxu0 %v3597
    %7002 = vmatprep.subr.mxu0 %v3595
    %7003 = vmatpush1.msra.mxu0 %v3593
    %7004 = vmatprep.subr.mxu0 %v3589
    %7005 = vmatpush1.msra.mxu0 %v3587
    %7006 = vmatprep.subr.mxu0 %v3585
    %7007 = vmatpush1.msra.mxu0 %v3583
    %7008 = vmatprep.subr.mxu0 %v3579
    %7009 = vmatpush1.msra.mxu0 %v3577
    %7010 = vmatprep.subr.mxu0 %v3575
    %7011 = vmatpush1.msra.mxu0 %v3573
    %7012 = vmatprep.subr.mxu0 %v3569
    %7013 = vmatpush1.msra.mxu0 %v3567
    %7014 = vmatprep.subr.mxu0 %v3565
    %7015 = vmatpush1.msra.mxu0 %v3563
    %7016 = vmatprep.subr.mxu0 0.0
    %7017 = vmatpush2.msra.mxu0 0.0
    %7018 = vmatprep.subr.mxu0 0.0
    %7019 = vmatpush2.msra.mxu0 0.0
    %7020 = vmatprep.subr.mxu0 0.0
    %7021 = vmatpush2.msra.mxu0 0.0
    %7022 = vmatprep.subr.mxu0 0.0
    %7023 = vmatpush2.msra.mxu0 0.0
    %7024 = vmatprep.subr.mxu0 0.0
    %7025 = vmatpush2.msra.mxu0 0.0
    %7026 = vmatprep.subr.mxu0 0.0
    %7027 = vmatpush2.msra.mxu0 0.0
    %7028 = vmatprep.subr.mxu0 0.0
    %7029 = vmatpush2.msra.mxu0 0.0
    %7030 = vmatprep.subr.mxu0 0.0
    %7031 = vmatpush2.msra.mxu0 0.0
    %7032 = vmatprep.subr.mxu0 0.0
    %7033 = vmatpush2.msra.mxu0 0.0
    %7034 = vmatprep.subr.mxu0 0.0
    %7035 = vmatpush2.msra.mxu0 0.0
    %7036 = vmatprep.subr.mxu0 0.0
    %7037 = vmatpush2.msra.mxu0 0.0
    %7038 = vmatprep.subr.mxu0 0.0
    %7039 = vmatpush2.msra.mxu0 0.0
    %7040 = vmatprep.subr.mxu0 0.0
    %7041 = vmatpush2.msra.mxu0 0.0
    %7042 = vmatprep.subr.mxu0 0.0
    %7043 = vmatpush2.msra.mxu0 0.0
    %7044 = vmatprep.subr.mxu0 0.0
    %7045 = vmatpush2.msra.mxu0 0.0
    %7046 = vmatprep.subr.mxu0 %v3645
    %7047 = vmatpush2.msra.mxu0 %v3643
    %7048 = vmatprep.mubr.f32.mxu0 %v6639
    %7049 = vmatmul.mubr.f32.gmra.mxu0 %v5362
    %v7050 = vpop.f32.mrf.mxu0
    %v7051 = vadd.f32 %v6980, %v7050
    %v7052 = vpop.f32.mrf.mxu0
    %v7053 = vadd.f32 %v6982, %v7052
    %7054 = vdwg.mxu0
    %7055 = vmatprep.subr.mxu0 %v4322
    %7056 = vmatpush1.msra.mxu0 %v4320
    %7057 = vmatprep.subr.mxu0 %v4318
    %7058 = vmatpush1.msra.mxu0 %v4316
    %7059 = vmatprep.subr.mxu0 %v4312
    %7060 = vmatpush1.msra.mxu0 %v4310
    %7061 = vmatprep.subr.mxu0 %v4308
    %7062 = vmatpush1.msra.mxu0 %v4306
    %7063 = vmatprep.subr.mxu0 %v4302
    %7064 = vmatpush1.msra.mxu0 %v4300
    %7065 = vmatprep.subr.mxu0 %v4298
    %7066 = vmatpush1.msra.mxu0 %v4296
    %7067 = vmatprep.subr.mxu0 %v4292
    %7068 = vmatpush1.msra.mxu0 %v4290
    %7069 = vmatprep.subr.mxu0 %v4288
    %7070 = vmatpush1.msra.mxu0 %v4286
    %7071 = vmatprep.subr.mxu0 %v4282
    %7072 = vmatpush1.msra.mxu0 %v4280
    %7073 = vmatprep.subr.mxu0 %v4278
    %7074 = vmatpush1.msra.mxu0 %v4276
    %7075 = vmatprep.subr.mxu0 %v4272
    %7076 = vmatpush1.msra.mxu0 %v4270
    %7077 = vmatprep.subr.mxu0 %v4268
    %7078 = vmatpush1.msra.mxu0 %v4266
    %7079 = vmatprep.subr.mxu0 %v4262
    %7080 = vmatpush1.msra.mxu0 %v4260
    %7081 = vmatprep.subr.mxu0 %v4258
    %7082 = vmatpush1.msra.mxu0 %v4256
    %7083 = vmatprep.subr.mxu0 %v4252
    %7084 = vmatpush1.msra.mxu0 %v4250
    %7085 = vmatprep.subr.mxu0 %v4248
    %7086 = vmatpush1.msra.mxu0 %v4246
    %7087 = vmatprep.subr.mxu0 %v4402
    %7088 = vmatpush2.msra.mxu0 %v4400
    %7089 = vmatprep.subr.mxu0 %v4398
    %7090 = vmatpush2.msra.mxu0 %v4396
    %7091 = vmatprep.subr.mxu0 %v4392
    %7092 = vmatpush2.msra.mxu0 %v4390
    %7093 = vmatprep.subr.mxu0 %v4388
    %7094 = vmatpush2.msra.mxu0 %v4386
    %7095 = vmatprep.subr.mxu0 %v4382
    %7096 = vmatpush2.msra.mxu0 %v4380
    %7097 = vmatprep.subr.mxu0 %v4378
    %7098 = vmatpush2.msra.mxu0 %v4376
    %7099 = vmatprep.subr.mxu0 %v4372
    %7100 = vmatpush2.msra.mxu0 %v4370
    %7101 = vmatprep.subr.mxu0 %v4368
    %7102 = vmatpush2.msra.mxu0 %v4366
    %7103 = vmatprep.subr.mxu0 %v4362
    %7104 = vmatpush2.msra.mxu0 %v4360
    %7105 = vmatprep.subr.mxu0 %v4358
    %7106 = vmatpush2.msra.mxu0 %v4356
    %7107 = vmatprep.subr.mxu0 %v4352
    %7108 = vmatpush2.msra.mxu0 %v4350
    %7109 = vmatprep.subr.mxu0 %v4348
    %7110 = vmatpush2.msra.mxu0 %v4346
    %7111 = vmatprep.subr.mxu0 %v4342
    %7112 = vmatpush2.msra.mxu0 %v4340
    %7113 = vmatprep.subr.mxu0 %v4338
    %7114 = vmatpush2.msra.mxu0 %v4336
    %7115 = vmatprep.subr.mxu0 %v4332
    %7116 = vmatpush2.msra.mxu0 %v4330
    %7117 = vmatprep.subr.mxu0 %v4328
    %7118 = vmatpush2.msra.mxu0 %v4326
    %7119 = vmatprep.mubr.f32.mxu0 %v5361
    %7120 = vmatmul.mubr.f32.gmra.mxu0 %v5360
    %v7121 = vpop.f32.mrf.mxu0
    %v7122 = vadd.f32 0.0, %v7121
    %v7123 = vpop.f32.mrf.mxu0
    %v7124 = vadd.f32 0.0, %v7123
    %7125 = vdwg.mxu0
    %7126 = vmatprep.subr.mxu0 %v4482
    %7127 = vmatpush1.msra.mxu0 %v4480
    %7128 = vmatprep.subr.mxu0 %v4478
    %7129 = vmatpush1.msra.mxu0 %v4476
    %7130 = vmatprep.subr.mxu0 %v4472
    %7131 = vmatpush1.msra.mxu0 %v4470
    %7132 = vmatprep.subr.mxu0 %v4468
    %7133 = vmatpush1.msra.mxu0 %v4466
    %7134 = vmatprep.subr.mxu0 %v4462
    %7135 = vmatpush1.msra.mxu0 %v4460
    %7136 = vmatprep.subr.mxu0 %v4458
    %7137 = vmatpush1.msra.mxu0 %v4456
    %7138 = vmatprep.subr.mxu0 %v4452
    %7139 = vmatpush1.msra.mxu0 %v4450
    %7140 = vmatprep.subr.mxu0 %v4448
    %7141 = vmatpush1.msra.mxu0 %v4446
    %7142 = vmatprep.subr.mxu0 %v4442
    %7143 = vmatpush1.msra.mxu0 %v4440
    %7144 = vmatprep.subr.mxu0 %v4438
    %7145 = vmatpush1.msra.mxu0 %v4436
    %7146 = vmatprep.subr.mxu0 %v4432
    %7147 = vmatpush1.msra.mxu0 %v4430
    %7148 = vmatprep.subr.mxu0 %v4428
    %7149 = vmatpush1.msra.mxu0 %v4426
    %7150 = vmatprep.subr.mxu0 %v4422
    %7151 = vmatpush1.msra.mxu0 %v4420
    %7152 = vmatprep.subr.mxu0 %v4418
    %7153 = vmatpush1.msra.mxu0 %v4416
    %7154 = vmatprep.subr.mxu0 %v4412
    %7155 = vmatpush1.msra.mxu0 %v4410
    %7156 = vmatprep.subr.mxu0 %v4408
    %7157 = vmatpush1.msra.mxu0 %v4406
    %7158 = vmatprep.subr.mxu0 0.0
    %7159 = vmatpush2.msra.mxu0 0.0
    %7160 = vmatprep.subr.mxu0 0.0
    %7161 = vmatpush2.msra.mxu0 0.0
    %7162 = vmatprep.subr.mxu0 0.0
    %7163 = vmatpush2.msra.mxu0 0.0
    %7164 = vmatprep.subr.mxu0 0.0
    %7165 = vmatpush2.msra.mxu0 0.0
    %7166 = vmatprep.subr.mxu0 0.0
    %7167 = vmatpush2.msra.mxu0 0.0
    %7168 = vmatprep.subr.mxu0 0.0
    %7169 = vmatpush2.msra.mxu0 0.0
    %7170 = vmatprep.subr.mxu0 0.0
    %7171 = vmatpush2.msra.mxu0 0.0
    %7172 = vmatprep.subr.mxu0 0.0
    %7173 = vmatpush2.msra.mxu0 0.0
    %7174 = vmatprep.subr.mxu0 0.0
    %7175 = vmatpush2.msra.mxu0 0.0
    %7176 = vmatprep.subr.mxu0 0.0
    %7177 = vmatpush2.msra.mxu0 0.0
    %7178 = vmatprep.subr.mxu0 0.0
    %7179 = vmatpush2.msra.mxu0 0.0
    %7180 = vmatprep.subr.mxu0 0.0
    %7181 = vmatpush2.msra.mxu0 0.0
    %7182 = vmatprep.subr.mxu0 0.0
    %7183 = vmatpush2.msra.mxu0 0.0
    %7184 = vmatprep.subr.mxu0 0.0
    %7185 = vmatpush2.msra.mxu0 0.0
    %7186 = vmatprep.subr.mxu0 0.0
    %7187 = vmatpush2.msra.mxu0 0.0
    %7188 = vmatprep.subr.mxu0 %v4488
    %7189 = vmatpush2.msra.mxu0 %v4486
    %7190 = vmatprep.mubr.f32.mxu0 %v6639
    %7191 = vmatmul.mubr.f32.gmra.mxu0 %v5362
    %v7192 = vpop.f32.mrf.mxu0
    %v7193 = vadd.f32 %v7122, %v7192
    %v7194 = vpop.f32.mrf.mxu0
    %v7195 = vadd.f32 %v7124, %v7194
    %7196 = vdwg.mxu0
    %7197 = vmatprep.subr.mxu0 %v5165
    %7198 = vmatpush1.msra.mxu0 %v5163
    %7199 = vmatprep.subr.mxu0 %v5161
    %7200 = vmatpush1.msra.mxu0 %v5159
    %7201 = vmatprep.subr.mxu0 %v5155
    %7202 = vmatpush1.msra.mxu0 %v5153
    %7203 = vmatprep.subr.mxu0 %v5151
    %7204 = vmatpush1.msra.mxu0 %v5149
    %7205 = vmatprep.subr.mxu0 %v5145
    %7206 = vmatpush1.msra.mxu0 %v5143
    %7207 = vmatprep.subr.mxu0 %v5141
    %7208 = vmatpush1.msra.mxu0 %v5139
    %7209 = vmatprep.subr.mxu0 %v5135
    %7210 = vmatpush1.msra.mxu0 %v5133
    %7211 = vmatprep.subr.mxu0 %v5131
    %7212 = vmatpush1.msra.mxu0 %v5129
    %7213 = vmatprep.subr.mxu0 %v5125
    %7214 = vmatpush1.msra.mxu0 %v5123
    %7215 = vmatprep.subr.mxu0 %v5121
    %7216 = vmatpush1.msra.mxu0 %v5119
    %7217 = vmatprep.subr.mxu0 %v5115
    %7218 = vmatpush1.msra.mxu0 %v5113
    %7219 = vmatprep.subr.mxu0 %v5111
    %7220 = vmatpush1.msra.mxu0 %v5109
    %7221 = vmatprep.subr.mxu0 %v5105
    %7222 = vmatpush1.msra.mxu0 %v5103
    %7223 = vmatprep.subr.mxu0 %v5101
    %7224 = vmatpush1.msra.mxu0 %v5099
    %7225 = vmatprep.subr.mxu0 %v5095
    %7226 = vmatpush1.msra.mxu0 %v5093
    %7227 = vmatprep.subr.mxu0 %v5091
    %7228 = vmatpush1.msra.mxu0 %v5089
    %7229 = vmatprep.subr.mxu0 %v5245
    %7230 = vmatpush2.msra.mxu0 %v5243
    %7231 = vmatprep.subr.mxu0 %v5241
    %7232 = vmatpush2.msra.mxu0 %v5239
    %7233 = vmatprep.subr.mxu0 %v5235
    %7234 = vmatpush2.msra.mxu0 %v5233
    %7235 = vmatprep.subr.mxu0 %v5231
    %7236 = vmatpush2.msra.mxu0 %v5229
    %7237 = vmatprep.subr.mxu0 %v5225
    %7238 = vmatpush2.msra.mxu0 %v5223
    %7239 = vmatprep.subr.mxu0 %v5221
    %7240 = vmatpush2.msra.mxu0 %v5219
    %7241 = vmatprep.subr.mxu0 %v5215
    %7242 = vmatpush2.msra.mxu0 %v5213
    %7243 = vmatprep.subr.mxu0 %v5211
    %7244 = vmatpush2.msra.mxu0 %v5209
    %7245 = vmatprep.subr.mxu0 %v5205
    %7246 = vmatpush2.msra.mxu0 %v5203
    %7247 = vmatprep.subr.mxu0 %v5201
    %7248 = vmatpush2.msra.mxu0 %v5199
    %7249 = vmatprep.subr.mxu0 %v5195
    %7250 = vmatpush2.msra.mxu0 %v5193
    %7251 = vmatprep.subr.mxu0 %v5191
    %7252 = vmatpush2.msra.mxu0 %v5189
    %7253 = vmatprep.subr.mxu0 %v5185
    %7254 = vmatpush2.msra.mxu0 %v5183
    %7255 = vmatprep.subr.mxu0 %v5181
    %7256 = vmatpush2.msra.mxu0 %v5179
    %7257 = vmatprep.subr.mxu0 %v5175
    %7258 = vmatpush2.msra.mxu0 %v5173
    %7259 = vmatprep.subr.mxu0 %v5171
    %7260 = vmatpush2.msra.mxu0 %v5169
    %7261 = vmatprep.mubr.f32.mxu0 %v5361
    %7262 = vmatmul.mubr.f32.gmra.mxu0 %v5360
    %v7263 = vpop.f32.mrf.mxu0
    %v7264 = vadd.f32 0.0, %v7263
    %v7265 = vpop.f32.mrf.mxu0
    %v7266 = vadd.f32 0.0, %v7265
    %7267 = vdwg.mxu0
    %7268 = vmatprep.subr.mxu0 %v5325
    %7269 = vmatpush1.msra.mxu0 %v5323
    %7270 = vmatprep.subr.mxu0 %v5321
    %7271 = vmatpush1.msra.mxu0 %v5319
    %7272 = vmatprep.subr.mxu0 %v5315
    %7273 = vmatpush1.msra.mxu0 %v5313
    %7274 = vmatprep.subr.mxu0 %v5311
    %7275 = vmatpush1.msra.mxu0 %v5309
    %7276 = vmatprep.subr.mxu0 %v5305
    %7277 = vmatpush1.msra.mxu0 %v5303
    %7278 = vmatprep.subr.mxu0 %v5301
    %7279 = vmatpush1.msra.mxu0 %v5299
    %7280 = vmatprep.subr.mxu0 %v5295
    %7281 = vmatpush1.msra.mxu0 %v5293
    %7282 = vmatprep.subr.mxu0 %v5291
    %7283 = vmatpush1.msra.mxu0 %v5289
    %7284 = vmatprep.subr.mxu0 %v5285
    %7285 = vmatpush1.msra.mxu0 %v5283
    %7286 = vmatprep.subr.mxu0 %v5281
    %7287 = vmatpush1.msra.mxu0 %v5279
    %7288 = vmatprep.subr.mxu0 %v5275
    %7289 = vmatpush1.msra.mxu0 %v5273
    %7290 = vmatprep.subr.mxu0 %v5271
    %7291 = vmatpush1.msra.mxu0 %v5269
    %7292 = vmatprep.subr.mxu0 %v5265
    %7293 = vmatpush1.msra.mxu0 %v5263
    %7294 = vmatprep.subr.mxu0 %v5261
    %7295 = vmatpush1.msra.mxu0 %v5259
    %7296 = vmatprep.subr.mxu0 %v5255
    %7297 = vmatpush1.msra.mxu0 %v5253
    %7298 = vmatprep.subr.mxu0 %v5251
    %7299 = vmatpush1.msra.mxu0 %v5249
    %7300 = vmatprep.subr.mxu0 0.0
    %7301 = vmatpush2.msra.mxu0 0.0
    %7302 = vmatprep.subr.mxu0 0.0
    %7303 = vmatpush2.msra.mxu0 0.0
    %7304 = vmatprep.subr.mxu0 0.0
    %7305 = vmatpush2.msra.mxu0 0.0
    %7306 = vmatprep.subr.mxu0 0.0
    %7307 = vmatpush2.msra.mxu0 0.0
    %7308 = vmatprep.subr.mxu0 0.0
    %7309 = vmatpush2.msra.mxu0 0.0
    %7310 = vmatprep.subr.mxu0 0.0
    %7311 = vmatpush2.msra.mxu0 0.0
    %7312 = vmatprep.subr.mxu0 0.0
    %7313 = vmatpush2.msra.mxu0 0.0
    %7314 = vmatprep.subr.mxu0 0.0
    %7315 = vmatpush2.msra.mxu0 0.0
    %7316 = vmatprep.subr.mxu0 0.0
    %7317 = vmatpush2.msra.mxu0 0.0
    %7318 = vmatprep.subr.mxu0 0.0
    %7319 = vmatpush2.msra.mxu0 0.0
    %7320 = vmatprep.subr.mxu0 0.0
    %7321 = vmatpush2.msra.mxu0 0.0
    %7322 = vmatprep.subr.mxu0 0.0
    %7323 = vmatpush2.msra.mxu0 0.0
    %7324 = vmatprep.subr.mxu0 0.0
    %7325 = vmatpush2.msra.mxu0 0.0
    %7326 = vmatprep.subr.mxu0 0.0
    %7327 = vmatpush2.msra.mxu0 0.0
    %7328 = vmatprep.subr.mxu0 0.0
    %7329 = vmatpush2.msra.mxu0 0.0
    %7330 = vmatprep.subr.mxu0 %v5331
    %7331 = vmatpush2.msra.mxu0 %v5329
    %7332 = vmatprep.mubr.f32.mxu0 %v6639
    %7333 = vmatmul.mubr.f32.gmra.mxu0 %v5362
    %v7334 = vpop.f32.mrf.mxu0
    %v7335 = vadd.f32 %v7264, %v7334
    %v7336 = vpop.f32.mrf.mxu0
    %v7337 = vadd.f32 %v7266, %v7336
    %7338 = vdwg.mxu0
    %v7339 = vmul.f32 %v7051, 0.0051020407
    %v7340 = vmul.f32 %v7053, 0.0051020407
    %v7341 = vmul.f32 %v7193, 0.0051020407
    %v7342 = vmul.f32 %v7195, 0.0051020407
    %v7343 = vmul.f32 %v7335, 0.0051020407
    %v7344 = vmul.f32 %v7337, 0.0051020407
    %v7346 = vlaneseq
    %v7347 = vshrl.u32 %v7346, 7
    %v7348 = vsub.s32 0, %v7347
    %v7349 = vrot.slane %v189, %v7348
    %v7350 = vlaneseq
    %v7351 = vshrl.u32 %v7350, 7
    %v7352 = vsub.s32 1, %v7351
    %v7353 = vrot.slane %v189, %v7352
    %v7354 = vlaneseq
    %v7355 = vshrl.u32 %v7354, 7
    %v7356 = vsub.s32 2, %v7355
    %v7357 = vrot.slane %v189, %v7356
    %v7358 = vlaneseq
    %v7359 = vshrl.u32 %v7358, 7
    %v7360 = vsub.s32 3, %v7359
    %v7361 = vrot.slane %v189, %v7360
    %v7362 = vlaneseq
    %v7363 = vshrl.u32 %v7362, 7
    %v7364 = vsub.s32 4, %v7363
    %v7365 = vrot.slane %v189, %v7364
    %v7366 = vlaneseq
    %v7367 = vshrl.u32 %v7366, 7
    %v7368 = vsub.s32 5, %v7367
    %v7369 = vrot.slane %v189, %v7368
    %v7376 = vadd.f32 %v7339, %v7349
    %v7377 = vadd.f32 %v7340, %v7353
    %v7378 = vadd.f32 %v7341, %v7357
    %v7379 = vadd.f32 %v7342, %v7361
    %v7380 = vadd.f32 %v7343, %v7365
    %v7381 = vadd.f32 %v7344, %v7369
    %v7382 = vmul.f32 %v5360, %v6891
    %v7383 = vmul.f32 %v5361, %v6905
    %v7384 = vmul.f32 %v5362, %v6901
    %v7385 = vmul.f32 %v5363, %v6899
    %v7386 = vmul.f32 %v6912, %v7349
    %v7387 = vmul.f32 %v6912, %v7353
    %v7388 = vmul.f32 %v6912, %v7357
    %v7389 = vmul.f32 %v6912, %v7361
    %v7390 = vmul.f32 %v6912, %v7365
    %v7391 = vmul.f32 %v6912, %v7369
    %v7393 = vsel %vm6637, %v7385, 0
    %7395 = vmatprep.subr.mxu0 %v3479
    %7396 = vmatpush1.msra.mxu0 %v3477
    %7397 = vmatprep.subr.mxu0 %v3475
    %7398 = vmatpush1.msra.mxu0 %v3473
    %7399 = vmatprep.subr.mxu0 %v3469
    %7400 = vmatpush1.msra.mxu0 %v3467
    %7401 = vmatprep.subr.mxu0 %v3465
    %7402 = vmatpush1.msra.mxu0 %v3463
    %7403 = vmatprep.subr.mxu0 %v3459
    %7404 = vmatpush1.msra.mxu0 %v3457
    %7405 = vmatprep.subr.mxu0 %v3455
    %7406 = vmatpush1.msra.mxu0 %v3453
    %7407 = vmatprep.subr.mxu0 %v3449
    %7408 = vmatpush1.msra.mxu0 %v3447
    %7409 = vmatprep.subr.mxu0 %v3445
    %7410 = vmatpush1.msra.mxu0 %v3443
    %7411 = vmatprep.subr.mxu0 %v3439
    %7412 = vmatpush1.msra.mxu0 %v3437
    %7413 = vmatprep.subr.mxu0 %v3435
    %7414 = vmatpush1.msra.mxu0 %v3433
    %7415 = vmatprep.subr.mxu0 %v3429
    %7416 = vmatpush1.msra.mxu0 %v3427
    %7417 = vmatprep.subr.mxu0 %v3425
    %7418 = vmatpush1.msra.mxu0 %v3423
    %7419 = vmatprep.subr.mxu0 %v3419
    %7420 = vmatpush1.msra.mxu0 %v3417
    %7421 = vmatprep.subr.mxu0 %v3415
    %7422 = vmatpush1.msra.mxu0 %v3413
    %7423 = vmatprep.subr.mxu0 %v3409
    %7424 = vmatpush1.msra.mxu0 %v3407
    %7425 = vmatprep.subr.mxu0 %v3405
    %7426 = vmatpush1.msra.mxu0 %v3403
    %7427 = vmatprep.subr.mxu0 %v3559
    %7428 = vmatpush2.msra.mxu0 %v3557
    %7429 = vmatprep.subr.mxu0 %v3555
    %7430 = vmatpush2.msra.mxu0 %v3553
    %7431 = vmatprep.subr.mxu0 %v3549
    %7432 = vmatpush2.msra.mxu0 %v3547
    %7433 = vmatprep.subr.mxu0 %v3545
    %7434 = vmatpush2.msra.mxu0 %v3543
    %7435 = vmatprep.subr.mxu0 %v3539
    %7436 = vmatpush2.msra.mxu0 %v3537
    %7437 = vmatprep.subr.mxu0 %v3535
    %7438 = vmatpush2.msra.mxu0 %v3533
    %7439 = vmatprep.subr.mxu0 %v3529
    %7440 = vmatpush2.msra.mxu0 %v3527
    %7441 = vmatprep.subr.mxu0 %v3525
    %7442 = vmatpush2.msra.mxu0 %v3523
    %7443 = vmatprep.subr.mxu0 %v3519
    %7444 = vmatpush2.msra.mxu0 %v3517
    %7445 = vmatprep.subr.mxu0 %v3515
    %7446 = vmatpush2.msra.mxu0 %v3513
    %7447 = vmatprep.subr.mxu0 %v3509
    %7448 = vmatpush2.msra.mxu0 %v3507
    %7449 = vmatprep.subr.mxu0 %v3505
    %7450 = vmatpush2.msra.mxu0 %v3503
    %7451 = vmatprep.subr.mxu0 %v3499
    %7452 = vmatpush2.msra.mxu0 %v3497
    %7453 = vmatprep.subr.mxu0 %v3495
    %7454 = vmatpush2.msra.mxu0 %v3493
    %7455 = vmatprep.subr.mxu0 %v3489
    %7456 = vmatpush2.msra.mxu0 %v3487
    %7457 = vmatprep.subr.mxu0 %v3485
    %7458 = vmatpush2.msra.mxu0 %v3483
    %7459 = vmatprep.mubr.f32.mxu0 %v7383
    %7460 = vmatmul.mubr.f32.gmra.mxu0 %v7382
    %v7461 = vpop.f32.mrf.mxu0
    %v7462 = vadd.f32 %v7386, %v7461
    %v7463 = vpop.f32.mrf.mxu0
    %v7464 = vadd.f32 %v7387, %v7463
    %7465 = vdwg.mxu0
    %7466 = vmatprep.subr.mxu0 %v3639
    %7467 = vmatpush1.msra.mxu0 %v3637
    %7468 = vmatprep.subr.mxu0 %v3635
    %7469 = vmatpush1.msra.mxu0 %v3633
    %7470 = vmatprep.subr.mxu0 %v3629
    %7471 = vmatpush1.msra.mxu0 %v3627
    %7472 = vmatprep.subr.mxu0 %v3625
    %7473 = vmatpush1.msra.mxu0 %v3623
    %7474 = vmatprep.subr.mxu0 %v3619
    %7475 = vmatpush1.msra.mxu0 %v3617
    %7476 = vmatprep.subr.mxu0 %v3615
    %7477 = vmatpush1.msra.mxu0 %v3613
    %7478 = vmatprep.subr.mxu0 %v3609
    %7479 = vmatpush1.msra.mxu0 %v3607
    %7480 = vmatprep.subr.mxu0 %v3605
    %7481 = vmatpush1.msra.mxu0 %v3603
    %7482 = vmatprep.subr.mxu0 %v3599
    %7483 = vmatpush1.msra.mxu0 %v3597
    %7484 = vmatprep.subr.mxu0 %v3595
    %7485 = vmatpush1.msra.mxu0 %v3593
    %7486 = vmatprep.subr.mxu0 %v3589
    %7487 = vmatpush1.msra.mxu0 %v3587
    %7488 = vmatprep.subr.mxu0 %v3585
    %7489 = vmatpush1.msra.mxu0 %v3583
    %7490 = vmatprep.subr.mxu0 %v3579
    %7491 = vmatpush1.msra.mxu0 %v3577
    %7492 = vmatprep.subr.mxu0 %v3575
    %7493 = vmatpush1.msra.mxu0 %v3573
    %7494 = vmatprep.subr.mxu0 %v3569
    %7495 = vmatpush1.msra.mxu0 %v3567
    %7496 = vmatprep.subr.mxu0 %v3565
    %7497 = vmatpush1.msra.mxu0 %v3563
    %7498 = vmatprep.subr.mxu0 0.0
    %7499 = vmatpush2.msra.mxu0 0.0
    %7500 = vmatprep.subr.mxu0 0.0
    %7501 = vmatpush2.msra.mxu0 0.0
    %7502 = vmatprep.subr.mxu0 0.0
    %7503 = vmatpush2.msra.mxu0 0.0
    %7504 = vmatprep.subr.mxu0 0.0
    %7505 = vmatpush2.msra.mxu0 0.0
    %7506 = vmatprep.subr.mxu0 0.0
    %7507 = vmatpush2.msra.mxu0 0.0
    %7508 = vmatprep.subr.mxu0 0.0
    %7509 = vmatpush2.msra.mxu0 0.0
    %7510 = vmatprep.subr.mxu0 0.0
    %7511 = vmatpush2.msra.mxu0 0.0
    %7512 = vmatprep.subr.mxu0 0.0
    %7513 = vmatpush2.msra.mxu0 0.0
    %7514 = vmatprep.subr.mxu0 0.0
    %7515 = vmatpush2.msra.mxu0 0.0
    %7516 = vmatprep.subr.mxu0 0.0
    %7517 = vmatpush2.msra.mxu0 0.0
    %7518 = vmatprep.subr.mxu0 0.0
    %7519 = vmatpush2.msra.mxu0 0.0
    %7520 = vmatprep.subr.mxu0 0.0
    %7521 = vmatpush2.msra.mxu0 0.0
    %7522 = vmatprep.subr.mxu0 0.0
    %7523 = vmatpush2.msra.mxu0 0.0
    %7524 = vmatprep.subr.mxu0 0.0
    %7525 = vmatpush2.msra.mxu0 0.0
    %7526 = vmatprep.subr.mxu0 0.0
    %7527 = vmatpush2.msra.mxu0 0.0
    %7528 = vmatprep.subr.mxu0 %v3645
    %7529 = vmatpush2.msra.mxu0 %v3643
    %7530 = vmatprep.mubr.f32.mxu0 %v7393
    %7531 = vmatmul.mubr.f32.gmra.mxu0 %v7384
    %v7532 = vpop.f32.mrf.mxu0
    %v7533 = vadd.f32 %v7462, %v7532
    %v7534 = vpop.f32.mrf.mxu0
    %v7535 = vadd.f32 %v7464, %v7534
    %7536 = vdwg.mxu0
    %7537 = vmatprep.subr.mxu0 %v4322
    %7538 = vmatpush1.msra.mxu0 %v4320
    %7539 = vmatprep.subr.mxu0 %v4318
    %7540 = vmatpush1.msra.mxu0 %v4316
    %7541 = vmatprep.subr.mxu0 %v4312
    %7542 = vmatpush1.msra.mxu0 %v4310
    %7543 = vmatprep.subr.mxu0 %v4308
    %7544 = vmatpush1.msra.mxu0 %v4306
    %7545 = vmatprep.subr.mxu0 %v4302
    %7546 = vmatpush1.msra.mxu0 %v4300
    %7547 = vmatprep.subr.mxu0 %v4298
    %7548 = vmatpush1.msra.mxu0 %v4296
    %7549 = vmatprep.subr.mxu0 %v4292
    %7550 = vmatpush1.msra.mxu0 %v4290
    %7551 = vmatprep.subr.mxu0 %v4288
    %7552 = vmatpush1.msra.mxu0 %v4286
    %7553 = vmatprep.subr.mxu0 %v4282
    %7554 = vmatpush1.msra.mxu0 %v4280
    %7555 = vmatprep.subr.mxu0 %v4278
    %7556 = vmatpush1.msra.mxu0 %v4276
    %7557 = vmatprep.subr.mxu0 %v4272
    %7558 = vmatpush1.msra.mxu0 %v4270
    %7559 = vmatprep.subr.mxu0 %v4268
    %7560 = vmatpush1.msra.mxu0 %v4266
    %7561 = vmatprep.subr.mxu0 %v4262
    %7562 = vmatpush1.msra.mxu0 %v4260
    %7563 = vmatprep.subr.mxu0 %v4258
    %7564 = vmatpush1.msra.mxu0 %v4256
    %7565 = vmatprep.subr.mxu0 %v4252
    %7566 = vmatpush1.msra.mxu0 %v4250
    %7567 = vmatprep.subr.mxu0 %v4248
    %7568 = vmatpush1.msra.mxu0 %v4246
    %7569 = vmatprep.subr.mxu0 %v4402
    %7570 = vmatpush2.msra.mxu0 %v4400
    %7571 = vmatprep.subr.mxu0 %v4398
    %7572 = vmatpush2.msra.mxu0 %v4396
    %7573 = vmatprep.subr.mxu0 %v4392
    %7574 = vmatpush2.msra.mxu0 %v4390
    %7575 = vmatprep.subr.mxu0 %v4388
    %7576 = vmatpush2.msra.mxu0 %v4386
    %7577 = vmatprep.subr.mxu0 %v4382
    %7578 = vmatpush2.msra.mxu0 %v4380
    %7579 = vmatprep.subr.mxu0 %v4378
    %7580 = vmatpush2.msra.mxu0 %v4376
    %7581 = vmatprep.subr.mxu0 %v4372
    %7582 = vmatpush2.msra.mxu0 %v4370
    %7583 = vmatprep.subr.mxu0 %v4368
    %7584 = vmatpush2.msra.mxu0 %v4366
    %7585 = vmatprep.subr.mxu0 %v4362
    %7586 = vmatpush2.msra.mxu0 %v4360
    %7587 = vmatprep.subr.mxu0 %v4358
    %7588 = vmatpush2.msra.mxu0 %v4356
    %7589 = vmatprep.subr.mxu0 %v4352
    %7590 = vmatpush2.msra.mxu0 %v4350
    %7591 = vmatprep.subr.mxu0 %v4348
    %7592 = vmatpush2.msra.mxu0 %v4346
    %7593 = vmatprep.subr.mxu0 %v4342
    %7594 = vmatpush2.msra.mxu0 %v4340
    %7595 = vmatprep.subr.mxu0 %v4338
    %7596 = vmatpush2.msra.mxu0 %v4336
    %7597 = vmatprep.subr.mxu0 %v4332
    %7598 = vmatpush2.msra.mxu0 %v4330
    %7599 = vmatprep.subr.mxu0 %v4328
    %7600 = vmatpush2.msra.mxu0 %v4326
    %7601 = vmatprep.mubr.f32.mxu0 %v7383
    %7602 = vmatmul.mubr.f32.gmra.mxu0 %v7382
    %v7603 = vpop.f32.mrf.mxu0
    %v7604 = vadd.f32 %v7388, %v7603
    %v7605 = vpop.f32.mrf.mxu0
    %v7606 = vadd.f32 %v7389, %v7605
    %7607 = vdwg.mxu0
    %7608 = vmatprep.subr.mxu0 %v4482
    %7609 = vmatpush1.msra.mxu0 %v4480
    %7610 = vmatprep.subr.mxu0 %v4478
    %7611 = vmatpush1.msra.mxu0 %v4476
    %7612 = vmatprep.subr.mxu0 %v4472
    %7613 = vmatpush1.msra.mxu0 %v4470
    %7614 = vmatprep.subr.mxu0 %v4468
    %7615 = vmatpush1.msra.mxu0 %v4466
    %7616 = vmatprep.subr.mxu0 %v4462
    %7617 = vmatpush1.msra.mxu0 %v4460
    %7618 = vmatprep.subr.mxu0 %v4458
    %7619 = vmatpush1.msra.mxu0 %v4456
    %7620 = vmatprep.subr.mxu0 %v4452
    %7621 = vmatpush1.msra.mxu0 %v4450
    %7622 = vmatprep.subr.mxu0 %v4448
    %7623 = vmatpush1.msra.mxu0 %v4446
    %7624 = vmatprep.subr.mxu0 %v4442
    %7625 = vmatpush1.msra.mxu0 %v4440
    %7626 = vmatprep.subr.mxu0 %v4438
    %7627 = vmatpush1.msra.mxu0 %v4436
    %7628 = vmatprep.subr.mxu0 %v4432
    %7629 = vmatpush1.msra.mxu0 %v4430
    %7630 = vmatprep.subr.mxu0 %v4428
    %7631 = vmatpush1.msra.mxu0 %v4426
    %7632 = vmatprep.subr.mxu0 %v4422
    %7633 = vmatpush1.msra.mxu0 %v4420
    %7634 = vmatprep.subr.mxu0 %v4418
    %7635 = vmatpush1.msra.mxu0 %v4416
    %7636 = vmatprep.subr.mxu0 %v4412
    %7637 = vmatpush1.msra.mxu0 %v4410
    %7638 = vmatprep.subr.mxu0 %v4408
    %7639 = vmatpush1.msra.mxu0 %v4406
    %7640 = vmatprep.subr.mxu0 0.0
    %7641 = vmatpush2.msra.mxu0 0.0
    %7642 = vmatprep.subr.mxu0 0.0
    %7643 = vmatpush2.msra.mxu0 0.0
    %7644 = vmatprep.subr.mxu0 0.0
    %7645 = vmatpush2.msra.mxu0 0.0
    %7646 = vmatprep.subr.mxu0 0.0
    %7647 = vmatpush2.msra.mxu0 0.0
    %7648 = vmatprep.subr.mxu0 0.0
    %7649 = vmatpush2.msra.mxu0 0.0
    %7650 = vmatprep.subr.mxu0 0.0
    %7651 = vmatpush2.msra.mxu0 0.0
    %7652 = vmatprep.subr.mxu0 0.0
    %7653 = vmatpush2.msra.mxu0 0.0
    %7654 = vmatprep.subr.mxu0 0.0
    %7655 = vmatpush2.msra.mxu0 0.0
    %7656 = vmatprep.subr.mxu0 0.0
    %7657 = vmatpush2.msra.mxu0 0.0
    %7658 = vmatprep.subr.mxu0 0.0
    %7659 = vmatpush2.msra.mxu0 0.0
    %7660 = vmatprep.subr.mxu0 0.0
    %7661 = vmatpush2.msra.mxu0 0.0
    %7662 = vmatprep.subr.mxu0 0.0
    %7663 = vmatpush2.msra.mxu0 0.0
    %7664 = vmatprep.subr.mxu0 0.0
    %7665 = vmatpush2.msra.mxu0 0.0
    %7666 = vmatprep.subr.mxu0 0.0
    %7667 = vmatpush2.msra.mxu0 0.0
    %7668 = vmatprep.subr.mxu0 0.0
    %7669 = vmatpush2.msra.mxu0 0.0
    %7670 = vmatprep.subr.mxu0 %v4488
    %7671 = vmatpush2.msra.mxu0 %v4486
    %7672 = vmatprep.mubr.f32.mxu0 %v7393
    %7673 = vmatmul.mubr.f32.gmra.mxu0 %v7384
    %v7674 = vpop.f32.mrf.mxu0
    %v7675 = vadd.f32 %v7604, %v7674
    %v7676 = vpop.f32.mrf.mxu0
    %v7677 = vadd.f32 %v7606, %v7676
    %7678 = vdwg.mxu0
    %7679 = vmatprep.subr.mxu0 %v5165
    %7680 = vmatpush1.msra.mxu0 %v5163
    %7681 = vmatprep.subr.mxu0 %v5161
    %7682 = vmatpush1.msra.mxu0 %v5159
    %7683 = vmatprep.subr.mxu0 %v5155
    %7684 = vmatpush1.msra.mxu0 %v5153
    %7685 = vmatprep.subr.mxu0 %v5151
    %7686 = vmatpush1.msra.mxu0 %v5149
    %7687 = vmatprep.subr.mxu0 %v5145
    %7688 = vmatpush1.msra.mxu0 %v5143
    %7689 = vmatprep.subr.mxu0 %v5141
    %7690 = vmatpush1.msra.mxu0 %v5139
    %7691 = vmatprep.subr.mxu0 %v5135
    %7692 = vmatpush1.msra.mxu0 %v5133
    %7693 = vmatprep.subr.mxu0 %v5131
    %7694 = vmatpush1.msra.mxu0 %v5129
    %7695 = vmatprep.subr.mxu0 %v5125
    %7696 = vmatpush1.msra.mxu0 %v5123
    %7697 = vmatprep.subr.mxu0 %v5121
    %7698 = vmatpush1.msra.mxu0 %v5119
    %7699 = vmatprep.subr.mxu0 %v5115
    %7700 = vmatpush1.msra.mxu0 %v5113
    %7701 = vmatprep.subr.mxu0 %v5111
    %7702 = vmatpush1.msra.mxu0 %v5109
    %7703 = vmatprep.subr.mxu0 %v5105
    %7704 = vmatpush1.msra.mxu0 %v5103
    %7705 = vmatprep.subr.mxu0 %v5101
    %7706 = vmatpush1.msra.mxu0 %v5099
    %7707 = vmatprep.subr.mxu0 %v5095
    %7708 = vmatpush1.msra.mxu0 %v5093
    %7709 = vmatprep.subr.mxu0 %v5091
    %7710 = vmatpush1.msra.mxu0 %v5089
    %7711 = vmatprep.subr.mxu0 %v5245
    %7712 = vmatpush2.msra.mxu0 %v5243
    %7713 = vmatprep.subr.mxu0 %v5241
    %7714 = vmatpush2.msra.mxu0 %v5239
    %7715 = vmatprep.subr.mxu0 %v5235
    %7716 = vmatpush2.msra.mxu0 %v5233
    %7717 = vmatprep.subr.mxu0 %v5231
    %7718 = vmatpush2.msra.mxu0 %v5229
    %7719 = vmatprep.subr.mxu0 %v5225
    %7720 = vmatpush2.msra.mxu0 %v5223
    %7721 = vmatprep.subr.mxu0 %v5221
    %7722 = vmatpush2.msra.mxu0 %v5219
    %7723 = vmatprep.subr.mxu0 %v5215
    %7724 = vmatpush2.msra.mxu0 %v5213
    %7725 = vmatprep.subr.mxu0 %v5211
    %7726 = vmatpush2.msra.mxu0 %v5209
    %7727 = vmatprep.subr.mxu0 %v5205
    %7728 = vmatpush2.msra.mxu0 %v5203
    %7729 = vmatprep.subr.mxu0 %v5201
    %7730 = vmatpush2.msra.mxu0 %v5199
    %7731 = vmatprep.subr.mxu0 %v5195
    %7732 = vmatpush2.msra.mxu0 %v5193
    %7733 = vmatprep.subr.mxu0 %v5191
    %7734 = vmatpush2.msra.mxu0 %v5189
    %7735 = vmatprep.subr.mxu0 %v5185
    %7736 = vmatpush2.msra.mxu0 %v5183
    %7737 = vmatprep.subr.mxu0 %v5181
    %7738 = vmatpush2.msra.mxu0 %v5179
    %7739 = vmatprep.subr.mxu0 %v5175
    %7740 = vmatpush2.msra.mxu0 %v5173
    %7741 = vmatprep.subr.mxu0 %v5171
    %7742 = vmatpush2.msra.mxu0 %v5169
    %7743 = vmatprep.mubr.f32.mxu0 %v7383
    %7744 = vmatmul.mubr.f32.gmra.mxu0 %v7382
    %v7745 = vpop.f32.mrf.mxu0
    %v7746 = vadd.f32 %v7390, %v7745
    %v7747 = vpop.f32.mrf.mxu0
    %v7748 = vadd.f32 %v7391, %v7747
    %7749 = vdwg.mxu0
    %7750 = vmatprep.subr.mxu0 %v5325
    %7751 = vmatpush1.msra.mxu0 %v5323
    %7752 = vmatprep.subr.mxu0 %v5321
    %7753 = vmatpush1.msra.mxu0 %v5319
    %7754 = vmatprep.subr.mxu0 %v5315
    %7755 = vmatpush1.msra.mxu0 %v5313
    %7756 = vmatprep.subr.mxu0 %v5311
    %7757 = vmatpush1.msra.mxu0 %v5309
    %7758 = vmatprep.subr.mxu0 %v5305
    %7759 = vmatpush1.msra.mxu0 %v5303
    %7760 = vmatprep.subr.mxu0 %v5301
    %7761 = vmatpush1.msra.mxu0 %v5299
    %7762 = vmatprep.subr.mxu0 %v5295
    %7763 = vmatpush1.msra.mxu0 %v5293
    %7764 = vmatprep.subr.mxu0 %v5291
    %7765 = vmatpush1.msra.mxu0 %v5289
    %7766 = vmatprep.subr.mxu0 %v5285
    %7767 = vmatpush1.msra.mxu0 %v5283
    %7768 = vmatprep.subr.mxu0 %v5281
    %7769 = vmatpush1.msra.mxu0 %v5279
    %7770 = vmatprep.subr.mxu0 %v5275
    %7771 = vmatpush1.msra.mxu0 %v5273
    %7772 = vmatprep.subr.mxu0 %v5271
    %7773 = vmatpush1.msra.mxu0 %v5269
    %7774 = vmatprep.subr.mxu0 %v5265
    %7775 = vmatpush1.msra.mxu0 %v5263
    %7776 = vmatprep.subr.mxu0 %v5261
    %7777 = vmatpush1.msra.mxu0 %v5259
    %7778 = vmatprep.subr.mxu0 %v5255
    %7779 = vmatpush1.msra.mxu0 %v5253
    %7780 = vmatprep.subr.mxu0 %v5251
    %7781 = vmatpush1.msra.mxu0 %v5249
    %7782 = vmatprep.subr.mxu0 0.0
    %7783 = vmatpush2.msra.mxu0 0.0
    %7784 = vmatprep.subr.mxu0 0.0
    %7785 = vmatpush2.msra.mxu0 0.0
    %7786 = vmatprep.subr.mxu0 0.0
    %7787 = vmatpush2.msra.mxu0 0.0
    %7788 = vmatprep.subr.mxu0 0.0
    %7789 = vmatpush2.msra.mxu0 0.0
    %7790 = vmatprep.subr.mxu0 0.0
    %7791 = vmatpush2.msra.mxu0 0.0
    %7792 = vmatprep.subr.mxu0 0.0
    %7793 = vmatpush2.msra.mxu0 0.0
    %7794 = vmatprep.subr.mxu0 0.0
    %7795 = vmatpush2.msra.mxu0 0.0
    %7796 = vmatprep.subr.mxu0 0.0
    %7797 = vmatpush2.msra.mxu0 0.0
    %7798 = vmatprep.subr.mxu0 0.0
    %7799 = vmatpush2.msra.mxu0 0.0
    %7800 = vmatprep.subr.mxu0 0.0
    %7801 = vmatpush2.msra.mxu0 0.0
    %7802 = vmatprep.subr.mxu0 0.0
    %7803 = vmatpush2.msra.mxu0 0.0
    %7804 = vmatprep.subr.mxu0 0.0
    %7805 = vmatpush2.msra.mxu0 0.0
    %7806 = vmatprep.subr.mxu0 0.0
    %7807 = vmatpush2.msra.mxu0 0.0
    %7808 = vmatprep.subr.mxu0 0.0
    %7809 = vmatpush2.msra.mxu0 0.0
    %7810 = vmatprep.subr.mxu0 0.0
    %7811 = vmatpush2.msra.mxu0 0.0
    %7812 = vmatprep.subr.mxu0 %v5331
    %7813 = vmatpush2.msra.mxu0 %v5329
    %7814 = vmatprep.mubr.f32.mxu0 %v7393
    %7815 = vmatmul.mubr.f32.gmra.mxu0 %v7384
    %v7816 = vpop.f32.mrf.mxu0
    %v7817 = vadd.f32 %v7746, %v7816
    %v7818 = vpop.f32.mrf.mxu0
    %v7819 = vadd.f32 %v7748, %v7818
    %7820 = vdwg.mxu0
    %v7821 = vld [vmem:[%s7] sm:$0xff]
    %v7822 = vld [vmem:[%s7 + $0x8] sm:$0xff]
    %v7823 = vld [vmem:[%s7 + $0x10] sm:$0xff]
    %v7824 = vld [vmem:[%s7 + $0x18] sm:$0xff]
    %v7825 = vld [vmem:[%s7 + $0x20] sm:$0xff]
    %v7826 = vld [vmem:[%s7 + $0x28] sm:$0xff]
    %v7827 = vld [vmem:[%s7 + $0x30] sm:$0xff]
    %v7828 = vld [vmem:[%s7 + $0x38] sm:$0xff]
    %v7829 = vld [vmem:[%s7 + $0x40] sm:$0xff]
    %v7830 = vld [vmem:[%s7 + $0x48] sm:$0xff]
    %v7831 = vld [vmem:[%s7 + $0x50] sm:$0xff]
    %v7832 = vld [vmem:[%s7 + $0x58] sm:$0xff]
    %v7833 = vld [vmem:[%s7 + $0x60] sm:$0xff]
    %v7834 = vld [vmem:[%s7 + $0x68] sm:$0xff]
    %v7835 = vld [vmem:[%s7 + $0x70] sm:$0xff]
    %v7836 = vld [vmem:[%s7 + $0x78] sm:$0xff]
    %v7837 = vld [vmem:[%s7 + $0x80] sm:$0xff]
    %v7838 = vld [vmem:[%s7 + $0x88] sm:$0xff]
    %v7839 = vld [vmem:[%s7 + $0x90] sm:$0xff]
    %v7840 = vld [vmem:[%s7 + $0x98] sm:$0xff]
    %v7841 = vld [vmem:[%s7 + $0xa0] sm:$0xff]
    %v7842 = vld [vmem:[%s7 + $0xa8] sm:$0xff]
    %v7843 = vld [vmem:[%s7 + $0xb0] sm:$0xff]
    %v7844 = vld [vmem:[%s7 + $0xb8] sm:$0xff]
    %v7845 = vld [vmem:[%s7 + $0xc0] sm:$0xff]
    %v7846 = vld [vmem:[%s7 + $0xc8] sm:$0xff]
    %v7847 = vld [vmem:[%s7 + $0xd0] sm:$0xff]
    %v7848 = vld [vmem:[%s7 + $0xd8] sm:$0xff]
    %v7849 = vld [vmem:[%s7 + $0xe0] sm:$0xff]
    %v7850 = vld [vmem:[%s7 + $0xe8] sm:$0xff]
    %v7851 = vld [vmem:[%s7 + $0xf0] sm:$0xff]
    %v7852 = vld [vmem:[%s7 + $0xf8] sm:$0xff]
    %v7853 = vld [vmem:[%s7 + $0x100] sm:$0xff]
    %v7854 = vld [vmem:[%s7 + $0x108] sm:$0xff]
    %v7855 = vld [vmem:[%s7 + $0x110] sm:$0xff]
    %v7856 = vld [vmem:[%s7 + $0x118] sm:$0xff]
    %v7857 = vld [vmem:[%s7 + $0x120] sm:$0xff]
    %v7858 = vld [vmem:[%s7 + $0x128] sm:$0xff]
    %v7859 = vld [vmem:[%s7 + $0x130] sm:$0xff]
    %v7860 = vld [vmem:[%s7 + $0x138] sm:$0xff]
    %v7861 = vld [vmem:[%s7 + $0x140] sm:$0xff]
    %v7862 = vld [vmem:[%s7 + $0x148] sm:$0xff]
    %v7863 = vld [vmem:[%s7 + $0x150] sm:$0xff]
    %v7864 = vld [vmem:[%s7 + $0x158] sm:$0xff]
    %v7865 = vld [vmem:[%s7 + $0x160] sm:$0xff]
    %v7866 = vld [vmem:[%s7 + $0x168] sm:$0xff]
    %v7867 = vld [vmem:[%s7 + $0x170] sm:$0xff]
    %v7868 = vld [vmem:[%s7 + $0x178] sm:$0xff]
    %v7869 = vld [vmem:[%s7 + $0x180] sm:$0xff]
    %v7870 = vld [vmem:[%s7 + $0x188] sm:$0xff]
    %v7871 = vld [vmem:[%s7 + $0x190] sm:$0xff]
    %v7872 = vld [vmem:[%s7 + $0x198] sm:$0xff]
    %v7873 = vld [vmem:[%s7 + $0x1a0] sm:$0xff]
    %v7874 = vld [vmem:[%s7 + $0x1a8] sm:$0xff]
    %v7875 = vld [vmem:[%s7 + $0x1b0] sm:$0xff]
    %v7876 = vld [vmem:[%s7 + $0x1b8] sm:$0xff]
    %v7877 = vld [vmem:[%s7 + $0x1c0] sm:$0xff]
    %v7878 = vld [vmem:[%s7 + $0x1c8] sm:$0xff]
    %v7879 = vld [vmem:[%s7 + $0x1d0] sm:$0xff]
    %v7880 = vld [vmem:[%s7 + $0x1d8] sm:$0xff]
    %v7881 = vld [vmem:[%s7 + $0x1e0] sm:$0xff]
    %v7882 = vld [vmem:[%s7 + $0x1e8] sm:$0xff]
    %v7883 = vld [vmem:[%s7 + $0x1f0] sm:$0xff]
    %v7884 = vld [vmem:[%s7 + $0x1f8] sm:$0xff]
    %v7885 = vld [vmem:[%s7 + $0x200] sm:$0xff]
    %v7886 = vld [vmem:[%s7 + $0x208] sm:$0xff]
    %v7887 = vld [vmem:[%s7 + $0x210] sm:$0xff]
    %v7888 = vld [vmem:[%s7 + $0x218] sm:$0xff]
    %v7889 = vld [vmem:[%s7 + $0x220] sm:$0xff]
    %v7890 = vld [vmem:[%s7 + $0x228] sm:$0xff]
    %v7891 = vld [vmem:[%s7 + $0x230] sm:$0xff]
    %v7892 = vld [vmem:[%s7 + $0x238] sm:$0xff]
    %v7893 = vld [vmem:[%s7 + $0x240] sm:$0xff]
    %v7894 = vld [vmem:[%s7 + $0x248] sm:$0xff]
    %v7895 = vld [vmem:[%s7 + $0x250] sm:$0xff]
    %v7896 = vld [vmem:[%s7 + $0x258] sm:$0xff]
    %v7897 = vld [vmem:[%s7 + $0x260] sm:$0xff]
    %v7898 = vld [vmem:[%s7 + $0x268] sm:$0xff]
    %v7899 = vld [vmem:[%s7 + $0x270] sm:$0xff]
    %v7900 = vld [vmem:[%s7 + $0x278] sm:$0xff]
    %v7901 = vld [vmem:[%s7 + $0x280] sm:$0xff]
    %v7902 = vld [vmem:[%s7 + $0x288] sm:$0xff]
    %v7903 = vld [vmem:[%s7 + $0x290] sm:$0xff]
    %v7904 = vld [vmem:[%s7 + $0x298] sm:$0xff]
    %v7905 = vld [vmem:[%s7 + $0x2a0] sm:$0xff]
    %v7906 = vld [vmem:[%s7 + $0x2a8] sm:$0xff]
    %v7907 = vld [vmem:[%s7 + $0x2b0] sm:$0xff]
    %v7908 = vld [vmem:[%s7 + $0x2b8] sm:$0xff]
    %v7909 = vld [vmem:[%s7 + $0x2c0] sm:$0xff]
    %v7910 = vld [vmem:[%s7 + $0x2c8] sm:$0xff]
    %v7911 = vld [vmem:[%s7 + $0x2d0] sm:$0xff]
    %v7912 = vld [vmem:[%s7 + $0x2d8] sm:$0xff]
    %v7913 = vld [vmem:[%s7 + $0x2e0] sm:$0xff]
    %v7914 = vld [vmem:[%s7 + $0x2e8] sm:$0xff]
    %v7915 = vld [vmem:[%s7 + $0x2f0] sm:$0xff]
    %v7916 = vld [vmem:[%s7 + $0x2f8] sm:$0xff]
    %v7917 = vld [vmem:[#allocation13] sm:$0x1]
    %v7919 = vlaneseq
    %v7920 = vshrl.u32 %v7919, 7
    %v7921 = vsub.s32 0, %v7920
    %v7922 = vrot.slane %v7917, %v7921
    %7924 = vmatprep.subr.mxu0 0.0
    %7925 = vmatpush1.msra.mxu0 %v7836
    %7926 = vmatprep.subr.mxu0 0.0
    %7927 = vmatpush1.msra.mxu0 %v7835
    %7928 = vmatprep.subr.mxu0 0.0
    %7929 = vmatpush1.msra.mxu0 %v7834
    %7930 = vmatprep.subr.mxu0 0.0
    %7931 = vmatpush1.msra.mxu0 %v7833
    %7932 = vmatprep.subr.mxu0 0.0
    %7933 = vmatpush1.msra.mxu0 %v7832
    %7934 = vmatprep.subr.mxu0 0.0
    %7935 = vmatpush1.msra.mxu0 %v7831
    %7936 = vmatprep.subr.mxu0 0.0
    %7937 = vmatpush1.msra.mxu0 %v7830
    %7938 = vmatprep.subr.mxu0 0.0
    %7939 = vmatpush1.msra.mxu0 %v7829
    %7940 = vmatprep.subr.mxu0 0.0
    %7941 = vmatpush1.msra.mxu0 %v7828
    %7942 = vmatprep.subr.mxu0 0.0
    %7943 = vmatpush1.msra.mxu0 %v7827
    %7944 = vmatprep.subr.mxu0 0.0
    %7945 = vmatpush1.msra.mxu0 %v7826
    %7946 = vmatprep.subr.mxu0 0.0
    %7947 = vmatpush1.msra.mxu0 %v7825
    %7948 = vmatprep.subr.mxu0 0.0
    %7949 = vmatpush1.msra.mxu0 %v7824
    %7950 = vmatprep.subr.mxu0 0.0
    %7951 = vmatpush1.msra.mxu0 %v7823
    %7952 = vmatprep.subr.mxu0 0.0
    %7953 = vmatpush1.msra.mxu0 %v7822
    %7954 = vmatprep.subr.mxu0 0.0
    %7955 = vmatpush1.msra.mxu0 %v7821
    %7956 = vmatprep.subr.mxu0 0.0
    %7957 = vmatpush2.msra.mxu0 %v7852
    %7958 = vmatprep.subr.mxu0 0.0
    %7959 = vmatpush2.msra.mxu0 %v7851
    %7960 = vmatprep.subr.mxu0 0.0
    %7961 = vmatpush2.msra.mxu0 %v7850
    %7962 = vmatprep.subr.mxu0 0.0
    %7963 = vmatpush2.msra.mxu0 %v7849
    %7964 = vmatprep.subr.mxu0 0.0
    %7965 = vmatpush2.msra.mxu0 %v7848
    %7966 = vmatprep.subr.mxu0 0.0
    %7967 = vmatpush2.msra.mxu0 %v7847
    %7968 = vmatprep.subr.mxu0 0.0
    %7969 = vmatpush2.msra.mxu0 %v7846
    %7970 = vmatprep.subr.mxu0 0.0
    %7971 = vmatpush2.msra.mxu0 %v7845
    %7972 = vmatprep.subr.mxu0 0.0
    %7973 = vmatpush2.msra.mxu0 %v7844
    %7974 = vmatprep.subr.mxu0 0.0
    %7975 = vmatpush2.msra.mxu0 %v7843
    %7976 = vmatprep.subr.mxu0 0.0
    %7977 = vmatpush2.msra.mxu0 %v7842
    %7978 = vmatprep.subr.mxu0 0.0
    %7979 = vmatpush2.msra.mxu0 %v7841
    %7980 = vmatprep.subr.mxu0 0.0
    %7981 = vmatpush2.msra.mxu0 %v7840
    %7982 = vmatprep.subr.mxu0 0.0
    %7983 = vmatpush2.msra.mxu0 %v7839
    %7984 = vmatprep.subr.mxu0 0.0
    %7985 = vmatpush2.msra.mxu0 %v7838
    %7986 = vmatprep.subr.mxu0 0.0
    %7987 = vmatpush2.msra.mxu0 %v7837
    %7988 = vmatprep.mubr.f32.mxu0 %v7377
    %7989 = vmatmul.mubr.f32.gmra.mxu0 %v7376
    %v7990 = vpop.f32.mrf.mxu0
    %v7991 = vadd.f32 %v7922, %v7990
    %v7992 = vpop.f32.mrf.mxu0
    %7993 = vdwg.mxu0
    %7994 = vmatprep.subr.mxu0 0.0
    %7995 = vmatpush1.msra.mxu0 %v7868
    %7996 = vmatprep.subr.mxu0 0.0
    %7997 = vmatpush1.msra.mxu0 %v7867
    %7998 = vmatprep.subr.mxu0 0.0
    %7999 = vmatpush1.msra.mxu0 %v7866
    %8000 = vmatprep.subr.mxu0 0.0
    %8001 = vmatpush1.msra.mxu0 %v7865
    %8002 = vmatprep.subr.mxu0 0.0
    %8003 = vmatpush1.msra.mxu0 %v7864
    %8004 = vmatprep.subr.mxu0 0.0
    %8005 = vmatpush1.msra.mxu0 %v7863
    %8006 = vmatprep.subr.mxu0 0.0
    %8007 = vmatpush1.msra.mxu0 %v7862
    %8008 = vmatprep.subr.mxu0 0.0
    %8009 = vmatpush1.msra.mxu0 %v7861
    %8010 = vmatprep.subr.mxu0 0.0
    %8011 = vmatpush1.msra.mxu0 %v7860
    %8012 = vmatprep.subr.mxu0 0.0
    %8013 = vmatpush1.msra.mxu0 %v7859
    %8014 = vmatprep.subr.mxu0 0.0
    %8015 = vmatpush1.msra.mxu0 %v7858
    %8016 = vmatprep.subr.mxu0 0.0
    %8017 = vmatpush1.msra.mxu0 %v7857
    %8018 = vmatprep.subr.mxu0 0.0
    %8019 = vmatpush1.msra.mxu0 %v7856
    %8020 = vmatprep.subr.mxu0 0.0
    %8021 = vmatpush1.msra.mxu0 %v7855
    %8022 = vmatprep.subr.mxu0 0.0
    %8023 = vmatpush1.msra.mxu0 %v7854
    %8024 = vmatprep.subr.mxu0 0.0
    %8025 = vmatpush1.msra.mxu0 %v7853
    %8026 = vmatprep.subr.mxu0 0.0
    %8027 = vmatpush2.msra.mxu0 %v7884
    %8028 = vmatprep.subr.mxu0 0.0
    %8029 = vmatpush2.msra.mxu0 %v7883
    %8030 = vmatprep.subr.mxu0 0.0
    %8031 = vmatpush2.msra.mxu0 %v7882
    %8032 = vmatprep.subr.mxu0 0.0
    %8033 = vmatpush2.msra.mxu0 %v7881
    %8034 = vmatprep.subr.mxu0 0.0
    %8035 = vmatpush2.msra.mxu0 %v7880
    %8036 = vmatprep.subr.mxu0 0.0
    %8037 = vmatpush2.msra.mxu0 %v7879
    %8038 = vmatprep.subr.mxu0 0.0
    %8039 = vmatpush2.msra.mxu0 %v7878
    %8040 = vmatprep.subr.mxu0 0.0
    %8041 = vmatpush2.msra.mxu0 %v7877
    %8042 = vmatprep.subr.mxu0 0.0
    %8043 = vmatpush2.msra.mxu0 %v7876
    %8044 = vmatprep.subr.mxu0 0.0
    %8045 = vmatpush2.msra.mxu0 %v7875
    %8046 = vmatprep.subr.mxu0 0.0
    %8047 = vmatpush2.msra.mxu0 %v7874
    %8048 = vmatprep.subr.mxu0 0.0
    %8049 = vmatpush2.msra.mxu0 %v7873
    %8050 = vmatprep.subr.mxu0 0.0
    %8051 = vmatpush2.msra.mxu0 %v7872
    %8052 = vmatprep.subr.mxu0 0.0
    %8053 = vmatpush2.msra.mxu0 %v7871
    %8054 = vmatprep.subr.mxu0 0.0
    %8055 = vmatpush2.msra.mxu0 %v7870
    %8056 = vmatprep.subr.mxu0 0.0
    %8057 = vmatpush2.msra.mxu0 %v7869
    %8058 = vmatprep.mubr.f32.mxu0 %v7379
    %8059 = vmatmul.mubr.f32.gmra.mxu0 %v7378
    %v8060 = vpop.f32.mrf.mxu0
    %v8061 = vadd.f32 %v7991, %v8060
    %v8062 = vpop.f32.mrf.mxu0
    %8063 = vdwg.mxu0
    %8064 = vmatprep.subr.mxu0 0.0
    %8065 = vmatpush1.msra.mxu0 %v7900
    %8066 = vmatprep.subr.mxu0 0.0
    %8067 = vmatpush1.msra.mxu0 %v7899
    %8068 = vmatprep.subr.mxu0 0.0
    %8069 = vmatpush1.msra.mxu0 %v7898
    %8070 = vmatprep.subr.mxu0 0.0
    %8071 = vmatpush1.msra.mxu0 %v7897
    %8072 = vmatprep.subr.mxu0 0.0
    %8073 = vmatpush1.msra.mxu0 %v7896
    %8074 = vmatprep.subr.mxu0 0.0
    %8075 = vmatpush1.msra.mxu0 %v7895
    %8076 = vmatprep.subr.mxu0 0.0
    %8077 = vmatpush1.msra.mxu0 %v7894
    %8078 = vmatprep.subr.mxu0 0.0
    %8079 = vmatpush1.msra.mxu0 %v7893
    %8080 = vmatprep.subr.mxu0 0.0
    %8081 = vmatpush1.msra.mxu0 %v7892
    %8082 = vmatprep.subr.mxu0 0.0
    %8083 = vmatpush1.msra.mxu0 %v7891
    %8084 = vmatprep.subr.mxu0 0.0
    %8085 = vmatpush1.msra.mxu0 %v7890
    %8086 = vmatprep.subr.mxu0 0.0
    %8087 = vmatpush1.msra.mxu0 %v7889
    %8088 = vmatprep.subr.mxu0 0.0
    %8089 = vmatpush1.msra.mxu0 %v7888
    %8090 = vmatprep.subr.mxu0 0.0
    %8091 = vmatpush1.msra.mxu0 %v7887
    %8092 = vmatprep.subr.mxu0 0.0
    %8093 = vmatpush1.msra.mxu0 %v7886
    %8094 = vmatprep.subr.mxu0 0.0
    %8095 = vmatpush1.msra.mxu0 %v7885
    %8096 = vmatprep.subr.mxu0 0.0
    %8097 = vmatpush2.msra.mxu0 %v7916
    %8098 = vmatprep.subr.mxu0 0.0
    %8099 = vmatpush2.msra.mxu0 %v7915
    %8100 = vmatprep.subr.mxu0 0.0
    %8101 = vmatpush2.msra.mxu0 %v7914
    %8102 = vmatprep.subr.mxu0 0.0
    %8103 = vmatpush2.msra.mxu0 %v7913
    %8104 = vmatprep.subr.mxu0 0.0
    %8105 = vmatpush2.msra.mxu0 %v7912
    %8106 = vmatprep.subr.mxu0 0.0
    %8107 = vmatpush2.msra.mxu0 %v7911
    %8108 = vmatprep.subr.mxu0 0.0
    %8109 = vmatpush2.msra.mxu0 %v7910
    %8110 = vmatprep.subr.mxu0 0.0
    %8111 = vmatpush2.msra.mxu0 %v7909
    %8112 = vmatprep.subr.mxu0 0.0
    %8113 = vmatpush2.msra.mxu0 %v7908
    %8114 = vmatprep.subr.mxu0 0.0
    %8115 = vmatpush2.msra.mxu0 %v7907
    %8116 = vmatprep.subr.mxu0 0.0
    %8117 = vmatpush2.msra.mxu0 %v7906
    %8118 = vmatprep.subr.mxu0 0.0
    %8119 = vmatpush2.msra.mxu0 %v7905
    %8120 = vmatprep.subr.mxu0 0.0
    %8121 = vmatpush2.msra.mxu0 %v7904
    %8122 = vmatprep.subr.mxu0 0.0
    %8123 = vmatpush2.msra.mxu0 %v7903
    %8124 = vmatprep.subr.mxu0 0.0
    %8125 = vmatpush2.msra.mxu0 %v7902
    %8126 = vmatprep.subr.mxu0 0.0
    %8127 = vmatpush2.msra.mxu0 %v7901
    %8128 = vmatprep.mubr.f32.mxu0 %v7381
    %8129 = vmatmul.mubr.f32.gmra.mxu0 %v7380
    %v8130 = vpop.f32.mrf.mxu0
    %v8131 = vadd.f32 %v8061, %v8130
    %v8132 = vpop.f32.mrf.mxu0
    %8133 = vdwg.mxu0
    %v8134 = vmax.f32 %v8131, 0.0
    %v8135 = vld [vmem:[#allocation14] sm:$0xff]
    %v8136 = vld [vmem:[#allocation14 + $0x8] sm:$0xff]
    %v8137 = vld [vmem:[#allocation14 + $0x10] sm:$0xff]
    %v8138 = vld [vmem:[#allocation14 + $0x18] sm:$0xff]
    %v8139 = vld [vmem:[#allocation14 + $0x20] sm:$0xff]
    %v8140 = vld [vmem:[#allocation14 + $0x28] sm:$0xff]
    %v8141 = vld [vmem:[#allocation14 + $0x30] sm:$0xff]
    %v8142 = vld [vmem:[#allocation14 + $0x38] sm:$0xff]
    %v8143 = vld [vmem:[#allocation14 + $0x40] sm:$0xff]
    %v8144 = vld [vmem:[#allocation14 + $0x48] sm:$0xff]
    %v8145 = vld [vmem:[#allocation14 + $0x50] sm:$0xff]
    %v8146 = vld [vmem:[#allocation14 + $0x58] sm:$0xff]
    %v8147 = vld [vmem:[#allocation16] sm:$0x3f]
    %v8149 = vlaneseq
    %v8150 = vshrl.u32 %v8149, 7
    %v8151 = vsub.s32 0, %v8150
    %v8152 = vrot.slane %v8147, %v8151
    %v8153 = vlaneseq
    %v8154 = vshrl.u32 %v8153, 7
    %v8155 = vsub.s32 1, %v8154
    %v8156 = vrot.slane %v8147, %v8155
    %v8157 = vlaneseq
    %v8158 = vshrl.u32 %v8157, 7
    %v8159 = vsub.s32 2, %v8158
    %v8160 = vrot.slane %v8147, %v8159
    %v8161 = vlaneseq
    %v8162 = vshrl.u32 %v8161, 7
    %v8163 = vsub.s32 3, %v8162
    %v8164 = vrot.slane %v8147, %v8163
    %v8165 = vlaneseq
    %v8166 = vshrl.u32 %v8165, 7
    %v8167 = vsub.s32 4, %v8166
    %v8168 = vrot.slane %v8147, %v8167
    %v8169 = vlaneseq
    %v8170 = vshrl.u32 %v8169, 7
    %v8171 = vsub.s32 5, %v8170
    %v8172 = vrot.slane %v8147, %v8171
    %v8180 = vsel %vm6807, %v8134, 0
    %8182 = vmatprep.subr.mxu0 0.0
    %8183 = vmatpush1.msra.mxu0 0.0
    %8184 = vmatprep.subr.mxu0 0.0
    %8185 = vmatpush1.msra.mxu0 0.0
    %8186 = vmatprep.subr.mxu0 0.0
    %8187 = vmatpush1.msra.mxu0 0.0
    %8188 = vmatprep.subr.mxu0 0.0
    %8189 = vmatpush1.msra.mxu0 0.0
    %8190 = vmatprep.subr.mxu0 0.0
    %8191 = vmatpush1.msra.mxu0 0.0
    %8192 = vmatprep.subr.mxu0 0.0
    %8193 = vmatpush1.msra.mxu0 0.0
    %8194 = vmatprep.subr.mxu0 0.0
    %8195 = vmatpush1.msra.mxu0 0.0
    %8196 = vmatprep.subr.mxu0 0.0
    %8197 = vmatpush1.msra.mxu0 0.0
    %8198 = vmatprep.subr.mxu0 0.0
    %8199 = vmatpush1.msra.mxu0 0.0
    %8200 = vmatprep.subr.mxu0 0.0
    %8201 = vmatpush1.msra.mxu0 0.0
    %8202 = vmatprep.subr.mxu0 0.0
    %8203 = vmatpush1.msra.mxu0 0.0
    %8204 = vmatprep.subr.mxu0 0.0
    %8205 = vmatpush1.msra.mxu0 0.0
    %8206 = vmatprep.subr.mxu0 0.0
    %8207 = vmatpush1.msra.mxu0 0.0
    %8208 = vmatprep.subr.mxu0 0.0
    %8209 = vmatpush1.msra.mxu0 0.0
    %8210 = vmatprep.subr.mxu0 %v8142
    %8211 = vmatpush1.msra.mxu0 %v8141
    %8212 = vmatprep.subr.mxu0 %v8136
    %8213 = vmatpush1.msra.mxu0 %v8135
    %8214 = vmatprep.subr.mxu0 0.0
    %8215 = vmatpush2.msra.mxu0 0.0
    %8216 = vmatprep.subr.mxu0 0.0
    %8217 = vmatpush2.msra.mxu0 0.0
    %8218 = vmatprep.subr.mxu0 0.0
    %8219 = vmatpush2.msra.mxu0 0.0
    %8220 = vmatprep.subr.mxu0 0.0
    %8221 = vmatpush2.msra.mxu0 0.0
    %8222 = vmatprep.subr.mxu0 0.0
    %8223 = vmatpush2.msra.mxu0 0.0
    %8224 = vmatprep.subr.mxu0 0.0
    %8225 = vmatpush2.msra.mxu0 0.0
    %8226 = vmatprep.subr.mxu0 0.0
    %8227 = vmatpush2.msra.mxu0 0.0
    %8228 = vmatprep.subr.mxu0 0.0
    %8229 = vmatpush2.msra.mxu0 0.0
    %8230 = vmatprep.subr.mxu0 0.0
    %8231 = vmatpush2.msra.mxu0 0.0
    %8232 = vmatprep.subr.mxu0 0.0
    %8233 = vmatpush2.msra.mxu0 0.0
    %8234 = vmatprep.subr.mxu0 0.0
    %8235 = vmatpush2.msra.mxu0 0.0
    %8236 = vmatprep.subr.mxu0 0.0
    %8237 = vmatpush2.msra.mxu0 0.0
    %8238 = vmatprep.subr.mxu0 0.0
    %8239 = vmatpush2.msra.mxu0 0.0
    %8240 = vmatprep.subr.mxu0 0.0
    %8241 = vmatpush2.msra.mxu0 0.0
    %8242 = vmatprep.subr.mxu0 0.0
    %8243 = vmatpush2.msra.mxu0 0.0
    %8244 = vmatprep.subr.mxu0 0.0
    %8245 = vmatpush2.msra.mxu0 0.0
    %8246 = vmatprep.mubr.f32.mxu0 0.0
    %8247 = vmatmul.mubr.f32.gmra.mxu0 %v8180
    %v8248 = vpop.f32.mrf.mxu0
    %v8249 = vadd.f32 %v8152, %v8248
    %v8250 = vpop.f32.mrf.mxu0
    %v8251 = vadd.f32 %v8156, %v8250
    %8252 = vdwg.mxu0
    %8253 = vmatprep.subr.mxu0 0.0
    %8254 = vmatpush1.msra.mxu0 0.0
    %8255 = vmatprep.subr.mxu0 0.0
    %8256 = vmatpush1.msra.mxu0 0.0
    %8257 = vmatprep.subr.mxu0 0.0
    %8258 = vmatpush1.msra.mxu0 0.0
    %8259 = vmatprep.subr.mxu0 0.0
    %8260 = vmatpush1.msra.mxu0 0.0
    %8261 = vmatprep.subr.mxu0 0.0
    %8262 = vmatpush1.msra.mxu0 0.0
    %8263 = vmatprep.subr.mxu0 0.0
    %8264 = vmatpush1.msra.mxu0 0.0
    %8265 = vmatprep.subr.mxu0 0.0
    %8266 = vmatpush1.msra.mxu0 0.0
    %8267 = vmatprep.subr.mxu0 0.0
    %8268 = vmatpush1.msra.mxu0 0.0
    %8269 = vmatprep.subr.mxu0 0.0
    %8270 = vmatpush1.msra.mxu0 0.0
    %8271 = vmatprep.subr.mxu0 0.0
    %8272 = vmatpush1.msra.mxu0 0.0
    %8273 = vmatprep.subr.mxu0 0.0
    %8274 = vmatpush1.msra.mxu0 0.0
    %8275 = vmatprep.subr.mxu0 0.0
    %8276 = vmatpush1.msra.mxu0 0.0
    %8277 = vmatprep.subr.mxu0 0.0
    %8278 = vmatpush1.msra.mxu0 0.0
    %8279 = vmatprep.subr.mxu0 0.0
    %8280 = vmatpush1.msra.mxu0 0.0
    %8281 = vmatprep.subr.mxu0 %v8144
    %8282 = vmatpush1.msra.mxu0 %v8143
    %8283 = vmatprep.subr.mxu0 %v8138
    %8284 = vmatpush1.msra.mxu0 %v8137
    %8285 = vmatprep.subr.mxu0 0.0
    %8286 = vmatpush2.msra.mxu0 0.0
    %8287 = vmatprep.subr.mxu0 0.0
    %8288 = vmatpush2.msra.mxu0 0.0
    %8289 = vmatprep.subr.mxu0 0.0
    %8290 = vmatpush2.msra.mxu0 0.0
    %8291 = vmatprep.subr.mxu0 0.0
    %8292 = vmatpush2.msra.mxu0 0.0
    %8293 = vmatprep.subr.mxu0 0.0
    %8294 = vmatpush2.msra.mxu0 0.0
    %8295 = vmatprep.subr.mxu0 0.0
    %8296 = vmatpush2.msra.mxu0 0.0
    %8297 = vmatprep.subr.mxu0 0.0
    %8298 = vmatpush2.msra.mxu0 0.0
    %8299 = vmatprep.subr.mxu0 0.0
    %8300 = vmatpush2.msra.mxu0 0.0
    %8301 = vmatprep.subr.mxu0 0.0
    %8302 = vmatpush2.msra.mxu0 0.0
    %8303 = vmatprep.subr.mxu0 0.0
    %8304 = vmatpush2.msra.mxu0 0.0
    %8305 = vmatprep.subr.mxu0 0.0
    %8306 = vmatpush2.msra.mxu0 0.0
    %8307 = vmatprep.subr.mxu0 0.0
    %8308 = vmatpush2.msra.mxu0 0.0
    %8309 = vmatprep.subr.mxu0 0.0
    %8310 = vmatpush2.msra.mxu0 0.0
    %8311 = vmatprep.subr.mxu0 0.0
    %8312 = vmatpush2.msra.mxu0 0.0
    %8313 = vmatprep.subr.mxu0 0.0
    %8314 = vmatpush2.msra.mxu0 0.0
    %8315 = vmatprep.subr.mxu0 0.0
    %8316 = vmatpush2.msra.mxu0 0.0
    %8317 = vmatprep.mubr.f32.mxu0 0.0
    %8318 = vmatmul.mubr.f32.gmra.mxu0 %v8180
    %v8319 = vpop.f32.mrf.mxu0
    %v8320 = vadd.f32 %v8160, %v8319
    %v8321 = vpop.f32.mrf.mxu0
    %v8322 = vadd.f32 %v8164, %v8321
    %8323 = vdwg.mxu0
    %8324 = vmatprep.subr.mxu0 0.0
    %8325 = vmatpush1.msra.mxu0 0.0
    %8326 = vmatprep.subr.mxu0 0.0
    %8327 = vmatpush1.msra.mxu0 0.0
    %8328 = vmatprep.subr.mxu0 0.0
    %8329 = vmatpush1.msra.mxu0 0.0
    %8330 = vmatprep.subr.mxu0 0.0
    %8331 = vmatpush1.msra.mxu0 0.0
    %8332 = vmatprep.subr.mxu0 0.0
    %8333 = vmatpush1.msra.mxu0 0.0
    %8334 = vmatprep.subr.mxu0 0.0
    %8335 = vmatpush1.msra.mxu0 0.0
    %8336 = vmatprep.subr.mxu0 0.0
    %8337 = vmatpush1.msra.mxu0 0.0
    %8338 = vmatprep.subr.mxu0 0.0
    %8339 = vmatpush1.msra.mxu0 0.0
    %8340 = vmatprep.subr.mxu0 0.0
    %8341 = vmatpush1.msra.mxu0 0.0
    %8342 = vmatprep.subr.mxu0 0.0
    %8343 = vmatpush1.msra.mxu0 0.0
    %8344 = vmatprep.subr.mxu0 0.0
    %8345 = vmatpush1.msra.mxu0 0.0
    %8346 = vmatprep.subr.mxu0 0.0
    %8347 = vmatpush1.msra.mxu0 0.0
    %8348 = vmatprep.subr.mxu0 0.0
    %8349 = vmatpush1.msra.mxu0 0.0
    %8350 = vmatprep.subr.mxu0 0.0
    %8351 = vmatpush1.msra.mxu0 0.0
    %8352 = vmatprep.subr.mxu0 %v8146
    %8353 = vmatpush1.msra.mxu0 %v8145
    %8354 = vmatprep.subr.mxu0 %v8140
    %8355 = vmatpush1.msra.mxu0 %v8139
    %8356 = vmatprep.subr.mxu0 0.0
    %8357 = vmatpush2.msra.mxu0 0.0
    %8358 = vmatprep.subr.mxu0 0.0
    %8359 = vmatpush2.msra.mxu0 0.0
    %8360 = vmatprep.subr.mxu0 0.0
    %8361 = vmatpush2.msra.mxu0 0.0
    %8362 = vmatprep.subr.mxu0 0.0
    %8363 = vmatpush2.msra.mxu0 0.0
    %8364 = vmatprep.subr.mxu0 0.0
    %8365 = vmatpush2.msra.mxu0 0.0
    %8366 = vmatprep.subr.mxu0 0.0
    %8367 = vmatpush2.msra.mxu0 0.0
    %8368 = vmatprep.subr.mxu0 0.0
    %8369 = vmatpush2.msra.mxu0 0.0
    %8370 = vmatprep.subr.mxu0 0.0
    %8371 = vmatpush2.msra.mxu0 0.0
    %8372 = vmatprep.subr.mxu0 0.0
    %8373 = vmatpush2.msra.mxu0 0.0
    %8374 = vmatprep.subr.mxu0 0.0
    %8375 = vmatpush2.msra.mxu0 0.0
    %8376 = vmatprep.subr.mxu0 0.0
    %8377 = vmatpush2.msra.mxu0 0.0
    %8378 = vmatprep.subr.mxu0 0.0
    %8379 = vmatpush2.msra.mxu0 0.0
    %8380 = vmatprep.subr.mxu0 0.0
    %8381 = vmatpush2.msra.mxu0 0.0
    %8382 = vmatprep.subr.mxu0 0.0
    %8383 = vmatpush2.msra.mxu0 0.0
    %8384 = vmatprep.subr.mxu0 0.0
    %8385 = vmatpush2.msra.mxu0 0.0
    %8386 = vmatprep.subr.mxu0 0.0
    %8387 = vmatpush2.msra.mxu0 0.0
    %8388 = vmatprep.mubr.f32.mxu0 0.0
    %8389 = vmatmul.mubr.f32.gmra.mxu0 %v8180
    %v8390 = vpop.f32.mrf.mxu0
    %v8391 = vadd.f32 %v8168, %v8390
    %v8392 = vpop.f32.mrf.mxu0
    %v8393 = vadd.f32 %v8172, %v8392
    %8394 = vdwg.mxu0
    %v8395 = vxor.u32 %v8249, 2147483648
    %v8396 = vxor.u32 %v8251, 2147483648
    %v8397 = vxor.u32 %v8320, 2147483648
    %v8398 = vxor.u32 %v8322, 2147483648
    %v8399 = vxor.u32 %v8391, 2147483648
    %v8400 = vxor.u32 %v8393, 2147483648
    %v8401 = vmul.f32 %v8395, 1.442695
    %v8402 = vpow.pop %v8401
    %v8403 = vmul.f32 %v8396, 1.442695
    %v8404 = vpow.pop %v8403
    %v8405 = vmul.f32 %v8397, 1.442695
    %v8406 = vpow.pop %v8405
    %v8407 = vmul.f32 %v8398, 1.442695
    %v8408 = vpow.pop %v8407
    %v8409 = vmul.f32 %v8399, 1.442695
    %v8410 = vpow.pop %v8409
    %v8411 = vmul.f32 %v8400, 1.442695
    %v8412 = vpow.pop %v8411
    %v8413 = vadd.f32 %v8402, 1.0
    %v8414 = vadd.f32 %v8404, 1.0
    %v8415 = vadd.f32 %v8406, 1.0
    %v8416 = vadd.f32 %v8408, 1.0
    %v8417 = vadd.f32 %v8410, 1.0
    %v8418 = vadd.f32 %v8412, 1.0
    %v8419 = vrcp.pop %v8413
    %v8420 = vmul.f32 1.0, %v8419
    %v8421 = vrcp.pop %v8414
    %v8422 = vmul.f32 1.0, %v8421
    %v8423 = vrcp.pop %v8415
    %v8424 = vmul.f32 1.0, %v8423
    %v8425 = vrcp.pop %v8416
    %v8426 = vmul.f32 1.0, %v8425
    %v8427 = vrcp.pop %v8417
    %v8428 = vmul.f32 1.0, %v8427
    %v8429 = vrcp.pop %v8418
    %v8430 = vmul.f32 1.0, %v8429
    %v8431 = vmul.f32 %v8420, 0.3
    %v8432 = vmul.f32 %v8422, 0.3
    %v8433 = vmul.f32 %v8424, 0.3
    %v8434 = vmul.f32 %v8426, 0.3
    %v8435 = vmul.f32 %v8428, 0.3
    %v8436 = vmul.f32 %v8430, 0.3
    %v8437 = vadd.f32 %v8431, 1.0
    %v8438 = vadd.f32 %v8432, 1.0
    %v8439 = vadd.f32 %v8433, 1.0
    %v8440 = vadd.f32 %v8434, 1.0
    %v8441 = vadd.f32 %v8435, 1.0
    %v8442 = vadd.f32 %v8436, 1.0
    %v8443 = vmul.f32 %v7376, %v8437
    %v8444 = vmul.f32 %v7377, %v8438
    %v8445 = vmul.f32 %v7378, %v8439
    %v8446 = vmul.f32 %v7379, %v8440
    %v8447 = vmul.f32 %v7380, %v8441
    %v8448 = vmul.f32 %v7381, %v8442
    %v8449 = vmul.f32 %v7533, 0.0025510204
    %v8450 = vmul.f32 %v7535, 0.0025510204
    %v8451 = vmul.f32 %v7675, 0.0025510204
    %v8452 = vmul.f32 %v7677, 0.0025510204
    %v8453 = vmul.f32 %v7817, 0.0025510204
    %v8454 = vmul.f32 %v7819, 0.0025510204
    %v8455 = vadd.f32 %v8443, %v8449
    %v8456 = vadd.f32 %v8444, %v8450
    %v8457 = vadd.f32 %v8445, %v8451
    %v8458 = vadd.f32 %v8446, %v8452
    %v8459 = vadd.f32 %v8447, %v8453
    %v8460 = vadd.f32 %v8448, %v8454
    %v8461 = vpack.c.bf16 %v8455, %v8455
    %v8462 = vpack.c.bf16 %v8456, %v8456
    %v8463 = vpack.c.bf16 %v8457, %v8457
    %v8464 = vpack.c.bf16 %v8458, %v8458
    %v8465 = vpack.c.bf16 %v8459, %v8459
    %v8466 = vpack.c.bf16 %v8460, %v8460
    %v8467 = vld [vmem:[%s11] sm:$0xff]
    %v8468 = vld [vmem:[%s11 + $0x8] sm:$0xff]
    %v8469 = vld [vmem:[%s11 + $0x10] sm:$0xff]
    %v8470 = vld [vmem:[%s11 + $0x18] sm:$0xff]
    %v8471 = vld [vmem:[%s11 + $0x20] sm:$0xff]
    %v8472 = vld [vmem:[%s11 + $0x28] sm:$0xff]
    %v8473 = vld [vmem:[%s11 + $0x30] sm:$0xff]
    %v8474 = vld [vmem:[%s11 + $0x38] sm:$0xff]
    %v8475 = vld [vmem:[%s11 + $0x40] sm:$0xff]
    %v8476 = vld [vmem:[%s11 + $0x48] sm:$0xff]
    %v8477 = vld [vmem:[%s11 + $0x50] sm:$0xff]
    %v8478 = vld [vmem:[%s11 + $0x58] sm:$0xff]
    %v8479 = vld [vmem:[%s11 + $0x60] sm:$0xff]
    %v8480 = vld [vmem:[%s11 + $0x68] sm:$0xff]
    %v8481 = vld [vmem:[%s11 + $0x70] sm:$0xff]
    %v8482 = vld [vmem:[%s11 + $0x78] sm:$0xff]
    %v8483 = vld [vmem:[%s11 + $0x80] sm:$0xff]
    %v8484 = vld [vmem:[%s11 + $0x88] sm:$0xff]
    %v8485 = vld [vmem:[%s11 + $0x90] sm:$0xff]
    %v8486 = vld [vmem:[%s11 + $0x98] sm:$0xff]
    %v8487 = vld [vmem:[%s11 + $0xa0] sm:$0xff]
    %v8488 = vld [vmem:[%s11 + $0xa8] sm:$0xff]
    %v8489 = vld [vmem:[%s11 + $0xb0] sm:$0xff]
    %v8490 = vld [vmem:[%s11 + $0xb8] sm:$0xff]
    %v8491 = vld [vmem:[%s11 + $0xc0] sm:$0xff]
    %v8492 = vld [vmem:[%s11 + $0xc8] sm:$0xff]
    %v8493 = vld [vmem:[%s11 + $0xd0] sm:$0xff]
    %v8494 = vld [vmem:[%s11 + $0xd8] sm:$0xff]
    %v8495 = vld [vmem:[%s11 + $0xe0] sm:$0xff]
    %v8496 = vld [vmem:[%s11 + $0xe8] sm:$0xff]
    %v8497 = vld [vmem:[%s11 + $0xf0] sm:$0xff]
    %v8498 = vld [vmem:[%s11 + $0xf8] sm:$0xff]
    %v8499 = vld [vmem:[%s11 + $0x100] sm:$0xff]
    %v8500 = vld [vmem:[%s11 + $0x108] sm:$0xff]
    %v8501 = vld [vmem:[%s11 + $0x110] sm:$0xff]
    %v8502 = vld [vmem:[%s11 + $0x118] sm:$0xff]
    %v8503 = vld [vmem:[%s11 + $0x120] sm:$0xff]
    %v8504 = vld [vmem:[%s11 + $0x128] sm:$0xff]
    %v8505 = vld [vmem:[%s11 + $0x130] sm:$0xff]
    %v8506 = vld [vmem:[%s11 + $0x138] sm:$0xff]
    %v8507 = vld [vmem:[%s11 + $0x140] sm:$0xff]
    %v8508 = vld [vmem:[%s11 + $0x148] sm:$0xff]
    %v8509 = vld [vmem:[%s11 + $0x150] sm:$0xff]
    %v8510 = vld [vmem:[%s11 + $0x158] sm:$0xff]
    %v8511 = vld [vmem:[%s11 + $0x160] sm:$0xff]
    %v8512 = vld [vmem:[%s11 + $0x168] sm:$0xff]
    %v8513 = vld [vmem:[%s11 + $0x170] sm:$0xff]
    %v8514 = vld [vmem:[%s11 + $0x178] sm:$0xff]
    %v8515 = vld [vmem:[%s11 + $0x180] sm:$0xff]
    %v8516 = vld [vmem:[%s11 + $0x188] sm:$0xff]
    %v8517 = vld [vmem:[%s11 + $0x190] sm:$0xff]
    %v8518 = vld [vmem:[%s11 + $0x198] sm:$0xff]
    %v8519 = vld [vmem:[%s11 + $0x1a0] sm:$0xff]
    %v8520 = vld [vmem:[%s11 + $0x1a8] sm:$0xff]
    %v8521 = vld [vmem:[%s11 + $0x1b0] sm:$0xff]
    %v8522 = vld [vmem:[%s11 + $0x1b8] sm:$0xff]
    %v8523 = vld [vmem:[%s11 + $0x1c0] sm:$0xff]
    %v8524 = vld [vmem:[%s11 + $0x1c8] sm:$0xff]
    %v8525 = vld [vmem:[%s11 + $0x1d0] sm:$0xff]
    %v8526 = vld [vmem:[%s11 + $0x1d8] sm:$0xff]
    %v8527 = vld [vmem:[%s11 + $0x1e0] sm:$0xff]
    %v8528 = vld [vmem:[%s11 + $0x1e8] sm:$0xff]
    %v8529 = vld [vmem:[%s11 + $0x1f0] sm:$0xff]
    %v8530 = vld [vmem:[%s11 + $0x1f8] sm:$0xff]
    %v8531 = vld [vmem:[%s11 + $0x200] sm:$0xff]
    %v8532 = vld [vmem:[%s11 + $0x208] sm:$0xff]
    %v8533 = vld [vmem:[%s11 + $0x210] sm:$0xff]
    %v8534 = vld [vmem:[%s11 + $0x218] sm:$0xff]
    %v8535 = vld [vmem:[%s11 + $0x220] sm:$0xff]
    %v8536 = vld [vmem:[%s11 + $0x228] sm:$0xff]
    %v8537 = vld [vmem:[%s11 + $0x230] sm:$0xff]
    %v8538 = vld [vmem:[%s11 + $0x238] sm:$0xff]
    %v8539 = vld [vmem:[%s11 + $0x240] sm:$0xff]
    %v8540 = vld [vmem:[%s11 + $0x248] sm:$0xff]
    %v8541 = vld [vmem:[%s11 + $0x250] sm:$0xff]
    %v8542 = vld [vmem:[%s11 + $0x258] sm:$0xff]
    %v8543 = vld [vmem:[%s11 + $0x260] sm:$0xff]
    %v8544 = vld [vmem:[%s11 + $0x268] sm:$0xff]
    %v8545 = vld [vmem:[%s11 + $0x270] sm:$0xff]
    %v8546 = vld [vmem:[%s11 + $0x278] sm:$0xff]
    %v8547 = vld [vmem:[%s11 + $0x280] sm:$0xff]
    %v8548 = vld [vmem:[%s11 + $0x288] sm:$0xff]
    %v8549 = vld [vmem:[%s11 + $0x290] sm:$0xff]
    %v8550 = vld [vmem:[%s11 + $0x298] sm:$0xff]
    %v8551 = vld [vmem:[%s11 + $0x2a0] sm:$0xff]
    %v8552 = vld [vmem:[%s11 + $0x2a8] sm:$0xff]
    %v8553 = vld [vmem:[%s11 + $0x2b0] sm:$0xff]
    %v8554 = vld [vmem:[%s11 + $0x2b8] sm:$0xff]
    %v8555 = vld [vmem:[%s11 + $0x2c0] sm:$0xff]
    %v8556 = vld [vmem:[%s11 + $0x2c8] sm:$0xff]
    %v8557 = vld [vmem:[%s11 + $0x2d0] sm:$0xff]
    %v8558 = vld [vmem:[%s11 + $0x2d8] sm:$0xff]
    %v8559 = vld [vmem:[%s11 + $0x2e0] sm:$0xff]
    %v8560 = vld [vmem:[%s11 + $0x2e8] sm:$0xff]
    %v8561 = vld [vmem:[%s11 + $0x2f0] sm:$0xff]
    %v8562 = vld [vmem:[%s11 + $0x2f8] sm:$0xff]
    %v8563 = vld [vmem:[%s11 + $0x300] sm:$0xff]
    %v8564 = vld [vmem:[%s11 + $0x308] sm:$0xff]
    %v8565 = vld [vmem:[%s11 + $0x310] sm:$0xff]
    %v8566 = vld [vmem:[%s11 + $0x318] sm:$0xff]
    %v8567 = vld [vmem:[%s11 + $0x320] sm:$0xff]
    %v8568 = vld [vmem:[%s11 + $0x328] sm:$0xff]
    %v8569 = vld [vmem:[%s11 + $0x330] sm:$0xff]
    %v8570 = vld [vmem:[%s11 + $0x338] sm:$0xff]
    %v8571 = vld [vmem:[%s11 + $0x340] sm:$0xff]
    %v8572 = vld [vmem:[%s11 + $0x348] sm:$0xff]
    %v8573 = vld [vmem:[%s11 + $0x350] sm:$0xff]
    %v8574 = vld [vmem:[%s11 + $0x358] sm:$0xff]
    %v8575 = vld [vmem:[%s11 + $0x360] sm:$0xff]
    %v8576 = vld [vmem:[%s11 + $0x368] sm:$0xff]
    %v8577 = vld [vmem:[%s11 + $0x370] sm:$0xff]
    %v8578 = vld [vmem:[%s11 + $0x378] sm:$0xff]
    %v8579 = vld [vmem:[%s11 + $0x380] sm:$0xff]
    %v8580 = vld [vmem:[%s11 + $0x388] sm:$0xff]
    %v8581 = vld [vmem:[%s11 + $0x390] sm:$0xff]
    %v8582 = vld [vmem:[%s11 + $0x398] sm:$0xff]
    %v8583 = vld [vmem:[%s11 + $0x3a0] sm:$0xff]
    %v8584 = vld [vmem:[%s11 + $0x3a8] sm:$0xff]
    %v8585 = vld [vmem:[%s11 + $0x3b0] sm:$0xff]
    %v8586 = vld [vmem:[%s11 + $0x3b8] sm:$0xff]
    %v8587 = vld [vmem:[%s11 + $0x3c0] sm:$0xff]
    %v8588 = vld [vmem:[%s11 + $0x3c8] sm:$0xff]
    %v8589 = vld [vmem:[%s11 + $0x3d0] sm:$0xff]
    %v8590 = vld [vmem:[%s11 + $0x3d8] sm:$0xff]
    %v8591 = vld [vmem:[%s11 + $0x3e0] sm:$0xff]
    %v8592 = vld [vmem:[%s11 + $0x3e8] sm:$0xff]
    %v8593 = vld [vmem:[%s11 + $0x3f0] sm:$0xff]
    %v8594 = vld [vmem:[%s11 + $0x3f8] sm:$0xff]
    %v8595 = vld [vmem:[%s11 + $0x400] sm:$0xff]
    %v8596 = vld [vmem:[%s11 + $0x408] sm:$0xff]
    %v8597 = vld [vmem:[%s11 + $0x410] sm:$0xff]
    %v8598 = vld [vmem:[%s11 + $0x418] sm:$0xff]
    %v8599 = vld [vmem:[%s11 + $0x420] sm:$0xff]
    %v8600 = vld [vmem:[%s11 + $0x428] sm:$0xff]
    %v8601 = vld [vmem:[%s11 + $0x430] sm:$0xff]
    %v8602 = vld [vmem:[%s11 + $0x438] sm:$0xff]
    %v8603 = vld [vmem:[%s11 + $0x440] sm:$0xff]
    %v8604 = vld [vmem:[%s11 + $0x448] sm:$0xff]
    %v8605 = vld [vmem:[%s11 + $0x450] sm:$0xff]
    %v8606 = vld [vmem:[%s11 + $0x458] sm:$0xff]
    %v8607 = vld [vmem:[%s11 + $0x460] sm:$0xff]
    %v8608 = vld [vmem:[%s11 + $0x468] sm:$0xff]
    %v8609 = vld [vmem:[%s11 + $0x470] sm:$0xff]
    %v8610 = vld [vmem:[%s11 + $0x478] sm:$0xff]
    %v8611 = vld [vmem:[%s11 + $0x480] sm:$0xff]
    %v8612 = vld [vmem:[%s11 + $0x488] sm:$0xff]
    %v8613 = vld [vmem:[%s11 + $0x490] sm:$0xff]
    %v8614 = vld [vmem:[%s11 + $0x498] sm:$0xff]
    %v8615 = vld [vmem:[%s11 + $0x4a0] sm:$0xff]
    %v8616 = vld [vmem:[%s11 + $0x4a8] sm:$0xff]
    %v8617 = vld [vmem:[%s11 + $0x4b0] sm:$0xff]
    %v8618 = vld [vmem:[%s11 + $0x4b8] sm:$0xff]
    %v8619 = vld [vmem:[%s11 + $0x4c0] sm:$0xff]
    %v8620 = vld [vmem:[%s11 + $0x4c8] sm:$0xff]
    %v8621 = vld [vmem:[%s11 + $0x4d0] sm:$0xff]
    %v8622 = vld [vmem:[%s11 + $0x4d8] sm:$0xff]
    %v8623 = vld [vmem:[%s11 + $0x4e0] sm:$0xff]
    %v8624 = vld [vmem:[%s11 + $0x4e8] sm:$0xff]
    %v8625 = vld [vmem:[%s11 + $0x4f0] sm:$0xff]
    %v8626 = vld [vmem:[%s11 + $0x4f8] sm:$0xff]
    %v8627 = vld [vmem:[%s11 + $0x500] sm:$0xff]
    %v8628 = vld [vmem:[%s11 + $0x508] sm:$0xff]
    %v8629 = vld [vmem:[%s11 + $0x510] sm:$0xff]
    %v8630 = vld [vmem:[%s11 + $0x518] sm:$0xff]
    %v8631 = vld [vmem:[%s11 + $0x520] sm:$0xff]
    %v8632 = vld [vmem:[%s11 + $0x528] sm:$0xff]
    %v8633 = vld [vmem:[%s11 + $0x530] sm:$0xff]
    %v8634 = vld [vmem:[%s11 + $0x538] sm:$0xff]
    %v8635 = vld [vmem:[%s11 + $0x540] sm:$0xff]
    %v8636 = vld [vmem:[%s11 + $0x548] sm:$0xff]
    %v8637 = vld [vmem:[%s11 + $0x550] sm:$0xff]
    %v8638 = vld [vmem:[%s11 + $0x558] sm:$0xff]
    %v8639 = vld [vmem:[%s11 + $0x560] sm:$0xff]
    %v8640 = vld [vmem:[%s11 + $0x568] sm:$0xff]
    %v8641 = vld [vmem:[%s11 + $0x570] sm:$0xff]
    %v8642 = vld [vmem:[%s11 + $0x578] sm:$0xff]
    %v8643 = vld [vmem:[%s11 + $0x580] sm:$0xff]
    %v8644 = vld [vmem:[%s11 + $0x588] sm:$0xff]
    %v8645 = vld [vmem:[%s11 + $0x590] sm:$0xff]
    %v8646 = vld [vmem:[%s11 + $0x598] sm:$0xff]
    %v8647 = vld [vmem:[%s11 + $0x5a0] sm:$0xff]
    %v8648 = vld [vmem:[%s11 + $0x5a8] sm:$0xff]
    %v8649 = vld [vmem:[%s11 + $0x5b0] sm:$0xff]
    %v8650 = vld [vmem:[%s11 + $0x5b8] sm:$0xff]
    %v8651 = vld [vmem:[%s11 + $0x5c0] sm:$0xff]
    %v8652 = vld [vmem:[%s11 + $0x5c8] sm:$0xff]
    %v8653 = vld [vmem:[%s11 + $0x5d0] sm:$0xff]
    %v8654 = vld [vmem:[%s11 + $0x5d8] sm:$0xff]
    %v8655 = vld [vmem:[%s11 + $0x5e0] sm:$0xff]
    %v8656 = vld [vmem:[%s11 + $0x5e8] sm:$0xff]
    %v8657 = vld [vmem:[%s11 + $0x5f0] sm:$0xff]
    %v8658 = vld [vmem:[%s11 + $0x5f8] sm:$0xff]
    %v8659 = vld [vmem:[#allocation17] sm:$0xf]
    %v8661 = vlaneseq
    %v8662 = vshrl.u32 %v8661, 7
    %v8663 = vsub.s32 0, %v8662
    %v8664 = vrot.slane %v8659, %v8663
    %v8665 = vlaneseq
    %v8666 = vshrl.u32 %v8665, 7
    %v8667 = vsub.s32 1, %v8666
    %v8668 = vrot.slane %v8659, %v8667
    %v8669 = vlaneseq
    %v8670 = vshrl.u32 %v8669, 7
    %v8671 = vsub.s32 2, %v8670
    %v8672 = vrot.slane %v8659, %v8671
    %v8673 = vlaneseq
    %v8674 = vshrl.u32 %v8673, 7
    %v8675 = vsub.s32 3, %v8674
    %v8676 = vrot.slane %v8659, %v8675
    %v8873 = vunpack.c.l.b16 %v8467
    %v8874 = vunpack.c.h.b16 %v8467
    %v8875 = vunpack.c.l.b16 %v8468
    %v8876 = vunpack.c.h.b16 %v8468
    %v8877 = vunpack.c.l.b16 %v8469
    %v8878 = vunpack.c.h.b16 %v8469
    %v8879 = vunpack.c.l.b16 %v8470
    %v8880 = vunpack.c.h.b16 %v8470
    %v8881 = vunpack.c.l.b16 %v8471
    %v8882 = vunpack.c.h.b16 %v8471
    %v8883 = vunpack.c.l.b16 %v8472
    %v8884 = vunpack.c.h.b16 %v8472
    %v8885 = vunpack.c.l.b16 %v8473
    %v8886 = vunpack.c.h.b16 %v8473
    %v8887 = vunpack.c.l.b16 %v8474
    %v8888 = vunpack.c.h.b16 %v8474
    %v8889 = vunpack.c.l.b16 %v8475
    %v8890 = vunpack.c.h.b16 %v8475
    %v8891 = vunpack.c.l.b16 %v8476
    %v8892 = vunpack.c.h.b16 %v8476
    %v8893 = vunpack.c.l.b16 %v8477
    %v8894 = vunpack.c.h.b16 %v8477
    %v8895 = vunpack.c.l.b16 %v8478
    %v8896 = vunpack.c.h.b16 %v8478
    %v8897 = vunpack.c.l.b16 %v8479
    %v8898 = vunpack.c.h.b16 %v8479
    %v8899 = vunpack.c.l.b16 %v8480
    %v8900 = vunpack.c.h.b16 %v8480
    %v8901 = vunpack.c.l.b16 %v8481
    %v8902 = vunpack.c.h.b16 %v8481
    %v8903 = vunpack.c.l.b16 %v8482
    %v8904 = vunpack.c.h.b16 %v8482
    %v8905 = vunpack.c.l.b16 %v8483
    %v8906 = vunpack.c.h.b16 %v8483
    %v8907 = vunpack.c.l.b16 %v8484
    %v8908 = vunpack.c.h.b16 %v8484
    %v8909 = vunpack.c.l.b16 %v8485
    %v8910 = vunpack.c.h.b16 %v8485
    %v8911 = vunpack.c.l.b16 %v8486
    %v8912 = vunpack.c.h.b16 %v8486
    %v8913 = vunpack.c.l.b16 %v8487
    %v8914 = vunpack.c.h.b16 %v8487
    %v8915 = vunpack.c.l.b16 %v8488
    %v8916 = vunpack.c.h.b16 %v8488
    %v8917 = vunpack.c.l.b16 %v8489
    %v8918 = vunpack.c.h.b16 %v8489
    %v8919 = vunpack.c.l.b16 %v8490
    %v8920 = vunpack.c.h.b16 %v8490
    %v8921 = vunpack.c.l.b16 %v8491
    %v8922 = vunpack.c.h.b16 %v8491
    %v8923 = vunpack.c.l.b16 %v8492
    %v8924 = vunpack.c.h.b16 %v8492
    %v8925 = vunpack.c.l.b16 %v8493
    %v8926 = vunpack.c.h.b16 %v8493
    %v8927 = vunpack.c.l.b16 %v8494
    %v8928 = vunpack.c.h.b16 %v8494
    %v8929 = vunpack.c.l.b16 %v8495
    %v8930 = vunpack.c.h.b16 %v8495
    %v8931 = vunpack.c.l.b16 %v8496
    %v8932 = vunpack.c.h.b16 %v8496
    %v8933 = vunpack.c.l.b16 %v8497
    %v8934 = vunpack.c.h.b16 %v8497
    %v8935 = vunpack.c.l.b16 %v8498
    %v8936 = vunpack.c.h.b16 %v8498
    %v8937 = vunpack.c.l.b16 %v8499
    %v8938 = vunpack.c.h.b16 %v8499
    %v8939 = vunpack.c.l.b16 %v8500
    %v8940 = vunpack.c.h.b16 %v8500
    %v8941 = vunpack.c.l.b16 %v8501
    %v8942 = vunpack.c.h.b16 %v8501
    %v8943 = vunpack.c.l.b16 %v8502
    %v8944 = vunpack.c.h.b16 %v8502
    %v8945 = vunpack.c.l.b16 %v8503
    %v8946 = vunpack.c.h.b16 %v8503
    %v8947 = vunpack.c.l.b16 %v8504
    %v8948 = vunpack.c.h.b16 %v8504
    %v8949 = vunpack.c.l.b16 %v8505
    %v8950 = vunpack.c.h.b16 %v8505
    %v8951 = vunpack.c.l.b16 %v8506
    %v8952 = vunpack.c.h.b16 %v8506
    %v8953 = vunpack.c.l.b16 %v8507
    %v8954 = vunpack.c.h.b16 %v8507
    %v8955 = vunpack.c.l.b16 %v8508
    %v8956 = vunpack.c.h.b16 %v8508
    %v8957 = vunpack.c.l.b16 %v8509
    %v8958 = vunpack.c.h.b16 %v8509
    %v8959 = vunpack.c.l.b16 %v8510
    %v8960 = vunpack.c.h.b16 %v8510
    %v8961 = vunpack.c.l.b16 %v8511
    %v8962 = vunpack.c.h.b16 %v8511
    %v8963 = vunpack.c.l.b16 %v8512
    %v8964 = vunpack.c.h.b16 %v8512
    %v8965 = vunpack.c.l.b16 %v8513
    %v8966 = vunpack.c.h.b16 %v8513
    %v8967 = vunpack.c.l.b16 %v8514
    %v8968 = vunpack.c.h.b16 %v8514
    %v8969 = vunpack.c.l.b16 %v8515
    %v8970 = vunpack.c.h.b16 %v8515
    %v8971 = vunpack.c.l.b16 %v8516
    %v8972 = vunpack.c.h.b16 %v8516
    %v8973 = vunpack.c.l.b16 %v8517
    %v8974 = vunpack.c.h.b16 %v8517
    %v8975 = vunpack.c.l.b16 %v8518
    %v8976 = vunpack.c.h.b16 %v8518
    %v8977 = vunpack.c.l.b16 %v8519
    %v8978 = vunpack.c.h.b16 %v8519
    %v8979 = vunpack.c.l.b16 %v8520
    %v8980 = vunpack.c.h.b16 %v8520
    %v8981 = vunpack.c.l.b16 %v8521
    %v8982 = vunpack.c.h.b16 %v8521
    %v8983 = vunpack.c.l.b16 %v8522
    %v8984 = vunpack.c.h.b16 %v8522
    %v8985 = vunpack.c.l.b16 %v8523
    %v8986 = vunpack.c.h.b16 %v8523
    %v8987 = vunpack.c.l.b16 %v8524
    %v8988 = vunpack.c.h.b16 %v8524
    %v8989 = vunpack.c.l.b16 %v8525
    %v8990 = vunpack.c.h.b16 %v8525
    %v8991 = vunpack.c.l.b16 %v8526
    %v8992 = vunpack.c.h.b16 %v8526
    %v8993 = vunpack.c.l.b16 %v8527
    %v8994 = vunpack.c.h.b16 %v8527
    %v8995 = vunpack.c.l.b16 %v8528
    %v8996 = vunpack.c.h.b16 %v8528
    %v8997 = vunpack.c.l.b16 %v8529
    %v8998 = vunpack.c.h.b16 %v8529
    %v8999 = vunpack.c.l.b16 %v8530
    %v9000 = vunpack.c.h.b16 %v8530
    %v9001 = vunpack.c.l.b16 %v8531
    %v9002 = vunpack.c.h.b16 %v8531
    %v9003 = vunpack.c.l.b16 %v8532
    %v9004 = vunpack.c.h.b16 %v8532
    %v9005 = vunpack.c.l.b16 %v8533
    %v9006 = vunpack.c.h.b16 %v8533
    %v9007 = vunpack.c.l.b16 %v8534
    %v9008 = vunpack.c.h.b16 %v8534
    %v9009 = vunpack.c.l.b16 %v8535
    %v9010 = vunpack.c.h.b16 %v8535
    %v9011 = vunpack.c.l.b16 %v8536
    %v9012 = vunpack.c.h.b16 %v8536
    %v9013 = vunpack.c.l.b16 %v8537
    %v9014 = vunpack.c.h.b16 %v8537
    %v9015 = vunpack.c.l.b16 %v8538
    %v9016 = vunpack.c.h.b16 %v8538
    %v9017 = vunpack.c.l.b16 %v8539
    %v9018 = vunpack.c.h.b16 %v8539
    %v9019 = vunpack.c.l.b16 %v8540
    %v9020 = vunpack.c.h.b16 %v8540
    %v9021 = vunpack.c.l.b16 %v8541
    %v9022 = vunpack.c.h.b16 %v8541
    %v9023 = vunpack.c.l.b16 %v8542
    %v9024 = vunpack.c.h.b16 %v8542
    %v9025 = vunpack.c.l.b16 %v8543
    %v9026 = vunpack.c.h.b16 %v8543
    %v9027 = vunpack.c.l.b16 %v8544
    %v9028 = vunpack.c.h.b16 %v8544
    %v9029 = vunpack.c.l.b16 %v8545
    %v9030 = vunpack.c.h.b16 %v8545
    %v9031 = vunpack.c.l.b16 %v8546
    %v9032 = vunpack.c.h.b16 %v8546
    %v9033 = vunpack.c.l.b16 %v8547
    %v9034 = vunpack.c.h.b16 %v8547
    %v9035 = vunpack.c.l.b16 %v8548
    %v9036 = vunpack.c.h.b16 %v8548
    %v9037 = vunpack.c.l.b16 %v8549
    %v9038 = vunpack.c.h.b16 %v8549
    %v9039 = vunpack.c.l.b16 %v8550
    %v9040 = vunpack.c.h.b16 %v8550
    %v9041 = vunpack.c.l.b16 %v8551
    %v9042 = vunpack.c.h.b16 %v8551
    %v9043 = vunpack.c.l.b16 %v8552
    %v9044 = vunpack.c.h.b16 %v8552
    %v9045 = vunpack.c.l.b16 %v8553
    %v9046 = vunpack.c.h.b16 %v8553
    %v9047 = vunpack.c.l.b16 %v8554
    %v9048 = vunpack.c.h.b16 %v8554
    %v9049 = vunpack.c.l.b16 %v8555
    %v9050 = vunpack.c.h.b16 %v8555
    %v9051 = vunpack.c.l.b16 %v8556
    %v9052 = vunpack.c.h.b16 %v8556
    %v9053 = vunpack.c.l.b16 %v8557
    %v9054 = vunpack.c.h.b16 %v8557
    %v9055 = vunpack.c.l.b16 %v8558
    %v9056 = vunpack.c.h.b16 %v8558
    %v9057 = vunpack.c.l.b16 %v8559
    %v9058 = vunpack.c.h.b16 %v8559
    %v9059 = vunpack.c.l.b16 %v8560
    %v9060 = vunpack.c.h.b16 %v8560
    %v9061 = vunpack.c.l.b16 %v8561
    %v9062 = vunpack.c.h.b16 %v8561
    %v9063 = vunpack.c.l.b16 %v8562
    %v9064 = vunpack.c.h.b16 %v8562
    %v9065 = vunpack.c.l.b16 %v8563
    %v9066 = vunpack.c.h.b16 %v8563
    %v9067 = vunpack.c.l.b16 %v8564
    %v9068 = vunpack.c.h.b16 %v8564
    %v9069 = vunpack.c.l.b16 %v8565
    %v9070 = vunpack.c.h.b16 %v8565
    %v9071 = vunpack.c.l.b16 %v8566
    %v9072 = vunpack.c.h.b16 %v8566
    %v9073 = vunpack.c.l.b16 %v8567
    %v9074 = vunpack.c.h.b16 %v8567
    %v9075 = vunpack.c.l.b16 %v8568
    %v9076 = vunpack.c.h.b16 %v8568
    %v9077 = vunpack.c.l.b16 %v8569
    %v9078 = vunpack.c.h.b16 %v8569
    %v9079 = vunpack.c.l.b16 %v8570
    %v9080 = vunpack.c.h.b16 %v8570
    %v9081 = vunpack.c.l.b16 %v8571
    %v9082 = vunpack.c.h.b16 %v8571
    %v9083 = vunpack.c.l.b16 %v8572
    %v9084 = vunpack.c.h.b16 %v8572
    %v9085 = vunpack.c.l.b16 %v8573
    %v9086 = vunpack.c.h.b16 %v8573
    %v9087 = vunpack.c.l.b16 %v8574
    %v9088 = vunpack.c.h.b16 %v8574
    %v9089 = vunpack.c.l.b16 %v8575
    %v9090 = vunpack.c.h.b16 %v8575
    %v9091 = vunpack.c.l.b16 %v8576
    %v9092 = vunpack.c.h.b16 %v8576
    %v9093 = vunpack.c.l.b16 %v8577
    %v9094 = vunpack.c.h.b16 %v8577
    %v9095 = vunpack.c.l.b16 %v8578
    %v9096 = vunpack.c.h.b16 %v8578
    %v9097 = vunpack.c.l.b16 %v8579
    %v9098 = vunpack.c.h.b16 %v8579
    %v9099 = vunpack.c.l.b16 %v8580
    %v9100 = vunpack.c.h.b16 %v8580
    %v9101 = vunpack.c.l.b16 %v8581
    %v9102 = vunpack.c.h.b16 %v8581
    %v9103 = vunpack.c.l.b16 %v8582
    %v9104 = vunpack.c.h.b16 %v8582
    %v9105 = vunpack.c.l.b16 %v8583
    %v9106 = vunpack.c.h.b16 %v8583
    %v9107 = vunpack.c.l.b16 %v8584
    %v9108 = vunpack.c.h.b16 %v8584
    %v9109 = vunpack.c.l.b16 %v8585
    %v9110 = vunpack.c.h.b16 %v8585
    %v9111 = vunpack.c.l.b16 %v8586
    %v9112 = vunpack.c.h.b16 %v8586
    %v9113 = vunpack.c.l.b16 %v8587
    %v9114 = vunpack.c.h.b16 %v8587
    %v9115 = vunpack.c.l.b16 %v8588
    %v9116 = vunpack.c.h.b16 %v8588
    %v9117 = vunpack.c.l.b16 %v8589
    %v9118 = vunpack.c.h.b16 %v8589
    %v9119 = vunpack.c.l.b16 %v8590
    %v9120 = vunpack.c.h.b16 %v8590
    %v9121 = vunpack.c.l.b16 %v8591
    %v9122 = vunpack.c.h.b16 %v8591
    %v9123 = vunpack.c.l.b16 %v8592
    %v9124 = vunpack.c.h.b16 %v8592
    %v9125 = vunpack.c.l.b16 %v8593
    %v9126 = vunpack.c.h.b16 %v8593
    %v9127 = vunpack.c.l.b16 %v8594
    %v9128 = vunpack.c.h.b16 %v8594
    %v9129 = vunpack.c.l.b16 %v8595
    %v9130 = vunpack.c.h.b16 %v8595
    %v9131 = vunpack.c.l.b16 %v8596
    %v9132 = vunpack.c.h.b16 %v8596
    %v9133 = vunpack.c.l.b16 %v8597
    %v9134 = vunpack.c.h.b16 %v8597
    %v9135 = vunpack.c.l.b16 %v8598
    %v9136 = vunpack.c.h.b16 %v8598
    %v9137 = vunpack.c.l.b16 %v8599
    %v9138 = vunpack.c.h.b16 %v8599
    %v9139 = vunpack.c.l.b16 %v8600
    %v9140 = vunpack.c.h.b16 %v8600
    %v9141 = vunpack.c.l.b16 %v8601
    %v9142 = vunpack.c.h.b16 %v8601
    %v9143 = vunpack.c.l.b16 %v8602
    %v9144 = vunpack.c.h.b16 %v8602
    %v9145 = vunpack.c.l.b16 %v8603
    %v9146 = vunpack.c.h.b16 %v8603
    %v9147 = vunpack.c.l.b16 %v8604
    %v9148 = vunpack.c.h.b16 %v8604
    %v9149 = vunpack.c.l.b16 %v8605
    %v9150 = vunpack.c.h.b16 %v8605
    %v9151 = vunpack.c.l.b16 %v8606
    %v9152 = vunpack.c.h.b16 %v8606
    %v9153 = vunpack.c.l.b16 %v8607
    %v9154 = vunpack.c.h.b16 %v8607
    %v9155 = vunpack.c.l.b16 %v8608
    %v9156 = vunpack.c.h.b16 %v8608
    %v9157 = vunpack.c.l.b16 %v8609
    %v9158 = vunpack.c.h.b16 %v8609
    %v9159 = vunpack.c.l.b16 %v8610
    %v9160 = vunpack.c.h.b16 %v8610
    %v9161 = vunpack.c.l.b16 %v8611
    %v9162 = vunpack.c.h.b16 %v8611
    %v9163 = vunpack.c.l.b16 %v8612
    %v9164 = vunpack.c.h.b16 %v8612
    %v9165 = vunpack.c.l.b16 %v8613
    %v9166 = vunpack.c.h.b16 %v8613
    %v9167 = vunpack.c.l.b16 %v8614
    %v9168 = vunpack.c.h.b16 %v8614
    %v9169 = vunpack.c.l.b16 %v8615
    %v9170 = vunpack.c.h.b16 %v8615
    %v9171 = vunpack.c.l.b16 %v8616
    %v9172 = vunpack.c.h.b16 %v8616
    %v9173 = vunpack.c.l.b16 %v8617
    %v9174 = vunpack.c.h.b16 %v8617
    %v9175 = vunpack.c.l.b16 %v8618
    %v9176 = vunpack.c.h.b16 %v8618
    %v9177 = vunpack.c.l.b16 %v8619
    %v9178 = vunpack.c.h.b16 %v8619
    %v9179 = vunpack.c.l.b16 %v8620
    %v9180 = vunpack.c.h.b16 %v8620
    %v9181 = vunpack.c.l.b16 %v8621
    %v9182 = vunpack.c.h.b16 %v8621
    %v9183 = vunpack.c.l.b16 %v8622
    %v9184 = vunpack.c.h.b16 %v8622
    %v9185 = vunpack.c.l.b16 %v8623
    %v9186 = vunpack.c.h.b16 %v8623
    %v9187 = vunpack.c.l.b16 %v8624
    %v9188 = vunpack.c.h.b16 %v8624
    %v9189 = vunpack.c.l.b16 %v8625
    %v9190 = vunpack.c.h.b16 %v8625
    %v9191 = vunpack.c.l.b16 %v8626
    %v9192 = vunpack.c.h.b16 %v8626
    %v9193 = vunpack.c.l.b16 %v8627
    %v9194 = vunpack.c.h.b16 %v8627
    %v9195 = vunpack.c.l.b16 %v8628
    %v9196 = vunpack.c.h.b16 %v8628
    %v9197 = vunpack.c.l.b16 %v8629
    %v9198 = vunpack.c.h.b16 %v8629
    %v9199 = vunpack.c.l.b16 %v8630
    %v9200 = vunpack.c.h.b16 %v8630
    %v9201 = vunpack.c.l.b16 %v8631
    %v9202 = vunpack.c.h.b16 %v8631
    %v9203 = vunpack.c.l.b16 %v8632
    %v9204 = vunpack.c.h.b16 %v8632
    %v9205 = vunpack.c.l.b16 %v8633
    %v9206 = vunpack.c.h.b16 %v8633
    %v9207 = vunpack.c.l.b16 %v8634
    %v9208 = vunpack.c.h.b16 %v8634
    %v9209 = vunpack.c.l.b16 %v8635
    %v9210 = vunpack.c.h.b16 %v8635
    %v9211 = vunpack.c.l.b16 %v8636
    %v9212 = vunpack.c.h.b16 %v8636
    %v9213 = vunpack.c.l.b16 %v8637
    %v9214 = vunpack.c.h.b16 %v8637
    %v9215 = vunpack.c.l.b16 %v8638
    %v9216 = vunpack.c.h.b16 %v8638
    %v9217 = vunpack.c.l.b16 %v8639
    %v9218 = vunpack.c.h.b16 %v8639
    %v9219 = vunpack.c.l.b16 %v8640
    %v9220 = vunpack.c.h.b16 %v8640
    %v9221 = vunpack.c.l.b16 %v8641
    %v9222 = vunpack.c.h.b16 %v8641
    %v9223 = vunpack.c.l.b16 %v8642
    %v9224 = vunpack.c.h.b16 %v8642
    %v9225 = vunpack.c.l.b16 %v8643
    %v9226 = vunpack.c.h.b16 %v8643
    %v9227 = vunpack.c.l.b16 %v8644
    %v9228 = vunpack.c.h.b16 %v8644
    %v9229 = vunpack.c.l.b16 %v8645
    %v9230 = vunpack.c.h.b16 %v8645
    %v9231 = vunpack.c.l.b16 %v8646
    %v9232 = vunpack.c.h.b16 %v8646
    %v9233 = vunpack.c.l.b16 %v8647
    %v9234 = vunpack.c.h.b16 %v8647
    %v9235 = vunpack.c.l.b16 %v8648
    %v9236 = vunpack.c.h.b16 %v8648
    %v9237 = vunpack.c.l.b16 %v8649
    %v9238 = vunpack.c.h.b16 %v8649
    %v9239 = vunpack.c.l.b16 %v8650
    %v9240 = vunpack.c.h.b16 %v8650
    %v9241 = vunpack.c.l.b16 %v8651
    %v9242 = vunpack.c.h.b16 %v8651
    %v9243 = vunpack.c.l.b16 %v8652
    %v9244 = vunpack.c.h.b16 %v8652
    %v9245 = vunpack.c.l.b16 %v8653
    %v9246 = vunpack.c.h.b16 %v8653
    %v9247 = vunpack.c.l.b16 %v8654
    %v9248 = vunpack.c.h.b16 %v8654
    %v9249 = vunpack.c.l.b16 %v8655
    %v9250 = vunpack.c.h.b16 %v8655
    %v9251 = vunpack.c.l.b16 %v8656
    %v9252 = vunpack.c.h.b16 %v8656
    %v9253 = vunpack.c.l.b16 %v8657
    %v9254 = vunpack.c.h.b16 %v8657
    %v9255 = vunpack.c.l.b16 %v8658
    %v9256 = vunpack.c.h.b16 %v8658
    %v9257 = vpack.c.b16 %v8877, %v8873
    %v9258 = vpack.c.b16 %v8878, %v8874
    %v9259 = vpack.c.b16 %v8879, %v8875
    %v9260 = vpack.c.b16 %v8880, %v8876
    %v9261 = vpack.c.b16 %v8885, %v8881
    %v9262 = vpack.c.b16 %v8886, %v8882
    %v9263 = vpack.c.b16 %v8887, %v8883
    %v9264 = vpack.c.b16 %v8888, %v8884
    %v9265 = vpack.c.b16 %v8893, %v8889
    %v9266 = vpack.c.b16 %v8894, %v8890
    %v9267 = vpack.c.b16 %v8895, %v8891
    %v9268 = vpack.c.b16 %v8896, %v8892
    %v9269 = vpack.c.b16 %v8901, %v8897
    %v9270 = vpack.c.b16 %v8902, %v8898
    %v9271 = vpack.c.b16 %v8903, %v8899
    %v9272 = vpack.c.b16 %v8904, %v8900
    %v9273 = vpack.c.b16 %v8909, %v8905
    %v9274 = vpack.c.b16 %v8910, %v8906
    %v9275 = vpack.c.b16 %v8911, %v8907
    %v9276 = vpack.c.b16 %v8912, %v8908
    %v9277 = vpack.c.b16 %v8917, %v8913
    %v9278 = vpack.c.b16 %v8918, %v8914
    %v9279 = vpack.c.b16 %v8919, %v8915
    %v9280 = vpack.c.b16 %v8920, %v8916
    %v9281 = vpack.c.b16 %v8925, %v8921
    %v9282 = vpack.c.b16 %v8926, %v8922
    %v9283 = vpack.c.b16 %v8927, %v8923
    %v9284 = vpack.c.b16 %v8928, %v8924
    %v9285 = vpack.c.b16 %v8933, %v8929
    %v9286 = vpack.c.b16 %v8934, %v8930
    %v9287 = vpack.c.b16 %v8935, %v8931
    %v9288 = vpack.c.b16 %v8936, %v8932
    %v9289 = vpack.c.b16 %v8941, %v8937
    %v9290 = vpack.c.b16 %v8942, %v8938
    %v9291 = vpack.c.b16 %v8943, %v8939
    %v9292 = vpack.c.b16 %v8944, %v8940
    %v9293 = vpack.c.b16 %v8949, %v8945
    %v9294 = vpack.c.b16 %v8950, %v8946
    %v9295 = vpack.c.b16 %v8951, %v8947
    %v9296 = vpack.c.b16 %v8952, %v8948
    %v9297 = vpack.c.b16 %v8957, %v8953
    %v9298 = vpack.c.b16 %v8958, %v8954
    %v9299 = vpack.c.b16 %v8959, %v8955
    %v9300 = vpack.c.b16 %v8960, %v8956
    %v9301 = vpack.c.b16 %v8965, %v8961
    %v9302 = vpack.c.b16 %v8966, %v8962
    %v9303 = vpack.c.b16 %v8967, %v8963
    %v9304 = vpack.c.b16 %v8968, %v8964
    %v9305 = vpack.c.b16 %v8973, %v8969
    %v9306 = vpack.c.b16 %v8974, %v8970
    %v9307 = vpack.c.b16 %v8975, %v8971
    %v9308 = vpack.c.b16 %v8976, %v8972
    %v9309 = vpack.c.b16 %v8981, %v8977
    %v9310 = vpack.c.b16 %v8982, %v8978
    %v9311 = vpack.c.b16 %v8983, %v8979
    %v9312 = vpack.c.b16 %v8984, %v8980
    %v9313 = vpack.c.b16 %v8989, %v8985
    %v9314 = vpack.c.b16 %v8990, %v8986
    %v9315 = vpack.c.b16 %v8991, %v8987
    %v9316 = vpack.c.b16 %v8992, %v8988
    %v9317 = vpack.c.b16 %v8997, %v8993
    %v9318 = vpack.c.b16 %v8998, %v8994
    %v9319 = vpack.c.b16 %v8999, %v8995
    %v9320 = vpack.c.b16 %v9000, %v8996
    %v9321 = vpack.c.b16 %v9005, %v9001
    %v9322 = vpack.c.b16 %v9006, %v9002
    %v9323 = vpack.c.b16 %v9007, %v9003
    %v9324 = vpack.c.b16 %v9008, %v9004
    %v9325 = vpack.c.b16 %v9013, %v9009
    %v9326 = vpack.c.b16 %v9014, %v9010
    %v9327 = vpack.c.b16 %v9015, %v9011
    %v9328 = vpack.c.b16 %v9016, %v9012
    %v9329 = vpack.c.b16 %v9021, %v9017
    %v9330 = vpack.c.b16 %v9022, %v9018
    %v9331 = vpack.c.b16 %v9023, %v9019
    %v9332 = vpack.c.b16 %v9024, %v9020
    %v9333 = vpack.c.b16 %v9029, %v9025
    %v9334 = vpack.c.b16 %v9030, %v9026
    %v9335 = vpack.c.b16 %v9031, %v9027
    %v9336 = vpack.c.b16 %v9032, %v9028
    %v9337 = vpack.c.b16 %v9037, %v9033
    %v9338 = vpack.c.b16 %v9038, %v9034
    %v9339 = vpack.c.b16 %v9039, %v9035
    %v9340 = vpack.c.b16 %v9040, %v9036
    %v9341 = vpack.c.b16 %v9045, %v9041
    %v9342 = vpack.c.b16 %v9046, %v9042
    %v9343 = vpack.c.b16 %v9047, %v9043
    %v9344 = vpack.c.b16 %v9048, %v9044
    %v9345 = vpack.c.b16 %v9053, %v9049
    %v9346 = vpack.c.b16 %v9054, %v9050
    %v9347 = vpack.c.b16 %v9055, %v9051
    %v9348 = vpack.c.b16 %v9056, %v9052
    %v9349 = vpack.c.b16 %v9061, %v9057
    %v9350 = vpack.c.b16 %v9062, %v9058
    %v9351 = vpack.c.b16 %v9063, %v9059
    %v9352 = vpack.c.b16 %v9064, %v9060
    %v9353 = vpack.c.b16 %v9069, %v9065
    %v9354 = vpack.c.b16 %v9070, %v9066
    %v9355 = vpack.c.b16 %v9071, %v9067
    %v9356 = vpack.c.b16 %v9072, %v9068
    %v9357 = vpack.c.b16 %v9077, %v9073
    %v9358 = vpack.c.b16 %v9078, %v9074
    %v9359 = vpack.c.b16 %v9079, %v9075
    %v9360 = vpack.c.b16 %v9080, %v9076
    %v9361 = vpack.c.b16 %v9085, %v9081
    %v9362 = vpack.c.b16 %v9086, %v9082
    %v9363 = vpack.c.b16 %v9087, %v9083
    %v9364 = vpack.c.b16 %v9088, %v9084
    %v9365 = vpack.c.b16 %v9093, %v9089
    %v9366 = vpack.c.b16 %v9094, %v9090
    %v9367 = vpack.c.b16 %v9095, %v9091
    %v9368 = vpack.c.b16 %v9096, %v9092
    %v9369 = vpack.c.b16 %v9101, %v9097
    %v9370 = vpack.c.b16 %v9102, %v9098
    %v9371 = vpack.c.b16 %v9103, %v9099
    %v9372 = vpack.c.b16 %v9104, %v9100
    %v9373 = vpack.c.b16 %v9109, %v9105
    %v9374 = vpack.c.b16 %v9110, %v9106
    %v9375 = vpack.c.b16 %v9111, %v9107
    %v9376 = vpack.c.b16 %v9112, %v9108
    %v9377 = vpack.c.b16 %v9117, %v9113
    %v9378 = vpack.c.b16 %v9118, %v9114
    %v9379 = vpack.c.b16 %v9119, %v9115
    %v9380 = vpack.c.b16 %v9120, %v9116
    %v9381 = vpack.c.b16 %v9125, %v9121
    %v9382 = vpack.c.b16 %v9126, %v9122
    %v9383 = vpack.c.b16 %v9127, %v9123
    %v9384 = vpack.c.b16 %v9128, %v9124
    %v9385 = vpack.c.b16 %v9133, %v9129
    %v9386 = vpack.c.b16 %v9134, %v9130
    %v9387 = vpack.c.b16 %v9135, %v9131
    %v9388 = vpack.c.b16 %v9136, %v9132
    %v9389 = vpack.c.b16 %v9141, %v9137
    %v9390 = vpack.c.b16 %v9142, %v9138
    %v9391 = vpack.c.b16 %v9143, %v9139
    %v9392 = vpack.c.b16 %v9144, %v9140
    %v9393 = vpack.c.b16 %v9149, %v9145
    %v9394 = vpack.c.b16 %v9150, %v9146
    %v9395 = vpack.c.b16 %v9151, %v9147
    %v9396 = vpack.c.b16 %v9152, %v9148
    %v9397 = vpack.c.b16 %v9157, %v9153
    %v9398 = vpack.c.b16 %v9158, %v9154
    %v9399 = vpack.c.b16 %v9159, %v9155
    %v9400 = vpack.c.b16 %v9160, %v9156
    %v9401 = vpack.c.b16 %v9165, %v9161
    %v9402 = vpack.c.b16 %v9166, %v9162
    %v9403 = vpack.c.b16 %v9167, %v9163
    %v9404 = vpack.c.b16 %v9168, %v9164
    %v9405 = vpack.c.b16 %v9173, %v9169
    %v9406 = vpack.c.b16 %v9174, %v9170
    %v9407 = vpack.c.b16 %v9175, %v9171
    %v9408 = vpack.c.b16 %v9176, %v9172
    %v9409 = vpack.c.b16 %v9181, %v9177
    %v9410 = vpack.c.b16 %v9182, %v9178
    %v9411 = vpack.c.b16 %v9183, %v9179
    %v9412 = vpack.c.b16 %v9184, %v9180
    %v9413 = vpack.c.b16 %v9189, %v9185
    %v9414 = vpack.c.b16 %v9190, %v9186
    %v9415 = vpack.c.b16 %v9191, %v9187
    %v9416 = vpack.c.b16 %v9192, %v9188
    %v9417 = vpack.c.b16 %v9197, %v9193
    %v9418 = vpack.c.b16 %v9198, %v9194
    %v9419 = vpack.c.b16 %v9199, %v9195
    %v9420 = vpack.c.b16 %v9200, %v9196
    %v9421 = vpack.c.b16 %v9205, %v9201
    %v9422 = vpack.c.b16 %v9206, %v9202
    %v9423 = vpack.c.b16 %v9207, %v9203
    %v9424 = vpack.c.b16 %v9208, %v9204
    %v9425 = vpack.c.b16 %v9213, %v9209
    %v9426 = vpack.c.b16 %v9214, %v9210
    %v9427 = vpack.c.b16 %v9215, %v9211
    %v9428 = vpack.c.b16 %v9216, %v9212
    %v9429 = vpack.c.b16 %v9221, %v9217
    %v9430 = vpack.c.b16 %v9222, %v9218
    %v9431 = vpack.c.b16 %v9223, %v9219
    %v9432 = vpack.c.b16 %v9224, %v9220
    %v9433 = vpack.c.b16 %v9229, %v9225
    %v9434 = vpack.c.b16 %v9230, %v9226
    %v9435 = vpack.c.b16 %v9231, %v9227
    %v9436 = vpack.c.b16 %v9232, %v9228
    %v9437 = vpack.c.b16 %v9237, %v9233
    %v9438 = vpack.c.b16 %v9238, %v9234
    %v9439 = vpack.c.b16 %v9239, %v9235
    %v9440 = vpack.c.b16 %v9240, %v9236
    %v9441 = vpack.c.b16 %v9245, %v9241
    %v9442 = vpack.c.b16 %v9246, %v9242
    %v9443 = vpack.c.b16 %v9247, %v9243
    %v9444 = vpack.c.b16 %v9248, %v9244
    %v9445 = vpack.c.b16 %v9253, %v9249
    %v9446 = vpack.c.b16 %v9254, %v9250
    %v9447 = vpack.c.b16 %v9255, %v9251
    %v9448 = vpack.c.b16 %v9256, %v9252
    %9641 = vmatprep.subr.bf16.mxu0 %v9286
    %9642 = vmatpush1.bf16.msra.mxu0 %v9285
    %9643 = vmatprep.subr.bf16.mxu0 %v9282
    %9644 = vmatpush1.bf16.msra.mxu0 %v9281
    %9645 = vmatprep.subr.bf16.mxu0 %v9278
    %9646 = vmatpush1.bf16.msra.mxu0 %v9277
    %9647 = vmatprep.subr.bf16.mxu0 %v9274
    %9648 = vmatpush1.bf16.msra.mxu0 %v9273
    %9649 = vmatprep.subr.bf16.mxu0 %v9270
    %9650 = vmatpush1.bf16.msra.mxu0 %v9269
    %9651 = vmatprep.subr.bf16.mxu0 %v9266
    %9652 = vmatpush1.bf16.msra.mxu0 %v9265
    %9653 = vmatprep.subr.bf16.mxu0 %v9262
    %9654 = vmatpush1.bf16.msra.mxu0 %v9261
    %9655 = vmatprep.subr.bf16.mxu0 %v9258
    %9656 = vmatpush1.bf16.msra.mxu0 %v9257
    %9657 = vmatprep.subr.bf16.mxu0 %v9318
    %9658 = vmatpush2.bf16.msra.mxu0 %v9317
    %9659 = vmatprep.subr.bf16.mxu0 %v9314
    %9660 = vmatpush2.bf16.msra.mxu0 %v9313
    %9661 = vmatprep.subr.bf16.mxu0 %v9310
    %9662 = vmatpush2.bf16.msra.mxu0 %v9309
    %9663 = vmatprep.subr.bf16.mxu0 %v9306
    %9664 = vmatpush2.bf16.msra.mxu0 %v9305
    %9665 = vmatprep.subr.bf16.mxu0 %v9302
    %9666 = vmatpush2.bf16.msra.mxu0 %v9301
    %9667 = vmatprep.subr.bf16.mxu0 %v9298
    %9668 = vmatpush2.bf16.msra.mxu0 %v9297
    %9669 = vmatprep.subr.bf16.mxu0 %v9294
    %9670 = vmatpush2.bf16.msra.mxu0 %v9293
    %9671 = vmatprep.subr.bf16.mxu0 %v9290
    %9672 = vmatpush2.bf16.msra.mxu0 %v9289
    %9673 = vmatprep.mubr.bf16.mxu0 %v8462
    %9674 = vmatmul.mubr.bf16.gmra.mxu0 %v8461
    %v9675 = vpop.f32.mrf.mxu0
    %v9676 = vadd.f32 %v8664, %v9675
    %v9677 = vpop.f32.mrf.mxu0
    %v9678 = vadd.f32 %v8668, %v9677
    %v9679 = vpop.f32.mrf.mxu0
    %v9680 = vpop.f32.mrf.mxu0
    %9681 = vdwg.mxu0
    %9682 = vmatprep.subr.bf16.mxu0 %v9350
    %9683 = vmatpush1.bf16.msra.mxu0 %v9349
    %9684 = vmatprep.subr.bf16.mxu0 %v9346
    %9685 = vmatpush1.bf16.msra.mxu0 %v9345
    %9686 = vmatprep.subr.bf16.mxu0 %v9342
    %9687 = vmatpush1.bf16.msra.mxu0 %v9341
    %9688 = vmatprep.subr.bf16.mxu0 %v9338
    %9689 = vmatpush1.bf16.msra.mxu0 %v9337
    %9690 = vmatprep.subr.bf16.mxu0 %v9334
    %9691 = vmatpush1.bf16.msra.mxu0 %v9333
    %9692 = vmatprep.subr.bf16.mxu0 %v9330
    %9693 = vmatpush1.bf16.msra.mxu0 %v9329
    %9694 = vmatprep.subr.bf16.mxu0 %v9326
    %9695 = vmatpush1.bf16.msra.mxu0 %v9325
    %9696 = vmatprep.subr.bf16.mxu0 %v9322
    %9697 = vmatpush1.bf16.msra.mxu0 %v9321
    %9698 = vmatprep.subr.bf16.mxu0 %v9382
    %9699 = vmatpush2.bf16.msra.mxu0 %v9381
    %9700 = vmatprep.subr.bf16.mxu0 %v9378
    %9701 = vmatpush2.bf16.msra.mxu0 %v9377
    %9702 = vmatprep.subr.bf16.mxu0 %v9374
    %9703 = vmatpush2.bf16.msra.mxu0 %v9373
    %9704 = vmatprep.subr.bf16.mxu0 %v9370
    %9705 = vmatpush2.bf16.msra.mxu0 %v9369
    %9706 = vmatprep.subr.bf16.mxu0 %v9366
    %9707 = vmatpush2.bf16.msra.mxu0 %v9365
    %9708 = vmatprep.subr.bf16.mxu0 %v9362
    %9709 = vmatpush2.bf16.msra.mxu0 %v9361
    %9710 = vmatprep.subr.bf16.mxu0 %v9358
    %9711 = vmatpush2.bf16.msra.mxu0 %v9357
    %9712 = vmatprep.subr.bf16.mxu0 %v9354
    %9713 = vmatpush2.bf16.msra.mxu0 %v9353
    %9714 = vmatprep.mubr.bf16.mxu0 %v8464
    %9715 = vmatmul.mubr.bf16.gmra.mxu0 %v8463
    %v9716 = vpop.f32.mrf.mxu0
    %v9717 = vadd.f32 %v9676, %v9716
    %v9718 = vpop.f32.mrf.mxu0
    %v9719 = vadd.f32 %v9678, %v9718
    %v9720 = vpop.f32.mrf.mxu0
    %v9721 = vpop.f32.mrf.mxu0
    %9722 = vdwg.mxu0
    %9723 = vmatprep.subr.bf16.mxu0 %v9414
    %9724 = vmatpush1.bf16.msra.mxu0 %v9413
    %9725 = vmatprep.subr.bf16.mxu0 %v9410
    %9726 = vmatpush1.bf16.msra.mxu0 %v9409
    %9727 = vmatprep.subr.bf16.mxu0 %v9406
    %9728 = vmatpush1.bf16.msra.mxu0 %v9405
    %9729 = vmatprep.subr.bf16.mxu0 %v9402
    %9730 = vmatpush1.bf16.msra.mxu0 %v9401
    %9731 = vmatprep.subr.bf16.mxu0 %v9398
    %9732 = vmatpush1.bf16.msra.mxu0 %v9397
    %9733 = vmatprep.subr.bf16.mxu0 %v9394
    %9734 = vmatpush1.bf16.msra.mxu0 %v9393
    %9735 = vmatprep.subr.bf16.mxu0 %v9390
    %9736 = vmatpush1.bf16.msra.mxu0 %v9389
    %9737 = vmatprep.subr.bf16.mxu0 %v9386
    %9738 = vmatpush1.bf16.msra.mxu0 %v9385
    %9739 = vmatprep.subr.bf16.mxu0 %v9446
    %9740 = vmatpush2.bf16.msra.mxu0 %v9445
    %9741 = vmatprep.subr.bf16.mxu0 %v9442
    %9742 = vmatpush2.bf16.msra.mxu0 %v9441
    %9743 = vmatprep.subr.bf16.mxu0 %v9438
    %9744 = vmatpush2.bf16.msra.mxu0 %v9437
    %9745 = vmatprep.subr.bf16.mxu0 %v9434
    %9746 = vmatpush2.bf16.msra.mxu0 %v9433
    %9747 = vmatprep.subr.bf16.mxu0 %v9430
    %9748 = vmatpush2.bf16.msra.mxu0 %v9429
    %9749 = vmatprep.subr.bf16.mxu0 %v9426
    %9750 = vmatpush2.bf16.msra.mxu0 %v9425
    %9751 = vmatprep.subr.bf16.mxu0 %v9422
    %9752 = vmatpush2.bf16.msra.mxu0 %v9421
    %9753 = vmatprep.subr.bf16.mxu0 %v9418
    %9754 = vmatpush2.bf16.msra.mxu0 %v9417
    %9755 = vmatprep.mubr.bf16.mxu0 %v8466
    %9756 = vmatmul.mubr.bf16.gmra.mxu0 %v8465
    %v9757 = vpop.f32.mrf.mxu0
    %v9758 = vadd.f32 %v9717, %v9757
    %v9759 = vpop.f32.mrf.mxu0
    %v9760 = vadd.f32 %v9719, %v9759
    %v9761 = vpop.f32.mrf.mxu0
    %v9762 = vpop.f32.mrf.mxu0
    %9763 = vdwg.mxu0
    %9764 = vmatprep.subr.bf16.mxu0 %v9288
    %9765 = vmatpush1.bf16.msra.mxu0 %v9287
    %9766 = vmatprep.subr.bf16.mxu0 %v9284
    %9767 = vmatpush1.bf16.msra.mxu0 %v9283
    %9768 = vmatprep.subr.bf16.mxu0 %v9280
    %9769 = vmatpush1.bf16.msra.mxu0 %v9279
    %9770 = vmatprep.subr.bf16.mxu0 %v9276
    %9771 = vmatpush1.bf16.msra.mxu0 %v9275
    %9772 = vmatprep.subr.bf16.mxu0 %v9272
    %9773 = vmatpush1.bf16.msra.mxu0 %v9271
    %9774 = vmatprep.subr.bf16.mxu0 %v9268
    %9775 = vmatpush1.bf16.msra.mxu0 %v9267
    %9776 = vmatprep.subr.bf16.mxu0 %v9264
    %9777 = vmatpush1.bf16.msra.mxu0 %v9263
    %9778 = vmatprep.subr.bf16.mxu0 %v9260
    %9779 = vmatpush1.bf16.msra.mxu0 %v9259
    %9780 = vmatprep.subr.bf16.mxu0 %v9320
    %9781 = vmatpush2.bf16.msra.mxu0 %v9319
    %9782 = vmatprep.subr.bf16.mxu0 %v9316
    %9783 = vmatpush2.bf16.msra.mxu0 %v9315
    %9784 = vmatprep.subr.bf16.mxu0 %v9312
    %9785 = vmatpush2.bf16.msra.mxu0 %v9311
    %9786 = vmatprep.subr.bf16.mxu0 %v9308
    %9787 = vmatpush2.bf16.msra.mxu0 %v9307
    %9788 = vmatprep.subr.bf16.mxu0 %v9304
    %9789 = vmatpush2.bf16.msra.mxu0 %v9303
    %9790 = vmatprep.subr.bf16.mxu0 %v9300
    %9791 = vmatpush2.bf16.msra.mxu0 %v9299
    %9792 = vmatprep.subr.bf16.mxu0 %v9296
    %9793 = vmatpush2.bf16.msra.mxu0 %v9295
    %9794 = vmatprep.subr.bf16.mxu0 %v9292
    %9795 = vmatpush2.bf16.msra.mxu0 %v9291
    %9796 = vmatprep.mubr.bf16.mxu0 %v8462
    %9797 = vmatmul.mubr.bf16.gmra.mxu0 %v8461
    %v9798 = vpop.f32.mrf.mxu0
    %v9799 = vadd.f32 %v8672, %v9798
    %v9800 = vpop.f32.mrf.mxu0
    %v9801 = vadd.f32 %v8676, %v9800
    %v9802 = vpop.f32.mrf.mxu0
    %v9803 = vpop.f32.mrf.mxu0
    %9804 = vdwg.mxu0
    %9805 = vmatprep.subr.bf16.mxu0 %v9352
    %9806 = vmatpush1.bf16.msra.mxu0 %v9351
    %9807 = vmatprep.subr.bf16.mxu0 %v9348
    %9808 = vmatpush1.bf16.msra.mxu0 %v9347
    %9809 = vmatprep.subr.bf16.mxu0 %v9344
    %9810 = vmatpush1.bf16.msra.mxu0 %v9343
    %9811 = vmatprep.subr.bf16.mxu0 %v9340
    %9812 = vmatpush1.bf16.msra.mxu0 %v9339
    %9813 = vmatprep.subr.bf16.mxu0 %v9336
    %9814 = vmatpush1.bf16.msra.mxu0 %v9335
    %9815 = vmatprep.subr.bf16.mxu0 %v9332
    %9816 = vmatpush1.bf16.msra.mxu0 %v9331
    %9817 = vmatprep.subr.bf16.mxu0 %v9328
    %9818 = vmatpush1.bf16.msra.mxu0 %v9327
    %9819 = vmatprep.subr.bf16.mxu0 %v9324
    %9820 = vmatpush1.bf16.msra.mxu0 %v9323
    %9821 = vmatprep.subr.bf16.mxu0 %v9384
    %9822 = vmatpush2.bf16.msra.mxu0 %v9383
    %9823 = vmatprep.subr.bf16.mxu0 %v9380
    %9824 = vmatpush2.bf16.msra.mxu0 %v9379
    %9825 = vmatprep.subr.bf16.mxu0 %v9376
    %9826 = vmatpush2.bf16.msra.mxu0 %v9375
    %9827 = vmatprep.subr.bf16.mxu0 %v9372
    %9828 = vmatpush2.bf16.msra.mxu0 %v9371
    %9829 = vmatprep.subr.bf16.mxu0 %v9368
    %9830 = vmatpush2.bf16.msra.mxu0 %v9367
    %9831 = vmatprep.subr.bf16.mxu0 %v9364
    %9832 = vmatpush2.bf16.msra.mxu0 %v9363
    %9833 = vmatprep.subr.bf16.mxu0 %v9360
    %9834 = vmatpush2.bf16.msra.mxu0 %v9359
    %9835 = vmatprep.subr.bf16.mxu0 %v9356
    %9836 = vmatpush2.bf16.msra.mxu0 %v9355
    %9837 = vmatprep.mubr.bf16.mxu0 %v8464
    %9838 = vmatmul.mubr.bf16.gmra.mxu0 %v8463
    %v9839 = vpop.f32.mrf.mxu0
    %v9840 = vadd.f32 %v9799, %v9839
    %v9841 = vpop.f32.mrf.mxu0
    %v9842 = vadd.f32 %v9801, %v9841
    %v9843 = vpop.f32.mrf.mxu0
    %v9844 = vpop.f32.mrf.mxu0
    %9845 = vdwg.mxu0
    %9846 = vmatprep.subr.bf16.mxu0 %v9416
    %9847 = vmatpush1.bf16.msra.mxu0 %v9415
    %9848 = vmatprep.subr.bf16.mxu0 %v9412
    %9849 = vmatpush1.bf16.msra.mxu0 %v9411
    %9850 = vmatprep.subr.bf16.mxu0 %v9408
    %9851 = vmatpush1.bf16.msra.mxu0 %v9407
    %9852 = vmatprep.subr.bf16.mxu0 %v9404
    %9853 = vmatpush1.bf16.msra.mxu0 %v9403
    %9854 = vmatprep.subr.bf16.mxu0 %v9400
    %9855 = vmatpush1.bf16.msra.mxu0 %v9399
    %9856 = vmatprep.subr.bf16.mxu0 %v9396
    %9857 = vmatpush1.bf16.msra.mxu0 %v9395
    %9858 = vmatprep.subr.bf16.mxu0 %v9392
    %9859 = vmatpush1.bf16.msra.mxu0 %v9391
    %9860 = vmatprep.subr.bf16.mxu0 %v9388
    %9861 = vmatpush1.bf16.msra.mxu0 %v9387
    %9862 = vmatprep.subr.bf16.mxu0 %v9448
    %9863 = vmatpush2.bf16.msra.mxu0 %v9447
    %9864 = vmatprep.subr.bf16.mxu0 %v9444
    %9865 = vmatpush2.bf16.msra.mxu0 %v9443
    %9866 = vmatprep.subr.bf16.mxu0 %v9440
    %9867 = vmatpush2.bf16.msra.mxu0 %v9439
    %9868 = vmatprep.subr.bf16.mxu0 %v9436
    %9869 = vmatpush2.bf16.msra.mxu0 %v9435
    %9870 = vmatprep.subr.bf16.mxu0 %v9432
    %9871 = vmatpush2.bf16.msra.mxu0 %v9431
    %9872 = vmatprep.subr.bf16.mxu0 %v9428
    %9873 = vmatpush2.bf16.msra.mxu0 %v9427
    %9874 = vmatprep.subr.bf16.mxu0 %v9424
    %9875 = vmatpush2.bf16.msra.mxu0 %v9423
    %9876 = vmatprep.subr.bf16.mxu0 %v9420
    %9877 = vmatpush2.bf16.msra.mxu0 %v9419
    %9878 = vmatprep.mubr.bf16.mxu0 %v8466
    %9879 = vmatmul.mubr.bf16.gmra.mxu0 %v8465
    %v9880 = vpop.f32.mrf.mxu0
    %v9881 = vadd.f32 %v9840, %v9880
    %v9882 = vpop.f32.mrf.mxu0
    %v9883 = vadd.f32 %v9842, %v9882
    %v9884 = vpop.f32.mrf.mxu0
    %v9885 = vpop.f32.mrf.mxu0
    %9886 = vdwg.mxu0
    %v9887 = vmax.f32 %v9758, 0.0
    %v9888 = vmax.f32 %v9760, 0.0
    %v9889 = vmax.f32 %v9881, 0.0
    %v9890 = vmax.f32 %v9883, 0.0
    %v9891 = vmul.f32 %v9887, %v9887
    %v9892 = vmul.f32 %v9888, %v9888
    %v9893 = vmul.f32 %v9889, %v9889
    %v9894 = vmul.f32 %v9890, %v9890
    %v9895 = vsel %vm6906, %v9891, 0.0
    %v9896 = vsel %vm6906, %v9892, 0.0
    %v9897 = vadd.f32 %v9895, %v9896
    %v9898 = vsel %vm6906, %v9893, 0.0
    %v9899 = vadd.f32 %v9897, %v9898
    %v9900 = vsel %vm6906, %v9894, 0.0
    %v9901 = vadd.f32 %v9899, %v9900
    %9902 = vadd.xlane.f32.xlu0 %v9901
    %v9903 = vpop.xlane.xlu0 %9902
    %v9904 = vrsqrt.pop %v9903
    %v9905 = vmul.f32 %v9903, %v9904
    %vm9906 = vcmp.eq.f32.partialorder %v9903, inf
    %v9907 = vsel %vm9906, %v9903, %v9905
    %vm9908 = vcmp.eq.f32.partialorder %v9903, 0.0
    %v9909 = vand.u32 %v9903, 2147483648
    %v9910 = vsel %vm9908, %v9909, %v9907
    %v9911 = vmax.f32 %v9910, 1e-12
    %v9912 = vmul.f32 %v9911, 2.0
    %v9913 = vrsqrt.pop %v9912
    %v9914 = vmul.f32 %v9887, %v9913
    %v9915 = vmul.f32 %v9888, %v9913
    %v9916 = vmul.f32 %v9889, %v9913
    %v9917 = vmul.f32 %v9890, %v9913
    %v9922 = vcombine.low %v9914, %v9915
    %v9923 = vcombine.low %v9916, %v9917
    %v9925 = vunpack.c.l.s4 1983009808
    %v9926 = vunpack.c.0.s8 %v9925
    %v9927 = vlaneseq
    %v9928 = vshrl.u32 %v9927, 7
    %v9929 = vsub.s32 %v9926, %v9928
    %v9930 = vrot.slane %v9922, %v9929
    %v9932 = vunpack.c.l.s4 1983009808
    %v9933 = vunpack.c.0.s8 %v9932
    %v9934 = vlaneseq
    %v9935 = vshrl.u32 %v9934, 7
    %v9936 = vsub.s32 %v9933, %v9935
    %v9937 = vrot.slane %v9923, %v9936
    %v9938 = vcombine.low %v9930, %v9937
    %9940 = vst [vmem:[#allocation21] sm:$0xff] %v9938
    %v9941 = vld [vmem:[%s13] sm:$0xff]
    %v9942 = vld [vmem:[%s13 + $0x8] sm:$0xff]
    %v9943 = vld [vmem:[%s13 + $0x10] sm:$0xff]
    %v9944 = vld [vmem:[%s13 + $0x18] sm:$0xff]
    %v9945 = vld [vmem:[%s13 + $0x20] sm:$0xff]
    %v9946 = vld [vmem:[%s13 + $0x28] sm:$0xff]
    %v9947 = vld [vmem:[%s13 + $0x30] sm:$0xff]
    %v9948 = vld [vmem:[%s13 + $0x38] sm:$0xff]
    %v9949 = vld [vmem:[%s13 + $0x40] sm:$0xff]
    %v9950 = vld [vmem:[%s13 + $0x48] sm:$0xff]
    %v9951 = vld [vmem:[%s13 + $0x50] sm:$0xff]
    %v9952 = vld [vmem:[%s13 + $0x58] sm:$0xff]
    %v9953 = vld [vmem:[%s13 + $0x60] sm:$0xff]
    %v9954 = vld [vmem:[%s13 + $0x68] sm:$0xff]
    %v9955 = vld [vmem:[%s13 + $0x70] sm:$0xff]
    %v9956 = vld [vmem:[%s13 + $0x78] sm:$0xff]
    %v9957 = vld [vmem:[%s13 + $0x80] sm:$0xff]
    %v9958 = vld [vmem:[%s13 + $0x88] sm:$0xff]
    %v9959 = vld [vmem:[%s13 + $0x90] sm:$0xff]
    %v9960 = vld [vmem:[%s13 + $0x98] sm:$0xff]
    %v9961 = vld [vmem:[%s13 + $0xa0] sm:$0xff]
    %v9962 = vld [vmem:[%s13 + $0xa8] sm:$0xff]
    %v9963 = vld [vmem:[%s13 + $0xb0] sm:$0xff]
    %v9964 = vld [vmem:[%s13 + $0xb8] sm:$0xff]
    %v9965 = vld [vmem:[%s13 + $0xc0] sm:$0xff]
    %v9966 = vld [vmem:[%s13 + $0xc8] sm:$0xff]
    %v9967 = vld [vmem:[%s13 + $0xd0] sm:$0xff]
    %v9968 = vld [vmem:[%s13 + $0xd8] sm:$0xff]
    %v9969 = vld [vmem:[%s13 + $0xe0] sm:$0xff]
    %v9970 = vld [vmem:[%s13 + $0xe8] sm:$0xff]
    %v9971 = vld [vmem:[%s13 + $0xf0] sm:$0xff]
    %v9972 = vld [vmem:[%s13 + $0xf8] sm:$0xff]
    %v9973 = vld [vmem:[%s13 + $0x100] sm:$0xff]
    %v9974 = vld [vmem:[%s13 + $0x108] sm:$0xff]
    %v9975 = vld [vmem:[%s13 + $0x110] sm:$0xff]
    %v9976 = vld [vmem:[%s13 + $0x118] sm:$0xff]
    %v9977 = vld [vmem:[%s13 + $0x120] sm:$0xff]
    %v9978 = vld [vmem:[%s13 + $0x128] sm:$0xff]
    %v9979 = vld [vmem:[%s13 + $0x130] sm:$0xff]
    %v9980 = vld [vmem:[%s13 + $0x138] sm:$0xff]
    %v9981 = vld [vmem:[%s13 + $0x140] sm:$0xff]
    %v9982 = vld [vmem:[%s13 + $0x148] sm:$0xff]
    %v9983 = vld [vmem:[%s13 + $0x150] sm:$0xff]
    %v9984 = vld [vmem:[%s13 + $0x158] sm:$0xff]
    %v9985 = vld [vmem:[%s13 + $0x160] sm:$0xff]
    %v9986 = vld [vmem:[%s13 + $0x168] sm:$0xff]
    %v9987 = vld [vmem:[%s13 + $0x170] sm:$0xff]
    %v9988 = vld [vmem:[%s13 + $0x178] sm:$0xff]
    %v9989 = vld [vmem:[%s13 + $0x180] sm:$0xff]
    %v9990 = vld [vmem:[%s13 + $0x188] sm:$0xff]
    %v9991 = vld [vmem:[%s13 + $0x190] sm:$0xff]
    %v9992 = vld [vmem:[%s13 + $0x198] sm:$0xff]
    %v9993 = vld [vmem:[%s13 + $0x1a0] sm:$0xff]
    %v9994 = vld [vmem:[%s13 + $0x1a8] sm:$0xff]
    %v9995 = vld [vmem:[%s13 + $0x1b0] sm:$0xff]
    %v9996 = vld [vmem:[%s13 + $0x1b8] sm:$0xff]
    %v9997 = vld [vmem:[%s13 + $0x1c0] sm:$0xff]
    %v9998 = vld [vmem:[%s13 + $0x1c8] sm:$0xff]
    %v9999 = vld [vmem:[%s13 + $0x1d0] sm:$0xff]
    %v10000 = vld [vmem:[%s13 + $0x1d8] sm:$0xff]
    %v10001 = vld [vmem:[%s13 + $0x1e0] sm:$0xff]
    %v10002 = vld [vmem:[%s13 + $0x1e8] sm:$0xff]
    %v10003 = vld [vmem:[%s13 + $0x1f0] sm:$0xff]
    %v10004 = vld [vmem:[%s13 + $0x1f8] sm:$0xff]
    %v10005 = vld [vmem:[#allocation19] sm:$0x1]
    %v10007 = vlaneseq
    %v10008 = vshrl.u32 %v10007, 7
    %v10009 = vsub.s32 0, %v10008
    %v10010 = vrot.slane %v10005, %v10009
    %10012 = vmatprep.subr.mxu0 0.0
    %10013 = vmatpush1.msra.mxu0 %v9956
    %10014 = vmatprep.subr.mxu0 0.0
    %10015 = vmatpush1.msra.mxu0 %v9955
    %10016 = vmatprep.subr.mxu0 0.0
    %10017 = vmatpush1.msra.mxu0 %v9954
    %10018 = vmatprep.subr.mxu0 0.0
    %10019 = vmatpush1.msra.mxu0 %v9953
    %10020 = vmatprep.subr.mxu0 0.0
    %10021 = vmatpush1.msra.mxu0 %v9952
    %10022 = vmatprep.subr.mxu0 0.0
    %10023 = vmatpush1.msra.mxu0 %v9951
    %10024 = vmatprep.subr.mxu0 0.0
    %10025 = vmatpush1.msra.mxu0 %v9950
    %10026 = vmatprep.subr.mxu0 0.0
    %10027 = vmatpush1.msra.mxu0 %v9949
    %10028 = vmatprep.subr.mxu0 0.0
    %10029 = vmatpush1.msra.mxu0 %v9948
    %10030 = vmatprep.subr.mxu0 0.0
    %10031 = vmatpush1.msra.mxu0 %v9947
    %10032 = vmatprep.subr.mxu0 0.0
    %10033 = vmatpush1.msra.mxu0 %v9946
    %10034 = vmatprep.subr.mxu0 0.0
    %10035 = vmatpush1.msra.mxu0 %v9945
    %10036 = vmatprep.subr.mxu0 0.0
    %10037 = vmatpush1.msra.mxu0 %v9944
    %10038 = vmatprep.subr.mxu0 0.0
    %10039 = vmatpush1.msra.mxu0 %v9943
    %10040 = vmatprep.subr.mxu0 0.0
    %10041 = vmatpush1.msra.mxu0 %v9942
    %10042 = vmatprep.subr.mxu0 0.0
    %10043 = vmatpush1.msra.mxu0 %v9941
    %10044 = vmatprep.subr.mxu0 0.0
    %10045 = vmatpush2.msra.mxu0 %v9972
    %10046 = vmatprep.subr.mxu0 0.0
    %10047 = vmatpush2.msra.mxu0 %v9971
    %10048 = vmatprep.subr.mxu0 0.0
    %10049 = vmatpush2.msra.mxu0 %v9970
    %10050 = vmatprep.subr.mxu0 0.0
    %10051 = vmatpush2.msra.mxu0 %v9969
    %10052 = vmatprep.subr.mxu0 0.0
    %10053 = vmatpush2.msra.mxu0 %v9968
    %10054 = vmatprep.subr.mxu0 0.0
    %10055 = vmatpush2.msra.mxu0 %v9967
    %10056 = vmatprep.subr.mxu0 0.0
    %10057 = vmatpush2.msra.mxu0 %v9966
    %10058 = vmatprep.subr.mxu0 0.0
    %10059 = vmatpush2.msra.mxu0 %v9965
    %10060 = vmatprep.subr.mxu0 0.0
    %10061 = vmatpush2.msra.mxu0 %v9964
    %10062 = vmatprep.subr.mxu0 0.0
    %10063 = vmatpush2.msra.mxu0 %v9963
    %10064 = vmatprep.subr.mxu0 0.0
    %10065 = vmatpush2.msra.mxu0 %v9962
    %10066 = vmatprep.subr.mxu0 0.0
    %10067 = vmatpush2.msra.mxu0 %v9961
    %10068 = vmatprep.subr.mxu0 0.0
    %10069 = vmatpush2.msra.mxu0 %v9960
    %10070 = vmatprep.subr.mxu0 0.0
    %10071 = vmatpush2.msra.mxu0 %v9959
    %10072 = vmatprep.subr.mxu0 0.0
    %10073 = vmatpush2.msra.mxu0 %v9958
    %10074 = vmatprep.subr.mxu0 0.0
    %10075 = vmatpush2.msra.mxu0 %v9957
    %10076 = vmatprep.mubr.f32.mxu0 %v9915
    %10077 = vmatmul.mubr.f32.gmra.mxu0 %v9914
    %v10078 = vpop.f32.mrf.mxu0
    %v10079 = vadd.f32 %v10010, %v10078
    %v10080 = vpop.f32.mrf.mxu0
    %10081 = vdwg.mxu0
    %10082 = vmatprep.subr.mxu0 0.0
    %10083 = vmatpush1.msra.mxu0 %v9988
    %10084 = vmatprep.subr.mxu0 0.0
    %10085 = vmatpush1.msra.mxu0 %v9987
    %10086 = vmatprep.subr.mxu0 0.0
    %10087 = vmatpush1.msra.mxu0 %v9986
    %10088 = vmatprep.subr.mxu0 0.0
    %10089 = vmatpush1.msra.mxu0 %v9985
    %10090 = vmatprep.subr.mxu0 0.0
    %10091 = vmatpush1.msra.mxu0 %v9984
    %10092 = vmatprep.subr.mxu0 0.0
    %10093 = vmatpush1.msra.mxu0 %v9983
    %10094 = vmatprep.subr.mxu0 0.0
    %10095 = vmatpush1.msra.mxu0 %v9982
    %10096 = vmatprep.subr.mxu0 0.0
    %10097 = vmatpush1.msra.mxu0 %v9981
    %10098 = vmatprep.subr.mxu0 0.0
    %10099 = vmatpush1.msra.mxu0 %v9980
    %10100 = vmatprep.subr.mxu0 0.0
    %10101 = vmatpush1.msra.mxu0 %v9979
    %10102 = vmatprep.subr.mxu0 0.0
    %10103 = vmatpush1.msra.mxu0 %v9978
    %10104 = vmatprep.subr.mxu0 0.0
    %10105 = vmatpush1.msra.mxu0 %v9977
    %10106 = vmatprep.subr.mxu0 0.0
    %10107 = vmatpush1.msra.mxu0 %v9976
    %10108 = vmatprep.subr.mxu0 0.0
    %10109 = vmatpush1.msra.mxu0 %v9975
    %10110 = vmatprep.subr.mxu0 0.0
    %10111 = vmatpush1.msra.mxu0 %v9974
    %10112 = vmatprep.subr.mxu0 0.0
    %10113 = vmatpush1.msra.mxu0 %v9973
    %10114 = vmatprep.subr.mxu0 0.0
    %10115 = vmatpush2.msra.mxu0 %v10004
    %10116 = vmatprep.subr.mxu0 0.0
    %10117 = vmatpush2.msra.mxu0 %v10003
    %10118 = vmatprep.subr.mxu0 0.0
    %10119 = vmatpush2.msra.mxu0 %v10002
    %10120 = vmatprep.subr.mxu0 0.0
    %10121 = vmatpush2.msra.mxu0 %v10001
    %10122 = vmatprep.subr.mxu0 0.0
    %10123 = vmatpush2.msra.mxu0 %v10000
    %10124 = vmatprep.subr.mxu0 0.0
    %10125 = vmatpush2.msra.mxu0 %v9999
    %10126 = vmatprep.subr.mxu0 0.0
    %10127 = vmatpush2.msra.mxu0 %v9998
    %10128 = vmatprep.subr.mxu0 0.0
    %10129 = vmatpush2.msra.mxu0 %v9997
    %10130 = vmatprep.subr.mxu0 0.0
    %10131 = vmatpush2.msra.mxu0 %v9996
    %10132 = vmatprep.subr.mxu0 0.0
    %10133 = vmatpush2.msra.mxu0 %v9995
    %10134 = vmatprep.subr.mxu0 0.0
    %10135 = vmatpush2.msra.mxu0 %v9994
    %10136 = vmatprep.subr.mxu0 0.0
    %10137 = vmatpush2.msra.mxu0 %v9993
    %10138 = vmatprep.subr.mxu0 0.0
    %10139 = vmatpush2.msra.mxu0 %v9992
    %10140 = vmatprep.subr.mxu0 0.0
    %10141 = vmatpush2.msra.mxu0 %v9991
    %10142 = vmatprep.subr.mxu0 0.0
    %10143 = vmatpush2.msra.mxu0 %v9990
    %10144 = vmatprep.subr.mxu0 0.0
    %10145 = vmatpush2.msra.mxu0 %v9989
    %10146 = vmatprep.mubr.f32.mxu0 %v9917
    %10147 = vmatmul.mubr.f32.gmra.mxu0 %v9916
    %v10148 = vpop.f32.mrf.mxu0
    %v10149 = vadd.f32 %v10079, %v10148
    %v10150 = vpop.f32.mrf.mxu0
    %10151 = vdwg.mxu0
    %vm10152 = vcmask 9216
    %10153 = vst.msk [vmem:[#allocation20] sm:$0x3] %vm10152, %v10149
    // Predicated region
    $region106: #{tpu_custom_call.1} parent=1 // pred_check
      _
    $region107: #{tpu_custom_call.1} parent=1 // pred_check_branch
      %10155 = sbr.rel (0) target = $region109
    $region108: #{tpu_custom_call.1} parent=1 // pred_region
      %s10157 = ssub.s32 32, 32
      %10158 = vsyncadd [#allocation4], %s10157
      %s10160 = sshll.u32 [#allocation20], 4
      %s10161 = int_to_ptr.vmem [resolvable:$true] %s10160
      %10163 = dma.vmem_to_hbm [thread:$0]  %s10161, 32, %s15, [#allocation4]
    $region109: #{tpu_custom_call.1} parent=1 // pred_fallthru
      _
    // Predicated region
    $region110: #{tpu_custom_call.1} parent=1 // pred_check
      _
    $region111: #{tpu_custom_call.1} parent=1 // pred_check_branch
      %10165 = sbr.rel (0) target = $region113
    $region112: #{tpu_custom_call.1} parent=1 // pred_region
      %s10167 = ssub.s32 128, 128
      %10168 = vsyncadd [#allocation22], %s10167
      %s10170 = sshll.u32 [#allocation21], 4
      %s10171 = int_to_ptr.vmem [resolvable:$true] %s10170
      %10173 = dma.vmem_to_hbm [thread:$0]  %s10171, 128, %s16, [#allocation22]
    $region113: #{tpu_custom_call.1} parent=1 // pred_fallthru
      _
    // Predicated region
    $region114: #{tpu_custom_call.1} parent=1 // pred_check
      _
    $region115: #{tpu_custom_call.1} parent=1 // pred_check_branch
      %10175 = sbr.rel (0) target = $region117
    $region116: #{tpu_custom_call.1} parent=1 // pred_region
      %10176 = dma.done [#allocation4], 32
    $region117: #{tpu_custom_call.1} parent=1 // pred_fallthru
      _
    // Predicated region
    $region118: #{tpu_custom_call.1} parent=1 // pred_check
      _
    $region119: #{tpu_custom_call.1} parent=1 // pred_check_branch
      %10178 = sbr.rel (0) target = $region121
    $region120: #{tpu_custom_call.1} parent=1 // pred_region
      %10179 = dma.done [#allocation22], 128
    $region121: #{tpu_custom_call.1} parent=1 // pred_fallthru
      _
    %10180 = vsyncpa [#allocation3], 1
    %10181 = vsyncpa [#allocation6], 1
    %10182 = vsyncpa [#allocation9], 1
    %10183 = vsyncpa [#allocation12], 1
    %10184 = vsyncpa [#allocation15], 1
    %10185 = vsyncpa [#allocation18], 1
    %10186 = vsyncpa [#allocation4], 1
    %10187 = vsyncpa [#allocation22], 1

</llo_original>
